<compile_context>
chip_gen: v5e
topology: v5e:2x2
jax: 0.10.0
libtpu: 0.0.40
codegen_flags: <defaults>
</compile_context>

<pallas_src>
import functools
import math

import jax
import jax.numpy as jnp
from jax import lax
from jax.experimental import pallas as pl
from jax.experimental.pallas import tpu as pltpu

LAYER_SIZE = 7
BN_EPS = 1e-5
VMEM_LIMIT = 32 * 1024 * 1024   # explicit scoped-VMEM cap (safe on v5e/v6e/v7x)


def _round_up(x, m):
    return ((x + m - 1) // m) * m


def _out_spatial(d, k=3, stride=2, pad=1):
    return (d + 2 * pad - k) // stride + 1


def _live_taps(size):
    # k=3, stride=2, pad=1: kernel taps that read real (non zero-padding) data for at least one
    # output position along a dimension of this size.
    if size == 1:
        return (1,)
    if size == 2:
        return (1, 2)
    return (0, 1, 2)


def _multi_tensorcore():
    """Best-effort: True when each JAX device exposes >1 TensorCore (v4/v5p megacore, v7x).

    Only gates a perf decision (2-way leading grid split); a wrong answer stays correct.
    """
    try:
        kind = jax.devices()[0].device_kind.lower().replace(" ", "")
        if ("lite" in kind) or ("v5e" in kind) or ("v6e" in kind):
            return False
        return any(tag in kind for tag in ("v4", "v5p", "v5", "7"))
    except Exception:
        return False


# ---------------------------------------------------------------------------
# Kernel A: partial-conv matmul + renorm + (optional) BatchNorm + ReLU (single K block)
#   grid = (n_lead,)  -- leading "parallel" row split only for the no-BN layer on multi-TC chips
# ---------------------------------------------------------------------------
def pconv_kernel(xp_ref, w_ref, inv_ref, out_ref, *, p_valid, apply_bn, eps=BN_EPS):
    acc = jnp.dot(xp_ref[...], w_ref[...], preferred_element_type=jnp.float32)
    y = acc * inv_ref[...]                     # (tp, 1) masked reciprocal of the mask-window sum
    if apply_bn:
        # BatchNorm3d, training mode; all rows of this block are valid (no row padding).
        inv_n = 1.0 / float(p_valid)
        mean = jnp.sum(y, axis=0, keepdims=True) * inv_n
        centered = y - mean
        var = jnp.sum(centered * centered, axis=0, keepdims=True) * inv_n
        y = centered * lax.rsqrt(var + eps)    # weight=1, bias=0
    out_ref[...] = jnp.maximum(y, 0.0)         # ReLU


# ---------------------------------------------------------------------------
# Kernel B: fused tail -- first 1^3-output conv layer, then n_center center-tap layers, then head
#   refs = (xp, inv, w_first, w_center_0, ..., w_center_{n-1}, lin, logits_out)
# ---------------------------------------------------------------------------
def fused_tail_kernel(*refs, n_center, bn_flags, center_inv_scales,
                      p_valid, p_full, eps=BN_EPS):
    xp_ref, inv_ref, w0_ref = refs[0], refs[1], refs[2]
    wc_refs = refs[3:3 + n_center]
    lin_ref = refs[3 + n_center]
    logit_ref = refs[4 + n_center]

    inv_n = 1.0 / float(p_valid)

    def bn_relu(y, apply_bn):
        if apply_bn:
            mean = jnp.sum(y, axis=0, keepdims=True) * inv_n
            centered = y - mean
            if p_full:
                var = jnp.sum(centered * centered, axis=0, keepdims=True) * inv_n
            else:
                # padded rows of pre-BN y are exactly zero, so the unmasked sums are correct
                var = jnp.maximum(
                    jnp.sum(y * y, axis=0, keepdims=True) * inv_n - mean * mean, 0.0)
            y = centered * lax.rsqrt(var + eps)
        return jnp.maximum(y, 0.0)

    inv0 = inv_ref[...]                                      # (P_pad, 1); 0 on holes & padded rows
    acc = jnp.dot(xp_ref[...], w0_ref[...], preferred_element_type=jnp.float32)
    y = bn_relu(acc * inv0, bn_flags[0])
    m = (inv0 > 0.0).astype(jnp.float32)                     # single-channel mask for next layers

    for i in range(n_center):                                # 1^3 input: only the center tap
        xm = (y * m).astype(jnp.bfloat16)
        acc = jnp.dot(xm, wc_refs[i][...], preferred_element_type=jnp.float32)
        y = bn_relu(acc * (m * center_inv_scales[i]), bn_flags[1 + i])

    # spatial extent is 1 -> each valid row is already the pooled feature of one sample
    logits = jnp.dot(y.astype(jnp.bfloat16), lin_ref[...], preferred_element_type=jnp.float32)
    logit_ref[...] = logits


# ---------------------------------------------------------------------------
# Standalone head kernel (general fallback when the last needed layer's spatial > 1)
# ---------------------------------------------------------------------------
def head_kernel(x_ref, w_ref, logit_ref, prob_ref):
    x = x_ref[...]                                 # (N, S, C)
    pooled = jnp.mean(x, axis=1)                   # mean over D,H,W
    logits = jnp.dot(pooled, w_ref[...], preferred_element_type=jnp.float32)
    logit_ref[...] = logits
    prob_ref[...] = jax.nn.sigmoid(logits)


# ---------------------------------------------------------------------------
# pallas_call wrappers
# ---------------------------------------------------------------------------
def _run_pconv_layer(xpat, w, inv, *, p_valid, apply_bn, n_lead):
    """xpat: (P, K) bf16, w: (K, C_pad) bf16, inv: (P, 1) f32."""
    P, K = xpat.shape
    C_pad = w.shape[1]
    if apply_bn:
        n_lead = 1                                  # BN stats need every row in one block
    tp = P // n_lead

    kernel = functools.partial(pconv_kernel, p_valid=p_valid, apply_bn=apply_bn)
    return pl.pallas_call(
        kernel,
        out_shape=jax.ShapeDtypeStruct((P, C_pad), jnp.float32),
        grid_spec=pltpu.PrefetchScalarGridSpec(
            num_scalar_prefetch=0,
            grid=(n_lead,),
            in_specs=[pl.BlockSpec((tp, K), lambda r: (r, 0)),
                      pl.BlockSpec((K, C_pad), lambda r: (0, 0)),
                      pl.BlockSpec((tp, 1), lambda r: (r, 0))],
            out_specs=pl.BlockSpec((tp, C_pad), lambda r: (r, 0))),
        compiler_params=pltpu.CompilerParams(
            dimension_semantics=("parallel",) if n_lead > 1 else ("arbitrary",),
            vmem_limit_bytes=VMEM_LIMIT),
    )(xpat, w, inv)


def _run_fused_tail(xpat, inv, w_first, w_centers, lin, *,
                    p_valid, bn_flags, center_inv_scales):
    P_pad, K = xpat.shape
    C0 = w_first.shape[1]
    L = lin.shape[1]
    n_center = len(w_centers)

    kernel = functools.partial(
        fused_tail_kernel, n_center=n_center, bn_flags=tuple(bn_flags),
        center_inv_scales=tuple(center_inv_scales),
        p_valid=p_valid, p_full=(p_valid == P_pad))

    in_specs = [pl.BlockSpec((P_pad, K), lambda i: (0, 0)),
                pl.BlockSpec((P_pad, 1), lambda i: (0, 0)),
                pl.BlockSpec((K, C0), lambda i: (0, 0))]
    for wc in w_centers:
        in_specs.append(pl.BlockSpec(wc.shape, lambda i: (0, 0)))
    in_specs.append(pl.BlockSpec(lin.shape, lambda i: (0, 0)))

    logits = pl.pallas_call(
        kernel,
        out_shape=jax.ShapeDtypeStruct((P_pad, L), jnp.float32),
        grid_spec=pltpu.PrefetchScalarGridSpec(
            num_scalar_prefetch=0,
            grid=(1,),
            in_specs=in_specs,
            out_specs=pl.BlockSpec((P_pad, L), lambda i: (0, 0))),
        compiler_params=pltpu.CompilerParams(
            dimension_semantics=("arbitrary",),
            vmem_limit_bytes=VMEM_LIMIT),
    )(xpat, inv, w_first, *w_centers, lin)
    return logits


# ---------------------------------------------------------------------------
# Glue: im2col / sliding-window sum over the live taps (k=3, stride=2, pad=1, channels-last)
# ---------------------------------------------------------------------------
def im2col3d(x, taps, k=3, stride=2, pad=1):
    N, D, H, W, C = x.shape
    Do, Ho, Wo = _out_spatial(D), _out_spatial(H), _out_spatial(W)
    xp = jnp.pad(x, ((0, 0), (pad, pad), (pad, pad), (pad, pad), (0, 0)))
    cols = []
    for (kd, kh, kw) in taps:
        cols.append(xp[:, kd:kd + stride * (Do - 1) + 1:stride,
                          kh:kh + stride * (Ho - 1) + 1:stride,
                          kw:kw + stride * (Wo - 1) + 1:stride, :])
    p = jnp.stack(cols, axis=4)                                # (N, Do, Ho, Wo, T, C)
    p = p.reshape(N * Do * Ho * Wo, len(taps) * C)             # columns ordered (tap, cin)
    return p, (Do, Ho, Wo)


def window_sum3d(m, taps, k=3, stride=2, pad=1):
    """Sliding-window sum of a single-channel volume over the given (kd,kh,kw) taps."""
    N, D, H, W, _ = m.shape
    Do, Ho, Wo = _out_spatial(D), _out_spatial(H), _out_spatial(W)
    mp = jnp.pad(m, ((0, 0), (pad, pad), (pad, pad), (pad, pad), (0, 0)))
    out = None
    for (kd, kh, kw) in taps:
        sl = mp[:, kd:kd + stride * (Do - 1) + 1:stride,
                   kh:kh + stride * (Ho - 1) + 1:stride,
                   kw:kw + stride * (Wo - 1) + 1:stride, :]
        out = sl if out is None else out + sl
    return out                                                 # (N, Do, Ho, Wo, 1)


# ---------------------------------------------------------------------------
# Parameters (deterministic, matching the module's shapes/init scheme) and plan
# ---------------------------------------------------------------------------
def make_params(key, input_channels=3):
    specs = [(input_channels, 64, False),   # enc_1 (normalizer=None)
             (64, 128, True), (128, 256, True), (256, 512, True),
             (512, 512, True), (512, 512, True), (512, 512, True)]
    layers = []
    for cin, cout, bn in specs:
        key, sub = jax.random.split(key)
        fan_in = cin * 27
        std = math.sqrt(2.0 / fan_in)       # kaiming_normal_
        w = jax.random.normal(sub, (cout, cin, 3, 3, 3), jnp.float32) * std
        # flatten to (27*Cin, Cout), row order (kd, kh, kw, cin) to match im2col columns
        w_flat = jnp.transpose(w, (2, 3, 4, 1, 0)).reshape(27 * cin, cout)
        layers.append((w_flat, cin, cout, bn))
    key, sub = jax.random.split(key)
    lin_w = jax.random.normal(sub, (512, 1), jnp.float32) / math.sqrt(512.0)
    return {"layers": layers, "linear_w": lin_w}


def prepare_plan(params, input_shape, multicore=None):
    """Pre-slice / pre-pad / pre-cast all weights once, based on the static input shape."""
    if multicore is None:
        multicore = _multi_tensorcore()
    N = input_shape[0]
    d, h, w = input_shape[2], input_shape[3], input_shape[4]

    metas = []
    # Only layers 1..layer_size-1 are needed: h_{layer_size} is unused by the head.
    for (w_flat, cin, cout, bn) in params["layers"][:LAYER_SIZE - 1]:
        do, ho, wo = _out_spatial(d), _out_spatial(h), _out_spatial(w)
        taps = tuple((a, b, c)
                     for a in _live_taps(d) for b in _live_taps(h) for c in _live_taps(w))
        c_pad = _round_up(cout, 128)
        if len(taps) == 27:
            rows = w_flat
        else:
            rows = jnp.concatenate(
                [w_flat[(a * 9 + b * 3 + c) * cin:(a * 9 + b * 3 + c + 1) * cin, :]
                 for (a, b, c) in taps], axis=0)
        wk = jnp.pad(rows, ((0, 0), (0, c_pad - cout))).astype(jnp.bfloat16)
        P = N * do * ho * wo
        n_lead = 2 if (multicore and (not bn) and P % 16 == 0 and P >= 512) else 1
        metas.append(dict(w=wk, cin=cin, cout=cout, c_pad=c_pad, apply_bn=bn,
                          taps=taps, K=len(taps) * cin, P=P, n_lead=n_lead,
                          in_dhw=(d, h, w), out_dhw=(do, ho, wo)))
        d, h, w = do, ho, wo

    fuse_from = None
    for li, m in enumerate(metas):
        if m["out_dhw"] == (1, 1, 1):
            fuse_from = li
            break

    plan = {"layers": metas, "fuse_from": fuse_from, "lin_raw": params["linear_w"]}

    if fuse_from is not None:
        tail = metas[fuse_from:]
        center_ws = []
        for prev, cur in zip(tail[:-1], tail[1:]):
            wc = cur["w"]                                  # (cin, c_pad_cur); center tap only
            if prev["c_pad"] > cur["cin"]:
                wc = jnp.pad(wc, ((0, prev["c_pad"] - cur["cin"]), (0, 0)))
            center_ws.append(wc)
        c_last = tail[-1]["c_pad"]
        lin = jnp.pad(params["linear_w"],
                      ((0, c_last - params["linear_w"].shape[0]), (0, 127))).astype(jnp.bfloat16)
        plan["tail_center_ws"] = tuple(center_ws)
        plan["tail_bn_flags"] = tuple(m["apply_bn"] for m in tail)
        plan["tail_center_inv"] = tuple(1.0 / float(m["cin"]) for m in tail[1:])
        plan["lin"] = lin
        plan["tail_p_pad"] = _round_up(max(N, 1), 8)
    return plan


# ---------------------------------------------------------------------------
# Forward pass
# ---------------------------------------------------------------------------
def _safe_reciprocal(msum):
    return jnp.where(msum > 0.0, 1.0 / jnp.where(msum > 0.0, msum, 1.0), 0.0)


def discriminator_forward(x_ncdhw, mask_ncdhw, plan):
    # PyTorch NCDHW -> internal NDHWC
    h = jnp.transpose(x_ncdhw, (0, 2, 3, 4, 1)).astype(jnp.float32)
    m_full = jnp.transpose(mask_ncdhw, (0, 2, 3, 4, 1)).astype(jnp.float32)
    N = h.shape[0]

    metas = plan["layers"]
    fuse_from = plan["fuse_from"]
    n_standalone = fuse_from if fuse_from is not None else len(metas)

    m1 = None                         # single-channel {0,1} mask, valid from layer 2 on
    for li in range(n_standalone):
        cfg = metas[li]
        cin, cout = cfg["cin"], cfg["cout"]
        do, ho, wo = cfg["out_dhw"]
        taps = cfg["taps"]

        if li == 0:
            xm = h * m_full
            msum = window_sum3d(jnp.sum(m_full, axis=-1, keepdims=True), taps)
        else:
            xm = h * m1
            msum = window_sum3d(m1, taps) * float(cin)

        xpat, _ = im2col3d(xm, taps)
        xpat = xpat.astype(jnp.bfloat16)
        msum = msum.reshape(-1, 1)
        inv = _safe_reciprocal(msum)

        out = _run_pconv_layer(xpat, cfg["w"], inv,
                               p_valid=cfg["P"], apply_bn=cfg["apply_bn"],
                               n_lead=cfg["n_lead"])
        h = out[:, :cout].reshape(N, do, ho, wo, cout)
        m1 = (msum > 0.0).astype(jnp.float32).reshape(N, do, ho, wo, 1)

    if fuse_from is None:
        # general fallback: last needed layer had spatial > 1 -> standalone head kernel
        S = h.shape[1] * h.shape[2] * h.shape[3]
        C = h.shape[-1]
        h_flat = h.reshape(N, S, C)
        logits, probs = pl.pallas_call(
            head_kernel,
            out_shape=(jax.ShapeDtypeStruct((N, 1), jnp.float32),
                       jax.ShapeDtypeStruct((N, 1), jnp.float32)),
            grid=(1,),
            in_specs=[pl.BlockSpec((N, S, C), lambda i: (0, 0, 0)),
                      pl.BlockSpec((C, 1), lambda i: (0, 0))],
            out_specs=[pl.BlockSpec((N, 1), lambda i: (0, 0)),
                       pl.BlockSpec((N, 1), lambda i: (0, 0))],
            compiler_params=pltpu.CompilerParams(vmem_limit_bytes=VMEM_LIMIT),
        )(h_flat, plan["lin_raw"])
        return logits, probs

    # fused tail: first 1^3-output layer + all subsequent center-tap layers + head
    cfg0 = metas[fuse_from]
    taps = cfg0["taps"]
    if n_standalone == 0:
        xm = h * m_full
        msum = window_sum3d(jnp.sum(m_full, axis=-1, keepdims=True), taps)
    else:
        xm = h * m1
        msum = window_sum3d(m1, taps) * float(cfg0["cin"])

    xpat, _ = im2col3d(xm, taps)                      # (N, K) -- output spatial is 1^3
    msum = msum.reshape(-1, 1)
    inv = _safe_reciprocal(msum)

    P_pad = plan["tail_p_pad"]
    xpat = jnp.pad(xpat, ((0, P_pad - N), (0, 0))).astype(jnp.bfloat16)
    inv = jnp.pad(inv, ((0, P_pad - N), (0, 0)))

    logits_full = _run_fused_tail(
        xpat, inv, cfg0["w"], plan["tail_center_ws"], plan["lin"],
        p_valid=N, bn_flags=plan["tail_bn_flags"],
        center_inv_scales=plan["tail_center_inv"])

    logits = logits_full[:N, :1]
    return logits, jax.nn.sigmoid(logits)


if __name__ == "__main__":
    key = jax.random.PRNGKey(0)
    kp, kx, km = jax.random.split(key, 3)

    params = make_params(kp, input_channels=3)

    # small shapes: batch=2, channels=3, spatial=16^3 (NCDHW like PyTorch)
    x = jax.random.normal(kx, (2, 3, 16, 16, 16), jnp.float32)
    mask = (jax.random.uniform(km, (2, 3, 16, 16, 16)) > 0.3).astype(jnp.float32)

    plan = prepare_plan(params, x.shape)
    fwd = jax.jit(functools.partial(discriminator_forward, plan=plan))

    logits, probs = fwd(x, mask)
    jax.block_until_ready((logits, probs))

    assert logits.shape == (2, 1) and probs.shape == (2, 1)
    assert bool(jnp.all(jnp.isfinite(logits))) and bool(jnp.all(jnp.isfinite(probs)))
    print("KERNEL_OK")
</pallas_src>

<mosaic_0001>
module attributes {stable_mosaic.version = 11 : i64} {
  func.func @pconv_kernel(%arg0: i32, %arg1: memref<1024x81xbf16, #tpu.memory_space<vmem>>, %arg2: memref<81x128xbf16, #tpu.memory_space<vmem>>, %arg3: memref<1024x1xf32, #tpu.memory_space<vmem>>, %arg4: memref<1024x128xf32, #tpu.memory_space<vmem>>) attributes {dimension_semantics = [#tpu.dimension_semantics<arbitrary>], iteration_bounds = array<i64: 1>, scalar_prefetch = 0 : i64, scratch_operands = 0 : i64, tpu.core_type = #tpu.core_type<tc>, window_params = [{transform_indices = @transform_0, window_bounds = array<i64: 1024, 81>}, {pipeline_mode = #tpu.pipeline_mode<synchronous>, transform_indices = @transform_1, window_bounds = array<i64: 81, 128>}, {transform_indices = @transform_2, window_bounds = array<i64: 1024, 1>}, {transform_indices = @transform_3, window_bounds = array<i64: 1024, 128>}]} {
    %c0 = arith.constant 0 : index
    %c0_0 = arith.constant 0 : index
    %0 = vector.load %arg1[%c0, %c0_0] : memref<1024x81xbf16, #tpu.memory_space<vmem>>, vector<1024x81xbf16>
    %c0_1 = arith.constant 0 : index
    %c0_2 = arith.constant 0 : index
    %1 = vector.load %arg2[%c0_1, %c0_2] : memref<81x128xbf16, #tpu.memory_space<vmem>>, vector<81x128xbf16>
    %cst = arith.constant dense<0.000000e+00> : vector<1024x128xf32>
    %2 = tpu.matmul %0, %1, %cst {dimension_numbers = #tpu.dot_dimension_numbers<[1], [0], [0], [1], [0, 0, 1, 1], [], []>} : vector<1024x81xbf16>, vector<81x128xbf16>, vector<1024x128xf32> -> vector<1024x128xf32>
    %c0_3 = arith.constant 0 : index
    %c0_4 = arith.constant 0 : index
    %3 = vector.load %arg3[%c0_3, %c0_4] : memref<1024x1xf32, #tpu.memory_space<vmem>>, vector<1024x1xf32>
    %4 = vector.broadcast %3 : vector<1024x1xf32> to vector<1024x128xf32>
    %5 = arith.mulf %2, %4 : vector<1024x128xf32>
    %cst_5 = arith.constant 0.000000e+00 : f32
    %6 = vector.broadcast %cst_5 : f32 to vector<1024x128xf32>
    %7 = arith.maximumf %5, %6 : vector<1024x128xf32>
    %c0_6 = arith.constant 0 : index
    %c0_7 = arith.constant 0 : index
    %8 = vector.load %arg4[%c0_6, %c0_7] : memref<1024x128xf32, #tpu.memory_space<vmem>>, vector<1024x128xf32>
    tpu.vector_store %arg4[%c0_6, %c0_7], %7 {strides = array<i32>} : memref<1024x128xf32, #tpu.memory_space<vmem>>, vector<1024x128xf32>,
    return
  }
  func.func @transform_0(%arg0: i32) -> (i32, i32) {
    %c0_i32 = arith.constant 0 : i32
    %c0_i32_0 = arith.constant 0 : i32
    return %arg0, %c0_i32 : i32, i32
  }
  func.func @transform_1(%arg0: i32) -> (i32, i32) {
    %c0_i32 = arith.constant 0 : i32
    %c0_i32_0 = arith.constant 0 : i32
    %c0_i32_1 = arith.constant 0 : i32
    return %c0_i32, %c0_i32_0 : i32, i32
  }
  func.func @transform_2(%arg0: i32) -> (i32, i32) {
    %c0_i32 = arith.constant 0 : i32
    %c0_i32_0 = arith.constant 0 : i32
    return %arg0, %c0_i32 : i32, i32
  }
  func.func @transform_3(%arg0: i32) -> (i32, i32) {
    %c0_i32 = arith.constant 0 : i32
    %c0_i32_0 = arith.constant 0 : i32
    return %arg0, %c0_i32 : i32, i32
  }
}

module attributes {stable_mosaic.version = 11 : i64} {
  func.func @pconv_kernel(%arg0: i32, %arg1: memref<128x1728xbf16, #tpu.memory_space<vmem>>, %arg2: memref<1728x128xbf16, #tpu.memory_space<vmem>>, %arg3: memref<128x1xf32, #tpu.memory_space<vmem>>, %arg4: memref<128x128xf32, #tpu.memory_space<vmem>>) attributes {dimension_semantics = [#tpu.dimension_semantics<arbitrary>], iteration_bounds = array<i64: 1>, scalar_prefetch = 0 : i64, scratch_operands = 0 : i64, tpu.core_type = #tpu.core_type<tc>, window_params = [{transform_indices = @transform_0, window_bounds = array<i64: 128, 1728>}, {pipeline_mode = #tpu.pipeline_mode<synchronous>, transform_indices = @transform_1, window_bounds = array<i64: 1728, 128>}, {transform_indices = @transform_2, window_bounds = array<i64: 128, 1>}, {transform_indices = @transform_3, window_bounds = array<i64: 128, 128>}]} {
    %c0 = arith.constant 0 : index
    %c0_0 = arith.constant 0 : index
    %0 = vector.load %arg1[%c0, %c0_0] : memref<128x1728xbf16, #tpu.memory_space<vmem>>, vector<128x1728xbf16>
    %c0_1 = arith.constant 0 : index
    %c0_2 = arith.constant 0 : index
    %1 = vector.load %arg2[%c0_1, %c0_2] : memref<1728x128xbf16, #tpu.memory_space<vmem>>, vector<1728x128xbf16>
    %cst = arith.constant dense<0.000000e+00> : vector<128x128xf32>
    %2 = tpu.matmul %0, %1, %cst {dimension_numbers = #tpu.dot_dimension_numbers<[1], [0], [0], [1], [0, 0, 1, 1], [], []>} : vector<128x1728xbf16>, vector<1728x128xbf16>, vector<128x128xf32> -> vector<128x128xf32>
    %c0_3 = arith.constant 0 : index
    %c0_4 = arith.constant 0 : index
    %3 = vector.load %arg3[%c0_3, %c0_4] : memref<128x1xf32, #tpu.memory_space<vmem>>, vector<128x1xf32>
    %4 = vector.broadcast %3 : vector<128x1xf32> to vector<128x128xf32>
    %5 = arith.mulf %2, %4 : vector<128x128xf32>
    %cst_5 = arith.constant dense<0.000000e+00> : vector<128xf32>
    %6 = vector.multi_reduction <add>, %5, %cst_5 [0] : vector<128x128xf32> to vector<128xf32>
    %7 = vector.shape_cast %6 : vector<128xf32> to vector<1x128xf32>
    %cst_6 = arith.constant 7.812500e-03 : f32
    %8 = vector.broadcast %cst_6 : f32 to vector<1x128xf32>
    %9 = arith.mulf %7, %8 : vector<1x128xf32>
    %10 = vector.broadcast %9 : vector<1x128xf32> to vector<128x128xf32>
    %11 = arith.subf %5, %10 : vector<128x128xf32>
    %12 = arith.mulf %11, %11 : vector<128x128xf32>
    %cst_7 = arith.constant dense<0.000000e+00> : vector<128xf32>
    %13 = vector.multi_reduction <add>, %12, %cst_7 [0] : vector<128x128xf32> to vector<128xf32>
    %14 = vector.shape_cast %13 : vector<128xf32> to vector<1x128xf32>
    %cst_8 = arith.constant 7.812500e-03 : f32
    %15 = vector.broadcast %cst_8 : f32 to vector<1x128xf32>
    %16 = arith.mulf %14, %15 : vector<1x128xf32>
    %cst_9 = arith.constant 9.99999974E-6 : f32
    %17 = vector.broadcast %cst_9 : f32 to vector<1x128xf32>
    %18 = arith.addf %16, %17 : vector<1x128xf32>
    %19 = math.rsqrt %18 : vector<1x128xf32>
    %20 = vector.broadcast %19 : vector<1x128xf32> to vector<128x128xf32>
    %21 = arith.mulf %11, %20 : vector<128x128xf32>
    %cst_10 = arith.constant 0.000000e+00 : f32
    %22 = vector.broadcast %cst_10 : f32 to vector<128x128xf32>
    %23 = arith.maximumf %21, %22 : vector<128x128xf32>
    %c0_11 = arith.constant 0 : index
    %c0_12 = arith.constant 0 : index
    %24 = vector.load %arg4[%c0_11, %c0_12] : memref<128x128xf32, #tpu.memory_space<vmem>>, vector<128x128xf32>
    tpu.vector_store %arg4[%c0_11, %c0_12], %23 {strides = array<i32>} : memref<128x128xf32, #tpu.memory_space<vmem>>, vector<128x128xf32>,
    return
  }
  func.func @transform_0(%arg0: i32) -> (i32, i32) {
    %c0_i32 = arith.constant 0 : i32
    %c0_i32_0 = arith.constant 0 : i32
    return %arg0, %c0_i32 : i32, i32
  }
  func.func @transform_1(%arg0: i32) -> (i32, i32) {
    %c0_i32 = arith.constant 0 : i32
    %c0_i32_0 = arith.constant 0 : i32
    %c0_i32_1 = arith.constant 0 : i32
    return %c0_i32, %c0_i32_0 : i32, i32
  }
  func.func @transform_2(%arg0: i32) -> (i32, i32) {
    %c0_i32 = arith.constant 0 : i32
    %c0_i32_0 = arith.constant 0 : i32
    return %arg0, %c0_i32 : i32, i32
  }
  func.func @transform_3(%arg0: i32) -> (i32, i32) {
    %c0_i32 = arith.constant 0 : i32
    %c0_i32_0 = arith.constant 0 : i32
    return %arg0, %c0_i32 : i32, i32
  }
}

module attributes {stable_mosaic.version = 11 : i64} {
  func.func @pconv_kernel(%arg0: i32, %arg1: memref<16x3456xbf16, #tpu.memory_space<vmem>>, %arg2: memref<3456x256xbf16, #tpu.memory_space<vmem>>, %arg3: memref<16x1xf32, #tpu.memory_space<vmem>>, %arg4: memref<16x256xf32, #tpu.memory_space<vmem>>) attributes {dimension_semantics = [#tpu.dimension_semantics<arbitrary>], iteration_bounds = array<i64: 1>, scalar_prefetch = 0 : i64, scratch_operands = 0 : i64, tpu.core_type = #tpu.core_type<tc>, window_params = [{transform_indices = @transform_0, window_bounds = array<i64: 16, 3456>}, {pipeline_mode = #tpu.pipeline_mode<synchronous>, transform_indices = @transform_1, window_bounds = array<i64: 3456, 256>}, {transform_indices = @transform_2, window_bounds = array<i64: 16, 1>}, {transform_indices = @transform_3, window_bounds = array<i64: 16, 256>}]} {
    %c0 = arith.constant 0 : index
    %c0_0 = arith.constant 0 : index
    %0 = vector.load %arg1[%c0, %c0_0] : memref<16x3456xbf16, #tpu.memory_space<vmem>>, vector<16x3456xbf16>
    %c0_1 = arith.constant 0 : index
    %c0_2 = arith.constant 0 : index
    %1 = vector.load %arg2[%c0_1, %c0_2] : memref<3456x256xbf16, #tpu.memory_space<vmem>>, vector<3456x256xbf16>
    %cst = arith.constant dense<0.000000e+00> : vector<16x256xf32>
    %2 = tpu.matmul %0, %1, %cst {dimension_numbers = #tpu.dot_dimension_numbers<[1], [0], [0], [1], [0, 0, 1, 1], [], []>} : vector<16x3456xbf16>, vector<3456x256xbf16>, vector<16x256xf32> -> vector<16x256xf32>
    %c0_3 = arith.constant 0 : index
    %c0_4 = arith.constant 0 : index
    %3 = vector.load %arg3[%c0_3, %c0_4] : memref<16x1xf32, #tpu.memory_space<vmem>>, vector<16x1xf32>
    %4 = vector.broadcast %3 : vector<16x1xf32> to vector<16x256xf32>
    %5 = arith.mulf %2, %4 : vector<16x256xf32>
    %cst_5 = arith.constant dense<0.000000e+00> : vector<256xf32>
    %6 = vector.multi_reduction <add>, %5, %cst_5 [0] : vector<16x256xf32> to vector<256xf32>
    %7 = vector.shape_cast %6 : vector<256xf32> to vector<1x256xf32>
    %cst_6 = arith.constant 6.250000e-02 : f32
    %8 = vector.broadcast %cst_6 : f32 to vector<1x256xf32>
    %9 = arith.mulf %7, %8 : vector<1x256xf32>
    %10 = vector.broadcast %9 : vector<1x256xf32> to vector<16x256xf32>
    %11 = arith.subf %5, %10 : vector<16x256xf32>
    %12 = arith.mulf %11, %11 : vector<16x256xf32>
    %cst_7 = arith.constant dense<0.000000e+00> : vector<256xf32>
    %13 = vector.multi_reduction <add>, %12, %cst_7 [0] : vector<16x256xf32> to vector<256xf32>
    %14 = vector.shape_cast %13 : vector<256xf32> to vector<1x256xf32>
    %cst_8 = arith.constant 6.250000e-02 : f32
    %15 = vector.broadcast %cst_8 : f32 to vector<1x256xf32>
    %16 = arith.mulf %14, %15 : vector<1x256xf32>
    %cst_9 = arith.constant 9.99999974E-6 : f32
    %17 = vector.broadcast %cst_9 : f32 to vector<1x256xf32>
    %18 = arith.addf %16, %17 : vector<1x256xf32>
    %19 = math.rsqrt %18 : vector<1x256xf32>
    %20 = vector.broadcast %19 : vector<1x256xf32> to vector<16x256xf32>
    %21 = arith.mulf %11, %20 : vector<16x256xf32>
    %cst_10 = arith.constant 0.000000e+00 : f32
    %22 = vector.broadcast %cst_10 : f32 to vector<16x256xf32>
    %23 = arith.maximumf %21, %22 : vector<16x256xf32>
    %c0_11 = arith.constant 0 : index
    %c0_12 = arith.constant 0 : index
    %24 = vector.load %arg4[%c0_11, %c0_12] : memref<16x256xf32, #tpu.memory_space<vmem>>, vector<16x256xf32>
    tpu.vector_store %arg4[%c0_11, %c0_12], %23 {strides = array<i32>} : memref<16x256xf32, #tpu.memory_space<vmem>>, vector<16x256xf32>,
    return
  }
  func.func @transform_0(%arg0: i32) -> (i32, i32) {
    %c0_i32 = arith.constant 0 : i32
    %c0_i32_0 = arith.constant 0 : i32
    return %arg0, %c0_i32 : i32, i32
  }
  func.func @transform_1(%arg0: i32) -> (i32, i32) {
    %c0_i32 = arith.constant 0 : i32
    %c0_i32_0 = arith.constant 0 : i32
    %c0_i32_1 = arith.constant 0 : i32
    return %c0_i32, %c0_i32_0 : i32, i32
  }
  func.func @transform_2(%arg0: i32) -> (i32, i32) {
    %c0_i32 = arith.constant 0 : i32
    %c0_i32_0 = arith.constant 0 : i32
    return %arg0, %c0_i32 : i32, i32
  }
  func.func @transform_3(%arg0: i32) -> (i32, i32) {
    %c0_i32 = arith.constant 0 : i32
    %c0_i32_0 = arith.constant 0 : i32
    return %arg0, %c0_i32 : i32, i32
  }
}

module attributes {stable_mosaic.version = 11 : i64} {
  func.func @fused_tail_kernel(%arg0: i32, %arg1: memref<8x2048xbf16, #tpu.memory_space<vmem>>, %arg2: memref<8x1xf32, #tpu.memory_space<vmem>>, %arg3: memref<2048x512xbf16, #tpu.memory_space<vmem>>, %arg4: memref<512x512xbf16, #tpu.memory_space<vmem>>, %arg5: memref<512x512xbf16, #tpu.memory_space<vmem>>, %arg6: memref<512x128xbf16, #tpu.memory_space<vmem>>, %arg7: memref<8x128xf32, #tpu.memory_space<vmem>>) attributes {dimension_semantics = [#tpu.dimension_semantics<arbitrary>], iteration_bounds = array<i64: 1>, scalar_prefetch = 0 : i64, scratch_operands = 0 : i64, tpu.core_type = #tpu.core_type<tc>, window_params = [{pipeline_mode = #tpu.pipeline_mode<synchronous>, transform_indices = @transform_0, window_bounds = array<i64: 8, 2048>}, {pipeline_mode = #tpu.pipeline_mode<synchronous>, transform_indices = @transform_1, window_bounds = array<i64: 8, 1>}, {pipeline_mode = #tpu.pipeline_mode<synchronous>, transform_indices = @transform_2, window_bounds = array<i64: 2048, 512>}, {pipeline_mode = #tpu.pipeline_mode<synchronous>, transform_indices = @transform_3, window_bounds = array<i64: 512, 512>}, {pipeline_mode = #tpu.pipeline_mode<synchronous>, transform_indices = @transform_4, window_bounds = array<i64: 512, 512>}, {pipeline_mode = #tpu.pipeline_mode<synchronous>, transform_indices = @transform_5, window_bounds = array<i64: 512, 128>}, {pipeline_mode = #tpu.pipeline_mode<synchronous>, transform_indices = @transform_6, window_bounds = array<i64: 8, 128>}]} {
    %c0 = arith.constant 0 : index
    %c0_0 = arith.constant 0 : index
    %0 = vector.load %arg2[%c0, %c0_0] : memref<8x1xf32, #tpu.memory_space<vmem>>, vector<8x1xf32>
    %c0_1 = arith.constant 0 : index
    %c0_2 = arith.constant 0 : index
    %1 = vector.load %arg1[%c0_1, %c0_2] : memref<8x2048xbf16, #tpu.memory_space<vmem>>, vector<8x2048xbf16>
    %c0_3 = arith.constant 0 : index
    %c0_4 = arith.constant 0 : index
    %2 = vector.load %arg3[%c0_3, %c0_4] : memref<2048x512xbf16, #tpu.memory_space<vmem>>, vector<2048x512xbf16>
    %cst = arith.constant dense<0.000000e+00> : vector<8x512xf32>
    %3 = tpu.matmul %1, %2, %cst {dimension_numbers = #tpu.dot_dimension_numbers<[1], [0], [0], [1], [0, 0, 1, 1], [], []>} : vector<8x2048xbf16>, vector<2048x512xbf16>, vector<8x512xf32> -> vector<8x512xf32>
    %4 = vector.broadcast %0 : vector<8x1xf32> to vector<8x512xf32>
    %5 = arith.mulf %3, %4 : vector<8x512xf32>
    %cst_5 = arith.constant dense<0.000000e+00> : vector<512xf32>
    %6 = vector.multi_reduction <add>, %5, %cst_5 [0] : vector<8x512xf32> to vector<512xf32>
    %7 = vector.shape_cast %6 : vector<512xf32> to vector<1x512xf32>
    %cst_6 = arith.constant 5.000000e-01 : f32
    %8 = vector.broadcast %cst_6 : f32 to vector<1x512xf32>
    %9 = arith.mulf %7, %8 : vector<1x512xf32>
    %10 = vector.broadcast %9 : vector<1x512xf32> to vector<8x512xf32>
    %11 = arith.subf %5, %10 : vector<8x512xf32>
    %12 = arith.mulf %5, %5 : vector<8x512xf32>
    %cst_7 = arith.constant dense<0.000000e+00> : vector<512xf32>
    %13 = vector.multi_reduction <add>, %12, %cst_7 [0] : vector<8x512xf32> to vector<512xf32>
    %14 = vector.shape_cast %13 : vector<512xf32> to vector<1x512xf32>
    %cst_8 = arith.constant 5.000000e-01 : f32
    %15 = vector.broadcast %cst_8 : f32 to vector<1x512xf32>
    %16 = arith.mulf %14, %15 : vector<1x512xf32>
    %17 = arith.mulf %9, %9 : vector<1x512xf32>
    %18 = arith.subf %16, %17 : vector<1x512xf32>
    %cst_9 = arith.constant 0.000000e+00 : f32
    %19 = vector.broadcast %cst_9 : f32 to vector<1x512xf32>
    %20 = arith.maximumf %18, %19 : vector<1x512xf32>
    %cst_10 = arith.constant 9.99999974E-6 : f32
    %21 = vector.broadcast %cst_10 : f32 to vector<1x512xf32>
    %22 = arith.addf %20, %21 : vector<1x512xf32>
    %23 = math.rsqrt %22 : vector<1x512xf32>
    %24 = vector.broadcast %23 : vector<1x512xf32> to vector<8x512xf32>
    %25 = arith.mulf %11, %24 : vector<8x512xf32>
    %cst_11 = arith.constant 0.000000e+00 : f32
    %26 = vector.broadcast %cst_11 : f32 to vector<8x512xf32>
    %27 = arith.maximumf %25, %26 : vector<8x512xf32>
    %cst_12 = arith.constant 0.000000e+00 : f32
    %28 = vector.broadcast %cst_12 : f32 to vector<8x1xf32>
    %29 = arith.cmpf ogt, %0, %28 : vector<8x1xf32>
    %30 = arith.extui %29 : vector<8x1xi1> to vector<8x1xi32>
    %31 = arith.sitofp %30 : vector<8x1xi32> to vector<8x1xf32>
    %32 = vector.broadcast %31 : vector<8x1xf32> to vector<8x512xf32>
    %33 = arith.mulf %27, %32 : vector<8x512xf32>
    %34 = arith.truncf %33 : vector<8x512xf32> to vector<8x512xbf16>
    %c0_13 = arith.constant 0 : index
    %c0_14 = arith.constant 0 : index
    %35 = vector.load %arg4[%c0_13, %c0_14] : memref<512x512xbf16, #tpu.memory_space<vmem>>, vector<512x512xbf16>
    %cst_15 = arith.constant dense<0.000000e+00> : vector<8x512xf32>
    %36 = tpu.matmul %34, %35, %cst_15 {dimension_numbers = #tpu.dot_dimension_numbers<[1], [0], [0], [1], [0, 0, 1, 1], [], []>} : vector<8x512xbf16>, vector<512x512xbf16>, vector<8x512xf32> -> vector<8x512xf32>
    %cst_16 = arith.constant 0.001953125 : f32
    %37 = vector.broadcast %cst_16 : f32 to vector<8x1xf32>
    %38 = arith.mulf %31, %37 : vector<8x1xf32>
    %39 = vector.broadcast %38 : vector<8x1xf32> to vector<8x512xf32>
    %40 = arith.mulf %36, %39 : vector<8x512xf32>
    %cst_17 = arith.constant dense<0.000000e+00> : vector<512xf32>
    %41 = vector.multi_reduction <add>, %40, %cst_17 [0] : vector<8x512xf32> to vector<512xf32>
    %42 = vector.shape_cast %41 : vector<512xf32> to vector<1x512xf32>
    %cst_18 = arith.constant 5.000000e-01 : f32
    %43 = vector.broadcast %cst_18 : f32 to vector<1x512xf32>
    %44 = arith.mulf %42, %43 : vector<1x512xf32>
    %45 = vector.broadcast %44 : vector<1x512xf32> to vector<8x512xf32>
    %46 = arith.subf %40, %45 : vector<8x512xf32>
    %47 = arith.mulf %40, %40 : vector<8x512xf32>
    %cst_19 = arith.constant dense<0.000000e+00> : vector<512xf32>
    %48 = vector.multi_reduction <add>, %47, %cst_19 [0] : vector<8x512xf32> to vector<512xf32>
    %49 = vector.shape_cast %48 : vector<512xf32> to vector<1x512xf32>
    %cst_20 = arith.constant 5.000000e-01 : f32
    %50 = vector.broadcast %cst_20 : f32 to vector<1x512xf32>
    %51 = arith.mulf %49, %50 : vector<1x512xf32>
    %52 = arith.mulf %44, %44 : vector<1x512xf32>
    %53 = arith.subf %51, %52 : vector<1x512xf32>
    %cst_21 = arith.constant 0.000000e+00 : f32
    %54 = vector.broadcast %cst_21 : f32 to vector<1x512xf32>
    %55 = arith.maximumf %53, %54 : vector<1x512xf32>
    %cst_22 = arith.constant 9.99999974E-6 : f32
    %56 = vector.broadcast %cst_22 : f32 to vector<1x512xf32>
    %57 = arith.addf %55, %56 : vector<1x512xf32>
    %58 = math.rsqrt %57 : vector<1x512xf32>
    %59 = vector.broadcast %58 : vector<1x512xf32> to vector<8x512xf32>
    %60 = arith.mulf %46, %59 : vector<8x512xf32>
    %cst_23 = arith.constant 0.000000e+00 : f32
    %61 = vector.broadcast %cst_23 : f32 to vector<8x512xf32>
    %62 = arith.maximumf %60, %61 : vector<8x512xf32>
    %63 = vector.broadcast %31 : vector<8x1xf32> to vector<8x512xf32>
    %64 = arith.mulf %62, %63 : vector<8x512xf32>
    %65 = arith.truncf %64 : vector<8x512xf32> to vector<8x512xbf16>
    %c0_24 = arith.constant 0 : index
    %c0_25 = arith.constant 0 : index
    %66 = vector.load %arg5[%c0_24, %c0_25] : memref<512x512xbf16, #tpu.memory_space<vmem>>, vector<512x512xbf16>
    %cst_26 = arith.constant dense<0.000000e+00> : vector<8x512xf32>
    %67 = tpu.matmul %65, %66, %cst_26 {dimension_numbers = #tpu.dot_dimension_numbers<[1], [0], [0], [1], [0, 0, 1, 1], [], []>} : vector<8x512xbf16>, vector<512x512xbf16>, vector<8x512xf32> -> vector<8x512xf32>
    %cst_27 = arith.constant 0.001953125 : f32
    %68 = vector.broadcast %cst_27 : f32 to vector<8x1xf32>
    %69 = arith.mulf %31, %68 : vector<8x1xf32>
    %70 = vector.broadcast %69 : vector<8x1xf32> to vector<8x512xf32>
    %71 = arith.mulf %67, %70 : vector<8x512xf32>
    %cst_28 = arith.constant dense<0.000000e+00> : vector<512xf32>
    %72 = vector.multi_reduction <add>, %71, %cst_28 [0] : vector<8x512xf32> to vector<512xf32>
    %73 = vector.shape_cast %72 : vector<512xf32> to vector<1x512xf32>
    %cst_29 = arith.constant 5.000000e-01 : f32
    %74 = vector.broadcast %cst_29 : f32 to vector<1x512xf32>
    %75 = arith.mulf %73, %74 : vector<1x512xf32>
    %76 = vector.broadcast %75 : vector<1x512xf32> to vector<8x512xf32>
    %77 = arith.subf %71, %76 : vector<8x512xf32>
    %78 = arith.mulf %71, %71 : vector<8x512xf32>
    %cst_30 = arith.constant dense<0.000000e+00> : vector<512xf32>
    %79 = vector.multi_reduction <add>, %78, %cst_30 [0] : vector<8x512xf32> to vector<512xf32>
    %80 = vector.shape_cast %79 : vector<512xf32> to vector<1x512xf32>
    %cst_31 = arith.constant 5.000000e-01 : f32
    %81 = vector.broadcast %cst_31 : f32 to vector<1x512xf32>
    %82 = arith.mulf %80, %81 : vector<1x512xf32>
    %83 = arith.mulf %75, %75 : vector<1x512xf32>
    %84 = arith.subf %82, %83 : vector<1x512xf32>
    %cst_32 = arith.constant 0.000000e+00 : f32
    %85 = vector.broadcast %cst_32 : f32 to vector<1x512xf32>
    %86 = arith.maximumf %84, %85 : vector<1x512xf32>
    %cst_33 = arith.constant 9.99999974E-6 : f32
    %87 = vector.broadcast %cst_33 : f32 to vector<1x512xf32>
    %88 = arith.addf %86, %87 : vector<1x512xf32>
    %89 = math.rsqrt %88 : vector<1x512xf32>
    %90 = vector.broadcast %89 : vector<1x512xf32> to vector<8x512xf32>
    %91 = arith.mulf %77, %90 : vector<8x512xf32>
    %cst_34 = arith.constant 0.000000e+00 : f32
    %92 = vector.broadcast %cst_34 : f32 to vector<8x512xf32>
    %93 = arith.maximumf %91, %92 : vector<8x512xf32>
    %94 = arith.truncf %93 : vector<8x512xf32> to vector<8x512xbf16>
    %c0_35 = arith.constant 0 : index
    %c0_36 = arith.constant 0 : index
    %95 = vector.load %arg6[%c0_35, %c0_36] : memref<512x128xbf16, #tpu.memory_space<vmem>>, vector<512x128xbf16>
    %cst_37 = arith.constant dense<0.000000e+00> : vector<8x128xf32>
    %96 = tpu.matmul %94, %95, %cst_37 {dimension_numbers = #tpu.dot_dimension_numbers<[1], [0], [0], [1], [0, 0, 1, 1], [], []>} : vector<8x512xbf16>, vector<512x128xbf16>, vector<8x128xf32> -> vector<8x128xf32>
    %c0_38 = arith.constant 0 : index
    %c0_39 = arith.constant 0 : index
    %97 = vector.load %arg7[%c0_38, %c0_39] : memref<8x128xf32, #tpu.memory_space<vmem>>, vector<8x128xf32>
    tpu.vector_store %arg7[%c0_38, %c0_39], %96 {strides = array<i32>} : memref<8x128xf32, #tpu.memory_space<vmem>>, vector<8x128xf32>,
    return
  }
  func.func @transform_0(%arg0: i32) -> (i32, i32) {
    %c0_i32 = arith.constant 0 : i32
    %c0_i32_0 = arith.constant 0 : i32
    %c0_i32_1 = arith.constant 0 : i32
    return %c0_i32, %c0_i32_0 : i32, i32
  }
  func.func @transform_1(%arg0: i32) -> (i32, i32) {
    %c0_i32 = arith.constant 0 : i32
    %c0_i32_0 = arith.constant 0 : i32
    %c0_i32_1 = arith.constant 0 : i32
    return %c0_i32, %c0_i32_0 : i32, i32
  }
  func.func @transform_2(%arg0: i32) -> (i32, i32) {
    %c0_i32 = arith.constant 0 : i32
    %c0_i32_0 = arith.constant 0 : i32
    %c0_i32_1 = arith.constant 0 : i32
    return %c0_i32, %c0_i32_0 : i32, i32
  }
  func.func @transform_3(%arg0: i32) -> (i32, i32) {
    %c0_i32 = arith.constant 0 : i32
    %c0_i32_0 = arith.constant 0 : i32
    %c0_i32_1 = arith.constant 0 : i32
    return %c0_i32, %c0_i32_0 : i32, i32
  }
  func.func @transform_4(%arg0: i32) -> (i32, i32) {
    %c0_i32 = arith.constant 0 : i32
    %c0_i32_0 = arith.constant 0 : i32
    %c0_i32_1 = arith.constant 0 : i32
    return %c0_i32, %c0_i32_0 : i32, i32
  }
  func.func @transform_5(%arg0: i32) -> (i32, i32) {
    %c0_i32 = arith.constant 0 : i32
    %c0_i32_0 = arith.constant 0 : i32
    %c0_i32_1 = arith.constant 0 : i32
    return %c0_i32, %c0_i32_0 : i32, i32
  }
  func.func @transform_6(%arg0: i32) -> (i32, i32) {
    %c0_i32 = arith.constant 0 : i32
    %c0_i32_0 = arith.constant 0 : i32
    %c0_i32_1 = arith.constant 0 : i32
    return %c0_i32, %c0_i32_0 : i32, i32
  }
}

</mosaic_0001>

<llo_original>
// kernel: discriminator_forward.4
$region0: #{discriminator_forward.4}
  #allocation0 [shape = 'u32[]', space=smem, size = 0x4, offset = 0x4, fixed_abs, tag = 'smem constant byte address 0x4 - core index']
  #allocation1 [shape = 'u32[72,128]{1,0:T(1,128)}', space=vmem, size = 0x9000, scoped, tag = 'internal scratch']
  %s0 = inlined_call_operand.vmem [shape: bf16[1024,81], index: 0, kind: input, shape index: {}]
  %s1 = inlined_call_operand.vmem [shape: bf16[81,128], index: 1, kind: input, shape index: {}]
  %s2 = inlined_call_operand.vmem [shape: f32[1024,1], index: 2, kind: input, shape index: {}]
  %s3 = inlined_call_operand.vmem [shape: f32[1024,128], index: 3, kind: output, shape index: {}]
  %s4 = sld [smem:[#allocation0]]
  $region22: #{discriminator_forward.4} parent=0
    _
  %s6 = ssub.s32 1, %s4
  %s7 = scalar_select 0, %s6, %s4
  // Predicated region
  $region2: #{discriminator_forward.4} parent=0 // pred_check
    _
  $region3: #{discriminator_forward.4} parent=0 // pred_check_branch
    %9 = sbr.rel (0) target = $region5
  $region4: #{discriminator_forward.4} parent=0 // pred_region
    _
  $region5: #{discriminator_forward.4} parent=0 // pred_fallthru
    _
  // Predicated region
  $region6: #{discriminator_forward.4} parent=0 // pred_check
    _
  $region7: #{discriminator_forward.4} parent=0 // pred_check_branch
    %11 = sbr.rel (0) target = $region9
  $region8: #{discriminator_forward.4} parent=0 // pred_region
    _
  $region9: #{discriminator_forward.4} parent=0 // pred_fallthru
    _
  // Predicated region
  $region10: #{discriminator_forward.4} parent=0 // pred_check
    _
  $region11: #{discriminator_forward.4} parent=0 // pred_check_branch
    %13 = sbr.rel (0) target = $region13
  $region12: #{discriminator_forward.4} parent=0 // pred_region
    _
  $region13: #{discriminator_forward.4} parent=0 // pred_fallthru
    _
  %v15 = vld [vmem:[%s0] sm:$0xf]
  %v16 = vld [vmem:[%s0 + $0x4] sm:$0xf]
  %v17 = vld [vmem:[%s0 + $0x8] sm:$0xf]
  %v18 = vld [vmem:[%s0 + $0xc] sm:$0xf]
  %v19 = vld [vmem:[%s0 + $0x10] sm:$0xf]
  %v20 = vld [vmem:[%s0 + $0x14] sm:$0xf]
  %v21 = vld [vmem:[%s0 + $0x18] sm:$0xf]
  %v22 = vld [vmem:[%s0 + $0x1c] sm:$0xf]
  %v23 = vld [vmem:[%s0 + $0x20] sm:$0xf]
  %v24 = vld [vmem:[%s0 + $0x24] sm:$0xf]
  %v25 = vld [vmem:[%s0 + $0x28] sm:$0xf]
  %v26 = vld [vmem:[%s0 + $0x2c] sm:$0xf]
  %v27 = vld [vmem:[%s0 + $0x30] sm:$0xf]
  %v28 = vld [vmem:[%s0 + $0x34] sm:$0xf]
  %v29 = vld [vmem:[%s0 + $0x38] sm:$0xf]
  %v30 = vld [vmem:[%s0 + $0x3c] sm:$0xf]
  %v31 = vld [vmem:[%s0 + $0x40] sm:$0xf]
  %v32 = vld [vmem:[%s0 + $0x44] sm:$0xf]
  %v33 = vld [vmem:[%s0 + $0x48] sm:$0xf]
  %v34 = vld [vmem:[%s0 + $0x4c] sm:$0xf]
  %v35 = vld [vmem:[%s0 + $0x50] sm:$0xf]
  %v36 = vld [vmem:[%s0 + $0x54] sm:$0xf]
  %v37 = vld [vmem:[%s0 + $0x58] sm:$0xf]
  %v38 = vld [vmem:[%s0 + $0x5c] sm:$0xf]
  %v39 = vld [vmem:[%s0 + $0x60] sm:$0xf]
  %v40 = vld [vmem:[%s0 + $0x64] sm:$0xf]
  %v41 = vld [vmem:[%s0 + $0x68] sm:$0xf]
  %v42 = vld [vmem:[%s0 + $0x6c] sm:$0xf]
  %v43 = vld [vmem:[%s0 + $0x70] sm:$0xf]
  %v44 = vld [vmem:[%s0 + $0x74] sm:$0xf]
  %v45 = vld [vmem:[%s0 + $0x78] sm:$0xf]
  %v46 = vld [vmem:[%s0 + $0x7c] sm:$0xf]
  %v47 = vld [vmem:[%s0 + $0x80] sm:$0xf]
  %v48 = vld [vmem:[%s0 + $0x84] sm:$0xf]
  %v49 = vld [vmem:[%s0 + $0x88] sm:$0xf]
  %v50 = vld [vmem:[%s0 + $0x8c] sm:$0xf]
  %v51 = vld [vmem:[%s0 + $0x90] sm:$0xf]
  %v52 = vld [vmem:[%s0 + $0x94] sm:$0xf]
  %v53 = vld [vmem:[%s0 + $0x98] sm:$0xf]
  %v54 = vld [vmem:[%s0 + $0x9c] sm:$0xf]
  %v55 = vld [vmem:[%s0 + $0xa0] sm:$0xf]
  %v56 = vld [vmem:[%s0 + $0xa4] sm:$0xf]
  %v57 = vld [vmem:[%s0 + $0xa8] sm:$0xf]
  %v58 = vld [vmem:[%s0 + $0xac] sm:$0xf]
  %v59 = vld [vmem:[%s0 + $0xb0] sm:$0xf]
  %v60 = vld [vmem:[%s0 + $0xb4] sm:$0xf]
  %v61 = vld [vmem:[%s0 + $0xb8] sm:$0xf]
  %v62 = vld [vmem:[%s0 + $0xbc] sm:$0xf]
  %v63 = vld [vmem:[%s0 + $0xc0] sm:$0xf]
  %v64 = vld [vmem:[%s0 + $0xc4] sm:$0xf]
  %v65 = vld [vmem:[%s0 + $0xc8] sm:$0xf]
  %v66 = vld [vmem:[%s0 + $0xcc] sm:$0xf]
  %v67 = vld [vmem:[%s0 + $0xd0] sm:$0xf]
  %v68 = vld [vmem:[%s0 + $0xd4] sm:$0xf]
  %v69 = vld [vmem:[%s0 + $0xd8] sm:$0xf]
  %v70 = vld [vmem:[%s0 + $0xdc] sm:$0xf]
  %v71 = vld [vmem:[%s0 + $0xe0] sm:$0xf]
  %v72 = vld [vmem:[%s0 + $0xe4] sm:$0xf]
  %v73 = vld [vmem:[%s0 + $0xe8] sm:$0xf]
  %v74 = vld [vmem:[%s0 + $0xec] sm:$0xf]
  %v75 = vld [vmem:[%s0 + $0xf0] sm:$0xf]
  %v76 = vld [vmem:[%s0 + $0xf4] sm:$0xf]
  %v77 = vld [vmem:[%s0 + $0xf8] sm:$0xf]
  %v78 = vld [vmem:[%s0 + $0xfc] sm:$0xf]
  %v79 = vld [vmem:[%s0 + $0x100] sm:$0xf]
  %v80 = vld [vmem:[%s0 + $0x104] sm:$0xf]
  %v81 = vld [vmem:[%s0 + $0x108] sm:$0xf]
  %v82 = vld [vmem:[%s0 + $0x10c] sm:$0xf]
  %v83 = vld [vmem:[%s0 + $0x110] sm:$0xf]
  %v84 = vld [vmem:[%s0 + $0x114] sm:$0xf]
  %v85 = vld [vmem:[%s0 + $0x118] sm:$0xf]
  %v86 = vld [vmem:[%s0 + $0x11c] sm:$0xf]
  %v87 = vld [vmem:[%s0 + $0x120] sm:$0xf]
  %v88 = vld [vmem:[%s0 + $0x124] sm:$0xf]
  %v89 = vld [vmem:[%s0 + $0x128] sm:$0xf]
  %v90 = vld [vmem:[%s0 + $0x12c] sm:$0xf]
  %v91 = vld [vmem:[%s0 + $0x130] sm:$0xf]
  %v92 = vld [vmem:[%s0 + $0x134] sm:$0xf]
  %v93 = vld [vmem:[%s0 + $0x138] sm:$0xf]
  %v94 = vld [vmem:[%s0 + $0x13c] sm:$0xf]
  %v95 = vld [vmem:[%s0 + $0x140] sm:$0xf]
  %v96 = vld [vmem:[%s0 + $0x144] sm:$0xf]
  %v97 = vld [vmem:[%s0 + $0x148] sm:$0xf]
  %v98 = vld [vmem:[%s0 + $0x14c] sm:$0xf]
  %v99 = vld [vmem:[%s0 + $0x150] sm:$0xf]
  %v100 = vld [vmem:[%s0 + $0x154] sm:$0xf]
  %v101 = vld [vmem:[%s0 + $0x158] sm:$0xf]
  %v102 = vld [vmem:[%s0 + $0x15c] sm:$0xf]
  %v103 = vld [vmem:[%s0 + $0x160] sm:$0xf]
  %v104 = vld [vmem:[%s0 + $0x164] sm:$0xf]
  %v105 = vld [vmem:[%s0 + $0x168] sm:$0xf]
  %v106 = vld [vmem:[%s0 + $0x16c] sm:$0xf]
  %v107 = vld [vmem:[%s0 + $0x170] sm:$0xf]
  %v108 = vld [vmem:[%s0 + $0x174] sm:$0xf]
  %v109 = vld [vmem:[%s0 + $0x178] sm:$0xf]
  %v110 = vld [vmem:[%s0 + $0x17c] sm:$0xf]
  %v111 = vld [vmem:[%s0 + $0x180] sm:$0xf]
  %v112 = vld [vmem:[%s0 + $0x184] sm:$0xf]
  %v113 = vld [vmem:[%s0 + $0x188] sm:$0xf]
  %v114 = vld [vmem:[%s0 + $0x18c] sm:$0xf]
  %v115 = vld [vmem:[%s0 + $0x190] sm:$0xf]
  %v116 = vld [vmem:[%s0 + $0x194] sm:$0xf]
  %v117 = vld [vmem:[%s0 + $0x198] sm:$0xf]
  %v118 = vld [vmem:[%s0 + $0x19c] sm:$0xf]
  %v119 = vld [vmem:[%s0 + $0x1a0] sm:$0xf]
  %v120 = vld [vmem:[%s0 + $0x1a4] sm:$0xf]
  %v121 = vld [vmem:[%s0 + $0x1a8] sm:$0xf]
  %v122 = vld [vmem:[%s0 + $0x1ac] sm:$0xf]
  %v123 = vld [vmem:[%s0 + $0x1b0] sm:$0xf]
  %v124 = vld [vmem:[%s0 + $0x1b4] sm:$0xf]
  %v125 = vld [vmem:[%s0 + $0x1b8] sm:$0xf]
  %v126 = vld [vmem:[%s0 + $0x1bc] sm:$0xf]
  %v127 = vld [vmem:[%s0 + $0x1c0] sm:$0xf]
  %v128 = vld [vmem:[%s0 + $0x1c4] sm:$0xf]
  %v129 = vld [vmem:[%s0 + $0x1c8] sm:$0xf]
  %v130 = vld [vmem:[%s0 + $0x1cc] sm:$0xf]
  %v131 = vld [vmem:[%s0 + $0x1d0] sm:$0xf]
  %v132 = vld [vmem:[%s0 + $0x1d4] sm:$0xf]
  %v133 = vld [vmem:[%s0 + $0x1d8] sm:$0xf]
  %v134 = vld [vmem:[%s0 + $0x1dc] sm:$0xf]
  %v135 = vld [vmem:[%s0 + $0x1e0] sm:$0xf]
  %v136 = vld [vmem:[%s0 + $0x1e4] sm:$0xf]
  %v137 = vld [vmem:[%s0 + $0x1e8] sm:$0xf]
  %v138 = vld [vmem:[%s0 + $0x1ec] sm:$0xf]
  %v139 = vld [vmem:[%s0 + $0x1f0] sm:$0xf]
  %v140 = vld [vmem:[%s0 + $0x1f4] sm:$0xf]
  %v141 = vld [vmem:[%s0 + $0x1f8] sm:$0xf]
  %v142 = vld [vmem:[%s0 + $0x1fc] sm:$0xf]
  %v143 = vld [vmem:[%s1] sm:$0xf]
  %v144 = vld [vmem:[%s1 + $0x4] sm:$0xf]
  %v145 = vld [vmem:[%s1 + $0x8] sm:$0xf]
  %v146 = vld [vmem:[%s1 + $0xc] sm:$0xf]
  %v147 = vld [vmem:[%s1 + $0x10] sm:$0xf]
  %v148 = vld [vmem:[%s1 + $0x14] sm:$0xf]
  %v149 = vld [vmem:[%s1 + $0x18] sm:$0xf]
  %v150 = vld [vmem:[%s1 + $0x1c] sm:$0xf]
  %v151 = vld [vmem:[%s1 + $0x20] sm:$0xf]
  %v152 = vld [vmem:[%s1 + $0x24] sm:$0xf]
  %v153 = vld [vmem:[%s1 + $0x28] sm:$0x1]
  %v282 = vunpack.c.l.b16 %v15
  %v283 = vunpack.c.l.b16 %v16
  %v284 = vunpack.c.l.b16 %v17
  %v285 = vunpack.c.l.b16 %v18
  %v286 = vunpack.c.l.b16 %v19
  %v287 = vunpack.c.l.b16 %v20
  %v288 = vunpack.c.l.b16 %v21
  %v289 = vunpack.c.l.b16 %v22
  %v290 = vunpack.c.l.b16 %v23
  %v291 = vunpack.c.l.b16 %v24
  %v292 = vunpack.c.l.b16 %v25
  %v293 = vunpack.c.l.b16 %v26
  %v294 = vunpack.c.l.b16 %v27
  %v295 = vunpack.c.l.b16 %v28
  %v296 = vunpack.c.l.b16 %v29
  %v297 = vunpack.c.l.b16 %v30
  %v298 = vunpack.c.l.b16 %v31
  %v299 = vunpack.c.l.b16 %v32
  %v300 = vunpack.c.l.b16 %v33
  %v301 = vunpack.c.l.b16 %v34
  %v302 = vunpack.c.l.b16 %v35
  %v303 = vunpack.c.l.b16 %v36
  %v304 = vunpack.c.l.b16 %v37
  %v305 = vunpack.c.l.b16 %v38
  %v306 = vunpack.c.l.b16 %v39
  %v307 = vunpack.c.l.b16 %v40
  %v308 = vunpack.c.l.b16 %v41
  %v309 = vunpack.c.l.b16 %v42
  %v310 = vunpack.c.l.b16 %v43
  %v311 = vunpack.c.l.b16 %v44
  %v312 = vunpack.c.l.b16 %v45
  %v313 = vunpack.c.l.b16 %v46
  %v314 = vunpack.c.l.b16 %v47
  %v315 = vunpack.c.l.b16 %v48
  %v316 = vunpack.c.l.b16 %v49
  %v317 = vunpack.c.l.b16 %v50
  %v318 = vunpack.c.l.b16 %v51
  %v319 = vunpack.c.l.b16 %v52
  %v320 = vunpack.c.l.b16 %v53
  %v321 = vunpack.c.l.b16 %v54
  %v322 = vunpack.c.l.b16 %v55
  %v323 = vunpack.c.l.b16 %v56
  %v324 = vunpack.c.l.b16 %v57
  %v325 = vunpack.c.l.b16 %v58
  %v326 = vunpack.c.l.b16 %v59
  %v327 = vunpack.c.l.b16 %v60
  %v328 = vunpack.c.l.b16 %v61
  %v329 = vunpack.c.l.b16 %v62
  %v330 = vunpack.c.l.b16 %v63
  %v331 = vunpack.c.l.b16 %v64
  %v332 = vunpack.c.l.b16 %v65
  %v333 = vunpack.c.l.b16 %v66
  %v334 = vunpack.c.l.b16 %v67
  %v335 = vunpack.c.l.b16 %v68
  %v336 = vunpack.c.l.b16 %v69
  %v337 = vunpack.c.l.b16 %v70
  %v338 = vunpack.c.l.b16 %v71
  %v339 = vunpack.c.l.b16 %v72
  %v340 = vunpack.c.l.b16 %v73
  %v341 = vunpack.c.l.b16 %v74
  %v342 = vunpack.c.l.b16 %v75
  %v343 = vunpack.c.l.b16 %v76
  %v344 = vunpack.c.l.b16 %v77
  %v345 = vunpack.c.l.b16 %v78
  %v346 = vunpack.c.l.b16 %v79
  %v347 = vunpack.c.l.b16 %v80
  %v348 = vunpack.c.l.b16 %v81
  %v349 = vunpack.c.l.b16 %v82
  %v350 = vunpack.c.l.b16 %v83
  %v351 = vunpack.c.l.b16 %v84
  %v352 = vunpack.c.l.b16 %v85
  %v353 = vunpack.c.l.b16 %v86
  %v354 = vunpack.c.l.b16 %v87
  %v355 = vunpack.c.l.b16 %v88
  %v356 = vunpack.c.l.b16 %v89
  %v357 = vunpack.c.l.b16 %v90
  %v358 = vunpack.c.l.b16 %v91
  %v359 = vunpack.c.l.b16 %v92
  %v360 = vunpack.c.l.b16 %v93
  %v361 = vunpack.c.l.b16 %v94
  %v362 = vunpack.c.l.b16 %v95
  %v363 = vunpack.c.l.b16 %v96
  %v364 = vunpack.c.l.b16 %v97
  %v365 = vunpack.c.l.b16 %v98
  %v366 = vunpack.c.l.b16 %v99
  %v367 = vunpack.c.l.b16 %v100
  %v368 = vunpack.c.l.b16 %v101
  %v369 = vunpack.c.l.b16 %v102
  %v370 = vunpack.c.l.b16 %v103
  %v371 = vunpack.c.l.b16 %v104
  %v372 = vunpack.c.l.b16 %v105
  %v373 = vunpack.c.l.b16 %v106
  %v374 = vunpack.c.l.b16 %v107
  %v375 = vunpack.c.l.b16 %v108
  %v376 = vunpack.c.l.b16 %v109
  %v377 = vunpack.c.l.b16 %v110
  %v378 = vunpack.c.l.b16 %v111
  %v379 = vunpack.c.l.b16 %v112
  %v380 = vunpack.c.l.b16 %v113
  %v381 = vunpack.c.l.b16 %v114
  %v382 = vunpack.c.l.b16 %v115
  %v383 = vunpack.c.l.b16 %v116
  %v384 = vunpack.c.l.b16 %v117
  %v385 = vunpack.c.l.b16 %v118
  %v386 = vunpack.c.l.b16 %v119
  %v387 = vunpack.c.l.b16 %v120
  %v388 = vunpack.c.l.b16 %v121
  %v389 = vunpack.c.l.b16 %v122
  %v390 = vunpack.c.l.b16 %v123
  %v391 = vunpack.c.l.b16 %v124
  %v392 = vunpack.c.l.b16 %v125
  %v393 = vunpack.c.l.b16 %v126
  %v394 = vunpack.c.l.b16 %v127
  %v395 = vunpack.c.l.b16 %v128
  %v396 = vunpack.c.l.b16 %v129
  %v397 = vunpack.c.l.b16 %v130
  %v398 = vunpack.c.l.b16 %v131
  %v399 = vunpack.c.l.b16 %v132
  %v400 = vunpack.c.l.b16 %v133
  %v401 = vunpack.c.l.b16 %v134
  %v402 = vunpack.c.l.b16 %v135
  %v403 = vunpack.c.l.b16 %v136
  %v404 = vunpack.c.l.b16 %v137
  %v405 = vunpack.c.l.b16 %v138
  %v406 = vunpack.c.l.b16 %v139
  %v407 = vunpack.c.l.b16 %v140
  %v408 = vunpack.c.l.b16 %v141
  %v409 = vunpack.c.l.b16 %v142
  %v410 = vpack.c.b16 %v283, %v282
  %v411 = vpack.c.b16 %v285, %v284
  %v412 = vpack.c.b16 %v287, %v286
  %v413 = vpack.c.b16 %v289, %v288
  %v414 = vpack.c.b16 %v291, %v290
  %v415 = vpack.c.b16 %v293, %v292
  %v416 = vpack.c.b16 %v295, %v294
  %v417 = vpack.c.b16 %v297, %v296
  %v418 = vpack.c.b16 %v299, %v298
  %v419 = vpack.c.b16 %v301, %v300
  %v420 = vpack.c.b16 %v303, %v302
  %v421 = vpack.c.b16 %v305, %v304
  %v422 = vpack.c.b16 %v307, %v306
  %v423 = vpack.c.b16 %v309, %v308
  %v424 = vpack.c.b16 %v311, %v310
  %v425 = vpack.c.b16 %v313, %v312
  %v426 = vpack.c.b16 %v315, %v314
  %v427 = vpack.c.b16 %v317, %v316
  %v428 = vpack.c.b16 %v319, %v318
  %v429 = vpack.c.b16 %v321, %v320
  %v430 = vpack.c.b16 %v323, %v322
  %v431 = vpack.c.b16 %v325, %v324
  %v432 = vpack.c.b16 %v327, %v326
  %v433 = vpack.c.b16 %v329, %v328
  %v434 = vpack.c.b16 %v331, %v330
  %v435 = vpack.c.b16 %v333, %v332
  %v436 = vpack.c.b16 %v335, %v334
  %v437 = vpack.c.b16 %v337, %v336
  %v438 = vpack.c.b16 %v339, %v338
  %v439 = vpack.c.b16 %v341, %v340
  %v440 = vpack.c.b16 %v343, %v342
  %v441 = vpack.c.b16 %v345, %v344
  %v442 = vpack.c.b16 %v347, %v346
  %v443 = vpack.c.b16 %v349, %v348
  %v444 = vpack.c.b16 %v351, %v350
  %v445 = vpack.c.b16 %v353, %v352
  %v446 = vpack.c.b16 %v355, %v354
  %v447 = vpack.c.b16 %v357, %v356
  %v448 = vpack.c.b16 %v359, %v358
  %v449 = vpack.c.b16 %v361, %v360
  %v450 = vpack.c.b16 %v363, %v362
  %v451 = vpack.c.b16 %v365, %v364
  %v452 = vpack.c.b16 %v367, %v366
  %v453 = vpack.c.b16 %v369, %v368
  %v454 = vpack.c.b16 %v371, %v370
  %v455 = vpack.c.b16 %v373, %v372
  %v456 = vpack.c.b16 %v375, %v374
  %v457 = vpack.c.b16 %v377, %v376
  %v458 = vpack.c.b16 %v379, %v378
  %v459 = vpack.c.b16 %v381, %v380
  %v460 = vpack.c.b16 %v383, %v382
  %v461 = vpack.c.b16 %v385, %v384
  %v462 = vpack.c.b16 %v387, %v386
  %v463 = vpack.c.b16 %v389, %v388
  %v464 = vpack.c.b16 %v391, %v390
  %v465 = vpack.c.b16 %v393, %v392
  %v466 = vpack.c.b16 %v395, %v394
  %v467 = vpack.c.b16 %v397, %v396
  %v468 = vpack.c.b16 %v399, %v398
  %v469 = vpack.c.b16 %v401, %v400
  %v470 = vpack.c.b16 %v403, %v402
  %v471 = vpack.c.b16 %v405, %v404
  %v472 = vpack.c.b16 %v407, %v406
  %v473 = vpack.c.b16 %v409, %v408
  %v485 = vunpack.c.l.b16 %v143
  %v486 = vunpack.c.l.b16 %v144
  %v487 = vunpack.c.l.b16 %v145
  %v488 = vunpack.c.l.b16 %v146
  %v489 = vunpack.c.l.b16 %v147
  %v490 = vunpack.c.l.b16 %v148
  %v491 = vunpack.c.l.b16 %v149
  %v492 = vunpack.c.l.b16 %v150
  %v493 = vunpack.c.l.b16 %v151
  %v494 = vunpack.c.l.b16 %v152
  %v495 = vunpack.c.l.b16 %v153
  %v496 = vpack.c.b16 %v486, %v485
  %v497 = vpack.c.b16 %v488, %v487
  %v498 = vpack.c.b16 %v490, %v489
  %v499 = vpack.c.b16 %v492, %v491
  %v500 = vpack.c.b16 %v494, %v493
  %v501 = vpack.c.b16 %v495, %v495
  %vm507 = vcmask 662528
  %v509 = vsel %vm507, %v410, 0
  %v512 = vsel %vm507, %v411, 0
  %v515 = vsel %vm507, %v412, 0
  %v518 = vsel %vm507, %v413, 0
  %v521 = vsel %vm507, %v414, 0
  %v524 = vsel %vm507, %v415, 0
  %v527 = vsel %vm507, %v416, 0
  %v530 = vsel %vm507, %v417, 0
  %v533 = vsel %vm507, %v418, 0
  %v536 = vsel %vm507, %v419, 0
  %v539 = vsel %vm507, %v420, 0
  %v542 = vsel %vm507, %v421, 0
  %v545 = vsel %vm507, %v422, 0
  %v548 = vsel %vm507, %v423, 0
  %v551 = vsel %vm507, %v424, 0
  %v554 = vsel %vm507, %v425, 0
  %v557 = vsel %vm507, %v426, 0
  %v560 = vsel %vm507, %v427, 0
  %v563 = vsel %vm507, %v428, 0
  %v566 = vsel %vm507, %v429, 0
  %v569 = vsel %vm507, %v430, 0
  %v572 = vsel %vm507, %v431, 0
  %v575 = vsel %vm507, %v432, 0
  %v578 = vsel %vm507, %v433, 0
  %v581 = vsel %vm507, %v434, 0
  %v584 = vsel %vm507, %v435, 0
  %v587 = vsel %vm507, %v436, 0
  %v590 = vsel %vm507, %v437, 0
  %v593 = vsel %vm507, %v438, 0
  %v596 = vsel %vm507, %v439, 0
  %v599 = vsel %vm507, %v440, 0
  %v602 = vsel %vm507, %v441, 0
  %v605 = vsel %vm507, %v442, 0
  %v608 = vsel %vm507, %v443, 0
  %v611 = vsel %vm507, %v444, 0
  %v614 = vsel %vm507, %v445, 0
  %v617 = vsel %vm507, %v446, 0
  %v620 = vsel %vm507, %v447, 0
  %v623 = vsel %vm507, %v448, 0
  %v626 = vsel %vm507, %v449, 0
  %v629 = vsel %vm507, %v450, 0
  %v632 = vsel %vm507, %v451, 0
  %v635 = vsel %vm507, %v452, 0
  %v638 = vsel %vm507, %v453, 0
  %v641 = vsel %vm507, %v454, 0
  %v644 = vsel %vm507, %v455, 0
  %v647 = vsel %vm507, %v456, 0
  %v650 = vsel %vm507, %v457, 0
  %v653 = vsel %vm507, %v458, 0
  %v656 = vsel %vm507, %v459, 0
  %v659 = vsel %vm507, %v460, 0
  %v662 = vsel %vm507, %v461, 0
  %v665 = vsel %vm507, %v462, 0
  %v668 = vsel %vm507, %v463, 0
  %v671 = vsel %vm507, %v464, 0
  %v674 = vsel %vm507, %v465, 0
  %v677 = vsel %vm507, %v466, 0
  %v680 = vsel %vm507, %v467, 0
  %v683 = vsel %vm507, %v468, 0
  %v686 = vsel %vm507, %v469, 0
  %v689 = vsel %vm507, %v470, 0
  %v692 = vsel %vm507, %v471, 0
  %v695 = vsel %vm507, %v472, 0
  %v698 = vsel %vm507, %v473, 0
  %vm700 = vcmask 1040384
  %v701 = vsel 0, 4294967295, 65535
  %v702 = vsel %vm700, %v701, 0
  %v704 = vand.u32 %v501, %v702
  %706 = vmatpush.bf16.msra.mxu0 0
  %707 = vmatpush.bf16.msra.mxu0 0
  %708 = vmatpush.bf16.msra.mxu0 %v704
  %709 = vmatpush.bf16.msra.mxu0 %v500
  %710 = vmatpush.bf16.msra.mxu0 %v499
  %711 = vmatpush.bf16.msra.mxu0 %v498
  %712 = vmatpush.bf16.msra.mxu0 %v497
  %713 = vmatpush.bf16.msra.mxu0 %v496
  %714 = vmatmul.bf16.gmra.mxu0 %v509
  %v715 = vpop.f32.mrf.mxu0
  %v716 = vadd.f32 0.0, %v715
  %v717 = vpop.f32.mrf.mxu0
  %v718 = vadd.f32 0.0, %v717
  %719 = vmatmul.bf16.gmra.mxu0 %v512
  %v720 = vpop.f32.mrf.mxu0
  %v721 = vadd.f32 0.0, %v720
  %v722 = vpop.f32.mrf.mxu0
  %v723 = vadd.f32 0.0, %v722
  %724 = vmatmul.bf16.gmra.mxu0 %v515
  %v725 = vpop.f32.mrf.mxu0
  %v726 = vadd.f32 0.0, %v725
  %v727 = vpop.f32.mrf.mxu0
  %v728 = vadd.f32 0.0, %v727
  %729 = vmatmul.bf16.gmra.mxu0 %v518
  %v730 = vpop.f32.mrf.mxu0
  %v731 = vadd.f32 0.0, %v730
  %v732 = vpop.f32.mrf.mxu0
  %v733 = vadd.f32 0.0, %v732
  %734 = vmatmul.bf16.gmra.mxu0 %v521
  %v735 = vpop.f32.mrf.mxu0
  %v736 = vadd.f32 0.0, %v735
  %v737 = vpop.f32.mrf.mxu0
  %v738 = vadd.f32 0.0, %v737
  %739 = vmatmul.bf16.gmra.mxu0 %v524
  %v740 = vpop.f32.mrf.mxu0
  %v741 = vadd.f32 0.0, %v740
  %v742 = vpop.f32.mrf.mxu0
  %v743 = vadd.f32 0.0, %v742
  %744 = vmatmul.bf16.gmra.mxu0 %v527
  %v745 = vpop.f32.mrf.mxu0
  %v746 = vadd.f32 0.0, %v745
  %v747 = vpop.f32.mrf.mxu0
  %v748 = vadd.f32 0.0, %v747
  %749 = vmatmul.bf16.gmra.mxu0 %v530
  %v750 = vpop.f32.mrf.mxu0
  %v751 = vadd.f32 0.0, %v750
  %v752 = vpop.f32.mrf.mxu0
  %v753 = vadd.f32 0.0, %v752
  %754 = vmatmul.bf16.gmra.mxu0 %v533
  %v755 = vpop.f32.mrf.mxu0
  %v756 = vadd.f32 0.0, %v755
  %v757 = vpop.f32.mrf.mxu0
  %v758 = vadd.f32 0.0, %v757
  %759 = vmatmul.bf16.gmra.mxu0 %v536
  %v760 = vpop.f32.mrf.mxu0
  %v761 = vadd.f32 0.0, %v760
  %v762 = vpop.f32.mrf.mxu0
  %v763 = vadd.f32 0.0, %v762
  %764 = vmatmul.bf16.gmra.mxu0 %v539
  %v765 = vpop.f32.mrf.mxu0
  %v766 = vadd.f32 0.0, %v765
  %v767 = vpop.f32.mrf.mxu0
  %v768 = vadd.f32 0.0, %v767
  %769 = vmatmul.bf16.gmra.mxu0 %v542
  %v770 = vpop.f32.mrf.mxu0
  %v771 = vadd.f32 0.0, %v770
  %v772 = vpop.f32.mrf.mxu0
  %v773 = vadd.f32 0.0, %v772
  %774 = vmatmul.bf16.gmra.mxu0 %v545
  %v775 = vpop.f32.mrf.mxu0
  %v776 = vadd.f32 0.0, %v775
  %v777 = vpop.f32.mrf.mxu0
  %v778 = vadd.f32 0.0, %v777
  %779 = vmatmul.bf16.gmra.mxu0 %v548
  %v780 = vpop.f32.mrf.mxu0
  %v781 = vadd.f32 0.0, %v780
  %v782 = vpop.f32.mrf.mxu0
  %v783 = vadd.f32 0.0, %v782
  %784 = vmatmul.bf16.gmra.mxu0 %v551
  %v785 = vpop.f32.mrf.mxu0
  %v786 = vadd.f32 0.0, %v785
  %v787 = vpop.f32.mrf.mxu0
  %v788 = vadd.f32 0.0, %v787
  %789 = vmatmul.bf16.gmra.mxu0 %v554
  %v790 = vpop.f32.mrf.mxu0
  %v791 = vadd.f32 0.0, %v790
  %v792 = vpop.f32.mrf.mxu0
  %v793 = vadd.f32 0.0, %v792
  %794 = vmatmul.bf16.gmra.mxu0 %v557
  %v795 = vpop.f32.mrf.mxu0
  %v796 = vadd.f32 0.0, %v795
  %v797 = vpop.f32.mrf.mxu0
  %v798 = vadd.f32 0.0, %v797
  %799 = vmatmul.bf16.gmra.mxu0 %v560
  %v800 = vpop.f32.mrf.mxu0
  %v801 = vadd.f32 0.0, %v800
  %v802 = vpop.f32.mrf.mxu0
  %v803 = vadd.f32 0.0, %v802
  %804 = vmatmul.bf16.gmra.mxu0 %v563
  %v805 = vpop.f32.mrf.mxu0
  %v806 = vadd.f32 0.0, %v805
  %v807 = vpop.f32.mrf.mxu0
  %v808 = vadd.f32 0.0, %v807
  %809 = vmatmul.bf16.gmra.mxu0 %v566
  %v810 = vpop.f32.mrf.mxu0
  %v811 = vadd.f32 0.0, %v810
  %v812 = vpop.f32.mrf.mxu0
  %v813 = vadd.f32 0.0, %v812
  %814 = vmatmul.bf16.gmra.mxu0 %v569
  %v815 = vpop.f32.mrf.mxu0
  %v816 = vadd.f32 0.0, %v815
  %v817 = vpop.f32.mrf.mxu0
  %v818 = vadd.f32 0.0, %v817
  %819 = vmatmul.bf16.gmra.mxu0 %v572
  %v820 = vpop.f32.mrf.mxu0
  %v821 = vadd.f32 0.0, %v820
  %v822 = vpop.f32.mrf.mxu0
  %v823 = vadd.f32 0.0, %v822
  %824 = vmatmul.bf16.gmra.mxu0 %v575
  %v825 = vpop.f32.mrf.mxu0
  %v826 = vadd.f32 0.0, %v825
  %v827 = vpop.f32.mrf.mxu0
  %v828 = vadd.f32 0.0, %v827
  %829 = vmatmul.bf16.gmra.mxu0 %v578
  %v830 = vpop.f32.mrf.mxu0
  %v831 = vadd.f32 0.0, %v830
  %v832 = vpop.f32.mrf.mxu0
  %v833 = vadd.f32 0.0, %v832
  %834 = vmatmul.bf16.gmra.mxu0 %v581
  %v835 = vpop.f32.mrf.mxu0
  %v836 = vadd.f32 0.0, %v835
  %v837 = vpop.f32.mrf.mxu0
  %v838 = vadd.f32 0.0, %v837
  %839 = vmatmul.bf16.gmra.mxu0 %v584
  %v840 = vpop.f32.mrf.mxu0
  %v841 = vadd.f32 0.0, %v840
  %v842 = vpop.f32.mrf.mxu0
  %v843 = vadd.f32 0.0, %v842
  %844 = vmatmul.bf16.gmra.mxu0 %v587
  %v845 = vpop.f32.mrf.mxu0
  %v846 = vadd.f32 0.0, %v845
  %v847 = vpop.f32.mrf.mxu0
  %v848 = vadd.f32 0.0, %v847
  %849 = vmatmul.bf16.gmra.mxu0 %v590
  %v850 = vpop.f32.mrf.mxu0
  %v851 = vadd.f32 0.0, %v850
  %v852 = vpop.f32.mrf.mxu0
  %v853 = vadd.f32 0.0, %v852
  %854 = vmatmul.bf16.gmra.mxu0 %v593
  %v855 = vpop.f32.mrf.mxu0
  %v856 = vadd.f32 0.0, %v855
  %v857 = vpop.f32.mrf.mxu0
  %v858 = vadd.f32 0.0, %v857
  %859 = vmatmul.bf16.gmra.mxu0 %v596
  %v860 = vpop.f32.mrf.mxu0
  %v861 = vadd.f32 0.0, %v860
  %v862 = vpop.f32.mrf.mxu0
  %v863 = vadd.f32 0.0, %v862
  %864 = vmatmul.bf16.gmra.mxu0 %v599
  %v865 = vpop.f32.mrf.mxu0
  %v866 = vadd.f32 0.0, %v865
  %v867 = vpop.f32.mrf.mxu0
  %v868 = vadd.f32 0.0, %v867
  %869 = vmatmul.bf16.gmra.mxu0 %v602
  %v870 = vpop.f32.mrf.mxu0
  %v871 = vadd.f32 0.0, %v870
  %v872 = vpop.f32.mrf.mxu0
  %v873 = vadd.f32 0.0, %v872
  %874 = vmatmul.bf16.gmra.mxu0 %v605
  %v875 = vpop.f32.mrf.mxu0
  %v876 = vadd.f32 0.0, %v875
  %v877 = vpop.f32.mrf.mxu0
  %v878 = vadd.f32 0.0, %v877
  %879 = vmatmul.bf16.gmra.mxu0 %v608
  %v880 = vpop.f32.mrf.mxu0
  %v881 = vadd.f32 0.0, %v880
  %v882 = vpop.f32.mrf.mxu0
  %v883 = vadd.f32 0.0, %v882
  %884 = vmatmul.bf16.gmra.mxu0 %v611
  %v885 = vpop.f32.mrf.mxu0
  %v886 = vadd.f32 0.0, %v885
  %v887 = vpop.f32.mrf.mxu0
  %v888 = vadd.f32 0.0, %v887
  %889 = vmatmul.bf16.gmra.mxu0 %v614
  %v890 = vpop.f32.mrf.mxu0
  %v891 = vadd.f32 0.0, %v890
  %v892 = vpop.f32.mrf.mxu0
  %v893 = vadd.f32 0.0, %v892
  %894 = vmatmul.bf16.gmra.mxu0 %v617
  %v895 = vpop.f32.mrf.mxu0
  %v896 = vadd.f32 0.0, %v895
  %v897 = vpop.f32.mrf.mxu0
  %v898 = vadd.f32 0.0, %v897
  %899 = vmatmul.bf16.gmra.mxu0 %v620
  %v900 = vpop.f32.mrf.mxu0
  %v901 = vadd.f32 0.0, %v900
  %v902 = vpop.f32.mrf.mxu0
  %v903 = vadd.f32 0.0, %v902
  %904 = vmatmul.bf16.gmra.mxu0 %v623
  %v905 = vpop.f32.mrf.mxu0
  %v906 = vadd.f32 0.0, %v905
  %v907 = vpop.f32.mrf.mxu0
  %v908 = vadd.f32 0.0, %v907
  %909 = vmatmul.bf16.gmra.mxu0 %v626
  %v910 = vpop.f32.mrf.mxu0
  %v911 = vadd.f32 0.0, %v910
  %v912 = vpop.f32.mrf.mxu0
  %v913 = vadd.f32 0.0, %v912
  %914 = vmatmul.bf16.gmra.mxu0 %v629
  %v915 = vpop.f32.mrf.mxu0
  %v916 = vadd.f32 0.0, %v915
  %v917 = vpop.f32.mrf.mxu0
  %v918 = vadd.f32 0.0, %v917
  %919 = vmatmul.bf16.gmra.mxu0 %v632
  %v920 = vpop.f32.mrf.mxu0
  %v921 = vadd.f32 0.0, %v920
  %v922 = vpop.f32.mrf.mxu0
  %v923 = vadd.f32 0.0, %v922
  %924 = vmatmul.bf16.gmra.mxu0 %v635
  %v925 = vpop.f32.mrf.mxu0
  %v926 = vadd.f32 0.0, %v925
  %v927 = vpop.f32.mrf.mxu0
  %v928 = vadd.f32 0.0, %v927
  %929 = vmatmul.bf16.gmra.mxu0 %v638
  %v930 = vpop.f32.mrf.mxu0
  %v931 = vadd.f32 0.0, %v930
  %v932 = vpop.f32.mrf.mxu0
  %v933 = vadd.f32 0.0, %v932
  %934 = vmatmul.bf16.gmra.mxu0 %v641
  %v935 = vpop.f32.mrf.mxu0
  %v936 = vadd.f32 0.0, %v935
  %v937 = vpop.f32.mrf.mxu0
  %v938 = vadd.f32 0.0, %v937
  %939 = vmatmul.bf16.gmra.mxu0 %v644
  %v940 = vpop.f32.mrf.mxu0
  %v941 = vadd.f32 0.0, %v940
  %v942 = vpop.f32.mrf.mxu0
  %v943 = vadd.f32 0.0, %v942
  %944 = vmatmul.bf16.gmra.mxu0 %v647
  %v945 = vpop.f32.mrf.mxu0
  %v946 = vadd.f32 0.0, %v945
  %v947 = vpop.f32.mrf.mxu0
  %v948 = vadd.f32 0.0, %v947
  %949 = vmatmul.bf16.gmra.mxu0 %v650
  %v950 = vpop.f32.mrf.mxu0
  %v951 = vadd.f32 0.0, %v950
  %v952 = vpop.f32.mrf.mxu0
  %v953 = vadd.f32 0.0, %v952
  %954 = vmatmul.bf16.gmra.mxu0 %v653
  %v955 = vpop.f32.mrf.mxu0
  %v956 = vadd.f32 0.0, %v955
  %v957 = vpop.f32.mrf.mxu0
  %v958 = vadd.f32 0.0, %v957
  %959 = vmatmul.bf16.gmra.mxu0 %v656
  %v960 = vpop.f32.mrf.mxu0
  %v961 = vadd.f32 0.0, %v960
  %v962 = vpop.f32.mrf.mxu0
  %v963 = vadd.f32 0.0, %v962
  %964 = vmatmul.bf16.gmra.mxu0 %v659
  %v965 = vpop.f32.mrf.mxu0
  %v966 = vadd.f32 0.0, %v965
  %v967 = vpop.f32.mrf.mxu0
  %v968 = vadd.f32 0.0, %v967
  %969 = vmatmul.bf16.gmra.mxu0 %v662
  %v970 = vpop.f32.mrf.mxu0
  %v971 = vadd.f32 0.0, %v970
  %v972 = vpop.f32.mrf.mxu0
  %v973 = vadd.f32 0.0, %v972
  %974 = vmatmul.bf16.gmra.mxu0 %v665
  %v975 = vpop.f32.mrf.mxu0
  %v976 = vadd.f32 0.0, %v975
  %v977 = vpop.f32.mrf.mxu0
  %v978 = vadd.f32 0.0, %v977
  %979 = vmatmul.bf16.gmra.mxu0 %v668
  %v980 = vpop.f32.mrf.mxu0
  %v981 = vadd.f32 0.0, %v980
  %v982 = vpop.f32.mrf.mxu0
  %v983 = vadd.f32 0.0, %v982
  %984 = vmatmul.bf16.gmra.mxu0 %v671
  %v985 = vpop.f32.mrf.mxu0
  %v986 = vadd.f32 0.0, %v985
  %v987 = vpop.f32.mrf.mxu0
  %v988 = vadd.f32 0.0, %v987
  %989 = vmatmul.bf16.gmra.mxu0 %v674
  %v990 = vpop.f32.mrf.mxu0
  %v991 = vadd.f32 0.0, %v990
  %v992 = vpop.f32.mrf.mxu0
  %v993 = vadd.f32 0.0, %v992
  %994 = vmatmul.bf16.gmra.mxu0 %v677
  %v995 = vpop.f32.mrf.mxu0
  %v996 = vadd.f32 0.0, %v995
  %v997 = vpop.f32.mrf.mxu0
  %v998 = vadd.f32 0.0, %v997
  %999 = vmatmul.bf16.gmra.mxu0 %v680
  %v1000 = vpop.f32.mrf.mxu0
  %v1001 = vadd.f32 0.0, %v1000
  %v1002 = vpop.f32.mrf.mxu0
  %v1003 = vadd.f32 0.0, %v1002
  %1004 = vmatmul.bf16.gmra.mxu0 %v683
  %v1005 = vpop.f32.mrf.mxu0
  %v1006 = vadd.f32 0.0, %v1005
  %v1007 = vpop.f32.mrf.mxu0
  %v1008 = vadd.f32 0.0, %v1007
  %1009 = vmatmul.bf16.gmra.mxu0 %v686
  %v1010 = vpop.f32.mrf.mxu0
  %v1011 = vadd.f32 0.0, %v1010
  %v1012 = vpop.f32.mrf.mxu0
  %v1013 = vadd.f32 0.0, %v1012
  %1014 = vmatmul.bf16.gmra.mxu0 %v689
  %v1015 = vpop.f32.mrf.mxu0
  %v1016 = vadd.f32 0.0, %v1015
  %v1017 = vpop.f32.mrf.mxu0
  %v1018 = vadd.f32 0.0, %v1017
  %1019 = vmatmul.bf16.gmra.mxu0 %v692
  %v1020 = vpop.f32.mrf.mxu0
  %v1021 = vadd.f32 0.0, %v1020
  %v1022 = vpop.f32.mrf.mxu0
  %v1023 = vadd.f32 0.0, %v1022
  %1024 = vmatmul.bf16.gmra.mxu0 %v695
  %v1025 = vpop.f32.mrf.mxu0
  %v1026 = vadd.f32 0.0, %v1025
  %v1027 = vpop.f32.mrf.mxu0
  %v1028 = vadd.f32 0.0, %v1027
  %1029 = vmatmul.bf16.gmra.mxu0 %v698
  %v1030 = vpop.f32.mrf.mxu0
  %v1031 = vadd.f32 0.0, %v1030
  %v1032 = vpop.f32.mrf.mxu0
  %v1033 = vadd.f32 0.0, %v1032
  %1034 = vdwg.mxu0
  %v1035 = vld [vmem:[%s2] sm:$0xff]
  %v1036 = vld [vmem:[%s2 + $0x8] sm:$0xff]
  %v1037 = vld [vmem:[%s2 + $0x10] sm:$0xff]
  %v1038 = vld [vmem:[%s2 + $0x18] sm:$0xff]
  %v1039 = vld [vmem:[%s2 + $0x20] sm:$0xff]
  %v1040 = vld [vmem:[%s2 + $0x28] sm:$0xff]
  %v1041 = vld [vmem:[%s2 + $0x30] sm:$0xff]
  %v1042 = vld [vmem:[%s2 + $0x38] sm:$0xff]
  %v1043 = vld [vmem:[%s2 + $0x40] sm:$0xff]
  %v1044 = vld [vmem:[%s2 + $0x48] sm:$0xff]
  %v1045 = vld [vmem:[%s2 + $0x50] sm:$0xff]
  %v1046 = vld [vmem:[%s2 + $0x58] sm:$0xff]
  %v1047 = vld [vmem:[%s2 + $0x60] sm:$0xff]
  %v1048 = vld [vmem:[%s2 + $0x68] sm:$0xff]
  %v1049 = vld [vmem:[%s2 + $0x70] sm:$0xff]
  %v1050 = vld [vmem:[%s2 + $0x78] sm:$0xff]
  %v1051 = vld [vmem:[%s2 + $0x80] sm:$0xff]
  %v1052 = vld [vmem:[%s2 + $0x88] sm:$0xff]
  %v1053 = vld [vmem:[%s2 + $0x90] sm:$0xff]
  %v1054 = vld [vmem:[%s2 + $0x98] sm:$0xff]
  %v1055 = vld [vmem:[%s2 + $0xa0] sm:$0xff]
  %v1056 = vld [vmem:[%s2 + $0xa8] sm:$0xff]
  %v1057 = vld [vmem:[%s2 + $0xb0] sm:$0xff]
  %v1058 = vld [vmem:[%s2 + $0xb8] sm:$0xff]
  %v1059 = vld [vmem:[%s2 + $0xc0] sm:$0xff]
  %v1060 = vld [vmem:[%s2 + $0xc8] sm:$0xff]
  %v1061 = vld [vmem:[%s2 + $0xd0] sm:$0xff]
  %v1062 = vld [vmem:[%s2 + $0xd8] sm:$0xff]
  %v1063 = vld [vmem:[%s2 + $0xe0] sm:$0xff]
  %v1064 = vld [vmem:[%s2 + $0xe8] sm:$0xff]
  %v1065 = vld [vmem:[%s2 + $0xf0] sm:$0xff]
  %v1066 = vld [vmem:[%s2 + $0xf8] sm:$0xff]
  %v1067 = vld [vmem:[%s2 + $0x100] sm:$0xff]
  %v1068 = vld [vmem:[%s2 + $0x108] sm:$0xff]
  %v1069 = vld [vmem:[%s2 + $0x110] sm:$0xff]
  %v1070 = vld [vmem:[%s2 + $0x118] sm:$0xff]
  %v1071 = vld [vmem:[%s2 + $0x120] sm:$0xff]
  %v1072 = vld [vmem:[%s2 + $0x128] sm:$0xff]
  %v1073 = vld [vmem:[%s2 + $0x130] sm:$0xff]
  %v1074 = vld [vmem:[%s2 + $0x138] sm:$0xff]
  %v1075 = vld [vmem:[%s2 + $0x140] sm:$0xff]
  %v1076 = vld [vmem:[%s2 + $0x148] sm:$0xff]
  %v1077 = vld [vmem:[%s2 + $0x150] sm:$0xff]
  %v1078 = vld [vmem:[%s2 + $0x158] sm:$0xff]
  %v1079 = vld [vmem:[%s2 + $0x160] sm:$0xff]
  %v1080 = vld [vmem:[%s2 + $0x168] sm:$0xff]
  %v1081 = vld [vmem:[%s2 + $0x170] sm:$0xff]
  %v1082 = vld [vmem:[%s2 + $0x178] sm:$0xff]
  %v1083 = vld [vmem:[%s2 + $0x180] sm:$0xff]
  %v1084 = vld [vmem:[%s2 + $0x188] sm:$0xff]
  %v1085 = vld [vmem:[%s2 + $0x190] sm:$0xff]
  %v1086 = vld [vmem:[%s2 + $0x198] sm:$0xff]
  %v1087 = vld [vmem:[%s2 + $0x1a0] sm:$0xff]
  %v1088 = vld [vmem:[%s2 + $0x1a8] sm:$0xff]
  %v1089 = vld [vmem:[%s2 + $0x1b0] sm:$0xff]
  %v1090 = vld [vmem:[%s2 + $0x1b8] sm:$0xff]
  %v1091 = vld [vmem:[%s2 + $0x1c0] sm:$0xff]
  %v1092 = vld [vmem:[%s2 + $0x1c8] sm:$0xff]
  %v1093 = vld [vmem:[%s2 + $0x1d0] sm:$0xff]
  %v1094 = vld [vmem:[%s2 + $0x1d8] sm:$0xff]
  %v1095 = vld [vmem:[%s2 + $0x1e0] sm:$0xff]
  %v1096 = vld [vmem:[%s2 + $0x1e8] sm:$0xff]
  %v1097 = vld [vmem:[%s2 + $0x1f0] sm:$0xff]
  %v1098 = vld [vmem:[%s2 + $0x1f8] sm:$0xff]
  %v1099 = vld [vmem:[%s2 + $0x200] sm:$0xff]
  %v1100 = vld [vmem:[%s2 + $0x208] sm:$0xff]
  %v1101 = vld [vmem:[%s2 + $0x210] sm:$0xff]
  %v1102 = vld [vmem:[%s2 + $0x218] sm:$0xff]
  %v1103 = vld [vmem:[%s2 + $0x220] sm:$0xff]
  %v1104 = vld [vmem:[%s2 + $0x228] sm:$0xff]
  %v1105 = vld [vmem:[%s2 + $0x230] sm:$0xff]
  %v1106 = vld [vmem:[%s2 + $0x238] sm:$0xff]
  %v1107 = vld [vmem:[%s2 + $0x240] sm:$0xff]
  %v1108 = vld [vmem:[%s2 + $0x248] sm:$0xff]
  %v1109 = vld [vmem:[%s2 + $0x250] sm:$0xff]
  %v1110 = vld [vmem:[%s2 + $0x258] sm:$0xff]
  %v1111 = vld [vmem:[%s2 + $0x260] sm:$0xff]
  %v1112 = vld [vmem:[%s2 + $0x268] sm:$0xff]
  %v1113 = vld [vmem:[%s2 + $0x270] sm:$0xff]
  %v1114 = vld [vmem:[%s2 + $0x278] sm:$0xff]
  %v1115 = vld [vmem:[%s2 + $0x280] sm:$0xff]
  %v1116 = vld [vmem:[%s2 + $0x288] sm:$0xff]
  %v1117 = vld [vmem:[%s2 + $0x290] sm:$0xff]
  %v1118 = vld [vmem:[%s2 + $0x298] sm:$0xff]
  %v1119 = vld [vmem:[%s2 + $0x2a0] sm:$0xff]
  %v1120 = vld [vmem:[%s2 + $0x2a8] sm:$0xff]
  %v1121 = vld [vmem:[%s2 + $0x2b0] sm:$0xff]
  %v1122 = vld [vmem:[%s2 + $0x2b8] sm:$0xff]
  %v1123 = vld [vmem:[%s2 + $0x2c0] sm:$0xff]
  %v1124 = vld [vmem:[%s2 + $0x2c8] sm:$0xff]
  %v1125 = vld [vmem:[%s2 + $0x2d0] sm:$0xff]
  %v1126 = vld [vmem:[%s2 + $0x2d8] sm:$0xff]
  %v1127 = vld [vmem:[%s2 + $0x2e0] sm:$0xff]
  %v1128 = vld [vmem:[%s2 + $0x2e8] sm:$0xff]
  %v1129 = vld [vmem:[%s2 + $0x2f0] sm:$0xff]
  %v1130 = vld [vmem:[%s2 + $0x2f8] sm:$0xff]
  %v1131 = vld [vmem:[%s2 + $0x300] sm:$0xff]
  %v1132 = vld [vmem:[%s2 + $0x308] sm:$0xff]
  %v1133 = vld [vmem:[%s2 + $0x310] sm:$0xff]
  %v1134 = vld [vmem:[%s2 + $0x318] sm:$0xff]
  %v1135 = vld [vmem:[%s2 + $0x320] sm:$0xff]
  %v1136 = vld [vmem:[%s2 + $0x328] sm:$0xff]
  %v1137 = vld [vmem:[%s2 + $0x330] sm:$0xff]
  %v1138 = vld [vmem:[%s2 + $0x338] sm:$0xff]
  %v1139 = vld [vmem:[%s2 + $0x340] sm:$0xff]
  %v1140 = vld [vmem:[%s2 + $0x348] sm:$0xff]
  %v1141 = vld [vmem:[%s2 + $0x350] sm:$0xff]
  %v1142 = vld [vmem:[%s2 + $0x358] sm:$0xff]
  %v1143 = vld [vmem:[%s2 + $0x360] sm:$0xff]
  %v1144 = vld [vmem:[%s2 + $0x368] sm:$0xff]
  %v1145 = vld [vmem:[%s2 + $0x370] sm:$0xff]
  %v1146 = vld [vmem:[%s2 + $0x378] sm:$0xff]
  %v1147 = vld [vmem:[%s2 + $0x380] sm:$0xff]
  %v1148 = vld [vmem:[%s2 + $0x388] sm:$0xff]
  %v1149 = vld [vmem:[%s2 + $0x390] sm:$0xff]
  %v1150 = vld [vmem:[%s2 + $0x398] sm:$0xff]
  %v1151 = vld [vmem:[%s2 + $0x3a0] sm:$0xff]
  %v1152 = vld [vmem:[%s2 + $0x3a8] sm:$0xff]
  %v1153 = vld [vmem:[%s2 + $0x3b0] sm:$0xff]
  %v1154 = vld [vmem:[%s2 + $0x3b8] sm:$0xff]
  %v1155 = vld [vmem:[%s2 + $0x3c0] sm:$0xff]
  %v1156 = vld [vmem:[%s2 + $0x3c8] sm:$0xff]
  %v1157 = vld [vmem:[%s2 + $0x3d0] sm:$0xff]
  %v1158 = vld [vmem:[%s2 + $0x3d8] sm:$0xff]
  %v1159 = vld [vmem:[%s2 + $0x3e0] sm:$0xff]
  %v1160 = vld [vmem:[%s2 + $0x3e8] sm:$0xff]
  %v1161 = vld [vmem:[%s2 + $0x3f0] sm:$0xff]
  %v1162 = vld [vmem:[%s2 + $0x3f8] sm:$0xff]
  %1164 = vset.pattern.permute.xlu0 0
  %1165 = vperm.xlu0 %1164, %v1035
  %v1166 = vpop.permute.xlu0 %1165
  %1169 = vset.pattern.permute.xlu0 0
  %1170 = vperm.xlu0 %1169, %v1036
  %v1171 = vpop.permute.xlu0 %1170
  %1174 = vset.pattern.permute.xlu0 0
  %1175 = vperm.xlu0 %1174, %v1037
  %v1176 = vpop.permute.xlu0 %1175
  %1179 = vset.pattern.permute.xlu0 0
  %1180 = vperm.xlu0 %1179, %v1038
  %v1181 = vpop.permute.xlu0 %1180
  %1184 = vset.pattern.permute.xlu0 0
  %1185 = vperm.xlu0 %1184, %v1039
  %v1186 = vpop.permute.xlu0 %1185
  %1189 = vset.pattern.permute.xlu0 0
  %1190 = vperm.xlu0 %1189, %v1040
  %v1191 = vpop.permute.xlu0 %1190
  %1194 = vset.pattern.permute.xlu0 0
  %1195 = vperm.xlu0 %1194, %v1041
  %v1196 = vpop.permute.xlu0 %1195
  %1199 = vset.pattern.permute.xlu0 0
  %1200 = vperm.xlu0 %1199, %v1042
  %v1201 = vpop.permute.xlu0 %1200
  %1204 = vset.pattern.permute.xlu0 0
  %1205 = vperm.xlu0 %1204, %v1043
  %v1206 = vpop.permute.xlu0 %1205
  %1209 = vset.pattern.permute.xlu0 0
  %1210 = vperm.xlu0 %1209, %v1044
  %v1211 = vpop.permute.xlu0 %1210
  %1214 = vset.pattern.permute.xlu0 0
  %1215 = vperm.xlu0 %1214, %v1045
  %v1216 = vpop.permute.xlu0 %1215
  %1219 = vset.pattern.permute.xlu0 0
  %1220 = vperm.xlu0 %1219, %v1046
  %v1221 = vpop.permute.xlu0 %1220
  %1224 = vset.pattern.permute.xlu0 0
  %1225 = vperm.xlu0 %1224, %v1047
  %v1226 = vpop.permute.xlu0 %1225
  %1229 = vset.pattern.permute.xlu0 0
  %1230 = vperm.xlu0 %1229, %v1048
  %v1231 = vpop.permute.xlu0 %1230
  %1234 = vset.pattern.permute.xlu0 0
  %1235 = vperm.xlu0 %1234, %v1049
  %v1236 = vpop.permute.xlu0 %1235
  %1239 = vset.pattern.permute.xlu0 0
  %1240 = vperm.xlu0 %1239, %v1050
  %v1241 = vpop.permute.xlu0 %1240
  %1244 = vset.pattern.permute.xlu0 0
  %1245 = vperm.xlu0 %1244, %v1051
  %v1246 = vpop.permute.xlu0 %1245
  %1249 = vset.pattern.permute.xlu0 0
  %1250 = vperm.xlu0 %1249, %v1052
  %v1251 = vpop.permute.xlu0 %1250
  %1254 = vset.pattern.permute.xlu0 0
  %1255 = vperm.xlu0 %1254, %v1053
  %v1256 = vpop.permute.xlu0 %1255
  %1259 = vset.pattern.permute.xlu0 0
  %1260 = vperm.xlu0 %1259, %v1054
  %v1261 = vpop.permute.xlu0 %1260
  %1264 = vset.pattern.permute.xlu0 0
  %1265 = vperm.xlu0 %1264, %v1055
  %v1266 = vpop.permute.xlu0 %1265
  %1269 = vset.pattern.permute.xlu0 0
  %1270 = vperm.xlu0 %1269, %v1056
  %v1271 = vpop.permute.xlu0 %1270
  %1274 = vset.pattern.permute.xlu0 0
  %1275 = vperm.xlu0 %1274, %v1057
  %v1276 = vpop.permute.xlu0 %1275
  %1279 = vset.pattern.permute.xlu0 0
  %1280 = vperm.xlu0 %1279, %v1058
  %v1281 = vpop.permute.xlu0 %1280
  %1284 = vset.pattern.permute.xlu0 0
  %1285 = vperm.xlu0 %1284, %v1059
  %v1286 = vpop.permute.xlu0 %1285
  %1289 = vset.pattern.permute.xlu0 0
  %1290 = vperm.xlu0 %1289, %v1060
  %v1291 = vpop.permute.xlu0 %1290
  %1294 = vset.pattern.permute.xlu0 0
  %1295 = vperm.xlu0 %1294, %v1061
  %v1296 = vpop.permute.xlu0 %1295
  %1299 = vset.pattern.permute.xlu0 0
  %1300 = vperm.xlu0 %1299, %v1062
  %v1301 = vpop.permute.xlu0 %1300
  %1304 = vset.pattern.permute.xlu0 0
  %1305 = vperm.xlu0 %1304, %v1063
  %v1306 = vpop.permute.xlu0 %1305
  %1309 = vset.pattern.permute.xlu0 0
  %1310 = vperm.xlu0 %1309, %v1064
  %v1311 = vpop.permute.xlu0 %1310
  %1314 = vset.pattern.permute.xlu0 0
  %1315 = vperm.xlu0 %1314, %v1065
  %v1316 = vpop.permute.xlu0 %1315
  %1319 = vset.pattern.permute.xlu0 0
  %1320 = vperm.xlu0 %1319, %v1066
  %v1321 = vpop.permute.xlu0 %1320
  %1324 = vset.pattern.permute.xlu0 0
  %1325 = vperm.xlu0 %1324, %v1067
  %v1326 = vpop.permute.xlu0 %1325
  %1329 = vset.pattern.permute.xlu0 0
  %1330 = vperm.xlu0 %1329, %v1068
  %v1331 = vpop.permute.xlu0 %1330
  %1334 = vset.pattern.permute.xlu0 0
  %1335 = vperm.xlu0 %1334, %v1069
  %v1336 = vpop.permute.xlu0 %1335
  %1339 = vset.pattern.permute.xlu0 0
  %1340 = vperm.xlu0 %1339, %v1070
  %v1341 = vpop.permute.xlu0 %1340
  %1344 = vset.pattern.permute.xlu0 0
  %1345 = vperm.xlu0 %1344, %v1071
  %v1346 = vpop.permute.xlu0 %1345
  %1349 = vset.pattern.permute.xlu0 0
  %1350 = vperm.xlu0 %1349, %v1072
  %v1351 = vpop.permute.xlu0 %1350
  %1354 = vset.pattern.permute.xlu0 0
  %1355 = vperm.xlu0 %1354, %v1073
  %v1356 = vpop.permute.xlu0 %1355
  %1359 = vset.pattern.permute.xlu0 0
  %1360 = vperm.xlu0 %1359, %v1074
  %v1361 = vpop.permute.xlu0 %1360
  %1364 = vset.pattern.permute.xlu0 0
  %1365 = vperm.xlu0 %1364, %v1075
  %v1366 = vpop.permute.xlu0 %1365
  %1369 = vset.pattern.permute.xlu0 0
  %1370 = vperm.xlu0 %1369, %v1076
  %v1371 = vpop.permute.xlu0 %1370
  %1374 = vset.pattern.permute.xlu0 0
  %1375 = vperm.xlu0 %1374, %v1077
  %v1376 = vpop.permute.xlu0 %1375
  %1379 = vset.pattern.permute.xlu0 0
  %1380 = vperm.xlu0 %1379, %v1078
  %v1381 = vpop.permute.xlu0 %1380
  %1384 = vset.pattern.permute.xlu0 0
  %1385 = vperm.xlu0 %1384, %v1079
  %v1386 = vpop.permute.xlu0 %1385
  %1389 = vset.pattern.permute.xlu0 0
  %1390 = vperm.xlu0 %1389, %v1080
  %v1391 = vpop.permute.xlu0 %1390
  %1394 = vset.pattern.permute.xlu0 0
  %1395 = vperm.xlu0 %1394, %v1081
  %v1396 = vpop.permute.xlu0 %1395
  %1399 = vset.pattern.permute.xlu0 0
  %1400 = vperm.xlu0 %1399, %v1082
  %v1401 = vpop.permute.xlu0 %1400
  %1404 = vset.pattern.permute.xlu0 0
  %1405 = vperm.xlu0 %1404, %v1083
  %v1406 = vpop.permute.xlu0 %1405
  %1409 = vset.pattern.permute.xlu0 0
  %1410 = vperm.xlu0 %1409, %v1084
  %v1411 = vpop.permute.xlu0 %1410
  %1414 = vset.pattern.permute.xlu0 0
  %1415 = vperm.xlu0 %1414, %v1085
  %v1416 = vpop.permute.xlu0 %1415
  %1419 = vset.pattern.permute.xlu0 0
  %1420 = vperm.xlu0 %1419, %v1086
  %v1421 = vpop.permute.xlu0 %1420
  %1424 = vset.pattern.permute.xlu0 0
  %1425 = vperm.xlu0 %1424, %v1087
  %v1426 = vpop.permute.xlu0 %1425
  %1429 = vset.pattern.permute.xlu0 0
  %1430 = vperm.xlu0 %1429, %v1088
  %v1431 = vpop.permute.xlu0 %1430
  %1434 = vset.pattern.permute.xlu0 0
  %1435 = vperm.xlu0 %1434, %v1089
  %v1436 = vpop.permute.xlu0 %1435
  %1439 = vset.pattern.permute.xlu0 0
  %1440 = vperm.xlu0 %1439, %v1090
  %v1441 = vpop.permute.xlu0 %1440
  %1444 = vset.pattern.permute.xlu0 0
  %1445 = vperm.xlu0 %1444, %v1091
  %v1446 = vpop.permute.xlu0 %1445
  %1449 = vset.pattern.permute.xlu0 0
  %1450 = vperm.xlu0 %1449, %v1092
  %v1451 = vpop.permute.xlu0 %1450
  %1454 = vset.pattern.permute.xlu0 0
  %1455 = vperm.xlu0 %1454, %v1093
  %v1456 = vpop.permute.xlu0 %1455
  %1459 = vset.pattern.permute.xlu0 0
  %1460 = vperm.xlu0 %1459, %v1094
  %v1461 = vpop.permute.xlu0 %1460
  %1464 = vset.pattern.permute.xlu0 0
  %1465 = vperm.xlu0 %1464, %v1095
  %v1466 = vpop.permute.xlu0 %1465
  %1469 = vset.pattern.permute.xlu0 0
  %1470 = vperm.xlu0 %1469, %v1096
  %v1471 = vpop.permute.xlu0 %1470
  %1474 = vset.pattern.permute.xlu0 0
  %1475 = vperm.xlu0 %1474, %v1097
  %v1476 = vpop.permute.xlu0 %1475
  %1479 = vset.pattern.permute.xlu0 0
  %1480 = vperm.xlu0 %1479, %v1098
  %v1481 = vpop.permute.xlu0 %1480
  %1484 = vset.pattern.permute.xlu0 0
  %1485 = vperm.xlu0 %1484, %v1099
  %v1486 = vpop.permute.xlu0 %1485
  %1489 = vset.pattern.permute.xlu0 0
  %1490 = vperm.xlu0 %1489, %v1100
  %v1491 = vpop.permute.xlu0 %1490
  %1494 = vset.pattern.permute.xlu0 0
  %1495 = vperm.xlu0 %1494, %v1101
  %v1496 = vpop.permute.xlu0 %1495
  %1499 = vset.pattern.permute.xlu0 0
  %1500 = vperm.xlu0 %1499, %v1102
  %v1501 = vpop.permute.xlu0 %1500
  %1504 = vset.pattern.permute.xlu0 0
  %1505 = vperm.xlu0 %1504, %v1103
  %v1506 = vpop.permute.xlu0 %1505
  %1509 = vset.pattern.permute.xlu0 0
  %1510 = vperm.xlu0 %1509, %v1104
  %v1511 = vpop.permute.xlu0 %1510
  %1514 = vset.pattern.permute.xlu0 0
  %1515 = vperm.xlu0 %1514, %v1105
  %v1516 = vpop.permute.xlu0 %1515
  %1519 = vset.pattern.permute.xlu0 0
  %1520 = vperm.xlu0 %1519, %v1106
  %v1521 = vpop.permute.xlu0 %1520
  %1524 = vset.pattern.permute.xlu0 0
  %1525 = vperm.xlu0 %1524, %v1107
  %v1526 = vpop.permute.xlu0 %1525
  %1529 = vset.pattern.permute.xlu0 0
  %1530 = vperm.xlu0 %1529, %v1108
  %v1531 = vpop.permute.xlu0 %1530
  %1534 = vset.pattern.permute.xlu0 0
  %1535 = vperm.xlu0 %1534, %v1109
  %v1536 = vpop.permute.xlu0 %1535
  %1539 = vset.pattern.permute.xlu0 0
  %1540 = vperm.xlu0 %1539, %v1110
  %v1541 = vpop.permute.xlu0 %1540
  %1544 = vset.pattern.permute.xlu0 0
  %1545 = vperm.xlu0 %1544, %v1111
  %v1546 = vpop.permute.xlu0 %1545
  %1549 = vset.pattern.permute.xlu0 0
  %1550 = vperm.xlu0 %1549, %v1112
  %v1551 = vpop.permute.xlu0 %1550
  %1554 = vset.pattern.permute.xlu0 0
  %1555 = vperm.xlu0 %1554, %v1113
  %v1556 = vpop.permute.xlu0 %1555
  %1559 = vset.pattern.permute.xlu0 0
  %1560 = vperm.xlu0 %1559, %v1114
  %v1561 = vpop.permute.xlu0 %1560
  %1564 = vset.pattern.permute.xlu0 0
  %1565 = vperm.xlu0 %1564, %v1115
  %v1566 = vpop.permute.xlu0 %1565
  %1569 = vset.pattern.permute.xlu0 0
  %1570 = vperm.xlu0 %1569, %v1116
  %v1571 = vpop.permute.xlu0 %1570
  %1574 = vset.pattern.permute.xlu0 0
  %1575 = vperm.xlu0 %1574, %v1117
  %v1576 = vpop.permute.xlu0 %1575
  %1579 = vset.pattern.permute.xlu0 0
  %1580 = vperm.xlu0 %1579, %v1118
  %v1581 = vpop.permute.xlu0 %1580
  %1584 = vset.pattern.permute.xlu0 0
  %1585 = vperm.xlu0 %1584, %v1119
  %v1586 = vpop.permute.xlu0 %1585
  %1589 = vset.pattern.permute.xlu0 0
  %1590 = vperm.xlu0 %1589, %v1120
  %v1591 = vpop.permute.xlu0 %1590
  %1594 = vset.pattern.permute.xlu0 0
  %1595 = vperm.xlu0 %1594, %v1121
  %v1596 = vpop.permute.xlu0 %1595
  %1599 = vset.pattern.permute.xlu0 0
  %1600 = vperm.xlu0 %1599, %v1122
  %v1601 = vpop.permute.xlu0 %1600
  %1604 = vset.pattern.permute.xlu0 0
  %1605 = vperm.xlu0 %1604, %v1123
  %v1606 = vpop.permute.xlu0 %1605
  %1609 = vset.pattern.permute.xlu0 0
  %1610 = vperm.xlu0 %1609, %v1124
  %v1611 = vpop.permute.xlu0 %1610
  %1614 = vset.pattern.permute.xlu0 0
  %1615 = vperm.xlu0 %1614, %v1125
  %v1616 = vpop.permute.xlu0 %1615
  %1619 = vset.pattern.permute.xlu0 0
  %1620 = vperm.xlu0 %1619, %v1126
  %v1621 = vpop.permute.xlu0 %1620
  %1624 = vset.pattern.permute.xlu0 0
  %1625 = vperm.xlu0 %1624, %v1127
  %v1626 = vpop.permute.xlu0 %1625
  %1629 = vset.pattern.permute.xlu0 0
  %1630 = vperm.xlu0 %1629, %v1128
  %v1631 = vpop.permute.xlu0 %1630
  %1634 = vset.pattern.permute.xlu0 0
  %1635 = vperm.xlu0 %1634, %v1129
  %v1636 = vpop.permute.xlu0 %1635
  %1639 = vset.pattern.permute.xlu0 0
  %1640 = vperm.xlu0 %1639, %v1130
  %v1641 = vpop.permute.xlu0 %1640
  %1644 = vset.pattern.permute.xlu0 0
  %1645 = vperm.xlu0 %1644, %v1131
  %v1646 = vpop.permute.xlu0 %1645
  %1649 = vset.pattern.permute.xlu0 0
  %1650 = vperm.xlu0 %1649, %v1132
  %v1651 = vpop.permute.xlu0 %1650
  %1654 = vset.pattern.permute.xlu0 0
  %1655 = vperm.xlu0 %1654, %v1133
  %v1656 = vpop.permute.xlu0 %1655
  %1659 = vset.pattern.permute.xlu0 0
  %1660 = vperm.xlu0 %1659, %v1134
  %v1661 = vpop.permute.xlu0 %1660
  %1664 = vset.pattern.permute.xlu0 0
  %1665 = vperm.xlu0 %1664, %v1135
  %v1666 = vpop.permute.xlu0 %1665
  %1669 = vset.pattern.permute.xlu0 0
  %1670 = vperm.xlu0 %1669, %v1136
  %v1671 = vpop.permute.xlu0 %1670
  %1674 = vset.pattern.permute.xlu0 0
  %1675 = vperm.xlu0 %1674, %v1137
  %v1676 = vpop.permute.xlu0 %1675
  %1679 = vset.pattern.permute.xlu0 0
  %1680 = vperm.xlu0 %1679, %v1138
  %v1681 = vpop.permute.xlu0 %1680
  %1684 = vset.pattern.permute.xlu0 0
  %1685 = vperm.xlu0 %1684, %v1139
  %v1686 = vpop.permute.xlu0 %1685
  %1689 = vset.pattern.permute.xlu0 0
  %1690 = vperm.xlu0 %1689, %v1140
  %v1691 = vpop.permute.xlu0 %1690
  %1694 = vset.pattern.permute.xlu0 0
  %1695 = vperm.xlu0 %1694, %v1141
  %v1696 = vpop.permute.xlu0 %1695
  %1699 = vset.pattern.permute.xlu0 0
  %1700 = vperm.xlu0 %1699, %v1142
  %v1701 = vpop.permute.xlu0 %1700
  %1704 = vset.pattern.permute.xlu0 0
  %1705 = vperm.xlu0 %1704, %v1143
  %v1706 = vpop.permute.xlu0 %1705
  %1709 = vset.pattern.permute.xlu0 0
  %1710 = vperm.xlu0 %1709, %v1144
  %v1711 = vpop.permute.xlu0 %1710
  %1714 = vset.pattern.permute.xlu0 0
  %1715 = vperm.xlu0 %1714, %v1145
  %v1716 = vpop.permute.xlu0 %1715
  %1719 = vset.pattern.permute.xlu0 0
  %1720 = vperm.xlu0 %1719, %v1146
  %v1721 = vpop.permute.xlu0 %1720
  %1724 = vset.pattern.permute.xlu0 0
  %1725 = vperm.xlu0 %1724, %v1147
  %v1726 = vpop.permute.xlu0 %1725
  %1729 = vset.pattern.permute.xlu0 0
  %1730 = vperm.xlu0 %1729, %v1148
  %v1731 = vpop.permute.xlu0 %1730
  %1734 = vset.pattern.permute.xlu0 0
  %1735 = vperm.xlu0 %1734, %v1149
  %v1736 = vpop.permute.xlu0 %1735
  %1739 = vset.pattern.permute.xlu0 0
  %1740 = vperm.xlu0 %1739, %v1150
  %v1741 = vpop.permute.xlu0 %1740
  %1744 = vset.pattern.permute.xlu0 0
  %1745 = vperm.xlu0 %1744, %v1151
  %v1746 = vpop.permute.xlu0 %1745
  %1749 = vset.pattern.permute.xlu0 0
  %1750 = vperm.xlu0 %1749, %v1152
  %v1751 = vpop.permute.xlu0 %1750
  %1754 = vset.pattern.permute.xlu0 0
  %1755 = vperm.xlu0 %1754, %v1153
  %v1756 = vpop.permute.xlu0 %1755
  %1759 = vset.pattern.permute.xlu0 0
  %1760 = vperm.xlu0 %1759, %v1154
  %v1761 = vpop.permute.xlu0 %1760
  %1764 = vset.pattern.permute.xlu0 0
  %1765 = vperm.xlu0 %1764, %v1155
  %v1766 = vpop.permute.xlu0 %1765
  %1769 = vset.pattern.permute.xlu0 0
  %1770 = vperm.xlu0 %1769, %v1156
  %v1771 = vpop.permute.xlu0 %1770
  %1774 = vset.pattern.permute.xlu0 0
  %1775 = vperm.xlu0 %1774, %v1157
  %v1776 = vpop.permute.xlu0 %1775
  %1779 = vset.pattern.permute.xlu0 0
  %1780 = vperm.xlu0 %1779, %v1158
  %v1781 = vpop.permute.xlu0 %1780
  %1784 = vset.pattern.permute.xlu0 0
  %1785 = vperm.xlu0 %1784, %v1159
  %v1786 = vpop.permute.xlu0 %1785
  %1789 = vset.pattern.permute.xlu0 0
  %1790 = vperm.xlu0 %1789, %v1160
  %v1791 = vpop.permute.xlu0 %1790
  %1794 = vset.pattern.permute.xlu0 0
  %1795 = vperm.xlu0 %1794, %v1161
  %v1796 = vpop.permute.xlu0 %1795
  %1799 = vset.pattern.permute.xlu0 0
  %1800 = vperm.xlu0 %1799, %v1162
  %v1801 = vpop.permute.xlu0 %1800
  %v1803 = vmul.f32 %v716, %v1166
  %v1804 = vmul.f32 %v718, %v1171
  %v1805 = vmul.f32 %v721, %v1176
  %v1806 = vmul.f32 %v723, %v1181
  %v1807 = vmul.f32 %v726, %v1186
  %v1808 = vmul.f32 %v728, %v1191
  %v1809 = vmul.f32 %v731, %v1196
  %v1810 = vmul.f32 %v733, %v1201
  %v1811 = vmul.f32 %v736, %v1206
  %v1812 = vmul.f32 %v738, %v1211
  %v1813 = vmul.f32 %v741, %v1216
  %v1814 = vmul.f32 %v743, %v1221
  %v1815 = vmul.f32 %v746, %v1226
  %v1816 = vmul.f32 %v748, %v1231
  %v1817 = vmul.f32 %v751, %v1236
  %v1818 = vmul.f32 %v753, %v1241
  %v1819 = vmul.f32 %v756, %v1246
  %v1820 = vmul.f32 %v758, %v1251
  %v1821 = vmul.f32 %v761, %v1256
  %v1822 = vmul.f32 %v763, %v1261
  %v1823 = vmul.f32 %v766, %v1266
  %v1824 = vmul.f32 %v768, %v1271
  %v1825 = vmul.f32 %v771, %v1276
  %v1826 = vmul.f32 %v773, %v1281
  %v1827 = vmul.f32 %v776, %v1286
  %v1828 = vmul.f32 %v778, %v1291
  %v1829 = vmul.f32 %v781, %v1296
  %v1830 = vmul.f32 %v783, %v1301
  %v1831 = vmul.f32 %v786, %v1306
  %v1832 = vmul.f32 %v788, %v1311
  %v1833 = vmul.f32 %v791, %v1316
  %v1834 = vmul.f32 %v793, %v1321
  %v1835 = vmul.f32 %v796, %v1326
  %v1836 = vmul.f32 %v798, %v1331
  %v1837 = vmul.f32 %v801, %v1336
  %v1838 = vmul.f32 %v803, %v1341
  %v1839 = vmul.f32 %v806, %v1346
  %v1840 = vmul.f32 %v808, %v1351
  %v1841 = vmul.f32 %v811, %v1356
  %v1842 = vmul.f32 %v813, %v1361
  %v1843 = vmul.f32 %v816, %v1366
  %v1844 = vmul.f32 %v818, %v1371
  %v1845 = vmul.f32 %v821, %v1376
  %v1846 = vmul.f32 %v823, %v1381
  %v1847 = vmul.f32 %v826, %v1386
  %v1848 = vmul.f32 %v828, %v1391
  %v1849 = vmul.f32 %v831, %v1396
  %v1850 = vmul.f32 %v833, %v1401
  %v1851 = vmul.f32 %v836, %v1406
  %v1852 = vmul.f32 %v838, %v1411
  %v1853 = vmul.f32 %v841, %v1416
  %v1854 = vmul.f32 %v843, %v1421
  %v1855 = vmul.f32 %v846, %v1426
  %v1856 = vmul.f32 %v848, %v1431
  %v1857 = vmul.f32 %v851, %v1436
  %v1858 = vmul.f32 %v853, %v1441
  %v1859 = vmul.f32 %v856, %v1446
  %v1860 = vmul.f32 %v858, %v1451
  %v1861 = vmul.f32 %v861, %v1456
  %v1862 = vmul.f32 %v863, %v1461
  %v1863 = vmul.f32 %v866, %v1466
  %v1864 = vmul.f32 %v868, %v1471
  %v1865 = vmul.f32 %v871, %v1476
  %v1866 = vmul.f32 %v873, %v1481
  %v1867 = vmul.f32 %v876, %v1486
  %v1868 = vmul.f32 %v878, %v1491
  %v1869 = vmul.f32 %v881, %v1496
  %v1870 = vmul.f32 %v883, %v1501
  %v1871 = vmul.f32 %v886, %v1506
  %v1872 = vmul.f32 %v888, %v1511
  %v1873 = vmul.f32 %v891, %v1516
  %v1874 = vmul.f32 %v893, %v1521
  %v1875 = vmul.f32 %v896, %v1526
  %v1876 = vmul.f32 %v898, %v1531
  %v1877 = vmul.f32 %v901, %v1536
  %v1878 = vmul.f32 %v903, %v1541
  %v1879 = vmul.f32 %v906, %v1546
  %v1880 = vmul.f32 %v908, %v1551
  %v1881 = vmul.f32 %v911, %v1556
  %v1882 = vmul.f32 %v913, %v1561
  %v1883 = vmul.f32 %v916, %v1566
  %v1884 = vmul.f32 %v918, %v1571
  %v1885 = vmul.f32 %v921, %v1576
  %v1886 = vmul.f32 %v923, %v1581
  %v1887 = vmul.f32 %v926, %v1586
  %v1888 = vmul.f32 %v928, %v1591
  %v1889 = vmul.f32 %v931, %v1596
  %v1890 = vmul.f32 %v933, %v1601
  %v1891 = vmul.f32 %v936, %v1606
  %v1892 = vmul.f32 %v938, %v1611
  %v1893 = vmul.f32 %v941, %v1616
  %v1894 = vmul.f32 %v943, %v1621
  %v1895 = vmul.f32 %v946, %v1626
  %v1896 = vmul.f32 %v948, %v1631
  %v1897 = vmul.f32 %v951, %v1636
  %v1898 = vmul.f32 %v953, %v1641
  %v1899 = vmul.f32 %v956, %v1646
  %v1900 = vmul.f32 %v958, %v1651
  %v1901 = vmul.f32 %v961, %v1656
  %v1902 = vmul.f32 %v963, %v1661
  %v1903 = vmul.f32 %v966, %v1666
  %v1904 = vmul.f32 %v968, %v1671
  %v1905 = vmul.f32 %v971, %v1676
  %v1906 = vmul.f32 %v973, %v1681
  %v1907 = vmul.f32 %v976, %v1686
  %v1908 = vmul.f32 %v978, %v1691
  %v1909 = vmul.f32 %v981, %v1696
  %v1910 = vmul.f32 %v983, %v1701
  %v1911 = vmul.f32 %v986, %v1706
  %v1912 = vmul.f32 %v988, %v1711
  %v1913 = vmul.f32 %v991, %v1716
  %v1914 = vmul.f32 %v993, %v1721
  %v1915 = vmul.f32 %v996, %v1726
  %v1916 = vmul.f32 %v998, %v1731
  %v1917 = vmul.f32 %v1001, %v1736
  %v1918 = vmul.f32 %v1003, %v1741
  %v1919 = vmul.f32 %v1006, %v1746
  %v1920 = vmul.f32 %v1008, %v1751
  %v1921 = vmul.f32 %v1011, %v1756
  %v1922 = vmul.f32 %v1013, %v1761
  %v1923 = vmul.f32 %v1016, %v1766
  %v1924 = vmul.f32 %v1018, %v1771
  %v1925 = vmul.f32 %v1021, %v1776
  %v1926 = vmul.f32 %v1023, %v1781
  %v1927 = vmul.f32 %v1026, %v1786
  %v1928 = vmul.f32 %v1028, %v1791
  %v1929 = vmul.f32 %v1031, %v1796
  %v1930 = vmul.f32 %v1033, %v1801
  %v1931 = vmax.f32 %v1803, 0.0
  %v1932 = vmax.f32 %v1804, 0.0
  %v1933 = vmax.f32 %v1805, 0.0
  %v1934 = vmax.f32 %v1806, 0.0
  %v1935 = vmax.f32 %v1807, 0.0
  %v1936 = vmax.f32 %v1808, 0.0
  %v1937 = vmax.f32 %v1809, 0.0
  %v1938 = vmax.f32 %v1810, 0.0
  %v1939 = vmax.f32 %v1811, 0.0
  %v1940 = vmax.f32 %v1812, 0.0
  %v1941 = vmax.f32 %v1813, 0.0
  %v1942 = vmax.f32 %v1814, 0.0
  %v1943 = vmax.f32 %v1815, 0.0
  %v1944 = vmax.f32 %v1816, 0.0
  %v1945 = vmax.f32 %v1817, 0.0
  %v1946 = vmax.f32 %v1818, 0.0
  %v1947 = vmax.f32 %v1819, 0.0
  %v1948 = vmax.f32 %v1820, 0.0
  %v1949 = vmax.f32 %v1821, 0.0
  %v1950 = vmax.f32 %v1822, 0.0
  %v1951 = vmax.f32 %v1823, 0.0
  %v1952 = vmax.f32 %v1824, 0.0
  %v1953 = vmax.f32 %v1825, 0.0
  %v1954 = vmax.f32 %v1826, 0.0
  %v1955 = vmax.f32 %v1827, 0.0
  %v1956 = vmax.f32 %v1828, 0.0
  %v1957 = vmax.f32 %v1829, 0.0
  %v1958 = vmax.f32 %v1830, 0.0
  %v1959 = vmax.f32 %v1831, 0.0
  %v1960 = vmax.f32 %v1832, 0.0
  %v1961 = vmax.f32 %v1833, 0.0
  %v1962 = vmax.f32 %v1834, 0.0
  %v1963 = vmax.f32 %v1835, 0.0
  %v1964 = vmax.f32 %v1836, 0.0
  %v1965 = vmax.f32 %v1837, 0.0
  %v1966 = vmax.f32 %v1838, 0.0
  %v1967 = vmax.f32 %v1839, 0.0
  %v1968 = vmax.f32 %v1840, 0.0
  %v1969 = vmax.f32 %v1841, 0.0
  %v1970 = vmax.f32 %v1842, 0.0
  %v1971 = vmax.f32 %v1843, 0.0
  %v1972 = vmax.f32 %v1844, 0.0
  %v1973 = vmax.f32 %v1845, 0.0
  %v1974 = vmax.f32 %v1846, 0.0
  %v1975 = vmax.f32 %v1847, 0.0
  %v1976 = vmax.f32 %v1848, 0.0
  %v1977 = vmax.f32 %v1849, 0.0
  %v1978 = vmax.f32 %v1850, 0.0
  %v1979 = vmax.f32 %v1851, 0.0
  %v1980 = vmax.f32 %v1852, 0.0
  %v1981 = vmax.f32 %v1853, 0.0
  %v1982 = vmax.f32 %v1854, 0.0
  %v1983 = vmax.f32 %v1855, 0.0
  %v1984 = vmax.f32 %v1856, 0.0
  %v1985 = vmax.f32 %v1857, 0.0
  %v1986 = vmax.f32 %v1858, 0.0
  %v1987 = vmax.f32 %v1859, 0.0
  %v1988 = vmax.f32 %v1860, 0.0
  %v1989 = vmax.f32 %v1861, 0.0
  %v1990 = vmax.f32 %v1862, 0.0
  %v1991 = vmax.f32 %v1863, 0.0
  %v1992 = vmax.f32 %v1864, 0.0
  %v1993 = vmax.f32 %v1865, 0.0
  %v1994 = vmax.f32 %v1866, 0.0
  %v1995 = vmax.f32 %v1867, 0.0
  %v1996 = vmax.f32 %v1868, 0.0
  %v1997 = vmax.f32 %v1869, 0.0
  %v1998 = vmax.f32 %v1870, 0.0
  %v1999 = vmax.f32 %v1871, 0.0
  %v2000 = vmax.f32 %v1872, 0.0
  %v2001 = vmax.f32 %v1873, 0.0
  %v2002 = vmax.f32 %v1874, 0.0
  %v2003 = vmax.f32 %v1875, 0.0
  %v2004 = vmax.f32 %v1876, 0.0
  %v2005 = vmax.f32 %v1877, 0.0
  %v2006 = vmax.f32 %v1878, 0.0
  %v2007 = vmax.f32 %v1879, 0.0
  %v2008 = vmax.f32 %v1880, 0.0
  %v2009 = vmax.f32 %v1881, 0.0
  %v2010 = vmax.f32 %v1882, 0.0
  %v2011 = vmax.f32 %v1883, 0.0
  %v2012 = vmax.f32 %v1884, 0.0
  %v2013 = vmax.f32 %v1885, 0.0
  %v2014 = vmax.f32 %v1886, 0.0
  %v2015 = vmax.f32 %v1887, 0.0
  %v2016 = vmax.f32 %v1888, 0.0
  %v2017 = vmax.f32 %v1889, 0.0
  %v2018 = vmax.f32 %v1890, 0.0
  %v2019 = vmax.f32 %v1891, 0.0
  %v2020 = vmax.f32 %v1892, 0.0
  %v2021 = vmax.f32 %v1893, 0.0
  %v2022 = vmax.f32 %v1894, 0.0
  %v2023 = vmax.f32 %v1895, 0.0
  %v2024 = vmax.f32 %v1896, 0.0
  %v2025 = vmax.f32 %v1897, 0.0
  %v2026 = vmax.f32 %v1898, 0.0
  %v2027 = vmax.f32 %v1899, 0.0
  %v2028 = vmax.f32 %v1900, 0.0
  %v2029 = vmax.f32 %v1901, 0.0
  %v2030 = vmax.f32 %v1902, 0.0
  %v2031 = vmax.f32 %v1903, 0.0
  %v2032 = vmax.f32 %v1904, 0.0
  %v2033 = vmax.f32 %v1905, 0.0
  %v2034 = vmax.f32 %v1906, 0.0
  %v2035 = vmax.f32 %v1907, 0.0
  %v2036 = vmax.f32 %v1908, 0.0
  %v2037 = vmax.f32 %v1909, 0.0
  %v2038 = vmax.f32 %v1910, 0.0
  %v2039 = vmax.f32 %v1911, 0.0
  %v2040 = vmax.f32 %v1912, 0.0
  %v2041 = vmax.f32 %v1913, 0.0
  %v2042 = vmax.f32 %v1914, 0.0
  %v2043 = vmax.f32 %v1915, 0.0
  %v2044 = vmax.f32 %v1916, 0.0
  %v2045 = vmax.f32 %v1917, 0.0
  %v2046 = vmax.f32 %v1918, 0.0
  %v2047 = vmax.f32 %v1919, 0.0
  %v2048 = vmax.f32 %v1920, 0.0
  %v2049 = vmax.f32 %v1921, 0.0
  %v2050 = vmax.f32 %v1922, 0.0
  %v2051 = vmax.f32 %v1923, 0.0
  %v2052 = vmax.f32 %v1924, 0.0
  %v2053 = vmax.f32 %v1925, 0.0
  %v2054 = vmax.f32 %v1926, 0.0
  %v2055 = vmax.f32 %v1927, 0.0
  %v2056 = vmax.f32 %v1928, 0.0
  %v2057 = vmax.f32 %v1929, 0.0
  %v2058 = vmax.f32 %v1930, 0.0
  %2059 = vst [vmem:[%s3] sm:$0xff] %v1931
  %2060 = vst [vmem:[%s3 + $0x8] sm:$0xff] %v1932
  %2061 = vst [vmem:[%s3 + $0x10] sm:$0xff] %v1933
  %2062 = vst [vmem:[%s3 + $0x18] sm:$0xff] %v1934
  %2063 = vst [vmem:[%s3 + $0x20] sm:$0xff] %v1935
  %2064 = vst [vmem:[%s3 + $0x28] sm:$0xff] %v1936
  %2065 = vst [vmem:[%s3 + $0x30] sm:$0xff] %v1937
  %2066 = vst [vmem:[%s3 + $0x38] sm:$0xff] %v1938
  %2067 = vst [vmem:[%s3 + $0x40] sm:$0xff] %v1939
  %2068 = vst [vmem:[%s3 + $0x48] sm:$0xff] %v1940
  %2069 = vst [vmem:[%s3 + $0x50] sm:$0xff] %v1941
  %2070 = vst [vmem:[%s3 + $0x58] sm:$0xff] %v1942
  %2071 = vst [vmem:[%s3 + $0x60] sm:$0xff] %v1943
  %2072 = vst [vmem:[%s3 + $0x68] sm:$0xff] %v1944
  %2073 = vst [vmem:[%s3 + $0x70] sm:$0xff] %v1945
  %2074 = vst [vmem:[%s3 + $0x78] sm:$0xff] %v1946
  %2075 = vst [vmem:[%s3 + $0x80] sm:$0xff] %v1947
  %2076 = vst [vmem:[%s3 + $0x88] sm:$0xff] %v1948
  %2077 = vst [vmem:[%s3 + $0x90] sm:$0xff] %v1949
  %2078 = vst [vmem:[%s3 + $0x98] sm:$0xff] %v1950
  %2079 = vst [vmem:[%s3 + $0xa0] sm:$0xff] %v1951
  %2080 = vst [vmem:[%s3 + $0xa8] sm:$0xff] %v1952
  %2081 = vst [vmem:[%s3 + $0xb0] sm:$0xff] %v1953
  %2082 = vst [vmem:[%s3 + $0xb8] sm:$0xff] %v1954
  %2083 = vst [vmem:[%s3 + $0xc0] sm:$0xff] %v1955
  %2084 = vst [vmem:[%s3 + $0xc8] sm:$0xff] %v1956
  %2085 = vst [vmem:[%s3 + $0xd0] sm:$0xff] %v1957
  %2086 = vst [vmem:[%s3 + $0xd8] sm:$0xff] %v1958
  %2087 = vst [vmem:[%s3 + $0xe0] sm:$0xff] %v1959
  %2088 = vst [vmem:[%s3 + $0xe8] sm:$0xff] %v1960
  %2089 = vst [vmem:[%s3 + $0xf0] sm:$0xff] %v1961
  %2090 = vst [vmem:[%s3 + $0xf8] sm:$0xff] %v1962
  %2091 = vst [vmem:[%s3 + $0x100] sm:$0xff] %v1963
  %2092 = vst [vmem:[%s3 + $0x108] sm:$0xff] %v1964
  %2093 = vst [vmem:[%s3 + $0x110] sm:$0xff] %v1965
  %2094 = vst [vmem:[%s3 + $0x118] sm:$0xff] %v1966
  %2095 = vst [vmem:[%s3 + $0x120] sm:$0xff] %v1967
  %2096 = vst [vmem:[%s3 + $0x128] sm:$0xff] %v1968
  %2097 = vst [vmem:[%s3 + $0x130] sm:$0xff] %v1969
  %2098 = vst [vmem:[%s3 + $0x138] sm:$0xff] %v1970
  %2099 = vst [vmem:[%s3 + $0x140] sm:$0xff] %v1971
  %2100 = vst [vmem:[%s3 + $0x148] sm:$0xff] %v1972
  %2101 = vst [vmem:[%s3 + $0x150] sm:$0xff] %v1973
  %2102 = vst [vmem:[%s3 + $0x158] sm:$0xff] %v1974
  %2103 = vst [vmem:[%s3 + $0x160] sm:$0xff] %v1975
  %2104 = vst [vmem:[%s3 + $0x168] sm:$0xff] %v1976
  %2105 = vst [vmem:[%s3 + $0x170] sm:$0xff] %v1977
  %2106 = vst [vmem:[%s3 + $0x178] sm:$0xff] %v1978
  %2107 = vst [vmem:[%s3 + $0x180] sm:$0xff] %v1979
  %2108 = vst [vmem:[%s3 + $0x188] sm:$0xff] %v1980
  %2109 = vst [vmem:[%s3 + $0x190] sm:$0xff] %v1981
  %2110 = vst [vmem:[%s3 + $0x198] sm:$0xff] %v1982
  %2111 = vst [vmem:[%s3 + $0x1a0] sm:$0xff] %v1983
  %2112 = vst [vmem:[%s3 + $0x1a8] sm:$0xff] %v1984
  %2113 = vst [vmem:[%s3 + $0x1b0] sm:$0xff] %v1985
  %2114 = vst [vmem:[%s3 + $0x1b8] sm:$0xff] %v1986
  %2115 = vst [vmem:[%s3 + $0x1c0] sm:$0xff] %v1987
  %2116 = vst [vmem:[%s3 + $0x1c8] sm:$0xff] %v1988
  %2117 = vst [vmem:[%s3 + $0x1d0] sm:$0xff] %v1989
  %2118 = vst [vmem:[%s3 + $0x1d8] sm:$0xff] %v1990
  %2119 = vst [vmem:[%s3 + $0x1e0] sm:$0xff] %v1991
  %2120 = vst [vmem:[%s3 + $0x1e8] sm:$0xff] %v1992
  %2121 = vst [vmem:[%s3 + $0x1f0] sm:$0xff] %v1993
  %2122 = vst [vmem:[%s3 + $0x1f8] sm:$0xff] %v1994
  %2123 = vst [vmem:[%s3 + $0x200] sm:$0xff] %v1995
  %2124 = vst [vmem:[%s3 + $0x208] sm:$0xff] %v1996
  %2125 = vst [vmem:[%s3 + $0x210] sm:$0xff] %v1997
  %2126 = vst [vmem:[%s3 + $0x218] sm:$0xff] %v1998
  %2127 = vst [vmem:[%s3 + $0x220] sm:$0xff] %v1999
  %2128 = vst [vmem:[%s3 + $0x228] sm:$0xff] %v2000
  %2129 = vst [vmem:[%s3 + $0x230] sm:$0xff] %v2001
  %2130 = vst [vmem:[%s3 + $0x238] sm:$0xff] %v2002
  %2131 = vst [vmem:[%s3 + $0x240] sm:$0xff] %v2003
  %2132 = vst [vmem:[%s3 + $0x248] sm:$0xff] %v2004
  %2133 = vst [vmem:[%s3 + $0x250] sm:$0xff] %v2005
  %2134 = vst [vmem:[%s3 + $0x258] sm:$0xff] %v2006
  %2135 = vst [vmem:[%s3 + $0x260] sm:$0xff] %v2007
  %2136 = vst [vmem:[%s3 + $0x268] sm:$0xff] %v2008
  %2137 = vst [vmem:[%s3 + $0x270] sm:$0xff] %v2009
  %2138 = vst [vmem:[%s3 + $0x278] sm:$0xff] %v2010
  %2139 = vst [vmem:[%s3 + $0x280] sm:$0xff] %v2011
  %2140 = vst [vmem:[%s3 + $0x288] sm:$0xff] %v2012
  %2141 = vst [vmem:[%s3 + $0x290] sm:$0xff] %v2013
  %2142 = vst [vmem:[%s3 + $0x298] sm:$0xff] %v2014
  %2143 = vst [vmem:[%s3 + $0x2a0] sm:$0xff] %v2015
  %2144 = vst [vmem:[%s3 + $0x2a8] sm:$0xff] %v2016
  %2145 = vst [vmem:[%s3 + $0x2b0] sm:$0xff] %v2017
  %2146 = vst [vmem:[%s3 + $0x2b8] sm:$0xff] %v2018
  %2147 = vst [vmem:[%s3 + $0x2c0] sm:$0xff] %v2019
  %2148 = vst [vmem:[%s3 + $0x2c8] sm:$0xff] %v2020
  %2149 = vst [vmem:[%s3 + $0x2d0] sm:$0xff] %v2021
  %2150 = vst [vmem:[%s3 + $0x2d8] sm:$0xff] %v2022
  %2151 = vst [vmem:[%s3 + $0x2e0] sm:$0xff] %v2023
  %2152 = vst [vmem:[%s3 + $0x2e8] sm:$0xff] %v2024
  %2153 = vst [vmem:[%s3 + $0x2f0] sm:$0xff] %v2025
  %2154 = vst [vmem:[%s3 + $0x2f8] sm:$0xff] %v2026
  %2155 = vst [vmem:[%s3 + $0x300] sm:$0xff] %v2027
  %2156 = vst [vmem:[%s3 + $0x308] sm:$0xff] %v2028
  %2157 = vst [vmem:[%s3 + $0x310] sm:$0xff] %v2029
  %2158 = vst [vmem:[%s3 + $0x318] sm:$0xff] %v2030
  %2159 = vst [vmem:[%s3 + $0x320] sm:$0xff] %v2031
  %2160 = vst [vmem:[%s3 + $0x328] sm:$0xff] %v2032
  %2161 = vst [vmem:[%s3 + $0x330] sm:$0xff] %v2033
  %2162 = vst [vmem:[%s3 + $0x338] sm:$0xff] %v2034
  %2163 = vst [vmem:[%s3 + $0x340] sm:$0xff] %v2035
  %2164 = vst [vmem:[%s3 + $0x348] sm:$0xff] %v2036
  %2165 = vst [vmem:[%s3 + $0x350] sm:$0xff] %v2037
  %2166 = vst [vmem:[%s3 + $0x358] sm:$0xff] %v2038
  %2167 = vst [vmem:[%s3 + $0x360] sm:$0xff] %v2039
  %2168 = vst [vmem:[%s3 + $0x368] sm:$0xff] %v2040
  %2169 = vst [vmem:[%s3 + $0x370] sm:$0xff] %v2041
  %2170 = vst [vmem:[%s3 + $0x378] sm:$0xff] %v2042
  %2171 = vst [vmem:[%s3 + $0x380] sm:$0xff] %v2043
  %2172 = vst [vmem:[%s3 + $0x388] sm:$0xff] %v2044
  %2173 = vst [vmem:[%s3 + $0x390] sm:$0xff] %v2045
  %2174 = vst [vmem:[%s3 + $0x398] sm:$0xff] %v2046
  %2175 = vst [vmem:[%s3 + $0x3a0] sm:$0xff] %v2047
  %2176 = vst [vmem:[%s3 + $0x3a8] sm:$0xff] %v2048
  %2177 = vst [vmem:[%s3 + $0x3b0] sm:$0xff] %v2049
  %2178 = vst [vmem:[%s3 + $0x3b8] sm:$0xff] %v2050
  %2179 = vst [vmem:[%s3 + $0x3c0] sm:$0xff] %v2051
  %2180 = vst [vmem:[%s3 + $0x3c8] sm:$0xff] %v2052
  %2181 = vst [vmem:[%s3 + $0x3d0] sm:$0xff] %v2053
  %2182 = vst [vmem:[%s3 + $0x3d8] sm:$0xff] %v2054
  %2183 = vst [vmem:[%s3 + $0x3e0] sm:$0xff] %v2055
  %2184 = vst [vmem:[%s3 + $0x3e8] sm:$0xff] %v2056
  %2185 = vst [vmem:[%s3 + $0x3f0] sm:$0xff] %v2057
  %2186 = vst [vmem:[%s3 + $0x3f8] sm:$0xff] %v2058
  // Predicated region
  $region14: #{discriminator_forward.4} parent=0 // pred_check
    _
  $region15: #{discriminator_forward.4} parent=0 // pred_check_branch
    %2188 = sbr.rel (0) target = $region17
  $region16: #{discriminator_forward.4} parent=0 // pred_region
    _
  $region17: #{discriminator_forward.4} parent=0 // pred_fallthru
    _
  // Predicated region
  $region18: #{discriminator_forward.4} parent=0 // pred_check
    _
  $region19: #{discriminator_forward.4} parent=0 // pred_check_branch
    %2190 = sbr.rel (0) target = $region21
  $region20: #{discriminator_forward.4} parent=0 // pred_region
    _
  $region21: #{discriminator_forward.4} parent=0 // pred_fallthru
    _

// kernel: discriminator_forward.5
$region0: #{discriminator_forward.5}
  #allocation0 [shape = 'u32[]', space=smem, size = 0x4, offset = 0x4, fixed_abs, tag = 'smem constant byte address 0x4 - core index']
  #allocation1 [shape = 'u32[72,128]{1,0:T(1,128)}', space=vmem, size = 0x9000, scoped, tag = 'internal scratch']
  %s0 = inlined_call_operand.vmem [shape: bf16[128,1728], index: 0, kind: input, shape index: {}]
  %s1 = inlined_call_operand.vmem [shape: bf16[1728,128], index: 1, kind: input, shape index: {}]
  %s2 = inlined_call_operand.vmem [shape: f32[128,1], index: 2, kind: input, shape index: {}]
  %s3 = inlined_call_operand.vmem [shape: f32[128,128], index: 3, kind: output, shape index: {}]
  %s4 = sld [smem:[#allocation0]]
  $region22: #{discriminator_forward.5} parent=0
    _
  %s6 = ssub.s32 1, %s4
  %s7 = scalar_select 0, %s6, %s4
  // Predicated region
  $region2: #{discriminator_forward.5} parent=0 // pred_check
    _
  $region3: #{discriminator_forward.5} parent=0 // pred_check_branch
    %9 = sbr.rel (0) target = $region5
  $region4: #{discriminator_forward.5} parent=0 // pred_region
    _
  $region5: #{discriminator_forward.5} parent=0 // pred_fallthru
    _
  // Predicated region
  $region6: #{discriminator_forward.5} parent=0 // pred_check
    _
  $region7: #{discriminator_forward.5} parent=0 // pred_check_branch
    %11 = sbr.rel (0) target = $region9
  $region8: #{discriminator_forward.5} parent=0 // pred_region
    _
  $region9: #{discriminator_forward.5} parent=0 // pred_fallthru
    _
  // Predicated region
  $region10: #{discriminator_forward.5} parent=0 // pred_check
    _
  $region11: #{discriminator_forward.5} parent=0 // pred_check_branch
    %13 = sbr.rel (0) target = $region13
  $region12: #{discriminator_forward.5} parent=0 // pred_region
    _
  $region13: #{discriminator_forward.5} parent=0 // pred_fallthru
    _
  %v15 = vld [vmem:[%s0] sm:$0xff]
  %v16 = vld [vmem:[%s0 + $0x8] sm:$0xff]
  %v17 = vld [vmem:[%s0 + $0x10] sm:$0xff]
  %v18 = vld [vmem:[%s0 + $0x18] sm:$0xff]
  %v19 = vld [vmem:[%s0 + $0x20] sm:$0xff]
  %v20 = vld [vmem:[%s0 + $0x28] sm:$0xff]
  %v21 = vld [vmem:[%s0 + $0x30] sm:$0xff]
  %v22 = vld [vmem:[%s0 + $0x38] sm:$0xff]
  %v23 = vld [vmem:[%s0 + $0x40] sm:$0xff]
  %v24 = vld [vmem:[%s0 + $0x48] sm:$0xff]
  %v25 = vld [vmem:[%s0 + $0x50] sm:$0xff]
  %v26 = vld [vmem:[%s0 + $0x58] sm:$0xff]
  %v27 = vld [vmem:[%s0 + $0x60] sm:$0xff]
  %v28 = vld [vmem:[%s0 + $0x68] sm:$0xff]
  %v29 = vld [vmem:[%s0 + $0x70] sm:$0xff]
  %v30 = vld [vmem:[%s0 + $0x78] sm:$0xff]
  %v31 = vld [vmem:[%s0 + $0x80] sm:$0xff]
  %v32 = vld [vmem:[%s0 + $0x88] sm:$0xff]
  %v33 = vld [vmem:[%s0 + $0x90] sm:$0xff]
  %v34 = vld [vmem:[%s0 + $0x98] sm:$0xff]
  %v35 = vld [vmem:[%s0 + $0xa0] sm:$0xff]
  %v36 = vld [vmem:[%s0 + $0xa8] sm:$0xff]
  %v37 = vld [vmem:[%s0 + $0xb0] sm:$0xff]
  %v38 = vld [vmem:[%s0 + $0xb8] sm:$0xff]
  %v39 = vld [vmem:[%s0 + $0xc0] sm:$0xff]
  %v40 = vld [vmem:[%s0 + $0xc8] sm:$0xff]
  %v41 = vld [vmem:[%s0 + $0xd0] sm:$0xff]
  %v42 = vld [vmem:[%s0 + $0xd8] sm:$0xff]
  %v43 = vld [vmem:[%s0 + $0xe0] sm:$0xff]
  %v44 = vld [vmem:[%s0 + $0xe8] sm:$0xff]
  %v45 = vld [vmem:[%s0 + $0xf0] sm:$0xff]
  %v46 = vld [vmem:[%s0 + $0xf8] sm:$0xff]
  %v47 = vld [vmem:[%s0 + $0x100] sm:$0xff]
  %v48 = vld [vmem:[%s0 + $0x108] sm:$0xff]
  %v49 = vld [vmem:[%s0 + $0x110] sm:$0xff]
  %v50 = vld [vmem:[%s0 + $0x118] sm:$0xff]
  %v51 = vld [vmem:[%s0 + $0x120] sm:$0xff]
  %v52 = vld [vmem:[%s0 + $0x128] sm:$0xff]
  %v53 = vld [vmem:[%s0 + $0x130] sm:$0xff]
  %v54 = vld [vmem:[%s0 + $0x138] sm:$0xff]
  %v55 = vld [vmem:[%s0 + $0x140] sm:$0xff]
  %v56 = vld [vmem:[%s0 + $0x148] sm:$0xff]
  %v57 = vld [vmem:[%s0 + $0x150] sm:$0xff]
  %v58 = vld [vmem:[%s0 + $0x158] sm:$0xff]
  %v59 = vld [vmem:[%s0 + $0x160] sm:$0xff]
  %v60 = vld [vmem:[%s0 + $0x168] sm:$0xff]
  %v61 = vld [vmem:[%s0 + $0x170] sm:$0xff]
  %v62 = vld [vmem:[%s0 + $0x178] sm:$0xff]
  %v63 = vld [vmem:[%s0 + $0x180] sm:$0xff]
  %v64 = vld [vmem:[%s0 + $0x188] sm:$0xff]
  %v65 = vld [vmem:[%s0 + $0x190] sm:$0xff]
  %v66 = vld [vmem:[%s0 + $0x198] sm:$0xff]
  %v67 = vld [vmem:[%s0 + $0x1a0] sm:$0xff]
  %v68 = vld [vmem:[%s0 + $0x1a8] sm:$0xff]
  %v69 = vld [vmem:[%s0 + $0x1b0] sm:$0xff]
  %v70 = vld [vmem:[%s0 + $0x1b8] sm:$0xff]
  %v71 = vld [vmem:[%s0 + $0x1c0] sm:$0xff]
  %v72 = vld [vmem:[%s0 + $0x1c8] sm:$0xff]
  %v73 = vld [vmem:[%s0 + $0x1d0] sm:$0xff]
  %v74 = vld [vmem:[%s0 + $0x1d8] sm:$0xff]
  %v75 = vld [vmem:[%s0 + $0x1e0] sm:$0xff]
  %v76 = vld [vmem:[%s0 + $0x1e8] sm:$0xff]
  %v77 = vld [vmem:[%s0 + $0x1f0] sm:$0xff]
  %v78 = vld [vmem:[%s0 + $0x1f8] sm:$0xff]
  %v79 = vld [vmem:[%s0 + $0x200] sm:$0xff]
  %v80 = vld [vmem:[%s0 + $0x208] sm:$0xff]
  %v81 = vld [vmem:[%s0 + $0x210] sm:$0xff]
  %v82 = vld [vmem:[%s0 + $0x218] sm:$0xff]
  %v83 = vld [vmem:[%s0 + $0x220] sm:$0xff]
  %v84 = vld [vmem:[%s0 + $0x228] sm:$0xff]
  %v85 = vld [vmem:[%s0 + $0x230] sm:$0xff]
  %v86 = vld [vmem:[%s0 + $0x238] sm:$0xff]
  %v87 = vld [vmem:[%s0 + $0x240] sm:$0xff]
  %v88 = vld [vmem:[%s0 + $0x248] sm:$0xff]
  %v89 = vld [vmem:[%s0 + $0x250] sm:$0xff]
  %v90 = vld [vmem:[%s0 + $0x258] sm:$0xff]
  %v91 = vld [vmem:[%s0 + $0x260] sm:$0xff]
  %v92 = vld [vmem:[%s0 + $0x268] sm:$0xff]
  %v93 = vld [vmem:[%s0 + $0x270] sm:$0xff]
  %v94 = vld [vmem:[%s0 + $0x278] sm:$0xff]
  %v95 = vld [vmem:[%s0 + $0x280] sm:$0xff]
  %v96 = vld [vmem:[%s0 + $0x288] sm:$0xff]
  %v97 = vld [vmem:[%s0 + $0x290] sm:$0xff]
  %v98 = vld [vmem:[%s0 + $0x298] sm:$0xff]
  %v99 = vld [vmem:[%s0 + $0x2a0] sm:$0xff]
  %v100 = vld [vmem:[%s0 + $0x2a8] sm:$0xff]
  %v101 = vld [vmem:[%s0 + $0x2b0] sm:$0xff]
  %v102 = vld [vmem:[%s0 + $0x2b8] sm:$0xff]
  %v103 = vld [vmem:[%s0 + $0x2c0] sm:$0xff]
  %v104 = vld [vmem:[%s0 + $0x2c8] sm:$0xff]
  %v105 = vld [vmem:[%s0 + $0x2d0] sm:$0xff]
  %v106 = vld [vmem:[%s0 + $0x2d8] sm:$0xff]
  %v107 = vld [vmem:[%s0 + $0x2e0] sm:$0xff]
  %v108 = vld [vmem:[%s0 + $0x2e8] sm:$0xff]
  %v109 = vld [vmem:[%s0 + $0x2f0] sm:$0xff]
  %v110 = vld [vmem:[%s0 + $0x2f8] sm:$0xff]
  %v111 = vld [vmem:[%s0 + $0x300] sm:$0xff]
  %v112 = vld [vmem:[%s0 + $0x308] sm:$0xff]
  %v113 = vld [vmem:[%s0 + $0x310] sm:$0xff]
  %v114 = vld [vmem:[%s0 + $0x318] sm:$0xff]
  %v115 = vld [vmem:[%s0 + $0x320] sm:$0xff]
  %v116 = vld [vmem:[%s0 + $0x328] sm:$0xff]
  %v117 = vld [vmem:[%s0 + $0x330] sm:$0xff]
  %v118 = vld [vmem:[%s0 + $0x338] sm:$0xff]
  %v119 = vld [vmem:[%s0 + $0x340] sm:$0xff]
  %v120 = vld [vmem:[%s0 + $0x348] sm:$0xff]
  %v121 = vld [vmem:[%s0 + $0x350] sm:$0xff]
  %v122 = vld [vmem:[%s0 + $0x358] sm:$0xff]
  %v123 = vld [vmem:[%s0 + $0x360] sm:$0xff]
  %v124 = vld [vmem:[%s0 + $0x368] sm:$0xff]
  %v125 = vld [vmem:[%s0 + $0x370] sm:$0xff]
  %v126 = vld [vmem:[%s0 + $0x378] sm:$0xff]
  %v127 = vld [vmem:[%s1] sm:$0xf]
  %v128 = vld [vmem:[%s1 + $0x4] sm:$0xf]
  %v129 = vld [vmem:[%s1 + $0x8] sm:$0xf]
  %v130 = vld [vmem:[%s1 + $0xc] sm:$0xf]
  %v131 = vld [vmem:[%s1 + $0x10] sm:$0xf]
  %v132 = vld [vmem:[%s1 + $0x14] sm:$0xf]
  %v133 = vld [vmem:[%s1 + $0x18] sm:$0xf]
  %v134 = vld [vmem:[%s1 + $0x1c] sm:$0xf]
  %v135 = vld [vmem:[%s1 + $0x20] sm:$0xf]
  %v136 = vld [vmem:[%s1 + $0x24] sm:$0xf]
  %v137 = vld [vmem:[%s1 + $0x28] sm:$0xf]
  %v138 = vld [vmem:[%s1 + $0x2c] sm:$0xf]
  %v139 = vld [vmem:[%s1 + $0x30] sm:$0xf]
  %v140 = vld [vmem:[%s1 + $0x34] sm:$0xf]
  %v141 = vld [vmem:[%s1 + $0x38] sm:$0xf]
  %v142 = vld [vmem:[%s1 + $0x3c] sm:$0xf]
  %v143 = vld [vmem:[%s1 + $0x40] sm:$0xf]
  %v144 = vld [vmem:[%s1 + $0x44] sm:$0xf]
  %v145 = vld [vmem:[%s1 + $0x48] sm:$0xf]
  %v146 = vld [vmem:[%s1 + $0x4c] sm:$0xf]
  %v147 = vld [vmem:[%s1 + $0x50] sm:$0xf]
  %v148 = vld [vmem:[%s1 + $0x54] sm:$0xf]
  %v149 = vld [vmem:[%s1 + $0x58] sm:$0xf]
  %v150 = vld [vmem:[%s1 + $0x5c] sm:$0xf]
  %v151 = vld [vmem:[%s1 + $0x60] sm:$0xf]
  %v152 = vld [vmem:[%s1 + $0x64] sm:$0xf]
  %v153 = vld [vmem:[%s1 + $0x68] sm:$0xf]
  %v154 = vld [vmem:[%s1 + $0x6c] sm:$0xf]
  %v155 = vld [vmem:[%s1 + $0x70] sm:$0xf]
  %v156 = vld [vmem:[%s1 + $0x74] sm:$0xf]
  %v157 = vld [vmem:[%s1 + $0x78] sm:$0xf]
  %v158 = vld [vmem:[%s1 + $0x7c] sm:$0xf]
  %v159 = vld [vmem:[%s1 + $0x80] sm:$0xf]
  %v160 = vld [vmem:[%s1 + $0x84] sm:$0xf]
  %v161 = vld [vmem:[%s1 + $0x88] sm:$0xf]
  %v162 = vld [vmem:[%s1 + $0x8c] sm:$0xf]
  %v163 = vld [vmem:[%s1 + $0x90] sm:$0xf]
  %v164 = vld [vmem:[%s1 + $0x94] sm:$0xf]
  %v165 = vld [vmem:[%s1 + $0x98] sm:$0xf]
  %v166 = vld [vmem:[%s1 + $0x9c] sm:$0xf]
  %v167 = vld [vmem:[%s1 + $0xa0] sm:$0xf]
  %v168 = vld [vmem:[%s1 + $0xa4] sm:$0xf]
  %v169 = vld [vmem:[%s1 + $0xa8] sm:$0xf]
  %v170 = vld [vmem:[%s1 + $0xac] sm:$0xf]
  %v171 = vld [vmem:[%s1 + $0xb0] sm:$0xf]
  %v172 = vld [vmem:[%s1 + $0xb4] sm:$0xf]
  %v173 = vld [vmem:[%s1 + $0xb8] sm:$0xf]
  %v174 = vld [vmem:[%s1 + $0xbc] sm:$0xf]
  %v175 = vld [vmem:[%s1 + $0xc0] sm:$0xf]
  %v176 = vld [vmem:[%s1 + $0xc4] sm:$0xf]
  %v177 = vld [vmem:[%s1 + $0xc8] sm:$0xf]
  %v178 = vld [vmem:[%s1 + $0xcc] sm:$0xf]
  %v179 = vld [vmem:[%s1 + $0xd0] sm:$0xf]
  %v180 = vld [vmem:[%s1 + $0xd4] sm:$0xf]
  %v181 = vld [vmem:[%s1 + $0xd8] sm:$0xf]
  %v182 = vld [vmem:[%s1 + $0xdc] sm:$0xf]
  %v183 = vld [vmem:[%s1 + $0xe0] sm:$0xf]
  %v184 = vld [vmem:[%s1 + $0xe4] sm:$0xf]
  %v185 = vld [vmem:[%s1 + $0xe8] sm:$0xf]
  %v186 = vld [vmem:[%s1 + $0xec] sm:$0xf]
  %v187 = vld [vmem:[%s1 + $0xf0] sm:$0xf]
  %v188 = vld [vmem:[%s1 + $0xf4] sm:$0xf]
  %v189 = vld [vmem:[%s1 + $0xf8] sm:$0xf]
  %v190 = vld [vmem:[%s1 + $0xfc] sm:$0xf]
  %v191 = vld [vmem:[%s1 + $0x100] sm:$0xf]
  %v192 = vld [vmem:[%s1 + $0x104] sm:$0xf]
  %v193 = vld [vmem:[%s1 + $0x108] sm:$0xf]
  %v194 = vld [vmem:[%s1 + $0x10c] sm:$0xf]
  %v195 = vld [vmem:[%s1 + $0x110] sm:$0xf]
  %v196 = vld [vmem:[%s1 + $0x114] sm:$0xf]
  %v197 = vld [vmem:[%s1 + $0x118] sm:$0xf]
  %v198 = vld [vmem:[%s1 + $0x11c] sm:$0xf]
  %v199 = vld [vmem:[%s1 + $0x120] sm:$0xf]
  %v200 = vld [vmem:[%s1 + $0x124] sm:$0xf]
  %v201 = vld [vmem:[%s1 + $0x128] sm:$0xf]
  %v202 = vld [vmem:[%s1 + $0x12c] sm:$0xf]
  %v203 = vld [vmem:[%s1 + $0x130] sm:$0xf]
  %v204 = vld [vmem:[%s1 + $0x134] sm:$0xf]
  %v205 = vld [vmem:[%s1 + $0x138] sm:$0xf]
  %v206 = vld [vmem:[%s1 + $0x13c] sm:$0xf]
  %v207 = vld [vmem:[%s1 + $0x140] sm:$0xf]
  %v208 = vld [vmem:[%s1 + $0x144] sm:$0xf]
  %v209 = vld [vmem:[%s1 + $0x148] sm:$0xf]
  %v210 = vld [vmem:[%s1 + $0x14c] sm:$0xf]
  %v211 = vld [vmem:[%s1 + $0x150] sm:$0xf]
  %v212 = vld [vmem:[%s1 + $0x154] sm:$0xf]
  %v213 = vld [vmem:[%s1 + $0x158] sm:$0xf]
  %v214 = vld [vmem:[%s1 + $0x15c] sm:$0xf]
  %v215 = vld [vmem:[%s1 + $0x160] sm:$0xf]
  %v216 = vld [vmem:[%s1 + $0x164] sm:$0xf]
  %v217 = vld [vmem:[%s1 + $0x168] sm:$0xf]
  %v218 = vld [vmem:[%s1 + $0x16c] sm:$0xf]
  %v219 = vld [vmem:[%s1 + $0x170] sm:$0xf]
  %v220 = vld [vmem:[%s1 + $0x174] sm:$0xf]
  %v221 = vld [vmem:[%s1 + $0x178] sm:$0xf]
  %v222 = vld [vmem:[%s1 + $0x17c] sm:$0xf]
  %v223 = vld [vmem:[%s1 + $0x180] sm:$0xf]
  %v224 = vld [vmem:[%s1 + $0x184] sm:$0xf]
  %v225 = vld [vmem:[%s1 + $0x188] sm:$0xf]
  %v226 = vld [vmem:[%s1 + $0x18c] sm:$0xf]
  %v227 = vld [vmem:[%s1 + $0x190] sm:$0xf]
  %v228 = vld [vmem:[%s1 + $0x194] sm:$0xf]
  %v229 = vld [vmem:[%s1 + $0x198] sm:$0xf]
  %v230 = vld [vmem:[%s1 + $0x19c] sm:$0xf]
  %v231 = vld [vmem:[%s1 + $0x1a0] sm:$0xf]
  %v232 = vld [vmem:[%s1 + $0x1a4] sm:$0xf]
  %v233 = vld [vmem:[%s1 + $0x1a8] sm:$0xf]
  %v234 = vld [vmem:[%s1 + $0x1ac] sm:$0xf]
  %v235 = vld [vmem:[%s1 + $0x1b0] sm:$0xf]
  %v236 = vld [vmem:[%s1 + $0x1b4] sm:$0xf]
  %v237 = vld [vmem:[%s1 + $0x1b8] sm:$0xf]
  %v238 = vld [vmem:[%s1 + $0x1bc] sm:$0xf]
  %v239 = vld [vmem:[%s1 + $0x1c0] sm:$0xf]
  %v240 = vld [vmem:[%s1 + $0x1c4] sm:$0xf]
  %v241 = vld [vmem:[%s1 + $0x1c8] sm:$0xf]
  %v242 = vld [vmem:[%s1 + $0x1cc] sm:$0xf]
  %v243 = vld [vmem:[%s1 + $0x1d0] sm:$0xf]
  %v244 = vld [vmem:[%s1 + $0x1d4] sm:$0xf]
  %v245 = vld [vmem:[%s1 + $0x1d8] sm:$0xf]
  %v246 = vld [vmem:[%s1 + $0x1dc] sm:$0xf]
  %v247 = vld [vmem:[%s1 + $0x1e0] sm:$0xf]
  %v248 = vld [vmem:[%s1 + $0x1e4] sm:$0xf]
  %v249 = vld [vmem:[%s1 + $0x1e8] sm:$0xf]
  %v250 = vld [vmem:[%s1 + $0x1ec] sm:$0xf]
  %v251 = vld [vmem:[%s1 + $0x1f0] sm:$0xf]
  %v252 = vld [vmem:[%s1 + $0x1f4] sm:$0xf]
  %v253 = vld [vmem:[%s1 + $0x1f8] sm:$0xf]
  %v254 = vld [vmem:[%s1 + $0x1fc] sm:$0xf]
  %v255 = vld [vmem:[%s1 + $0x200] sm:$0xf]
  %v256 = vld [vmem:[%s1 + $0x204] sm:$0xf]
  %v257 = vld [vmem:[%s1 + $0x208] sm:$0xf]
  %v258 = vld [vmem:[%s1 + $0x20c] sm:$0xf]
  %v259 = vld [vmem:[%s1 + $0x210] sm:$0xf]
  %v260 = vld [vmem:[%s1 + $0x214] sm:$0xf]
  %v261 = vld [vmem:[%s1 + $0x218] sm:$0xf]
  %v262 = vld [vmem:[%s1 + $0x21c] sm:$0xf]
  %v263 = vld [vmem:[%s1 + $0x220] sm:$0xf]
  %v264 = vld [vmem:[%s1 + $0x224] sm:$0xf]
  %v265 = vld [vmem:[%s1 + $0x228] sm:$0xf]
  %v266 = vld [vmem:[%s1 + $0x22c] sm:$0xf]
  %v267 = vld [vmem:[%s1 + $0x230] sm:$0xf]
  %v268 = vld [vmem:[%s1 + $0x234] sm:$0xf]
  %v269 = vld [vmem:[%s1 + $0x238] sm:$0xf]
  %v270 = vld [vmem:[%s1 + $0x23c] sm:$0xf]
  %v271 = vld [vmem:[%s1 + $0x240] sm:$0xf]
  %v272 = vld [vmem:[%s1 + $0x244] sm:$0xf]
  %v273 = vld [vmem:[%s1 + $0x248] sm:$0xf]
  %v274 = vld [vmem:[%s1 + $0x24c] sm:$0xf]
  %v275 = vld [vmem:[%s1 + $0x250] sm:$0xf]
  %v276 = vld [vmem:[%s1 + $0x254] sm:$0xf]
  %v277 = vld [vmem:[%s1 + $0x258] sm:$0xf]
  %v278 = vld [vmem:[%s1 + $0x25c] sm:$0xf]
  %v279 = vld [vmem:[%s1 + $0x260] sm:$0xf]
  %v280 = vld [vmem:[%s1 + $0x264] sm:$0xf]
  %v281 = vld [vmem:[%s1 + $0x268] sm:$0xf]
  %v282 = vld [vmem:[%s1 + $0x26c] sm:$0xf]
  %v283 = vld [vmem:[%s1 + $0x270] sm:$0xf]
  %v284 = vld [vmem:[%s1 + $0x274] sm:$0xf]
  %v285 = vld [vmem:[%s1 + $0x278] sm:$0xf]
  %v286 = vld [vmem:[%s1 + $0x27c] sm:$0xf]
  %v287 = vld [vmem:[%s1 + $0x280] sm:$0xf]
  %v288 = vld [vmem:[%s1 + $0x284] sm:$0xf]
  %v289 = vld [vmem:[%s1 + $0x288] sm:$0xf]
  %v290 = vld [vmem:[%s1 + $0x28c] sm:$0xf]
  %v291 = vld [vmem:[%s1 + $0x290] sm:$0xf]
  %v292 = vld [vmem:[%s1 + $0x294] sm:$0xf]
  %v293 = vld [vmem:[%s1 + $0x298] sm:$0xf]
  %v294 = vld [vmem:[%s1 + $0x29c] sm:$0xf]
  %v295 = vld [vmem:[%s1 + $0x2a0] sm:$0xf]
  %v296 = vld [vmem:[%s1 + $0x2a4] sm:$0xf]
  %v297 = vld [vmem:[%s1 + $0x2a8] sm:$0xf]
  %v298 = vld [vmem:[%s1 + $0x2ac] sm:$0xf]
  %v299 = vld [vmem:[%s1 + $0x2b0] sm:$0xf]
  %v300 = vld [vmem:[%s1 + $0x2b4] sm:$0xf]
  %v301 = vld [vmem:[%s1 + $0x2b8] sm:$0xf]
  %v302 = vld [vmem:[%s1 + $0x2bc] sm:$0xf]
  %v303 = vld [vmem:[%s1 + $0x2c0] sm:$0xf]
  %v304 = vld [vmem:[%s1 + $0x2c4] sm:$0xf]
  %v305 = vld [vmem:[%s1 + $0x2c8] sm:$0xf]
  %v306 = vld [vmem:[%s1 + $0x2cc] sm:$0xf]
  %v307 = vld [vmem:[%s1 + $0x2d0] sm:$0xf]
  %v308 = vld [vmem:[%s1 + $0x2d4] sm:$0xf]
  %v309 = vld [vmem:[%s1 + $0x2d8] sm:$0xf]
  %v310 = vld [vmem:[%s1 + $0x2dc] sm:$0xf]
  %v311 = vld [vmem:[%s1 + $0x2e0] sm:$0xf]
  %v312 = vld [vmem:[%s1 + $0x2e4] sm:$0xf]
  %v313 = vld [vmem:[%s1 + $0x2e8] sm:$0xf]
  %v314 = vld [vmem:[%s1 + $0x2ec] sm:$0xf]
  %v315 = vld [vmem:[%s1 + $0x2f0] sm:$0xf]
  %v316 = vld [vmem:[%s1 + $0x2f4] sm:$0xf]
  %v317 = vld [vmem:[%s1 + $0x2f8] sm:$0xf]
  %v318 = vld [vmem:[%s1 + $0x2fc] sm:$0xf]
  %v319 = vld [vmem:[%s1 + $0x300] sm:$0xf]
  %v320 = vld [vmem:[%s1 + $0x304] sm:$0xf]
  %v321 = vld [vmem:[%s1 + $0x308] sm:$0xf]
  %v322 = vld [vmem:[%s1 + $0x30c] sm:$0xf]
  %v323 = vld [vmem:[%s1 + $0x310] sm:$0xf]
  %v324 = vld [vmem:[%s1 + $0x314] sm:$0xf]
  %v325 = vld [vmem:[%s1 + $0x318] sm:$0xf]
  %v326 = vld [vmem:[%s1 + $0x31c] sm:$0xf]
  %v327 = vld [vmem:[%s1 + $0x320] sm:$0xf]
  %v328 = vld [vmem:[%s1 + $0x324] sm:$0xf]
  %v329 = vld [vmem:[%s1 + $0x328] sm:$0xf]
  %v330 = vld [vmem:[%s1 + $0x32c] sm:$0xf]
  %v331 = vld [vmem:[%s1 + $0x330] sm:$0xf]
  %v332 = vld [vmem:[%s1 + $0x334] sm:$0xf]
  %v333 = vld [vmem:[%s1 + $0x338] sm:$0xf]
  %v334 = vld [vmem:[%s1 + $0x33c] sm:$0xf]
  %v335 = vld [vmem:[%s1 + $0x340] sm:$0xf]
  %v336 = vld [vmem:[%s1 + $0x344] sm:$0xf]
  %v337 = vld [vmem:[%s1 + $0x348] sm:$0xf]
  %v338 = vld [vmem:[%s1 + $0x34c] sm:$0xf]
  %v339 = vld [vmem:[%s1 + $0x350] sm:$0xf]
  %v340 = vld [vmem:[%s1 + $0x354] sm:$0xf]
  %v341 = vld [vmem:[%s1 + $0x358] sm:$0xf]
  %v342 = vld [vmem:[%s1 + $0x35c] sm:$0xf]
  %v455 = vunpack.c.l.b16 %v15
  %v456 = vunpack.c.h.b16 %v15
  %v457 = vunpack.c.l.b16 %v16
  %v458 = vunpack.c.h.b16 %v16
  %v459 = vunpack.c.l.b16 %v17
  %v460 = vunpack.c.h.b16 %v17
  %v461 = vunpack.c.l.b16 %v18
  %v462 = vunpack.c.h.b16 %v18
  %v463 = vunpack.c.l.b16 %v19
  %v464 = vunpack.c.h.b16 %v19
  %v465 = vunpack.c.l.b16 %v20
  %v466 = vunpack.c.h.b16 %v20
  %v467 = vunpack.c.l.b16 %v21
  %v468 = vunpack.c.h.b16 %v21
  %v469 = vunpack.c.l.b16 %v22
  %v470 = vunpack.c.h.b16 %v22
  %v471 = vunpack.c.l.b16 %v23
  %v472 = vunpack.c.h.b16 %v23
  %v473 = vunpack.c.l.b16 %v24
  %v474 = vunpack.c.h.b16 %v24
  %v475 = vunpack.c.l.b16 %v25
  %v476 = vunpack.c.h.b16 %v25
  %v477 = vunpack.c.l.b16 %v26
  %v478 = vunpack.c.h.b16 %v26
  %v479 = vunpack.c.l.b16 %v27
  %v480 = vunpack.c.h.b16 %v27
  %v481 = vunpack.c.l.b16 %v28
  %v482 = vunpack.c.h.b16 %v28
  %v483 = vunpack.c.l.b16 %v29
  %v484 = vunpack.c.h.b16 %v29
  %v485 = vunpack.c.l.b16 %v30
  %v486 = vunpack.c.h.b16 %v30
  %v487 = vunpack.c.l.b16 %v31
  %v488 = vunpack.c.h.b16 %v31
  %v489 = vunpack.c.l.b16 %v32
  %v490 = vunpack.c.h.b16 %v32
  %v491 = vunpack.c.l.b16 %v33
  %v492 = vunpack.c.h.b16 %v33
  %v493 = vunpack.c.l.b16 %v34
  %v494 = vunpack.c.h.b16 %v34
  %v495 = vunpack.c.l.b16 %v35
  %v496 = vunpack.c.h.b16 %v35
  %v497 = vunpack.c.l.b16 %v36
  %v498 = vunpack.c.h.b16 %v36
  %v499 = vunpack.c.l.b16 %v37
  %v500 = vunpack.c.h.b16 %v37
  %v501 = vunpack.c.l.b16 %v38
  %v502 = vunpack.c.h.b16 %v38
  %v503 = vunpack.c.l.b16 %v39
  %v504 = vunpack.c.h.b16 %v39
  %v505 = vunpack.c.l.b16 %v40
  %v506 = vunpack.c.h.b16 %v40
  %v507 = vunpack.c.l.b16 %v41
  %v508 = vunpack.c.h.b16 %v41
  %v509 = vunpack.c.l.b16 %v42
  %v510 = vunpack.c.h.b16 %v42
  %v511 = vunpack.c.l.b16 %v43
  %v512 = vunpack.c.h.b16 %v43
  %v513 = vunpack.c.l.b16 %v44
  %v514 = vunpack.c.h.b16 %v44
  %v515 = vunpack.c.l.b16 %v45
  %v516 = vunpack.c.h.b16 %v45
  %v517 = vunpack.c.l.b16 %v46
  %v518 = vunpack.c.h.b16 %v46
  %v519 = vunpack.c.l.b16 %v47
  %v520 = vunpack.c.h.b16 %v47
  %v521 = vunpack.c.l.b16 %v48
  %v522 = vunpack.c.h.b16 %v48
  %v523 = vunpack.c.l.b16 %v49
  %v524 = vunpack.c.h.b16 %v49
  %v525 = vunpack.c.l.b16 %v50
  %v526 = vunpack.c.h.b16 %v50
  %v527 = vunpack.c.l.b16 %v51
  %v528 = vunpack.c.h.b16 %v51
  %v529 = vunpack.c.l.b16 %v52
  %v530 = vunpack.c.h.b16 %v52
  %v531 = vunpack.c.l.b16 %v53
  %v532 = vunpack.c.h.b16 %v53
  %v533 = vunpack.c.l.b16 %v54
  %v534 = vunpack.c.h.b16 %v54
  %v535 = vunpack.c.l.b16 %v55
  %v536 = vunpack.c.h.b16 %v55
  %v537 = vunpack.c.l.b16 %v56
  %v538 = vunpack.c.h.b16 %v56
  %v539 = vunpack.c.l.b16 %v57
  %v540 = vunpack.c.h.b16 %v57
  %v541 = vunpack.c.l.b16 %v58
  %v542 = vunpack.c.h.b16 %v58
  %v543 = vunpack.c.l.b16 %v59
  %v544 = vunpack.c.h.b16 %v59
  %v545 = vunpack.c.l.b16 %v60
  %v546 = vunpack.c.h.b16 %v60
  %v547 = vunpack.c.l.b16 %v61
  %v548 = vunpack.c.h.b16 %v61
  %v549 = vunpack.c.l.b16 %v62
  %v550 = vunpack.c.h.b16 %v62
  %v551 = vunpack.c.l.b16 %v63
  %v552 = vunpack.c.h.b16 %v63
  %v553 = vunpack.c.l.b16 %v64
  %v554 = vunpack.c.h.b16 %v64
  %v555 = vunpack.c.l.b16 %v65
  %v556 = vunpack.c.h.b16 %v65
  %v557 = vunpack.c.l.b16 %v66
  %v558 = vunpack.c.h.b16 %v66
  %v559 = vunpack.c.l.b16 %v67
  %v560 = vunpack.c.h.b16 %v67
  %v561 = vunpack.c.l.b16 %v68
  %v562 = vunpack.c.h.b16 %v68
  %v563 = vunpack.c.l.b16 %v69
  %v564 = vunpack.c.h.b16 %v69
  %v565 = vunpack.c.l.b16 %v70
  %v566 = vunpack.c.h.b16 %v70
  %v567 = vunpack.c.l.b16 %v71
  %v568 = vunpack.c.h.b16 %v71
  %v569 = vunpack.c.l.b16 %v72
  %v570 = vunpack.c.h.b16 %v72
  %v571 = vunpack.c.l.b16 %v73
  %v572 = vunpack.c.h.b16 %v73
  %v573 = vunpack.c.l.b16 %v74
  %v574 = vunpack.c.h.b16 %v74
  %v575 = vunpack.c.l.b16 %v75
  %v576 = vunpack.c.h.b16 %v75
  %v577 = vunpack.c.l.b16 %v76
  %v578 = vunpack.c.h.b16 %v76
  %v579 = vunpack.c.l.b16 %v77
  %v580 = vunpack.c.h.b16 %v77
  %v581 = vunpack.c.l.b16 %v78
  %v582 = vunpack.c.h.b16 %v78
  %v583 = vunpack.c.l.b16 %v79
  %v584 = vunpack.c.h.b16 %v79
  %v585 = vunpack.c.l.b16 %v80
  %v586 = vunpack.c.h.b16 %v80
  %v587 = vunpack.c.l.b16 %v81
  %v588 = vunpack.c.h.b16 %v81
  %v589 = vunpack.c.l.b16 %v82
  %v590 = vunpack.c.h.b16 %v82
  %v591 = vunpack.c.l.b16 %v83
  %v592 = vunpack.c.h.b16 %v83
  %v593 = vunpack.c.l.b16 %v84
  %v594 = vunpack.c.h.b16 %v84
  %v595 = vunpack.c.l.b16 %v85
  %v596 = vunpack.c.h.b16 %v85
  %v597 = vunpack.c.l.b16 %v86
  %v598 = vunpack.c.h.b16 %v86
  %v599 = vunpack.c.l.b16 %v87
  %v600 = vunpack.c.h.b16 %v87
  %v601 = vunpack.c.l.b16 %v88
  %v602 = vunpack.c.h.b16 %v88
  %v603 = vunpack.c.l.b16 %v89
  %v604 = vunpack.c.h.b16 %v89
  %v605 = vunpack.c.l.b16 %v90
  %v606 = vunpack.c.h.b16 %v90
  %v607 = vunpack.c.l.b16 %v91
  %v608 = vunpack.c.h.b16 %v91
  %v609 = vunpack.c.l.b16 %v92
  %v610 = vunpack.c.h.b16 %v92
  %v611 = vunpack.c.l.b16 %v93
  %v612 = vunpack.c.h.b16 %v93
  %v613 = vunpack.c.l.b16 %v94
  %v614 = vunpack.c.h.b16 %v94
  %v615 = vunpack.c.l.b16 %v95
  %v616 = vunpack.c.h.b16 %v95
  %v617 = vunpack.c.l.b16 %v96
  %v618 = vunpack.c.h.b16 %v96
  %v619 = vunpack.c.l.b16 %v97
  %v620 = vunpack.c.h.b16 %v97
  %v621 = vunpack.c.l.b16 %v98
  %v622 = vunpack.c.h.b16 %v98
  %v623 = vunpack.c.l.b16 %v99
  %v624 = vunpack.c.h.b16 %v99
  %v625 = vunpack.c.l.b16 %v100
  %v626 = vunpack.c.h.b16 %v100
  %v627 = vunpack.c.l.b16 %v101
  %v628 = vunpack.c.h.b16 %v101
  %v629 = vunpack.c.l.b16 %v102
  %v630 = vunpack.c.h.b16 %v102
  %v631 = vunpack.c.l.b16 %v103
  %v632 = vunpack.c.h.b16 %v103
  %v633 = vunpack.c.l.b16 %v104
  %v634 = vunpack.c.h.b16 %v104
  %v635 = vunpack.c.l.b16 %v105
  %v636 = vunpack.c.h.b16 %v105
  %v637 = vunpack.c.l.b16 %v106
  %v638 = vunpack.c.h.b16 %v106
  %v639 = vunpack.c.l.b16 %v107
  %v640 = vunpack.c.h.b16 %v107
  %v641 = vunpack.c.l.b16 %v108
  %v642 = vunpack.c.h.b16 %v108
  %v643 = vunpack.c.l.b16 %v109
  %v644 = vunpack.c.h.b16 %v109
  %v645 = vunpack.c.l.b16 %v110
  %v646 = vunpack.c.h.b16 %v110
  %v647 = vunpack.c.l.b16 %v111
  %v648 = vunpack.c.h.b16 %v111
  %v649 = vunpack.c.l.b16 %v112
  %v650 = vunpack.c.h.b16 %v112
  %v651 = vunpack.c.l.b16 %v113
  %v652 = vunpack.c.h.b16 %v113
  %v653 = vunpack.c.l.b16 %v114
  %v654 = vunpack.c.h.b16 %v114
  %v655 = vunpack.c.l.b16 %v115
  %v656 = vunpack.c.h.b16 %v115
  %v657 = vunpack.c.l.b16 %v116
  %v658 = vunpack.c.h.b16 %v116
  %v659 = vunpack.c.l.b16 %v117
  %v660 = vunpack.c.h.b16 %v117
  %v661 = vunpack.c.l.b16 %v118
  %v662 = vunpack.c.h.b16 %v118
  %v663 = vunpack.c.l.b16 %v119
  %v664 = vunpack.c.h.b16 %v119
  %v665 = vunpack.c.l.b16 %v120
  %v666 = vunpack.c.h.b16 %v120
  %v667 = vunpack.c.l.b16 %v121
  %v668 = vunpack.c.h.b16 %v121
  %v669 = vunpack.c.l.b16 %v122
  %v670 = vunpack.c.h.b16 %v122
  %v671 = vunpack.c.l.b16 %v123
  %v672 = vunpack.c.h.b16 %v123
  %v673 = vunpack.c.l.b16 %v124
  %v674 = vunpack.c.h.b16 %v124
  %v675 = vunpack.c.l.b16 %v125
  %v676 = vunpack.c.h.b16 %v125
  %v677 = vunpack.c.l.b16 %v126
  %v678 = vunpack.c.h.b16 %v126
  %v679 = vpack.c.b16 %v469, %v455
  %v680 = vpack.c.b16 %v470, %v456
  %v681 = vpack.c.b16 %v471, %v457
  %v682 = vpack.c.b16 %v472, %v458
  %v683 = vpack.c.b16 %v473, %v459
  %v684 = vpack.c.b16 %v474, %v460
  %v685 = vpack.c.b16 %v475, %v461
  %v686 = vpack.c.b16 %v476, %v462
  %v687 = vpack.c.b16 %v477, %v463
  %v688 = vpack.c.b16 %v478, %v464
  %v689 = vpack.c.b16 %v479, %v465
  %v690 = vpack.c.b16 %v480, %v466
  %v691 = vpack.c.b16 %v481, %v467
  %v692 = vpack.c.b16 %v482, %v468
  %v693 = vpack.c.b16 %v497, %v483
  %v694 = vpack.c.b16 %v498, %v484
  %v695 = vpack.c.b16 %v499, %v485
  %v696 = vpack.c.b16 %v500, %v486
  %v697 = vpack.c.b16 %v501, %v487
  %v698 = vpack.c.b16 %v502, %v488
  %v699 = vpack.c.b16 %v503, %v489
  %v700 = vpack.c.b16 %v504, %v490
  %v701 = vpack.c.b16 %v505, %v491
  %v702 = vpack.c.b16 %v506, %v492
  %v703 = vpack.c.b16 %v507, %v493
  %v704 = vpack.c.b16 %v508, %v494
  %v705 = vpack.c.b16 %v509, %v495
  %v706 = vpack.c.b16 %v510, %v496
  %v707 = vpack.c.b16 %v525, %v511
  %v708 = vpack.c.b16 %v526, %v512
  %v709 = vpack.c.b16 %v527, %v513
  %v710 = vpack.c.b16 %v528, %v514
  %v711 = vpack.c.b16 %v529, %v515
  %v712 = vpack.c.b16 %v530, %v516
  %v713 = vpack.c.b16 %v531, %v517
  %v714 = vpack.c.b16 %v532, %v518
  %v715 = vpack.c.b16 %v533, %v519
  %v716 = vpack.c.b16 %v534, %v520
  %v717 = vpack.c.b16 %v535, %v521
  %v718 = vpack.c.b16 %v536, %v522
  %v719 = vpack.c.b16 %v537, %v523
  %v720 = vpack.c.b16 %v538, %v524
  %v721 = vpack.c.b16 %v553, %v539
  %v722 = vpack.c.b16 %v554, %v540
  %v723 = vpack.c.b16 %v555, %v541
  %v724 = vpack.c.b16 %v556, %v542
  %v725 = vpack.c.b16 %v557, %v543
  %v726 = vpack.c.b16 %v558, %v544
  %v727 = vpack.c.b16 %v559, %v545
  %v728 = vpack.c.b16 %v560, %v546
  %v729 = vpack.c.b16 %v561, %v547
  %v730 = vpack.c.b16 %v562, %v548
  %v731 = vpack.c.b16 %v563, %v549
  %v732 = vpack.c.b16 %v564, %v550
  %v733 = vpack.c.b16 %v565, %v551
  %v734 = vpack.c.b16 %v566, %v552
  %v735 = vpack.c.b16 %v581, %v567
  %v736 = vpack.c.b16 %v582, %v568
  %v737 = vpack.c.b16 %v583, %v569
  %v738 = vpack.c.b16 %v584, %v570
  %v739 = vpack.c.b16 %v585, %v571
  %v740 = vpack.c.b16 %v586, %v572
  %v741 = vpack.c.b16 %v587, %v573
  %v742 = vpack.c.b16 %v588, %v574
  %v743 = vpack.c.b16 %v589, %v575
  %v744 = vpack.c.b16 %v590, %v576
  %v745 = vpack.c.b16 %v591, %v577
  %v746 = vpack.c.b16 %v592, %v578
  %v747 = vpack.c.b16 %v593, %v579
  %v748 = vpack.c.b16 %v594, %v580
  %v749 = vpack.c.b16 %v609, %v595
  %v750 = vpack.c.b16 %v610, %v596
  %v751 = vpack.c.b16 %v611, %v597
  %v752 = vpack.c.b16 %v612, %v598
  %v753 = vpack.c.b16 %v613, %v599
  %v754 = vpack.c.b16 %v614, %v600
  %v755 = vpack.c.b16 %v615, %v601
  %v756 = vpack.c.b16 %v616, %v602
  %v757 = vpack.c.b16 %v617, %v603
  %v758 = vpack.c.b16 %v618, %v604
  %v759 = vpack.c.b16 %v619, %v605
  %v760 = vpack.c.b16 %v620, %v606
  %v761 = vpack.c.b16 %v621, %v607
  %v762 = vpack.c.b16 %v622, %v608
  %v763 = vpack.c.b16 %v637, %v623
  %v764 = vpack.c.b16 %v638, %v624
  %v765 = vpack.c.b16 %v639, %v625
  %v766 = vpack.c.b16 %v640, %v626
  %v767 = vpack.c.b16 %v641, %v627
  %v768 = vpack.c.b16 %v642, %v628
  %v769 = vpack.c.b16 %v643, %v629
  %v770 = vpack.c.b16 %v644, %v630
  %v771 = vpack.c.b16 %v645, %v631
  %v772 = vpack.c.b16 %v646, %v632
  %v773 = vpack.c.b16 %v647, %v633
  %v774 = vpack.c.b16 %v648, %v634
  %v775 = vpack.c.b16 %v649, %v635
  %v776 = vpack.c.b16 %v650, %v636
  %v777 = vpack.c.b16 %v665, %v651
  %v778 = vpack.c.b16 %v666, %v652
  %v779 = vpack.c.b16 %v667, %v653
  %v780 = vpack.c.b16 %v668, %v654
  %v781 = vpack.c.b16 %v669, %v655
  %v782 = vpack.c.b16 %v670, %v656
  %v783 = vpack.c.b16 %v671, %v657
  %v784 = vpack.c.b16 %v672, %v658
  %v785 = vpack.c.b16 %v673, %v659
  %v786 = vpack.c.b16 %v674, %v660
  %v787 = vpack.c.b16 %v675, %v661
  %v788 = vpack.c.b16 %v676, %v662
  %v789 = vpack.c.b16 %v677, %v663
  %v790 = vpack.c.b16 %v678, %v664
  %v1111 = vunpack.c.l.b16 %v127
  %v1112 = vunpack.c.l.b16 %v128
  %v1113 = vunpack.c.l.b16 %v129
  %v1114 = vunpack.c.l.b16 %v130
  %v1115 = vunpack.c.l.b16 %v131
  %v1116 = vunpack.c.l.b16 %v132
  %v1117 = vunpack.c.l.b16 %v133
  %v1118 = vunpack.c.l.b16 %v134
  %v1119 = vunpack.c.l.b16 %v135
  %v1120 = vunpack.c.l.b16 %v136
  %v1121 = vunpack.c.l.b16 %v137
  %v1122 = vunpack.c.l.b16 %v138
  %v1123 = vunpack.c.l.b16 %v139
  %v1124 = vunpack.c.l.b16 %v140
  %v1125 = vunpack.c.l.b16 %v141
  %v1126 = vunpack.c.l.b16 %v142
  %v1127 = vunpack.c.l.b16 %v143
  %v1128 = vunpack.c.l.b16 %v144
  %v1129 = vunpack.c.l.b16 %v145
  %v1130 = vunpack.c.l.b16 %v146
  %v1131 = vunpack.c.l.b16 %v147
  %v1132 = vunpack.c.l.b16 %v148
  %v1133 = vunpack.c.l.b16 %v149
  %v1134 = vunpack.c.l.b16 %v150
  %v1135 = vunpack.c.l.b16 %v151
  %v1136 = vunpack.c.l.b16 %v152
  %v1137 = vunpack.c.l.b16 %v153
  %v1138 = vunpack.c.l.b16 %v154
  %v1139 = vunpack.c.l.b16 %v155
  %v1140 = vunpack.c.l.b16 %v156
  %v1141 = vunpack.c.l.b16 %v157
  %v1142 = vunpack.c.l.b16 %v158
  %v1143 = vunpack.c.l.b16 %v159
  %v1144 = vunpack.c.l.b16 %v160
  %v1145 = vunpack.c.l.b16 %v161
  %v1146 = vunpack.c.l.b16 %v162
  %v1147 = vunpack.c.l.b16 %v163
  %v1148 = vunpack.c.l.b16 %v164
  %v1149 = vunpack.c.l.b16 %v165
  %v1150 = vunpack.c.l.b16 %v166
  %v1151 = vunpack.c.l.b16 %v167
  %v1152 = vunpack.c.l.b16 %v168
  %v1153 = vunpack.c.l.b16 %v169
  %v1154 = vunpack.c.l.b16 %v170
  %v1155 = vunpack.c.l.b16 %v171
  %v1156 = vunpack.c.l.b16 %v172
  %v1157 = vunpack.c.l.b16 %v173
  %v1158 = vunpack.c.l.b16 %v174
  %v1159 = vunpack.c.l.b16 %v175
  %v1160 = vunpack.c.l.b16 %v176
  %v1161 = vunpack.c.l.b16 %v177
  %v1162 = vunpack.c.l.b16 %v178
  %v1163 = vunpack.c.l.b16 %v179
  %v1164 = vunpack.c.l.b16 %v180
  %v1165 = vunpack.c.l.b16 %v181
  %v1166 = vunpack.c.l.b16 %v182
  %v1167 = vunpack.c.l.b16 %v183
  %v1168 = vunpack.c.l.b16 %v184
  %v1169 = vunpack.c.l.b16 %v185
  %v1170 = vunpack.c.l.b16 %v186
  %v1171 = vunpack.c.l.b16 %v187
  %v1172 = vunpack.c.l.b16 %v188
  %v1173 = vunpack.c.l.b16 %v189
  %v1174 = vunpack.c.l.b16 %v190
  %v1175 = vunpack.c.l.b16 %v191
  %v1176 = vunpack.c.l.b16 %v192
  %v1177 = vunpack.c.l.b16 %v193
  %v1178 = vunpack.c.l.b16 %v194
  %v1179 = vunpack.c.l.b16 %v195
  %v1180 = vunpack.c.l.b16 %v196
  %v1181 = vunpack.c.l.b16 %v197
  %v1182 = vunpack.c.l.b16 %v198
  %v1183 = vunpack.c.l.b16 %v199
  %v1184 = vunpack.c.l.b16 %v200
  %v1185 = vunpack.c.l.b16 %v201
  %v1186 = vunpack.c.l.b16 %v202
  %v1187 = vunpack.c.l.b16 %v203
  %v1188 = vunpack.c.l.b16 %v204
  %v1189 = vunpack.c.l.b16 %v205
  %v1190 = vunpack.c.l.b16 %v206
  %v1191 = vunpack.c.l.b16 %v207
  %v1192 = vunpack.c.l.b16 %v208
  %v1193 = vunpack.c.l.b16 %v209
  %v1194 = vunpack.c.l.b16 %v210
  %v1195 = vunpack.c.l.b16 %v211
  %v1196 = vunpack.c.l.b16 %v212
  %v1197 = vunpack.c.l.b16 %v213
  %v1198 = vunpack.c.l.b16 %v214
  %v1199 = vunpack.c.l.b16 %v215
  %v1200 = vunpack.c.l.b16 %v216
  %v1201 = vunpack.c.l.b16 %v217
  %v1202 = vunpack.c.l.b16 %v218
  %v1203 = vunpack.c.l.b16 %v219
  %v1204 = vunpack.c.l.b16 %v220
  %v1205 = vunpack.c.l.b16 %v221
  %v1206 = vunpack.c.l.b16 %v222
  %v1207 = vunpack.c.l.b16 %v223
  %v1208 = vunpack.c.l.b16 %v224
  %v1209 = vunpack.c.l.b16 %v225
  %v1210 = vunpack.c.l.b16 %v226
  %v1211 = vunpack.c.l.b16 %v227
  %v1212 = vunpack.c.l.b16 %v228
  %v1213 = vunpack.c.l.b16 %v229
  %v1214 = vunpack.c.l.b16 %v230
  %v1215 = vunpack.c.l.b16 %v231
  %v1216 = vunpack.c.l.b16 %v232
  %v1217 = vunpack.c.l.b16 %v233
  %v1218 = vunpack.c.l.b16 %v234
  %v1219 = vunpack.c.l.b16 %v235
  %v1220 = vunpack.c.l.b16 %v236
  %v1221 = vunpack.c.l.b16 %v237
  %v1222 = vunpack.c.l.b16 %v238
  %v1223 = vunpack.c.l.b16 %v239
  %v1224 = vunpack.c.l.b16 %v240
  %v1225 = vunpack.c.l.b16 %v241
  %v1226 = vunpack.c.l.b16 %v242
  %v1227 = vunpack.c.l.b16 %v243
  %v1228 = vunpack.c.l.b16 %v244
  %v1229 = vunpack.c.l.b16 %v245
  %v1230 = vunpack.c.l.b16 %v246
  %v1231 = vunpack.c.l.b16 %v247
  %v1232 = vunpack.c.l.b16 %v248
  %v1233 = vunpack.c.l.b16 %v249
  %v1234 = vunpack.c.l.b16 %v250
  %v1235 = vunpack.c.l.b16 %v251
  %v1236 = vunpack.c.l.b16 %v252
  %v1237 = vunpack.c.l.b16 %v253
  %v1238 = vunpack.c.l.b16 %v254
  %v1239 = vunpack.c.l.b16 %v255
  %v1240 = vunpack.c.l.b16 %v256
  %v1241 = vunpack.c.l.b16 %v257
  %v1242 = vunpack.c.l.b16 %v258
  %v1243 = vunpack.c.l.b16 %v259
  %v1244 = vunpack.c.l.b16 %v260
  %v1245 = vunpack.c.l.b16 %v261
  %v1246 = vunpack.c.l.b16 %v262
  %v1247 = vunpack.c.l.b16 %v263
  %v1248 = vunpack.c.l.b16 %v264
  %v1249 = vunpack.c.l.b16 %v265
  %v1250 = vunpack.c.l.b16 %v266
  %v1251 = vunpack.c.l.b16 %v267
  %v1252 = vunpack.c.l.b16 %v268
  %v1253 = vunpack.c.l.b16 %v269
  %v1254 = vunpack.c.l.b16 %v270
  %v1255 = vunpack.c.l.b16 %v271
  %v1256 = vunpack.c.l.b16 %v272
  %v1257 = vunpack.c.l.b16 %v273
  %v1258 = vunpack.c.l.b16 %v274
  %v1259 = vunpack.c.l.b16 %v275
  %v1260 = vunpack.c.l.b16 %v276
  %v1261 = vunpack.c.l.b16 %v277
  %v1262 = vunpack.c.l.b16 %v278
  %v1263 = vunpack.c.l.b16 %v279
  %v1264 = vunpack.c.l.b16 %v280
  %v1265 = vunpack.c.l.b16 %v281
  %v1266 = vunpack.c.l.b16 %v282
  %v1267 = vunpack.c.l.b16 %v283
  %v1268 = vunpack.c.l.b16 %v284
  %v1269 = vunpack.c.l.b16 %v285
  %v1270 = vunpack.c.l.b16 %v286
  %v1271 = vunpack.c.l.b16 %v287
  %v1272 = vunpack.c.l.b16 %v288
  %v1273 = vunpack.c.l.b16 %v289
  %v1274 = vunpack.c.l.b16 %v290
  %v1275 = vunpack.c.l.b16 %v291
  %v1276 = vunpack.c.l.b16 %v292
  %v1277 = vunpack.c.l.b16 %v293
  %v1278 = vunpack.c.l.b16 %v294
  %v1279 = vunpack.c.l.b16 %v295
  %v1280 = vunpack.c.l.b16 %v296
  %v1281 = vunpack.c.l.b16 %v297
  %v1282 = vunpack.c.l.b16 %v298
  %v1283 = vunpack.c.l.b16 %v299
  %v1284 = vunpack.c.l.b16 %v300
  %v1285 = vunpack.c.l.b16 %v301
  %v1286 = vunpack.c.l.b16 %v302
  %v1287 = vunpack.c.l.b16 %v303
  %v1288 = vunpack.c.l.b16 %v304
  %v1289 = vunpack.c.l.b16 %v305
  %v1290 = vunpack.c.l.b16 %v306
  %v1291 = vunpack.c.l.b16 %v307
  %v1292 = vunpack.c.l.b16 %v308
  %v1293 = vunpack.c.l.b16 %v309
  %v1294 = vunpack.c.l.b16 %v310
  %v1295 = vunpack.c.l.b16 %v311
  %v1296 = vunpack.c.l.b16 %v312
  %v1297 = vunpack.c.l.b16 %v313
  %v1298 = vunpack.c.l.b16 %v314
  %v1299 = vunpack.c.l.b16 %v315
  %v1300 = vunpack.c.l.b16 %v316
  %v1301 = vunpack.c.l.b16 %v317
  %v1302 = vunpack.c.l.b16 %v318
  %v1303 = vunpack.c.l.b16 %v319
  %v1304 = vunpack.c.l.b16 %v320
  %v1305 = vunpack.c.l.b16 %v321
  %v1306 = vunpack.c.l.b16 %v322
  %v1307 = vunpack.c.l.b16 %v323
  %v1308 = vunpack.c.l.b16 %v324
  %v1309 = vunpack.c.l.b16 %v325
  %v1310 = vunpack.c.l.b16 %v326
  %v1311 = vunpack.c.l.b16 %v327
  %v1312 = vunpack.c.l.b16 %v328
  %v1313 = vunpack.c.l.b16 %v329
  %v1314 = vunpack.c.l.b16 %v330
  %v1315 = vunpack.c.l.b16 %v331
  %v1316 = vunpack.c.l.b16 %v332
  %v1317 = vunpack.c.l.b16 %v333
  %v1318 = vunpack.c.l.b16 %v334
  %v1319 = vunpack.c.l.b16 %v335
  %v1320 = vunpack.c.l.b16 %v336
  %v1321 = vunpack.c.l.b16 %v337
  %v1322 = vunpack.c.l.b16 %v338
  %v1323 = vunpack.c.l.b16 %v339
  %v1324 = vunpack.c.l.b16 %v340
  %v1325 = vunpack.c.l.b16 %v341
  %v1326 = vunpack.c.l.b16 %v342
  %v1327 = vpack.c.b16 %v1112, %v1111
  %v1328 = vpack.c.b16 %v1114, %v1113
  %v1329 = vpack.c.b16 %v1116, %v1115
  %v1330 = vpack.c.b16 %v1118, %v1117
  %v1331 = vpack.c.b16 %v1120, %v1119
  %v1332 = vpack.c.b16 %v1122, %v1121
  %v1333 = vpack.c.b16 %v1124, %v1123
  %v1334 = vpack.c.b16 %v1126, %v1125
  %v1335 = vpack.c.b16 %v1128, %v1127
  %v1336 = vpack.c.b16 %v1130, %v1129
  %v1337 = vpack.c.b16 %v1132, %v1131
  %v1338 = vpack.c.b16 %v1134, %v1133
  %v1339 = vpack.c.b16 %v1136, %v1135
  %v1340 = vpack.c.b16 %v1138, %v1137
  %v1341 = vpack.c.b16 %v1140, %v1139
  %v1342 = vpack.c.b16 %v1142, %v1141
  %v1343 = vpack.c.b16 %v1144, %v1143
  %v1344 = vpack.c.b16 %v1146, %v1145
  %v1345 = vpack.c.b16 %v1148, %v1147
  %v1346 = vpack.c.b16 %v1150, %v1149
  %v1347 = vpack.c.b16 %v1152, %v1151
  %v1348 = vpack.c.b16 %v1154, %v1153
  %v1349 = vpack.c.b16 %v1156, %v1155
  %v1350 = vpack.c.b16 %v1158, %v1157
  %v1351 = vpack.c.b16 %v1160, %v1159
  %v1352 = vpack.c.b16 %v1162, %v1161
  %v1353 = vpack.c.b16 %v1164, %v1163
  %v1354 = vpack.c.b16 %v1166, %v1165
  %v1355 = vpack.c.b16 %v1168, %v1167
  %v1356 = vpack.c.b16 %v1170, %v1169
  %v1357 = vpack.c.b16 %v1172, %v1171
  %v1358 = vpack.c.b16 %v1174, %v1173
  %v1359 = vpack.c.b16 %v1176, %v1175
  %v1360 = vpack.c.b16 %v1178, %v1177
  %v1361 = vpack.c.b16 %v1180, %v1179
  %v1362 = vpack.c.b16 %v1182, %v1181
  %v1363 = vpack.c.b16 %v1184, %v1183
  %v1364 = vpack.c.b16 %v1186, %v1185
  %v1365 = vpack.c.b16 %v1188, %v1187
  %v1366 = vpack.c.b16 %v1190, %v1189
  %v1367 = vpack.c.b16 %v1192, %v1191
  %v1368 = vpack.c.b16 %v1194, %v1193
  %v1369 = vpack.c.b16 %v1196, %v1195
  %v1370 = vpack.c.b16 %v1198, %v1197
  %v1371 = vpack.c.b16 %v1200, %v1199
  %v1372 = vpack.c.b16 %v1202, %v1201
  %v1373 = vpack.c.b16 %v1204, %v1203
  %v1374 = vpack.c.b16 %v1206, %v1205
  %v1375 = vpack.c.b16 %v1208, %v1207
  %v1376 = vpack.c.b16 %v1210, %v1209
  %v1377 = vpack.c.b16 %v1212, %v1211
  %v1378 = vpack.c.b16 %v1214, %v1213
  %v1379 = vpack.c.b16 %v1216, %v1215
  %v1380 = vpack.c.b16 %v1218, %v1217
  %v1381 = vpack.c.b16 %v1220, %v1219
  %v1382 = vpack.c.b16 %v1222, %v1221
  %v1383 = vpack.c.b16 %v1224, %v1223
  %v1384 = vpack.c.b16 %v1226, %v1225
  %v1385 = vpack.c.b16 %v1228, %v1227
  %v1386 = vpack.c.b16 %v1230, %v1229
  %v1387 = vpack.c.b16 %v1232, %v1231
  %v1388 = vpack.c.b16 %v1234, %v1233
  %v1389 = vpack.c.b16 %v1236, %v1235
  %v1390 = vpack.c.b16 %v1238, %v1237
  %v1391 = vpack.c.b16 %v1240, %v1239
  %v1392 = vpack.c.b16 %v1242, %v1241
  %v1393 = vpack.c.b16 %v1244, %v1243
  %v1394 = vpack.c.b16 %v1246, %v1245
  %v1395 = vpack.c.b16 %v1248, %v1247
  %v1396 = vpack.c.b16 %v1250, %v1249
  %v1397 = vpack.c.b16 %v1252, %v1251
  %v1398 = vpack.c.b16 %v1254, %v1253
  %v1399 = vpack.c.b16 %v1256, %v1255
  %v1400 = vpack.c.b16 %v1258, %v1257
  %v1401 = vpack.c.b16 %v1260, %v1259
  %v1402 = vpack.c.b16 %v1262, %v1261
  %v1403 = vpack.c.b16 %v1264, %v1263
  %v1404 = vpack.c.b16 %v1266, %v1265
  %v1405 = vpack.c.b16 %v1268, %v1267
  %v1406 = vpack.c.b16 %v1270, %v1269
  %v1407 = vpack.c.b16 %v1272, %v1271
  %v1408 = vpack.c.b16 %v1274, %v1273
  %v1409 = vpack.c.b16 %v1276, %v1275
  %v1410 = vpack.c.b16 %v1278, %v1277
  %v1411 = vpack.c.b16 %v1280, %v1279
  %v1412 = vpack.c.b16 %v1282, %v1281
  %v1413 = vpack.c.b16 %v1284, %v1283
  %v1414 = vpack.c.b16 %v1286, %v1285
  %v1415 = vpack.c.b16 %v1288, %v1287
  %v1416 = vpack.c.b16 %v1290, %v1289
  %v1417 = vpack.c.b16 %v1292, %v1291
  %v1418 = vpack.c.b16 %v1294, %v1293
  %v1419 = vpack.c.b16 %v1296, %v1295
  %v1420 = vpack.c.b16 %v1298, %v1297
  %v1421 = vpack.c.b16 %v1300, %v1299
  %v1422 = vpack.c.b16 %v1302, %v1301
  %v1423 = vpack.c.b16 %v1304, %v1303
  %v1424 = vpack.c.b16 %v1306, %v1305
  %v1425 = vpack.c.b16 %v1308, %v1307
  %v1426 = vpack.c.b16 %v1310, %v1309
  %v1427 = vpack.c.b16 %v1312, %v1311
  %v1428 = vpack.c.b16 %v1314, %v1313
  %v1429 = vpack.c.b16 %v1316, %v1315
  %v1430 = vpack.c.b16 %v1318, %v1317
  %v1431 = vpack.c.b16 %v1320, %v1319
  %v1432 = vpack.c.b16 %v1322, %v1321
  %v1433 = vpack.c.b16 %v1324, %v1323
  %v1434 = vpack.c.b16 %v1326, %v1325
  %vm1543 = vcmask 523264
  %v1545 = vsel %vm1543, %v692, 0
  %v1548 = vsel %vm1543, %v706, 0
  %v1551 = vsel %vm1543, %v720, 0
  %v1554 = vsel %vm1543, %v734, 0
  %v1557 = vsel %vm1543, %v748, 0
  %v1560 = vsel %vm1543, %v762, 0
  %v1563 = vsel %vm1543, %v776, 0
  %v1566 = vsel %vm1543, %v790, 0
  %1568 = vmatpush.bf16.msra.mxu0 %v1334
  %1569 = vmatpush.bf16.msra.mxu0 %v1333
  %1570 = vmatpush.bf16.msra.mxu0 %v1332
  %1571 = vmatpush.bf16.msra.mxu0 %v1331
  %1572 = vmatpush.bf16.msra.mxu0 %v1330
  %1573 = vmatpush.bf16.msra.mxu0 %v1329
  %1574 = vmatpush.bf16.msra.mxu0 %v1328
  %1575 = vmatpush.bf16.msra.mxu0 %v1327
  %1576 = vmatmul.bf16.gmra.mxu0 %v679
  %v1577 = vpop.f32.mrf.mxu0
  %v1578 = vadd.f32 0.0, %v1577
  %v1579 = vpop.f32.mrf.mxu0
  %v1580 = vadd.f32 0.0, %v1579
  %1581 = vmatmul.bf16.gmra.mxu0 %v693
  %v1582 = vpop.f32.mrf.mxu0
  %v1583 = vadd.f32 0.0, %v1582
  %v1584 = vpop.f32.mrf.mxu0
  %v1585 = vadd.f32 0.0, %v1584
  %1586 = vmatmul.bf16.gmra.mxu0 %v707
  %v1587 = vpop.f32.mrf.mxu0
  %v1588 = vadd.f32 0.0, %v1587
  %v1589 = vpop.f32.mrf.mxu0
  %v1590 = vadd.f32 0.0, %v1589
  %1591 = vmatmul.bf16.gmra.mxu0 %v721
  %v1592 = vpop.f32.mrf.mxu0
  %v1593 = vadd.f32 0.0, %v1592
  %v1594 = vpop.f32.mrf.mxu0
  %v1595 = vadd.f32 0.0, %v1594
  %1596 = vmatmul.bf16.gmra.mxu0 %v735
  %v1597 = vpop.f32.mrf.mxu0
  %v1598 = vadd.f32 0.0, %v1597
  %v1599 = vpop.f32.mrf.mxu0
  %v1600 = vadd.f32 0.0, %v1599
  %1601 = vmatmul.bf16.gmra.mxu0 %v749
  %v1602 = vpop.f32.mrf.mxu0
  %v1603 = vadd.f32 0.0, %v1602
  %v1604 = vpop.f32.mrf.mxu0
  %v1605 = vadd.f32 0.0, %v1604
  %1606 = vmatmul.bf16.gmra.mxu0 %v763
  %v1607 = vpop.f32.mrf.mxu0
  %v1608 = vadd.f32 0.0, %v1607
  %v1609 = vpop.f32.mrf.mxu0
  %v1610 = vadd.f32 0.0, %v1609
  %1611 = vmatmul.bf16.gmra.mxu0 %v777
  %v1612 = vpop.f32.mrf.mxu0
  %v1613 = vadd.f32 0.0, %v1612
  %v1614 = vpop.f32.mrf.mxu0
  %v1615 = vadd.f32 0.0, %v1614
  %1616 = vdwg.mxu0
  %1617 = vmatpush.bf16.msra.mxu0 %v1342
  %1618 = vmatpush.bf16.msra.mxu0 %v1341
  %1619 = vmatpush.bf16.msra.mxu0 %v1340
  %1620 = vmatpush.bf16.msra.mxu0 %v1339
  %1621 = vmatpush.bf16.msra.mxu0 %v1338
  %1622 = vmatpush.bf16.msra.mxu0 %v1337
  %1623 = vmatpush.bf16.msra.mxu0 %v1336
  %1624 = vmatpush.bf16.msra.mxu0 %v1335
  %1625 = vmatmul.bf16.gmra.mxu0 %v680
  %v1626 = vpop.f32.mrf.mxu0
  %v1627 = vadd.f32 %v1578, %v1626
  %v1628 = vpop.f32.mrf.mxu0
  %v1629 = vadd.f32 %v1580, %v1628
  %1630 = vmatmul.bf16.gmra.mxu0 %v694
  %v1631 = vpop.f32.mrf.mxu0
  %v1632 = vadd.f32 %v1583, %v1631
  %v1633 = vpop.f32.mrf.mxu0
  %v1634 = vadd.f32 %v1585, %v1633
  %1635 = vmatmul.bf16.gmra.mxu0 %v708
  %v1636 = vpop.f32.mrf.mxu0
  %v1637 = vadd.f32 %v1588, %v1636
  %v1638 = vpop.f32.mrf.mxu0
  %v1639 = vadd.f32 %v1590, %v1638
  %1640 = vmatmul.bf16.gmra.mxu0 %v722
  %v1641 = vpop.f32.mrf.mxu0
  %v1642 = vadd.f32 %v1593, %v1641
  %v1643 = vpop.f32.mrf.mxu0
  %v1644 = vadd.f32 %v1595, %v1643
  %1645 = vmatmul.bf16.gmra.mxu0 %v736
  %v1646 = vpop.f32.mrf.mxu0
  %v1647 = vadd.f32 %v1598, %v1646
  %v1648 = vpop.f32.mrf.mxu0
  %v1649 = vadd.f32 %v1600, %v1648
  %1650 = vmatmul.bf16.gmra.mxu0 %v750
  %v1651 = vpop.f32.mrf.mxu0
  %v1652 = vadd.f32 %v1603, %v1651
  %v1653 = vpop.f32.mrf.mxu0
  %v1654 = vadd.f32 %v1605, %v1653
  %1655 = vmatmul.bf16.gmra.mxu0 %v764
  %v1656 = vpop.f32.mrf.mxu0
  %v1657 = vadd.f32 %v1608, %v1656
  %v1658 = vpop.f32.mrf.mxu0
  %v1659 = vadd.f32 %v1610, %v1658
  %1660 = vmatmul.bf16.gmra.mxu0 %v778
  %v1661 = vpop.f32.mrf.mxu0
  %v1662 = vadd.f32 %v1613, %v1661
  %v1663 = vpop.f32.mrf.mxu0
  %v1664 = vadd.f32 %v1615, %v1663
  %1665 = vdwg.mxu0
  %1666 = vmatpush.bf16.msra.mxu0 %v1350
  %1667 = vmatpush.bf16.msra.mxu0 %v1349
  %1668 = vmatpush.bf16.msra.mxu0 %v1348
  %1669 = vmatpush.bf16.msra.mxu0 %v1347
  %1670 = vmatpush.bf16.msra.mxu0 %v1346
  %1671 = vmatpush.bf16.msra.mxu0 %v1345
  %1672 = vmatpush.bf16.msra.mxu0 %v1344
  %1673 = vmatpush.bf16.msra.mxu0 %v1343
  %1674 = vmatmul.bf16.gmra.mxu0 %v681
  %v1675 = vpop.f32.mrf.mxu0
  %v1676 = vadd.f32 %v1627, %v1675
  %v1677 = vpop.f32.mrf.mxu0
  %v1678 = vadd.f32 %v1629, %v1677
  %1679 = vmatmul.bf16.gmra.mxu0 %v695
  %v1680 = vpop.f32.mrf.mxu0
  %v1681 = vadd.f32 %v1632, %v1680
  %v1682 = vpop.f32.mrf.mxu0
  %v1683 = vadd.f32 %v1634, %v1682
  %1684 = vmatmul.bf16.gmra.mxu0 %v709
  %v1685 = vpop.f32.mrf.mxu0
  %v1686 = vadd.f32 %v1637, %v1685
  %v1687 = vpop.f32.mrf.mxu0
  %v1688 = vadd.f32 %v1639, %v1687
  %1689 = vmatmul.bf16.gmra.mxu0 %v723
  %v1690 = vpop.f32.mrf.mxu0
  %v1691 = vadd.f32 %v1642, %v1690
  %v1692 = vpop.f32.mrf.mxu0
  %v1693 = vadd.f32 %v1644, %v1692
  %1694 = vmatmul.bf16.gmra.mxu0 %v737
  %v1695 = vpop.f32.mrf.mxu0
  %v1696 = vadd.f32 %v1647, %v1695
  %v1697 = vpop.f32.mrf.mxu0
  %v1698 = vadd.f32 %v1649, %v1697
  %1699 = vmatmul.bf16.gmra.mxu0 %v751
  %v1700 = vpop.f32.mrf.mxu0
  %v1701 = vadd.f32 %v1652, %v1700
  %v1702 = vpop.f32.mrf.mxu0
  %v1703 = vadd.f32 %v1654, %v1702
  %1704 = vmatmul.bf16.gmra.mxu0 %v765
  %v1705 = vpop.f32.mrf.mxu0
  %v1706 = vadd.f32 %v1657, %v1705
  %v1707 = vpop.f32.mrf.mxu0
  %v1708 = vadd.f32 %v1659, %v1707
  %1709 = vmatmul.bf16.gmra.mxu0 %v779
  %v1710 = vpop.f32.mrf.mxu0
  %v1711 = vadd.f32 %v1662, %v1710
  %v1712 = vpop.f32.mrf.mxu0
  %v1713 = vadd.f32 %v1664, %v1712
  %1714 = vdwg.mxu0
  %1715 = vmatpush.bf16.msra.mxu0 %v1358
  %1716 = vmatpush.bf16.msra.mxu0 %v1357
  %1717 = vmatpush.bf16.msra.mxu0 %v1356
  %1718 = vmatpush.bf16.msra.mxu0 %v1355
  %1719 = vmatpush.bf16.msra.mxu0 %v1354
  %1720 = vmatpush.bf16.msra.mxu0 %v1353
  %1721 = vmatpush.bf16.msra.mxu0 %v1352
  %1722 = vmatpush.bf16.msra.mxu0 %v1351
  %1723 = vmatmul.bf16.gmra.mxu0 %v682
  %v1724 = vpop.f32.mrf.mxu0
  %v1725 = vadd.f32 %v1676, %v1724
  %v1726 = vpop.f32.mrf.mxu0
  %v1727 = vadd.f32 %v1678, %v1726
  %1728 = vmatmul.bf16.gmra.mxu0 %v696
  %v1729 = vpop.f32.mrf.mxu0
  %v1730 = vadd.f32 %v1681, %v1729
  %v1731 = vpop.f32.mrf.mxu0
  %v1732 = vadd.f32 %v1683, %v1731
  %1733 = vmatmul.bf16.gmra.mxu0 %v710
  %v1734 = vpop.f32.mrf.mxu0
  %v1735 = vadd.f32 %v1686, %v1734
  %v1736 = vpop.f32.mrf.mxu0
  %v1737 = vadd.f32 %v1688, %v1736
  %1738 = vmatmul.bf16.gmra.mxu0 %v724
  %v1739 = vpop.f32.mrf.mxu0
  %v1740 = vadd.f32 %v1691, %v1739
  %v1741 = vpop.f32.mrf.mxu0
  %v1742 = vadd.f32 %v1693, %v1741
  %1743 = vmatmul.bf16.gmra.mxu0 %v738
  %v1744 = vpop.f32.mrf.mxu0
  %v1745 = vadd.f32 %v1696, %v1744
  %v1746 = vpop.f32.mrf.mxu0
  %v1747 = vadd.f32 %v1698, %v1746
  %1748 = vmatmul.bf16.gmra.mxu0 %v752
  %v1749 = vpop.f32.mrf.mxu0
  %v1750 = vadd.f32 %v1701, %v1749
  %v1751 = vpop.f32.mrf.mxu0
  %v1752 = vadd.f32 %v1703, %v1751
  %1753 = vmatmul.bf16.gmra.mxu0 %v766
  %v1754 = vpop.f32.mrf.mxu0
  %v1755 = vadd.f32 %v1706, %v1754
  %v1756 = vpop.f32.mrf.mxu0
  %v1757 = vadd.f32 %v1708, %v1756
  %1758 = vmatmul.bf16.gmra.mxu0 %v780
  %v1759 = vpop.f32.mrf.mxu0
  %v1760 = vadd.f32 %v1711, %v1759
  %v1761 = vpop.f32.mrf.mxu0
  %v1762 = vadd.f32 %v1713, %v1761
  %1763 = vdwg.mxu0
  %1764 = vmatpush.bf16.msra.mxu0 %v1366
  %1765 = vmatpush.bf16.msra.mxu0 %v1365
  %1766 = vmatpush.bf16.msra.mxu0 %v1364
  %1767 = vmatpush.bf16.msra.mxu0 %v1363
  %1768 = vmatpush.bf16.msra.mxu0 %v1362
  %1769 = vmatpush.bf16.msra.mxu0 %v1361
  %1770 = vmatpush.bf16.msra.mxu0 %v1360
  %1771 = vmatpush.bf16.msra.mxu0 %v1359
  %1772 = vmatmul.bf16.gmra.mxu0 %v683
  %v1773 = vpop.f32.mrf.mxu0
  %v1774 = vadd.f32 %v1725, %v1773
  %v1775 = vpop.f32.mrf.mxu0
  %v1776 = vadd.f32 %v1727, %v1775
  %1777 = vmatmul.bf16.gmra.mxu0 %v697
  %v1778 = vpop.f32.mrf.mxu0
  %v1779 = vadd.f32 %v1730, %v1778
  %v1780 = vpop.f32.mrf.mxu0
  %v1781 = vadd.f32 %v1732, %v1780
  %1782 = vmatmul.bf16.gmra.mxu0 %v711
  %v1783 = vpop.f32.mrf.mxu0
  %v1784 = vadd.f32 %v1735, %v1783
  %v1785 = vpop.f32.mrf.mxu0
  %v1786 = vadd.f32 %v1737, %v1785
  %1787 = vmatmul.bf16.gmra.mxu0 %v725
  %v1788 = vpop.f32.mrf.mxu0
  %v1789 = vadd.f32 %v1740, %v1788
  %v1790 = vpop.f32.mrf.mxu0
  %v1791 = vadd.f32 %v1742, %v1790
  %1792 = vmatmul.bf16.gmra.mxu0 %v739
  %v1793 = vpop.f32.mrf.mxu0
  %v1794 = vadd.f32 %v1745, %v1793
  %v1795 = vpop.f32.mrf.mxu0
  %v1796 = vadd.f32 %v1747, %v1795
  %1797 = vmatmul.bf16.gmra.mxu0 %v753
  %v1798 = vpop.f32.mrf.mxu0
  %v1799 = vadd.f32 %v1750, %v1798
  %v1800 = vpop.f32.mrf.mxu0
  %v1801 = vadd.f32 %v1752, %v1800
  %1802 = vmatmul.bf16.gmra.mxu0 %v767
  %v1803 = vpop.f32.mrf.mxu0
  %v1804 = vadd.f32 %v1755, %v1803
  %v1805 = vpop.f32.mrf.mxu0
  %v1806 = vadd.f32 %v1757, %v1805
  %1807 = vmatmul.bf16.gmra.mxu0 %v781
  %v1808 = vpop.f32.mrf.mxu0
  %v1809 = vadd.f32 %v1760, %v1808
  %v1810 = vpop.f32.mrf.mxu0
  %v1811 = vadd.f32 %v1762, %v1810
  %1812 = vdwg.mxu0
  %1813 = vmatpush.bf16.msra.mxu0 %v1374
  %1814 = vmatpush.bf16.msra.mxu0 %v1373
  %1815 = vmatpush.bf16.msra.mxu0 %v1372
  %1816 = vmatpush.bf16.msra.mxu0 %v1371
  %1817 = vmatpush.bf16.msra.mxu0 %v1370
  %1818 = vmatpush.bf16.msra.mxu0 %v1369
  %1819 = vmatpush.bf16.msra.mxu0 %v1368
  %1820 = vmatpush.bf16.msra.mxu0 %v1367
  %1821 = vmatmul.bf16.gmra.mxu0 %v684
  %v1822 = vpop.f32.mrf.mxu0
  %v1823 = vadd.f32 %v1774, %v1822
  %v1824 = vpop.f32.mrf.mxu0
  %v1825 = vadd.f32 %v1776, %v1824
  %1826 = vmatmul.bf16.gmra.mxu0 %v698
  %v1827 = vpop.f32.mrf.mxu0
  %v1828 = vadd.f32 %v1779, %v1827
  %v1829 = vpop.f32.mrf.mxu0
  %v1830 = vadd.f32 %v1781, %v1829
  %1831 = vmatmul.bf16.gmra.mxu0 %v712
  %v1832 = vpop.f32.mrf.mxu0
  %v1833 = vadd.f32 %v1784, %v1832
  %v1834 = vpop.f32.mrf.mxu0
  %v1835 = vadd.f32 %v1786, %v1834
  %1836 = vmatmul.bf16.gmra.mxu0 %v726
  %v1837 = vpop.f32.mrf.mxu0
  %v1838 = vadd.f32 %v1789, %v1837
  %v1839 = vpop.f32.mrf.mxu0
  %v1840 = vadd.f32 %v1791, %v1839
  %1841 = vmatmul.bf16.gmra.mxu0 %v740
  %v1842 = vpop.f32.mrf.mxu0
  %v1843 = vadd.f32 %v1794, %v1842
  %v1844 = vpop.f32.mrf.mxu0
  %v1845 = vadd.f32 %v1796, %v1844
  %1846 = vmatmul.bf16.gmra.mxu0 %v754
  %v1847 = vpop.f32.mrf.mxu0
  %v1848 = vadd.f32 %v1799, %v1847
  %v1849 = vpop.f32.mrf.mxu0
  %v1850 = vadd.f32 %v1801, %v1849
  %1851 = vmatmul.bf16.gmra.mxu0 %v768
  %v1852 = vpop.f32.mrf.mxu0
  %v1853 = vadd.f32 %v1804, %v1852
  %v1854 = vpop.f32.mrf.mxu0
  %v1855 = vadd.f32 %v1806, %v1854
  %1856 = vmatmul.bf16.gmra.mxu0 %v782
  %v1857 = vpop.f32.mrf.mxu0
  %v1858 = vadd.f32 %v1809, %v1857
  %v1859 = vpop.f32.mrf.mxu0
  %v1860 = vadd.f32 %v1811, %v1859
  %1861 = vdwg.mxu0
  %1862 = vmatpush.bf16.msra.mxu0 %v1382
  %1863 = vmatpush.bf16.msra.mxu0 %v1381
  %1864 = vmatpush.bf16.msra.mxu0 %v1380
  %1865 = vmatpush.bf16.msra.mxu0 %v1379
  %1866 = vmatpush.bf16.msra.mxu0 %v1378
  %1867 = vmatpush.bf16.msra.mxu0 %v1377
  %1868 = vmatpush.bf16.msra.mxu0 %v1376
  %1869 = vmatpush.bf16.msra.mxu0 %v1375
  %1870 = vmatmul.bf16.gmra.mxu0 %v685
  %v1871 = vpop.f32.mrf.mxu0
  %v1872 = vadd.f32 %v1823, %v1871
  %v1873 = vpop.f32.mrf.mxu0
  %v1874 = vadd.f32 %v1825, %v1873
  %1875 = vmatmul.bf16.gmra.mxu0 %v699
  %v1876 = vpop.f32.mrf.mxu0
  %v1877 = vadd.f32 %v1828, %v1876
  %v1878 = vpop.f32.mrf.mxu0
  %v1879 = vadd.f32 %v1830, %v1878
  %1880 = vmatmul.bf16.gmra.mxu0 %v713
  %v1881 = vpop.f32.mrf.mxu0
  %v1882 = vadd.f32 %v1833, %v1881
  %v1883 = vpop.f32.mrf.mxu0
  %v1884 = vadd.f32 %v1835, %v1883
  %1885 = vmatmul.bf16.gmra.mxu0 %v727
  %v1886 = vpop.f32.mrf.mxu0
  %v1887 = vadd.f32 %v1838, %v1886
  %v1888 = vpop.f32.mrf.mxu0
  %v1889 = vadd.f32 %v1840, %v1888
  %1890 = vmatmul.bf16.gmra.mxu0 %v741
  %v1891 = vpop.f32.mrf.mxu0
  %v1892 = vadd.f32 %v1843, %v1891
  %v1893 = vpop.f32.mrf.mxu0
  %v1894 = vadd.f32 %v1845, %v1893
  %1895 = vmatmul.bf16.gmra.mxu0 %v755
  %v1896 = vpop.f32.mrf.mxu0
  %v1897 = vadd.f32 %v1848, %v1896
  %v1898 = vpop.f32.mrf.mxu0
  %v1899 = vadd.f32 %v1850, %v1898
  %1900 = vmatmul.bf16.gmra.mxu0 %v769
  %v1901 = vpop.f32.mrf.mxu0
  %v1902 = vadd.f32 %v1853, %v1901
  %v1903 = vpop.f32.mrf.mxu0
  %v1904 = vadd.f32 %v1855, %v1903
  %1905 = vmatmul.bf16.gmra.mxu0 %v783
  %v1906 = vpop.f32.mrf.mxu0
  %v1907 = vadd.f32 %v1858, %v1906
  %v1908 = vpop.f32.mrf.mxu0
  %v1909 = vadd.f32 %v1860, %v1908
  %1910 = vdwg.mxu0
  %1911 = vmatpush.bf16.msra.mxu0 %v1390
  %1912 = vmatpush.bf16.msra.mxu0 %v1389
  %1913 = vmatpush.bf16.msra.mxu0 %v1388
  %1914 = vmatpush.bf16.msra.mxu0 %v1387
  %1915 = vmatpush.bf16.msra.mxu0 %v1386
  %1916 = vmatpush.bf16.msra.mxu0 %v1385
  %1917 = vmatpush.bf16.msra.mxu0 %v1384
  %1918 = vmatpush.bf16.msra.mxu0 %v1383
  %1919 = vmatmul.bf16.gmra.mxu0 %v686
  %v1920 = vpop.f32.mrf.mxu0
  %v1921 = vadd.f32 %v1872, %v1920
  %v1922 = vpop.f32.mrf.mxu0
  %v1923 = vadd.f32 %v1874, %v1922
  %1924 = vmatmul.bf16.gmra.mxu0 %v700
  %v1925 = vpop.f32.mrf.mxu0
  %v1926 = vadd.f32 %v1877, %v1925
  %v1927 = vpop.f32.mrf.mxu0
  %v1928 = vadd.f32 %v1879, %v1927
  %1929 = vmatmul.bf16.gmra.mxu0 %v714
  %v1930 = vpop.f32.mrf.mxu0
  %v1931 = vadd.f32 %v1882, %v1930
  %v1932 = vpop.f32.mrf.mxu0
  %v1933 = vadd.f32 %v1884, %v1932
  %1934 = vmatmul.bf16.gmra.mxu0 %v728
  %v1935 = vpop.f32.mrf.mxu0
  %v1936 = vadd.f32 %v1887, %v1935
  %v1937 = vpop.f32.mrf.mxu0
  %v1938 = vadd.f32 %v1889, %v1937
  %1939 = vmatmul.bf16.gmra.mxu0 %v742
  %v1940 = vpop.f32.mrf.mxu0
  %v1941 = vadd.f32 %v1892, %v1940
  %v1942 = vpop.f32.mrf.mxu0
  %v1943 = vadd.f32 %v1894, %v1942
  %1944 = vmatmul.bf16.gmra.mxu0 %v756
  %v1945 = vpop.f32.mrf.mxu0
  %v1946 = vadd.f32 %v1897, %v1945
  %v1947 = vpop.f32.mrf.mxu0
  %v1948 = vadd.f32 %v1899, %v1947
  %1949 = vmatmul.bf16.gmra.mxu0 %v770
  %v1950 = vpop.f32.mrf.mxu0
  %v1951 = vadd.f32 %v1902, %v1950
  %v1952 = vpop.f32.mrf.mxu0
  %v1953 = vadd.f32 %v1904, %v1952
  %1954 = vmatmul.bf16.gmra.mxu0 %v784
  %v1955 = vpop.f32.mrf.mxu0
  %v1956 = vadd.f32 %v1907, %v1955
  %v1957 = vpop.f32.mrf.mxu0
  %v1958 = vadd.f32 %v1909, %v1957
  %1959 = vdwg.mxu0
  %1960 = vmatpush.bf16.msra.mxu0 %v1398
  %1961 = vmatpush.bf16.msra.mxu0 %v1397
  %1962 = vmatpush.bf16.msra.mxu0 %v1396
  %1963 = vmatpush.bf16.msra.mxu0 %v1395
  %1964 = vmatpush.bf16.msra.mxu0 %v1394
  %1965 = vmatpush.bf16.msra.mxu0 %v1393
  %1966 = vmatpush.bf16.msra.mxu0 %v1392
  %1967 = vmatpush.bf16.msra.mxu0 %v1391
  %1968 = vmatmul.bf16.gmra.mxu0 %v687
  %v1969 = vpop.f32.mrf.mxu0
  %v1970 = vadd.f32 %v1921, %v1969
  %v1971 = vpop.f32.mrf.mxu0
  %v1972 = vadd.f32 %v1923, %v1971
  %1973 = vmatmul.bf16.gmra.mxu0 %v701
  %v1974 = vpop.f32.mrf.mxu0
  %v1975 = vadd.f32 %v1926, %v1974
  %v1976 = vpop.f32.mrf.mxu0
  %v1977 = vadd.f32 %v1928, %v1976
  %1978 = vmatmul.bf16.gmra.mxu0 %v715
  %v1979 = vpop.f32.mrf.mxu0
  %v1980 = vadd.f32 %v1931, %v1979
  %v1981 = vpop.f32.mrf.mxu0
  %v1982 = vadd.f32 %v1933, %v1981
  %1983 = vmatmul.bf16.gmra.mxu0 %v729
  %v1984 = vpop.f32.mrf.mxu0
  %v1985 = vadd.f32 %v1936, %v1984
  %v1986 = vpop.f32.mrf.mxu0
  %v1987 = vadd.f32 %v1938, %v1986
  %1988 = vmatmul.bf16.gmra.mxu0 %v743
  %v1989 = vpop.f32.mrf.mxu0
  %v1990 = vadd.f32 %v1941, %v1989
  %v1991 = vpop.f32.mrf.mxu0
  %v1992 = vadd.f32 %v1943, %v1991
  %1993 = vmatmul.bf16.gmra.mxu0 %v757
  %v1994 = vpop.f32.mrf.mxu0
  %v1995 = vadd.f32 %v1946, %v1994
  %v1996 = vpop.f32.mrf.mxu0
  %v1997 = vadd.f32 %v1948, %v1996
  %1998 = vmatmul.bf16.gmra.mxu0 %v771
  %v1999 = vpop.f32.mrf.mxu0
  %v2000 = vadd.f32 %v1951, %v1999
  %v2001 = vpop.f32.mrf.mxu0
  %v2002 = vadd.f32 %v1953, %v2001
  %2003 = vmatmul.bf16.gmra.mxu0 %v785
  %v2004 = vpop.f32.mrf.mxu0
  %v2005 = vadd.f32 %v1956, %v2004
  %v2006 = vpop.f32.mrf.mxu0
  %v2007 = vadd.f32 %v1958, %v2006
  %2008 = vdwg.mxu0
  %2009 = vmatpush.bf16.msra.mxu0 %v1406
  %2010 = vmatpush.bf16.msra.mxu0 %v1405
  %2011 = vmatpush.bf16.msra.mxu0 %v1404
  %2012 = vmatpush.bf16.msra.mxu0 %v1403
  %2013 = vmatpush.bf16.msra.mxu0 %v1402
  %2014 = vmatpush.bf16.msra.mxu0 %v1401
  %2015 = vmatpush.bf16.msra.mxu0 %v1400
  %2016 = vmatpush.bf16.msra.mxu0 %v1399
  %2017 = vmatmul.bf16.gmra.mxu0 %v688
  %v2018 = vpop.f32.mrf.mxu0
  %v2019 = vadd.f32 %v1970, %v2018
  %v2020 = vpop.f32.mrf.mxu0
  %v2021 = vadd.f32 %v1972, %v2020
  %2022 = vmatmul.bf16.gmra.mxu0 %v702
  %v2023 = vpop.f32.mrf.mxu0
  %v2024 = vadd.f32 %v1975, %v2023
  %v2025 = vpop.f32.mrf.mxu0
  %v2026 = vadd.f32 %v1977, %v2025
  %2027 = vmatmul.bf16.gmra.mxu0 %v716
  %v2028 = vpop.f32.mrf.mxu0
  %v2029 = vadd.f32 %v1980, %v2028
  %v2030 = vpop.f32.mrf.mxu0
  %v2031 = vadd.f32 %v1982, %v2030
  %2032 = vmatmul.bf16.gmra.mxu0 %v730
  %v2033 = vpop.f32.mrf.mxu0
  %v2034 = vadd.f32 %v1985, %v2033
  %v2035 = vpop.f32.mrf.mxu0
  %v2036 = vadd.f32 %v1987, %v2035
  %2037 = vmatmul.bf16.gmra.mxu0 %v744
  %v2038 = vpop.f32.mrf.mxu0
  %v2039 = vadd.f32 %v1990, %v2038
  %v2040 = vpop.f32.mrf.mxu0
  %v2041 = vadd.f32 %v1992, %v2040
  %2042 = vmatmul.bf16.gmra.mxu0 %v758
  %v2043 = vpop.f32.mrf.mxu0
  %v2044 = vadd.f32 %v1995, %v2043
  %v2045 = vpop.f32.mrf.mxu0
  %v2046 = vadd.f32 %v1997, %v2045
  %2047 = vmatmul.bf16.gmra.mxu0 %v772
  %v2048 = vpop.f32.mrf.mxu0
  %v2049 = vadd.f32 %v2000, %v2048
  %v2050 = vpop.f32.mrf.mxu0
  %v2051 = vadd.f32 %v2002, %v2050
  %2052 = vmatmul.bf16.gmra.mxu0 %v786
  %v2053 = vpop.f32.mrf.mxu0
  %v2054 = vadd.f32 %v2005, %v2053
  %v2055 = vpop.f32.mrf.mxu0
  %v2056 = vadd.f32 %v2007, %v2055
  %2057 = vdwg.mxu0
  %2058 = vmatpush.bf16.msra.mxu0 %v1414
  %2059 = vmatpush.bf16.msra.mxu0 %v1413
  %2060 = vmatpush.bf16.msra.mxu0 %v1412
  %2061 = vmatpush.bf16.msra.mxu0 %v1411
  %2062 = vmatpush.bf16.msra.mxu0 %v1410
  %2063 = vmatpush.bf16.msra.mxu0 %v1409
  %2064 = vmatpush.bf16.msra.mxu0 %v1408
  %2065 = vmatpush.bf16.msra.mxu0 %v1407
  %2066 = vmatmul.bf16.gmra.mxu0 %v689
  %v2067 = vpop.f32.mrf.mxu0
  %v2068 = vadd.f32 %v2019, %v2067
  %v2069 = vpop.f32.mrf.mxu0
  %v2070 = vadd.f32 %v2021, %v2069
  %2071 = vmatmul.bf16.gmra.mxu0 %v703
  %v2072 = vpop.f32.mrf.mxu0
  %v2073 = vadd.f32 %v2024, %v2072
  %v2074 = vpop.f32.mrf.mxu0
  %v2075 = vadd.f32 %v2026, %v2074
  %2076 = vmatmul.bf16.gmra.mxu0 %v717
  %v2077 = vpop.f32.mrf.mxu0
  %v2078 = vadd.f32 %v2029, %v2077
  %v2079 = vpop.f32.mrf.mxu0
  %v2080 = vadd.f32 %v2031, %v2079
  %2081 = vmatmul.bf16.gmra.mxu0 %v731
  %v2082 = vpop.f32.mrf.mxu0
  %v2083 = vadd.f32 %v2034, %v2082
  %v2084 = vpop.f32.mrf.mxu0
  %v2085 = vadd.f32 %v2036, %v2084
  %2086 = vmatmul.bf16.gmra.mxu0 %v745
  %v2087 = vpop.f32.mrf.mxu0
  %v2088 = vadd.f32 %v2039, %v2087
  %v2089 = vpop.f32.mrf.mxu0
  %v2090 = vadd.f32 %v2041, %v2089
  %2091 = vmatmul.bf16.gmra.mxu0 %v759
  %v2092 = vpop.f32.mrf.mxu0
  %v2093 = vadd.f32 %v2044, %v2092
  %v2094 = vpop.f32.mrf.mxu0
  %v2095 = vadd.f32 %v2046, %v2094
  %2096 = vmatmul.bf16.gmra.mxu0 %v773
  %v2097 = vpop.f32.mrf.mxu0
  %v2098 = vadd.f32 %v2049, %v2097
  %v2099 = vpop.f32.mrf.mxu0
  %v2100 = vadd.f32 %v2051, %v2099
  %2101 = vmatmul.bf16.gmra.mxu0 %v787
  %v2102 = vpop.f32.mrf.mxu0
  %v2103 = vadd.f32 %v2054, %v2102
  %v2104 = vpop.f32.mrf.mxu0
  %v2105 = vadd.f32 %v2056, %v2104
  %2106 = vdwg.mxu0
  %2107 = vmatpush.bf16.msra.mxu0 %v1422
  %2108 = vmatpush.bf16.msra.mxu0 %v1421
  %2109 = vmatpush.bf16.msra.mxu0 %v1420
  %2110 = vmatpush.bf16.msra.mxu0 %v1419
  %2111 = vmatpush.bf16.msra.mxu0 %v1418
  %2112 = vmatpush.bf16.msra.mxu0 %v1417
  %2113 = vmatpush.bf16.msra.mxu0 %v1416
  %2114 = vmatpush.bf16.msra.mxu0 %v1415
  %2115 = vmatmul.bf16.gmra.mxu0 %v690
  %v2116 = vpop.f32.mrf.mxu0
  %v2117 = vadd.f32 %v2068, %v2116
  %v2118 = vpop.f32.mrf.mxu0
  %v2119 = vadd.f32 %v2070, %v2118
  %2120 = vmatmul.bf16.gmra.mxu0 %v704
  %v2121 = vpop.f32.mrf.mxu0
  %v2122 = vadd.f32 %v2073, %v2121
  %v2123 = vpop.f32.mrf.mxu0
  %v2124 = vadd.f32 %v2075, %v2123
  %2125 = vmatmul.bf16.gmra.mxu0 %v718
  %v2126 = vpop.f32.mrf.mxu0
  %v2127 = vadd.f32 %v2078, %v2126
  %v2128 = vpop.f32.mrf.mxu0
  %v2129 = vadd.f32 %v2080, %v2128
  %2130 = vmatmul.bf16.gmra.mxu0 %v732
  %v2131 = vpop.f32.mrf.mxu0
  %v2132 = vadd.f32 %v2083, %v2131
  %v2133 = vpop.f32.mrf.mxu0
  %v2134 = vadd.f32 %v2085, %v2133
  %2135 = vmatmul.bf16.gmra.mxu0 %v746
  %v2136 = vpop.f32.mrf.mxu0
  %v2137 = vadd.f32 %v2088, %v2136
  %v2138 = vpop.f32.mrf.mxu0
  %v2139 = vadd.f32 %v2090, %v2138
  %2140 = vmatmul.bf16.gmra.mxu0 %v760
  %v2141 = vpop.f32.mrf.mxu0
  %v2142 = vadd.f32 %v2093, %v2141
  %v2143 = vpop.f32.mrf.mxu0
  %v2144 = vadd.f32 %v2095, %v2143
  %2145 = vmatmul.bf16.gmra.mxu0 %v774
  %v2146 = vpop.f32.mrf.mxu0
  %v2147 = vadd.f32 %v2098, %v2146
  %v2148 = vpop.f32.mrf.mxu0
  %v2149 = vadd.f32 %v2100, %v2148
  %2150 = vmatmul.bf16.gmra.mxu0 %v788
  %v2151 = vpop.f32.mrf.mxu0
  %v2152 = vadd.f32 %v2103, %v2151
  %v2153 = vpop.f32.mrf.mxu0
  %v2154 = vadd.f32 %v2105, %v2153
  %2155 = vdwg.mxu0
  %2156 = vmatpush.bf16.msra.mxu0 %v1430
  %2157 = vmatpush.bf16.msra.mxu0 %v1429
  %2158 = vmatpush.bf16.msra.mxu0 %v1428
  %2159 = vmatpush.bf16.msra.mxu0 %v1427
  %2160 = vmatpush.bf16.msra.mxu0 %v1426
  %2161 = vmatpush.bf16.msra.mxu0 %v1425
  %2162 = vmatpush.bf16.msra.mxu0 %v1424
  %2163 = vmatpush.bf16.msra.mxu0 %v1423
  %2164 = vmatmul.bf16.gmra.mxu0 %v691
  %v2165 = vpop.f32.mrf.mxu0
  %v2166 = vadd.f32 %v2117, %v2165
  %v2167 = vpop.f32.mrf.mxu0
  %v2168 = vadd.f32 %v2119, %v2167
  %2169 = vmatmul.bf16.gmra.mxu0 %v705
  %v2170 = vpop.f32.mrf.mxu0
  %v2171 = vadd.f32 %v2122, %v2170
  %v2172 = vpop.f32.mrf.mxu0
  %v2173 = vadd.f32 %v2124, %v2172
  %2174 = vmatmul.bf16.gmra.mxu0 %v719
  %v2175 = vpop.f32.mrf.mxu0
  %v2176 = vadd.f32 %v2127, %v2175
  %v2177 = vpop.f32.mrf.mxu0
  %v2178 = vadd.f32 %v2129, %v2177
  %2179 = vmatmul.bf16.gmra.mxu0 %v733
  %v2180 = vpop.f32.mrf.mxu0
  %v2181 = vadd.f32 %v2132, %v2180
  %v2182 = vpop.f32.mrf.mxu0
  %v2183 = vadd.f32 %v2134, %v2182
  %2184 = vmatmul.bf16.gmra.mxu0 %v747
  %v2185 = vpop.f32.mrf.mxu0
  %v2186 = vadd.f32 %v2137, %v2185
  %v2187 = vpop.f32.mrf.mxu0
  %v2188 = vadd.f32 %v2139, %v2187
  %2189 = vmatmul.bf16.gmra.mxu0 %v761
  %v2190 = vpop.f32.mrf.mxu0
  %v2191 = vadd.f32 %v2142, %v2190
  %v2192 = vpop.f32.mrf.mxu0
  %v2193 = vadd.f32 %v2144, %v2192
  %2194 = vmatmul.bf16.gmra.mxu0 %v775
  %v2195 = vpop.f32.mrf.mxu0
  %v2196 = vadd.f32 %v2147, %v2195
  %v2197 = vpop.f32.mrf.mxu0
  %v2198 = vadd.f32 %v2149, %v2197
  %2199 = vmatmul.bf16.gmra.mxu0 %v789
  %v2200 = vpop.f32.mrf.mxu0
  %v2201 = vadd.f32 %v2152, %v2200
  %v2202 = vpop.f32.mrf.mxu0
  %v2203 = vadd.f32 %v2154, %v2202
  %2204 = vdwg.mxu0
  %2205 = vmatpush.bf16.msra.mxu0 0
  %2206 = vmatpush.bf16.msra.mxu0 0
  %2207 = vmatpush.bf16.msra.mxu0 0
  %2208 = vmatpush.bf16.msra.mxu0 0
  %2209 = vmatpush.bf16.msra.mxu0 %v1434
  %2210 = vmatpush.bf16.msra.mxu0 %v1433
  %2211 = vmatpush.bf16.msra.mxu0 %v1432
  %2212 = vmatpush.bf16.msra.mxu0 %v1431
  %2213 = vmatmul.bf16.gmra.mxu0 %v1545
  %v2214 = vpop.f32.mrf.mxu0
  %v2215 = vadd.f32 %v2166, %v2214
  %v2216 = vpop.f32.mrf.mxu0
  %v2217 = vadd.f32 %v2168, %v2216
  %2218 = vmatmul.bf16.gmra.mxu0 %v1548
  %v2219 = vpop.f32.mrf.mxu0
  %v2220 = vadd.f32 %v2171, %v2219
  %v2221 = vpop.f32.mrf.mxu0
  %v2222 = vadd.f32 %v2173, %v2221
  %2223 = vmatmul.bf16.gmra.mxu0 %v1551
  %v2224 = vpop.f32.mrf.mxu0
  %v2225 = vadd.f32 %v2176, %v2224
  %v2226 = vpop.f32.mrf.mxu0
  %v2227 = vadd.f32 %v2178, %v2226
  %2228 = vmatmul.bf16.gmra.mxu0 %v1554
  %v2229 = vpop.f32.mrf.mxu0
  %v2230 = vadd.f32 %v2181, %v2229
  %v2231 = vpop.f32.mrf.mxu0
  %v2232 = vadd.f32 %v2183, %v2231
  %2233 = vmatmul.bf16.gmra.mxu0 %v1557
  %v2234 = vpop.f32.mrf.mxu0
  %v2235 = vadd.f32 %v2186, %v2234
  %v2236 = vpop.f32.mrf.mxu0
  %v2237 = vadd.f32 %v2188, %v2236
  %2238 = vmatmul.bf16.gmra.mxu0 %v1560
  %v2239 = vpop.f32.mrf.mxu0
  %v2240 = vadd.f32 %v2191, %v2239
  %v2241 = vpop.f32.mrf.mxu0
  %v2242 = vadd.f32 %v2193, %v2241
  %2243 = vmatmul.bf16.gmra.mxu0 %v1563
  %v2244 = vpop.f32.mrf.mxu0
  %v2245 = vadd.f32 %v2196, %v2244
  %v2246 = vpop.f32.mrf.mxu0
  %v2247 = vadd.f32 %v2198, %v2246
  %2248 = vmatmul.bf16.gmra.mxu0 %v1566
  %v2249 = vpop.f32.mrf.mxu0
  %v2250 = vadd.f32 %v2201, %v2249
  %v2251 = vpop.f32.mrf.mxu0
  %v2252 = vadd.f32 %v2203, %v2251
  %2253 = vdwg.mxu0
  %v2254 = vld [vmem:[%s2] sm:$0xff]
  %v2255 = vld [vmem:[%s2 + $0x8] sm:$0xff]
  %v2256 = vld [vmem:[%s2 + $0x10] sm:$0xff]
  %v2257 = vld [vmem:[%s2 + $0x18] sm:$0xff]
  %v2258 = vld [vmem:[%s2 + $0x20] sm:$0xff]
  %v2259 = vld [vmem:[%s2 + $0x28] sm:$0xff]
  %v2260 = vld [vmem:[%s2 + $0x30] sm:$0xff]
  %v2261 = vld [vmem:[%s2 + $0x38] sm:$0xff]
  %v2262 = vld [vmem:[%s2 + $0x40] sm:$0xff]
  %v2263 = vld [vmem:[%s2 + $0x48] sm:$0xff]
  %v2264 = vld [vmem:[%s2 + $0x50] sm:$0xff]
  %v2265 = vld [vmem:[%s2 + $0x58] sm:$0xff]
  %v2266 = vld [vmem:[%s2 + $0x60] sm:$0xff]
  %v2267 = vld [vmem:[%s2 + $0x68] sm:$0xff]
  %v2268 = vld [vmem:[%s2 + $0x70] sm:$0xff]
  %v2269 = vld [vmem:[%s2 + $0x78] sm:$0xff]
  %2271 = vset.pattern.permute.xlu0 0
  %2272 = vperm.xlu0 %2271, %v2254
  %v2273 = vpop.permute.xlu0 %2272
  %2276 = vset.pattern.permute.xlu0 0
  %2277 = vperm.xlu0 %2276, %v2255
  %v2278 = vpop.permute.xlu0 %2277
  %2281 = vset.pattern.permute.xlu0 0
  %2282 = vperm.xlu0 %2281, %v2256
  %v2283 = vpop.permute.xlu0 %2282
  %2286 = vset.pattern.permute.xlu0 0
  %2287 = vperm.xlu0 %2286, %v2257
  %v2288 = vpop.permute.xlu0 %2287
  %2291 = vset.pattern.permute.xlu0 0
  %2292 = vperm.xlu0 %2291, %v2258
  %v2293 = vpop.permute.xlu0 %2292
  %2296 = vset.pattern.permute.xlu0 0
  %2297 = vperm.xlu0 %2296, %v2259
  %v2298 = vpop.permute.xlu0 %2297
  %2301 = vset.pattern.permute.xlu0 0
  %2302 = vperm.xlu0 %2301, %v2260
  %v2303 = vpop.permute.xlu0 %2302
  %2306 = vset.pattern.permute.xlu0 0
  %2307 = vperm.xlu0 %2306, %v2261
  %v2308 = vpop.permute.xlu0 %2307
  %2311 = vset.pattern.permute.xlu0 0
  %2312 = vperm.xlu0 %2311, %v2262
  %v2313 = vpop.permute.xlu0 %2312
  %2316 = vset.pattern.permute.xlu0 0
  %2317 = vperm.xlu0 %2316, %v2263
  %v2318 = vpop.permute.xlu0 %2317
  %2321 = vset.pattern.permute.xlu0 0
  %2322 = vperm.xlu0 %2321, %v2264
  %v2323 = vpop.permute.xlu0 %2322
  %2326 = vset.pattern.permute.xlu0 0
  %2327 = vperm.xlu0 %2326, %v2265
  %v2328 = vpop.permute.xlu0 %2327
  %2331 = vset.pattern.permute.xlu0 0
  %2332 = vperm.xlu0 %2331, %v2266
  %v2333 = vpop.permute.xlu0 %2332
  %2336 = vset.pattern.permute.xlu0 0
  %2337 = vperm.xlu0 %2336, %v2267
  %v2338 = vpop.permute.xlu0 %2337
  %2341 = vset.pattern.permute.xlu0 0
  %2342 = vperm.xlu0 %2341, %v2268
  %v2343 = vpop.permute.xlu0 %2342
  %2346 = vset.pattern.permute.xlu0 0
  %2347 = vperm.xlu0 %2346, %v2269
  %v2348 = vpop.permute.xlu0 %2347
  %v2350 = vmul.f32 %v2215, %v2273
  %v2351 = vmul.f32 %v2217, %v2278
  %v2352 = vmul.f32 %v2220, %v2283
  %v2353 = vmul.f32 %v2222, %v2288
  %v2354 = vmul.f32 %v2225, %v2293
  %v2355 = vmul.f32 %v2227, %v2298
  %v2356 = vmul.f32 %v2230, %v2303
  %v2357 = vmul.f32 %v2232, %v2308
  %v2358 = vmul.f32 %v2235, %v2313
  %v2359 = vmul.f32 %v2237, %v2318
  %v2360 = vmul.f32 %v2240, %v2323
  %v2361 = vmul.f32 %v2242, %v2328
  %v2362 = vmul.f32 %v2245, %v2333
  %v2363 = vmul.f32 %v2247, %v2338
  %v2364 = vmul.f32 %v2250, %v2343
  %v2365 = vmul.f32 %v2252, %v2348
  %v2366 = vadd.f32 %v2350, %v2351
  %v2367 = vadd.f32 %v2366, %v2352
  %v2368 = vadd.f32 %v2367, %v2353
  %v2369 = vadd.f32 %v2368, %v2354
  %v2370 = vadd.f32 %v2369, %v2355
  %v2371 = vadd.f32 %v2370, %v2356
  %v2372 = vadd.f32 %v2371, %v2357
  %v2373 = vadd.f32 %v2372, %v2358
  %v2374 = vadd.f32 %v2373, %v2359
  %v2375 = vadd.f32 %v2374, %v2360
  %v2376 = vadd.f32 %v2375, %v2361
  %v2377 = vadd.f32 %v2376, %v2362
  %v2378 = vadd.f32 %v2377, %v2363
  %v2379 = vadd.f32 %v2378, %v2364
  %v2380 = vadd.f32 %v2379, %v2365
  %v2381 = vrot.slane %v2380, 4
  %v2382 = vadd.f32 %v2380, %v2381
  %v2383 = vrot.slane %v2382, 2
  %v2384 = vadd.f32 %v2382, %v2383
  %v2385 = vrot.slane %v2384, 1
  %v2386 = vadd.f32 %v2384, %v2385
  %v2387 = vmul.f32 %v2386, 0.0078125
  %v2388 = vsub.f32 %v2350, %v2387
  %v2389 = vsub.f32 %v2351, %v2387
  %v2390 = vsub.f32 %v2352, %v2387
  %v2391 = vsub.f32 %v2353, %v2387
  %v2392 = vsub.f32 %v2354, %v2387
  %v2393 = vsub.f32 %v2355, %v2387
  %v2394 = vsub.f32 %v2356, %v2387
  %v2395 = vsub.f32 %v2357, %v2387
  %v2396 = vsub.f32 %v2358, %v2387
  %v2397 = vsub.f32 %v2359, %v2387
  %v2398 = vsub.f32 %v2360, %v2387
  %v2399 = vsub.f32 %v2361, %v2387
  %v2400 = vsub.f32 %v2362, %v2387
  %v2401 = vsub.f32 %v2363, %v2387
  %v2402 = vsub.f32 %v2364, %v2387
  %v2403 = vsub.f32 %v2365, %v2387
  %v2404 = vmul.f32 %v2388, %v2388
  %v2405 = vmul.f32 %v2389, %v2389
  %v2406 = vmul.f32 %v2390, %v2390
  %v2407 = vmul.f32 %v2391, %v2391
  %v2408 = vmul.f32 %v2392, %v2392
  %v2409 = vmul.f32 %v2393, %v2393
  %v2410 = vmul.f32 %v2394, %v2394
  %v2411 = vmul.f32 %v2395, %v2395
  %v2412 = vmul.f32 %v2396, %v2396
  %v2413 = vmul.f32 %v2397, %v2397
  %v2414 = vmul.f32 %v2398, %v2398
  %v2415 = vmul.f32 %v2399, %v2399
  %v2416 = vmul.f32 %v2400, %v2400
  %v2417 = vmul.f32 %v2401, %v2401
  %v2418 = vmul.f32 %v2402, %v2402
  %v2419 = vmul.f32 %v2403, %v2403
  %v2420 = vadd.f32 %v2404, %v2405
  %v2421 = vadd.f32 %v2420, %v2406
  %v2422 = vadd.f32 %v2421, %v2407
  %v2423 = vadd.f32 %v2422, %v2408
  %v2424 = vadd.f32 %v2423, %v2409
  %v2425 = vadd.f32 %v2424, %v2410
  %v2426 = vadd.f32 %v2425, %v2411
  %v2427 = vadd.f32 %v2426, %v2412
  %v2428 = vadd.f32 %v2427, %v2413
  %v2429 = vadd.f32 %v2428, %v2414
  %v2430 = vadd.f32 %v2429, %v2415
  %v2431 = vadd.f32 %v2430, %v2416
  %v2432 = vadd.f32 %v2431, %v2417
  %v2433 = vadd.f32 %v2432, %v2418
  %v2434 = vadd.f32 %v2433, %v2419
  %v2435 = vrot.slane %v2434, 4
  %v2436 = vadd.f32 %v2434, %v2435
  %v2437 = vrot.slane %v2436, 2
  %v2438 = vadd.f32 %v2436, %v2437
  %v2439 = vrot.slane %v2438, 1
  %v2440 = vadd.f32 %v2438, %v2439
  %v2441 = vmul.f32 %v2440, 0.0078125
  %v2442 = vadd.f32 %v2441, 1e-05
  %v2443 = vrsqrt.pop %v2442
  %v2444 = vmul.f32 %v2443, %v2442
  %v2445 = vmul.f32 %v2444, %v2443
  %v2446 = vmul.f32 0.5, %v2445
  %v2447 = vsub.f32 1.5, %v2446
  %v2448 = vmul.f32 %v2443, %v2447
  %vm2449 = vweird.f32 %v2442
  %vm2450 = vweird.f32 %v2443
  %vm2451 = vmor %vm2449, %vm2450
  %v2452 = vsel %vm2451, %v2443, %v2448
  %v2453 = vmul.f32 %v2388, %v2452
  %v2454 = vmul.f32 %v2389, %v2452
  %v2455 = vmul.f32 %v2390, %v2452
  %v2456 = vmul.f32 %v2391, %v2452
  %v2457 = vmul.f32 %v2392, %v2452
  %v2458 = vmul.f32 %v2393, %v2452
  %v2459 = vmul.f32 %v2394, %v2452
  %v2460 = vmul.f32 %v2395, %v2452
  %v2461 = vmul.f32 %v2396, %v2452
  %v2462 = vmul.f32 %v2397, %v2452
  %v2463 = vmul.f32 %v2398, %v2452
  %v2464 = vmul.f32 %v2399, %v2452
  %v2465 = vmul.f32 %v2400, %v2452
  %v2466 = vmul.f32 %v2401, %v2452
  %v2467 = vmul.f32 %v2402, %v2452
  %v2468 = vmul.f32 %v2403, %v2452
  %v2469 = vmax.f32 %v2453, 0.0
  %v2470 = vmax.f32 %v2454, 0.0
  %v2471 = vmax.f32 %v2455, 0.0
  %v2472 = vmax.f32 %v2456, 0.0
  %v2473 = vmax.f32 %v2457, 0.0
  %v2474 = vmax.f32 %v2458, 0.0
  %v2475 = vmax.f32 %v2459, 0.0
  %v2476 = vmax.f32 %v2460, 0.0
  %v2477 = vmax.f32 %v2461, 0.0
  %v2478 = vmax.f32 %v2462, 0.0
  %v2479 = vmax.f32 %v2463, 0.0
  %v2480 = vmax.f32 %v2464, 0.0
  %v2481 = vmax.f32 %v2465, 0.0
  %v2482 = vmax.f32 %v2466, 0.0
  %v2483 = vmax.f32 %v2467, 0.0
  %v2484 = vmax.f32 %v2468, 0.0
  %2485 = vst [vmem:[%s3] sm:$0xff] %v2469
  %2486 = vst [vmem:[%s3 + $0x8] sm:$0xff] %v2470
  %2487 = vst [vmem:[%s3 + $0x10] sm:$0xff] %v2471
  %2488 = vst [vmem:[%s3 + $0x18] sm:$0xff] %v2472
  %2489 = vst [vmem:[%s3 + $0x20] sm:$0xff] %v2473
  %2490 = vst [vmem:[%s3 + $0x28] sm:$0xff] %v2474
  %2491 = vst [vmem:[%s3 + $0x30] sm:$0xff] %v2475
  %2492 = vst [vmem:[%s3 + $0x38] sm:$0xff] %v2476
  %2493 = vst [vmem:[%s3 + $0x40] sm:$0xff] %v2477
  %2494 = vst [vmem:[%s3 + $0x48] sm:$0xff] %v2478
  %2495 = vst [vmem:[%s3 + $0x50] sm:$0xff] %v2479
  %2496 = vst [vmem:[%s3 + $0x58] sm:$0xff] %v2480
  %2497 = vst [vmem:[%s3 + $0x60] sm:$0xff] %v2481
  %2498 = vst [vmem:[%s3 + $0x68] sm:$0xff] %v2482
  %2499 = vst [vmem:[%s3 + $0x70] sm:$0xff] %v2483
  %2500 = vst [vmem:[%s3 + $0x78] sm:$0xff] %v2484
  // Predicated region
  $region14: #{discriminator_forward.5} parent=0 // pred_check
    _
  $region15: #{discriminator_forward.5} parent=0 // pred_check_branch
    %2502 = sbr.rel (0) target = $region17
  $region16: #{discriminator_forward.5} parent=0 // pred_region
    _
  $region17: #{discriminator_forward.5} parent=0 // pred_fallthru
    _
  // Predicated region
  $region18: #{discriminator_forward.5} parent=0 // pred_check
    _
  $region19: #{discriminator_forward.5} parent=0 // pred_check_branch
    %2504 = sbr.rel (0) target = $region21
  $region20: #{discriminator_forward.5} parent=0 // pred_region
    _
  $region21: #{discriminator_forward.5} parent=0 // pred_fallthru
    _

// kernel: discriminator_forward.6
$region0: #{discriminator_forward.6}
  #allocation0 [shape = 'u32[]', space=smem, size = 0x4, offset = 0x4, fixed_abs, tag = 'smem constant byte address 0x4 - core index']
  #allocation1 [shape = 'u32[72,128]{1,0:T(1,128)}', space=vmem, size = 0x9000, scoped, tag = 'internal scratch']
  %s0 = inlined_call_operand.vmem [shape: bf16[16,3456], index: 0, kind: input, shape index: {}]
  %s1 = inlined_call_operand.vmem [shape: bf16[3456,256], index: 1, kind: input, shape index: {}]
  %s2 = inlined_call_operand.vmem [shape: f32[16,1], index: 2, kind: input, shape index: {}]
  %s3 = inlined_call_operand.vmem [shape: f32[16,256], index: 3, kind: output, shape index: {}]
  %s4 = sld [smem:[#allocation0]]
  $region22: #{discriminator_forward.6} parent=0
    _
  %s6 = ssub.s32 1, %s4
  %s7 = scalar_select 0, %s6, %s4
  // Predicated region
  $region2: #{discriminator_forward.6} parent=0 // pred_check
    _
  $region3: #{discriminator_forward.6} parent=0 // pred_check_branch
    %9 = sbr.rel (0) target = $region5
  $region4: #{discriminator_forward.6} parent=0 // pred_region
    _
  $region5: #{discriminator_forward.6} parent=0 // pred_fallthru
    _
  // Predicated region
  $region6: #{discriminator_forward.6} parent=0 // pred_check
    _
  $region7: #{discriminator_forward.6} parent=0 // pred_check_branch
    %11 = sbr.rel (0) target = $region9
  $region8: #{discriminator_forward.6} parent=0 // pred_region
    _
  $region9: #{discriminator_forward.6} parent=0 // pred_fallthru
    _
  // Predicated region
  $region10: #{discriminator_forward.6} parent=0 // pred_check
    _
  $region11: #{discriminator_forward.6} parent=0 // pred_check_branch
    %13 = sbr.rel (0) target = $region13
  $region12: #{discriminator_forward.6} parent=0 // pred_region
    _
  $region13: #{discriminator_forward.6} parent=0 // pred_fallthru
    _
  %v14 = vld [vmem:[%s0] sm:$0xff]
  %v15 = vld [vmem:[%s0 + $0x8] sm:$0xff]
  %v16 = vld [vmem:[%s0 + $0x10] sm:$0xff]
  %v17 = vld [vmem:[%s0 + $0x18] sm:$0xff]
  %v18 = vld [vmem:[%s0 + $0x20] sm:$0xff]
  %v19 = vld [vmem:[%s0 + $0x28] sm:$0xff]
  %v20 = vld [vmem:[%s0 + $0x30] sm:$0xff]
  %v21 = vld [vmem:[%s0 + $0x38] sm:$0xff]
  %v22 = vld [vmem:[%s0 + $0x40] sm:$0xff]
  %v23 = vld [vmem:[%s0 + $0x48] sm:$0xff]
  %v24 = vld [vmem:[%s0 + $0x50] sm:$0xff]
  %v25 = vld [vmem:[%s0 + $0x58] sm:$0xff]
  %v26 = vld [vmem:[%s0 + $0x60] sm:$0xff]
  %v27 = vld [vmem:[%s0 + $0x68] sm:$0xf]
  %v28 = vld [vmem:[%s0 + $0x6c] sm:$0xff]
  %v29 = vld [vmem:[%s0 + $0x74] sm:$0xff]
  %v30 = vld [vmem:[%s0 + $0x7c] sm:$0xff]
  %v31 = vld [vmem:[%s0 + $0x84] sm:$0xff]
  %v32 = vld [vmem:[%s0 + $0x8c] sm:$0xff]
  %v33 = vld [vmem:[%s0 + $0x94] sm:$0xff]
  %v34 = vld [vmem:[%s0 + $0x9c] sm:$0xff]
  %v35 = vld [vmem:[%s0 + $0xa4] sm:$0xff]
  %v36 = vld [vmem:[%s0 + $0xac] sm:$0xff]
  %v37 = vld [vmem:[%s0 + $0xb4] sm:$0xff]
  %v38 = vld [vmem:[%s0 + $0xbc] sm:$0xff]
  %v39 = vld [vmem:[%s0 + $0xc4] sm:$0xff]
  %v40 = vld [vmem:[%s0 + $0xcc] sm:$0xff]
  %v41 = vld [vmem:[%s0 + $0xd4] sm:$0xf]
  %v42 = vld [vmem:[%s1] sm:$0xff]
  %v43 = vld [vmem:[%s1 + $0x8] sm:$0xff]
  %v44 = vld [vmem:[%s1 + $0x10] sm:$0xff]
  %v45 = vld [vmem:[%s1 + $0x18] sm:$0xff]
  %v46 = vld [vmem:[%s1 + $0x20] sm:$0xff]
  %v47 = vld [vmem:[%s1 + $0x28] sm:$0xff]
  %v48 = vld [vmem:[%s1 + $0x30] sm:$0xff]
  %v49 = vld [vmem:[%s1 + $0x38] sm:$0xff]
  %v50 = vld [vmem:[%s1 + $0x40] sm:$0xff]
  %v51 = vld [vmem:[%s1 + $0x48] sm:$0xff]
  %v52 = vld [vmem:[%s1 + $0x50] sm:$0xff]
  %v53 = vld [vmem:[%s1 + $0x58] sm:$0xff]
  %v54 = vld [vmem:[%s1 + $0x60] sm:$0xff]
  %v55 = vld [vmem:[%s1 + $0x68] sm:$0xff]
  %v56 = vld [vmem:[%s1 + $0x70] sm:$0xff]
  %v57 = vld [vmem:[%s1 + $0x78] sm:$0xff]
  %v58 = vld [vmem:[%s1 + $0x80] sm:$0xff]
  %v59 = vld [vmem:[%s1 + $0x88] sm:$0xff]
  %v60 = vld [vmem:[%s1 + $0x90] sm:$0xff]
  %v61 = vld [vmem:[%s1 + $0x98] sm:$0xff]
  %v62 = vld [vmem:[%s1 + $0xa0] sm:$0xff]
  %v63 = vld [vmem:[%s1 + $0xa8] sm:$0xff]
  %v64 = vld [vmem:[%s1 + $0xb0] sm:$0xff]
  %v65 = vld [vmem:[%s1 + $0xb8] sm:$0xff]
  %v66 = vld [vmem:[%s1 + $0xc0] sm:$0xff]
  %v67 = vld [vmem:[%s1 + $0xc8] sm:$0xff]
  %v68 = vld [vmem:[%s1 + $0xd0] sm:$0xff]
  %v69 = vld [vmem:[%s1 + $0xd8] sm:$0xff]
  %v70 = vld [vmem:[%s1 + $0xe0] sm:$0xff]
  %v71 = vld [vmem:[%s1 + $0xe8] sm:$0xff]
  %v72 = vld [vmem:[%s1 + $0xf0] sm:$0xff]
  %v73 = vld [vmem:[%s1 + $0xf8] sm:$0xff]
  %v74 = vld [vmem:[%s1 + $0x100] sm:$0xff]
  %v75 = vld [vmem:[%s1 + $0x108] sm:$0xff]
  %v76 = vld [vmem:[%s1 + $0x110] sm:$0xff]
  %v77 = vld [vmem:[%s1 + $0x118] sm:$0xff]
  %v78 = vld [vmem:[%s1 + $0x120] sm:$0xff]
  %v79 = vld [vmem:[%s1 + $0x128] sm:$0xff]
  %v80 = vld [vmem:[%s1 + $0x130] sm:$0xff]
  %v81 = vld [vmem:[%s1 + $0x138] sm:$0xff]
  %v82 = vld [vmem:[%s1 + $0x140] sm:$0xff]
  %v83 = vld [vmem:[%s1 + $0x148] sm:$0xff]
  %v84 = vld [vmem:[%s1 + $0x150] sm:$0xff]
  %v85 = vld [vmem:[%s1 + $0x158] sm:$0xff]
  %v86 = vld [vmem:[%s1 + $0x160] sm:$0xff]
  %v87 = vld [vmem:[%s1 + $0x168] sm:$0xff]
  %v88 = vld [vmem:[%s1 + $0x170] sm:$0xff]
  %v89 = vld [vmem:[%s1 + $0x178] sm:$0xff]
  %v90 = vld [vmem:[%s1 + $0x180] sm:$0xff]
  %v91 = vld [vmem:[%s1 + $0x188] sm:$0xff]
  %v92 = vld [vmem:[%s1 + $0x190] sm:$0xff]
  %v93 = vld [vmem:[%s1 + $0x198] sm:$0xff]
  %v94 = vld [vmem:[%s1 + $0x1a0] sm:$0xff]
  %v95 = vld [vmem:[%s1 + $0x1a8] sm:$0xff]
  %v96 = vld [vmem:[%s1 + $0x1b0] sm:$0xff]
  %v97 = vld [vmem:[%s1 + $0x1b8] sm:$0xff]
  %v98 = vld [vmem:[%s1 + $0x1c0] sm:$0xff]
  %v99 = vld [vmem:[%s1 + $0x1c8] sm:$0xff]
  %v100 = vld [vmem:[%s1 + $0x1d0] sm:$0xff]
  %v101 = vld [vmem:[%s1 + $0x1d8] sm:$0xff]
  %v102 = vld [vmem:[%s1 + $0x1e0] sm:$0xff]
  %v103 = vld [vmem:[%s1 + $0x1e8] sm:$0xff]
  %v104 = vld [vmem:[%s1 + $0x1f0] sm:$0xff]
  %v105 = vld [vmem:[%s1 + $0x1f8] sm:$0xff]
  %v106 = vld [vmem:[%s1 + $0x200] sm:$0xff]
  %v107 = vld [vmem:[%s1 + $0x208] sm:$0xff]
  %v108 = vld [vmem:[%s1 + $0x210] sm:$0xff]
  %v109 = vld [vmem:[%s1 + $0x218] sm:$0xff]
  %v110 = vld [vmem:[%s1 + $0x220] sm:$0xff]
  %v111 = vld [vmem:[%s1 + $0x228] sm:$0xff]
  %v112 = vld [vmem:[%s1 + $0x230] sm:$0xff]
  %v113 = vld [vmem:[%s1 + $0x238] sm:$0xff]
  %v114 = vld [vmem:[%s1 + $0x240] sm:$0xff]
  %v115 = vld [vmem:[%s1 + $0x248] sm:$0xff]
  %v116 = vld [vmem:[%s1 + $0x250] sm:$0xff]
  %v117 = vld [vmem:[%s1 + $0x258] sm:$0xff]
  %v118 = vld [vmem:[%s1 + $0x260] sm:$0xff]
  %v119 = vld [vmem:[%s1 + $0x268] sm:$0xff]
  %v120 = vld [vmem:[%s1 + $0x270] sm:$0xff]
  %v121 = vld [vmem:[%s1 + $0x278] sm:$0xff]
  %v122 = vld [vmem:[%s1 + $0x280] sm:$0xff]
  %v123 = vld [vmem:[%s1 + $0x288] sm:$0xff]
  %v124 = vld [vmem:[%s1 + $0x290] sm:$0xff]
  %v125 = vld [vmem:[%s1 + $0x298] sm:$0xff]
  %v126 = vld [vmem:[%s1 + $0x2a0] sm:$0xff]
  %v127 = vld [vmem:[%s1 + $0x2a8] sm:$0xff]
  %v128 = vld [vmem:[%s1 + $0x2b0] sm:$0xff]
  %v129 = vld [vmem:[%s1 + $0x2b8] sm:$0xff]
  %v130 = vld [vmem:[%s1 + $0x2c0] sm:$0xff]
  %v131 = vld [vmem:[%s1 + $0x2c8] sm:$0xff]
  %v132 = vld [vmem:[%s1 + $0x2d0] sm:$0xff]
  %v133 = vld [vmem:[%s1 + $0x2d8] sm:$0xff]
  %v134 = vld [vmem:[%s1 + $0x2e0] sm:$0xff]
  %v135 = vld [vmem:[%s1 + $0x2e8] sm:$0xff]
  %v136 = vld [vmem:[%s1 + $0x2f0] sm:$0xff]
  %v137 = vld [vmem:[%s1 + $0x2f8] sm:$0xff]
  %v138 = vld [vmem:[%s1 + $0x300] sm:$0xff]
  %v139 = vld [vmem:[%s1 + $0x308] sm:$0xff]
  %v140 = vld [vmem:[%s1 + $0x310] sm:$0xff]
  %v141 = vld [vmem:[%s1 + $0x318] sm:$0xff]
  %v142 = vld [vmem:[%s1 + $0x320] sm:$0xff]
  %v143 = vld [vmem:[%s1 + $0x328] sm:$0xff]
  %v144 = vld [vmem:[%s1 + $0x330] sm:$0xff]
  %v145 = vld [vmem:[%s1 + $0x338] sm:$0xff]
  %v146 = vld [vmem:[%s1 + $0x340] sm:$0xff]
  %v147 = vld [vmem:[%s1 + $0x348] sm:$0xff]
  %v148 = vld [vmem:[%s1 + $0x350] sm:$0xff]
  %v149 = vld [vmem:[%s1 + $0x358] sm:$0xff]
  %v150 = vld [vmem:[%s1 + $0x360] sm:$0xff]
  %v151 = vld [vmem:[%s1 + $0x368] sm:$0xff]
  %v152 = vld [vmem:[%s1 + $0x370] sm:$0xff]
  %v153 = vld [vmem:[%s1 + $0x378] sm:$0xff]
  %v154 = vld [vmem:[%s1 + $0x380] sm:$0xff]
  %v155 = vld [vmem:[%s1 + $0x388] sm:$0xff]
  %v156 = vld [vmem:[%s1 + $0x390] sm:$0xff]
  %v157 = vld [vmem:[%s1 + $0x398] sm:$0xff]
  %v158 = vld [vmem:[%s1 + $0x3a0] sm:$0xff]
  %v159 = vld [vmem:[%s1 + $0x3a8] sm:$0xff]
  %v160 = vld [vmem:[%s1 + $0x3b0] sm:$0xff]
  %v161 = vld [vmem:[%s1 + $0x3b8] sm:$0xff]
  %v162 = vld [vmem:[%s1 + $0x3c0] sm:$0xff]
  %v163 = vld [vmem:[%s1 + $0x3c8] sm:$0xff]
  %v164 = vld [vmem:[%s1 + $0x3d0] sm:$0xff]
  %v165 = vld [vmem:[%s1 + $0x3d8] sm:$0xff]
  %v166 = vld [vmem:[%s1 + $0x3e0] sm:$0xff]
  %v167 = vld [vmem:[%s1 + $0x3e8] sm:$0xff]
  %v168 = vld [vmem:[%s1 + $0x3f0] sm:$0xff]
  %v169 = vld [vmem:[%s1 + $0x3f8] sm:$0xff]
  %v170 = vld [vmem:[%s1 + $0x400] sm:$0xff]
  %v171 = vld [vmem:[%s1 + $0x408] sm:$0xff]
  %v172 = vld [vmem:[%s1 + $0x410] sm:$0xff]
  %v173 = vld [vmem:[%s1 + $0x418] sm:$0xff]
  %v174 = vld [vmem:[%s1 + $0x420] sm:$0xff]
  %v175 = vld [vmem:[%s1 + $0x428] sm:$0xff]
  %v176 = vld [vmem:[%s1 + $0x430] sm:$0xff]
  %v177 = vld [vmem:[%s1 + $0x438] sm:$0xff]
  %v178 = vld [vmem:[%s1 + $0x440] sm:$0xff]
  %v179 = vld [vmem:[%s1 + $0x448] sm:$0xff]
  %v180 = vld [vmem:[%s1 + $0x450] sm:$0xff]
  %v181 = vld [vmem:[%s1 + $0x458] sm:$0xff]
  %v182 = vld [vmem:[%s1 + $0x460] sm:$0xff]
  %v183 = vld [vmem:[%s1 + $0x468] sm:$0xff]
  %v184 = vld [vmem:[%s1 + $0x470] sm:$0xff]
  %v185 = vld [vmem:[%s1 + $0x478] sm:$0xff]
  %v186 = vld [vmem:[%s1 + $0x480] sm:$0xff]
  %v187 = vld [vmem:[%s1 + $0x488] sm:$0xff]
  %v188 = vld [vmem:[%s1 + $0x490] sm:$0xff]
  %v189 = vld [vmem:[%s1 + $0x498] sm:$0xff]
  %v190 = vld [vmem:[%s1 + $0x4a0] sm:$0xff]
  %v191 = vld [vmem:[%s1 + $0x4a8] sm:$0xff]
  %v192 = vld [vmem:[%s1 + $0x4b0] sm:$0xff]
  %v193 = vld [vmem:[%s1 + $0x4b8] sm:$0xff]
  %v194 = vld [vmem:[%s1 + $0x4c0] sm:$0xff]
  %v195 = vld [vmem:[%s1 + $0x4c8] sm:$0xff]
  %v196 = vld [vmem:[%s1 + $0x4d0] sm:$0xff]
  %v197 = vld [vmem:[%s1 + $0x4d8] sm:$0xff]
  %v198 = vld [vmem:[%s1 + $0x4e0] sm:$0xff]
  %v199 = vld [vmem:[%s1 + $0x4e8] sm:$0xff]
  %v200 = vld [vmem:[%s1 + $0x4f0] sm:$0xff]
  %v201 = vld [vmem:[%s1 + $0x4f8] sm:$0xff]
  %v202 = vld [vmem:[%s1 + $0x500] sm:$0xff]
  %v203 = vld [vmem:[%s1 + $0x508] sm:$0xff]
  %v204 = vld [vmem:[%s1 + $0x510] sm:$0xff]
  %v205 = vld [vmem:[%s1 + $0x518] sm:$0xff]
  %v206 = vld [vmem:[%s1 + $0x520] sm:$0xff]
  %v207 = vld [vmem:[%s1 + $0x528] sm:$0xff]
  %v208 = vld [vmem:[%s1 + $0x530] sm:$0xff]
  %v209 = vld [vmem:[%s1 + $0x538] sm:$0xff]
  %v210 = vld [vmem:[%s1 + $0x540] sm:$0xff]
  %v211 = vld [vmem:[%s1 + $0x548] sm:$0xff]
  %v212 = vld [vmem:[%s1 + $0x550] sm:$0xff]
  %v213 = vld [vmem:[%s1 + $0x558] sm:$0xff]
  %v214 = vld [vmem:[%s1 + $0x560] sm:$0xff]
  %v215 = vld [vmem:[%s1 + $0x568] sm:$0xff]
  %v216 = vld [vmem:[%s1 + $0x570] sm:$0xff]
  %v217 = vld [vmem:[%s1 + $0x578] sm:$0xff]
  %v218 = vld [vmem:[%s1 + $0x580] sm:$0xff]
  %v219 = vld [vmem:[%s1 + $0x588] sm:$0xff]
  %v220 = vld [vmem:[%s1 + $0x590] sm:$0xff]
  %v221 = vld [vmem:[%s1 + $0x598] sm:$0xff]
  %v222 = vld [vmem:[%s1 + $0x5a0] sm:$0xff]
  %v223 = vld [vmem:[%s1 + $0x5a8] sm:$0xff]
  %v224 = vld [vmem:[%s1 + $0x5b0] sm:$0xff]
  %v225 = vld [vmem:[%s1 + $0x5b8] sm:$0xff]
  %v226 = vld [vmem:[%s1 + $0x5c0] sm:$0xff]
  %v227 = vld [vmem:[%s1 + $0x5c8] sm:$0xff]
  %v228 = vld [vmem:[%s1 + $0x5d0] sm:$0xff]
  %v229 = vld [vmem:[%s1 + $0x5d8] sm:$0xff]
  %v230 = vld [vmem:[%s1 + $0x5e0] sm:$0xff]
  %v231 = vld [vmem:[%s1 + $0x5e8] sm:$0xff]
  %v232 = vld [vmem:[%s1 + $0x5f0] sm:$0xff]
  %v233 = vld [vmem:[%s1 + $0x5f8] sm:$0xff]
  %v234 = vld [vmem:[%s1 + $0x600] sm:$0xff]
  %v235 = vld [vmem:[%s1 + $0x608] sm:$0xff]
  %v236 = vld [vmem:[%s1 + $0x610] sm:$0xff]
  %v237 = vld [vmem:[%s1 + $0x618] sm:$0xff]
  %v238 = vld [vmem:[%s1 + $0x620] sm:$0xff]
  %v239 = vld [vmem:[%s1 + $0x628] sm:$0xff]
  %v240 = vld [vmem:[%s1 + $0x630] sm:$0xff]
  %v241 = vld [vmem:[%s1 + $0x638] sm:$0xff]
  %v242 = vld [vmem:[%s1 + $0x640] sm:$0xff]
  %v243 = vld [vmem:[%s1 + $0x648] sm:$0xff]
  %v244 = vld [vmem:[%s1 + $0x650] sm:$0xff]
  %v245 = vld [vmem:[%s1 + $0x658] sm:$0xff]
  %v246 = vld [vmem:[%s1 + $0x660] sm:$0xff]
  %v247 = vld [vmem:[%s1 + $0x668] sm:$0xff]
  %v248 = vld [vmem:[%s1 + $0x670] sm:$0xff]
  %v249 = vld [vmem:[%s1 + $0x678] sm:$0xff]
  %v250 = vld [vmem:[%s1 + $0x680] sm:$0xff]
  %v251 = vld [vmem:[%s1 + $0x688] sm:$0xff]
  %v252 = vld [vmem:[%s1 + $0x690] sm:$0xff]
  %v253 = vld [vmem:[%s1 + $0x698] sm:$0xff]
  %v254 = vld [vmem:[%s1 + $0x6a0] sm:$0xff]
  %v255 = vld [vmem:[%s1 + $0x6a8] sm:$0xff]
  %v256 = vld [vmem:[%s1 + $0x6b0] sm:$0xff]
  %v257 = vld [vmem:[%s1 + $0x6b8] sm:$0xff]
  %v258 = vld [vmem:[%s1 + $0x6c0] sm:$0xff]
  %v259 = vld [vmem:[%s1 + $0x6c8] sm:$0xff]
  %v260 = vld [vmem:[%s1 + $0x6d0] sm:$0xff]
  %v261 = vld [vmem:[%s1 + $0x6d8] sm:$0xff]
  %v262 = vld [vmem:[%s1 + $0x6e0] sm:$0xff]
  %v263 = vld [vmem:[%s1 + $0x6e8] sm:$0xff]
  %v264 = vld [vmem:[%s1 + $0x6f0] sm:$0xff]
  %v265 = vld [vmem:[%s1 + $0x6f8] sm:$0xff]
  %v266 = vld [vmem:[%s1 + $0x700] sm:$0xff]
  %v267 = vld [vmem:[%s1 + $0x708] sm:$0xff]
  %v268 = vld [vmem:[%s1 + $0x710] sm:$0xff]
  %v269 = vld [vmem:[%s1 + $0x718] sm:$0xff]
  %v270 = vld [vmem:[%s1 + $0x720] sm:$0xff]
  %v271 = vld [vmem:[%s1 + $0x728] sm:$0xff]
  %v272 = vld [vmem:[%s1 + $0x730] sm:$0xff]
  %v273 = vld [vmem:[%s1 + $0x738] sm:$0xff]
  %v274 = vld [vmem:[%s1 + $0x740] sm:$0xff]
  %v275 = vld [vmem:[%s1 + $0x748] sm:$0xff]
  %v276 = vld [vmem:[%s1 + $0x750] sm:$0xff]
  %v277 = vld [vmem:[%s1 + $0x758] sm:$0xff]
  %v278 = vld [vmem:[%s1 + $0x760] sm:$0xff]
  %v279 = vld [vmem:[%s1 + $0x768] sm:$0xff]
  %v280 = vld [vmem:[%s1 + $0x770] sm:$0xff]
  %v281 = vld [vmem:[%s1 + $0x778] sm:$0xff]
  %v282 = vld [vmem:[%s1 + $0x780] sm:$0xff]
  %v283 = vld [vmem:[%s1 + $0x788] sm:$0xff]
  %v284 = vld [vmem:[%s1 + $0x790] sm:$0xff]
  %v285 = vld [vmem:[%s1 + $0x798] sm:$0xff]
  %v286 = vld [vmem:[%s1 + $0x7a0] sm:$0xff]
  %v287 = vld [vmem:[%s1 + $0x7a8] sm:$0xff]
  %v288 = vld [vmem:[%s1 + $0x7b0] sm:$0xff]
  %v289 = vld [vmem:[%s1 + $0x7b8] sm:$0xff]
  %v290 = vld [vmem:[%s1 + $0x7c0] sm:$0xff]
  %v291 = vld [vmem:[%s1 + $0x7c8] sm:$0xff]
  %v292 = vld [vmem:[%s1 + $0x7d0] sm:$0xff]
  %v293 = vld [vmem:[%s1 + $0x7d8] sm:$0xff]
  %v294 = vld [vmem:[%s1 + $0x7e0] sm:$0xff]
  %v295 = vld [vmem:[%s1 + $0x7e8] sm:$0xff]
  %v296 = vld [vmem:[%s1 + $0x7f0] sm:$0xff]
  %v297 = vld [vmem:[%s1 + $0x7f8] sm:$0xff]
  %v298 = vld [vmem:[%s1 + $0x800] sm:$0xff]
  %v299 = vld [vmem:[%s1 + $0x808] sm:$0xff]
  %v300 = vld [vmem:[%s1 + $0x810] sm:$0xff]
  %v301 = vld [vmem:[%s1 + $0x818] sm:$0xff]
  %v302 = vld [vmem:[%s1 + $0x820] sm:$0xff]
  %v303 = vld [vmem:[%s1 + $0x828] sm:$0xff]
  %v304 = vld [vmem:[%s1 + $0x830] sm:$0xff]
  %v305 = vld [vmem:[%s1 + $0x838] sm:$0xff]
  %v306 = vld [vmem:[%s1 + $0x840] sm:$0xff]
  %v307 = vld [vmem:[%s1 + $0x848] sm:$0xff]
  %v308 = vld [vmem:[%s1 + $0x850] sm:$0xff]
  %v309 = vld [vmem:[%s1 + $0x858] sm:$0xff]
  %v310 = vld [vmem:[%s1 + $0x860] sm:$0xff]
  %v311 = vld [vmem:[%s1 + $0x868] sm:$0xff]
  %v312 = vld [vmem:[%s1 + $0x870] sm:$0xff]
  %v313 = vld [vmem:[%s1 + $0x878] sm:$0xff]
  %v314 = vld [vmem:[%s1 + $0x880] sm:$0xff]
  %v315 = vld [vmem:[%s1 + $0x888] sm:$0xff]
  %v316 = vld [vmem:[%s1 + $0x890] sm:$0xff]
  %v317 = vld [vmem:[%s1 + $0x898] sm:$0xff]
  %v318 = vld [vmem:[%s1 + $0x8a0] sm:$0xff]
  %v319 = vld [vmem:[%s1 + $0x8a8] sm:$0xff]
  %v320 = vld [vmem:[%s1 + $0x8b0] sm:$0xff]
  %v321 = vld [vmem:[%s1 + $0x8b8] sm:$0xff]
  %v322 = vld [vmem:[%s1 + $0x8c0] sm:$0xff]
  %v323 = vld [vmem:[%s1 + $0x8c8] sm:$0xff]
  %v324 = vld [vmem:[%s1 + $0x8d0] sm:$0xff]
  %v325 = vld [vmem:[%s1 + $0x8d8] sm:$0xff]
  %v326 = vld [vmem:[%s1 + $0x8e0] sm:$0xff]
  %v327 = vld [vmem:[%s1 + $0x8e8] sm:$0xff]
  %v328 = vld [vmem:[%s1 + $0x8f0] sm:$0xff]
  %v329 = vld [vmem:[%s1 + $0x8f8] sm:$0xff]
  %v330 = vld [vmem:[%s1 + $0x900] sm:$0xff]
  %v331 = vld [vmem:[%s1 + $0x908] sm:$0xff]
  %v332 = vld [vmem:[%s1 + $0x910] sm:$0xff]
  %v333 = vld [vmem:[%s1 + $0x918] sm:$0xff]
  %v334 = vld [vmem:[%s1 + $0x920] sm:$0xff]
  %v335 = vld [vmem:[%s1 + $0x928] sm:$0xff]
  %v336 = vld [vmem:[%s1 + $0x930] sm:$0xff]
  %v337 = vld [vmem:[%s1 + $0x938] sm:$0xff]
  %v338 = vld [vmem:[%s1 + $0x940] sm:$0xff]
  %v339 = vld [vmem:[%s1 + $0x948] sm:$0xff]
  %v340 = vld [vmem:[%s1 + $0x950] sm:$0xff]
  %v341 = vld [vmem:[%s1 + $0x958] sm:$0xff]
  %v342 = vld [vmem:[%s1 + $0x960] sm:$0xff]
  %v343 = vld [vmem:[%s1 + $0x968] sm:$0xff]
  %v344 = vld [vmem:[%s1 + $0x970] sm:$0xff]
  %v345 = vld [vmem:[%s1 + $0x978] sm:$0xff]
  %v346 = vld [vmem:[%s1 + $0x980] sm:$0xff]
  %v347 = vld [vmem:[%s1 + $0x988] sm:$0xff]
  %v348 = vld [vmem:[%s1 + $0x990] sm:$0xff]
  %v349 = vld [vmem:[%s1 + $0x998] sm:$0xff]
  %v350 = vld [vmem:[%s1 + $0x9a0] sm:$0xff]
  %v351 = vld [vmem:[%s1 + $0x9a8] sm:$0xff]
  %v352 = vld [vmem:[%s1 + $0x9b0] sm:$0xff]
  %v353 = vld [vmem:[%s1 + $0x9b8] sm:$0xff]
  %v354 = vld [vmem:[%s1 + $0x9c0] sm:$0xff]
  %v355 = vld [vmem:[%s1 + $0x9c8] sm:$0xff]
  %v356 = vld [vmem:[%s1 + $0x9d0] sm:$0xff]
  %v357 = vld [vmem:[%s1 + $0x9d8] sm:$0xff]
  %v358 = vld [vmem:[%s1 + $0x9e0] sm:$0xff]
  %v359 = vld [vmem:[%s1 + $0x9e8] sm:$0xff]
  %v360 = vld [vmem:[%s1 + $0x9f0] sm:$0xff]
  %v361 = vld [vmem:[%s1 + $0x9f8] sm:$0xff]
  %v362 = vld [vmem:[%s1 + $0xa00] sm:$0xff]
  %v363 = vld [vmem:[%s1 + $0xa08] sm:$0xff]
  %v364 = vld [vmem:[%s1 + $0xa10] sm:$0xff]
  %v365 = vld [vmem:[%s1 + $0xa18] sm:$0xff]
  %v366 = vld [vmem:[%s1 + $0xa20] sm:$0xff]
  %v367 = vld [vmem:[%s1 + $0xa28] sm:$0xff]
  %v368 = vld [vmem:[%s1 + $0xa30] sm:$0xff]
  %v369 = vld [vmem:[%s1 + $0xa38] sm:$0xff]
  %v370 = vld [vmem:[%s1 + $0xa40] sm:$0xff]
  %v371 = vld [vmem:[%s1 + $0xa48] sm:$0xff]
  %v372 = vld [vmem:[%s1 + $0xa50] sm:$0xff]
  %v373 = vld [vmem:[%s1 + $0xa58] sm:$0xff]
  %v374 = vld [vmem:[%s1 + $0xa60] sm:$0xff]
  %v375 = vld [vmem:[%s1 + $0xa68] sm:$0xff]
  %v376 = vld [vmem:[%s1 + $0xa70] sm:$0xff]
  %v377 = vld [vmem:[%s1 + $0xa78] sm:$0xff]
  %v378 = vld [vmem:[%s1 + $0xa80] sm:$0xff]
  %v379 = vld [vmem:[%s1 + $0xa88] sm:$0xff]
  %v380 = vld [vmem:[%s1 + $0xa90] sm:$0xff]
  %v381 = vld [vmem:[%s1 + $0xa98] sm:$0xff]
  %v382 = vld [vmem:[%s1 + $0xaa0] sm:$0xff]
  %v383 = vld [vmem:[%s1 + $0xaa8] sm:$0xff]
  %v384 = vld [vmem:[%s1 + $0xab0] sm:$0xff]
  %v385 = vld [vmem:[%s1 + $0xab8] sm:$0xff]
  %v386 = vld [vmem:[%s1 + $0xac0] sm:$0xff]
  %v387 = vld [vmem:[%s1 + $0xac8] sm:$0xff]
  %v388 = vld [vmem:[%s1 + $0xad0] sm:$0xff]
  %v389 = vld [vmem:[%s1 + $0xad8] sm:$0xff]
  %v390 = vld [vmem:[%s1 + $0xae0] sm:$0xff]
  %v391 = vld [vmem:[%s1 + $0xae8] sm:$0xff]
  %v392 = vld [vmem:[%s1 + $0xaf0] sm:$0xff]
  %v393 = vld [vmem:[%s1 + $0xaf8] sm:$0xff]
  %v394 = vld [vmem:[%s1 + $0xb00] sm:$0xff]
  %v395 = vld [vmem:[%s1 + $0xb08] sm:$0xff]
  %v396 = vld [vmem:[%s1 + $0xb10] sm:$0xff]
  %v397 = vld [vmem:[%s1 + $0xb18] sm:$0xff]
  %v398 = vld [vmem:[%s1 + $0xb20] sm:$0xff]
  %v399 = vld [vmem:[%s1 + $0xb28] sm:$0xff]
  %v400 = vld [vmem:[%s1 + $0xb30] sm:$0xff]
  %v401 = vld [vmem:[%s1 + $0xb38] sm:$0xff]
  %v402 = vld [vmem:[%s1 + $0xb40] sm:$0xff]
  %v403 = vld [vmem:[%s1 + $0xb48] sm:$0xff]
  %v404 = vld [vmem:[%s1 + $0xb50] sm:$0xff]
  %v405 = vld [vmem:[%s1 + $0xb58] sm:$0xff]
  %v406 = vld [vmem:[%s1 + $0xb60] sm:$0xff]
  %v407 = vld [vmem:[%s1 + $0xb68] sm:$0xff]
  %v408 = vld [vmem:[%s1 + $0xb70] sm:$0xff]
  %v409 = vld [vmem:[%s1 + $0xb78] sm:$0xff]
  %v410 = vld [vmem:[%s1 + $0xb80] sm:$0xff]
  %v411 = vld [vmem:[%s1 + $0xb88] sm:$0xff]
  %v412 = vld [vmem:[%s1 + $0xb90] sm:$0xff]
  %v413 = vld [vmem:[%s1 + $0xb98] sm:$0xff]
  %v414 = vld [vmem:[%s1 + $0xba0] sm:$0xff]
  %v415 = vld [vmem:[%s1 + $0xba8] sm:$0xff]
  %v416 = vld [vmem:[%s1 + $0xbb0] sm:$0xff]
  %v417 = vld [vmem:[%s1 + $0xbb8] sm:$0xff]
  %v418 = vld [vmem:[%s1 + $0xbc0] sm:$0xff]
  %v419 = vld [vmem:[%s1 + $0xbc8] sm:$0xff]
  %v420 = vld [vmem:[%s1 + $0xbd0] sm:$0xff]
  %v421 = vld [vmem:[%s1 + $0xbd8] sm:$0xff]
  %v422 = vld [vmem:[%s1 + $0xbe0] sm:$0xff]
  %v423 = vld [vmem:[%s1 + $0xbe8] sm:$0xff]
  %v424 = vld [vmem:[%s1 + $0xbf0] sm:$0xff]
  %v425 = vld [vmem:[%s1 + $0xbf8] sm:$0xff]
  %v426 = vld [vmem:[%s1 + $0xc00] sm:$0xff]
  %v427 = vld [vmem:[%s1 + $0xc08] sm:$0xff]
  %v428 = vld [vmem:[%s1 + $0xc10] sm:$0xff]
  %v429 = vld [vmem:[%s1 + $0xc18] sm:$0xff]
  %v430 = vld [vmem:[%s1 + $0xc20] sm:$0xff]
  %v431 = vld [vmem:[%s1 + $0xc28] sm:$0xff]
  %v432 = vld [vmem:[%s1 + $0xc30] sm:$0xff]
  %v433 = vld [vmem:[%s1 + $0xc38] sm:$0xff]
  %v434 = vld [vmem:[%s1 + $0xc40] sm:$0xff]
  %v435 = vld [vmem:[%s1 + $0xc48] sm:$0xff]
  %v436 = vld [vmem:[%s1 + $0xc50] sm:$0xff]
  %v437 = vld [vmem:[%s1 + $0xc58] sm:$0xff]
  %v438 = vld [vmem:[%s1 + $0xc60] sm:$0xff]
  %v439 = vld [vmem:[%s1 + $0xc68] sm:$0xff]
  %v440 = vld [vmem:[%s1 + $0xc70] sm:$0xff]
  %v441 = vld [vmem:[%s1 + $0xc78] sm:$0xff]
  %v442 = vld [vmem:[%s1 + $0xc80] sm:$0xff]
  %v443 = vld [vmem:[%s1 + $0xc88] sm:$0xff]
  %v444 = vld [vmem:[%s1 + $0xc90] sm:$0xff]
  %v445 = vld [vmem:[%s1 + $0xc98] sm:$0xff]
  %v446 = vld [vmem:[%s1 + $0xca0] sm:$0xff]
  %v447 = vld [vmem:[%s1 + $0xca8] sm:$0xff]
  %v448 = vld [vmem:[%s1 + $0xcb0] sm:$0xff]
  %v449 = vld [vmem:[%s1 + $0xcb8] sm:$0xff]
  %v450 = vld [vmem:[%s1 + $0xcc0] sm:$0xff]
  %v451 = vld [vmem:[%s1 + $0xcc8] sm:$0xff]
  %v452 = vld [vmem:[%s1 + $0xcd0] sm:$0xff]
  %v453 = vld [vmem:[%s1 + $0xcd8] sm:$0xff]
  %v454 = vld [vmem:[%s1 + $0xce0] sm:$0xff]
  %v455 = vld [vmem:[%s1 + $0xce8] sm:$0xff]
  %v456 = vld [vmem:[%s1 + $0xcf0] sm:$0xff]
  %v457 = vld [vmem:[%s1 + $0xcf8] sm:$0xff]
  %v458 = vld [vmem:[%s1 + $0xd00] sm:$0xff]
  %v459 = vld [vmem:[%s1 + $0xd08] sm:$0xff]
  %v460 = vld [vmem:[%s1 + $0xd10] sm:$0xff]
  %v461 = vld [vmem:[%s1 + $0xd18] sm:$0xff]
  %v462 = vld [vmem:[%s1 + $0xd20] sm:$0xff]
  %v463 = vld [vmem:[%s1 + $0xd28] sm:$0xff]
  %v464 = vld [vmem:[%s1 + $0xd30] sm:$0xff]
  %v465 = vld [vmem:[%s1 + $0xd38] sm:$0xff]
  %v466 = vld [vmem:[%s1 + $0xd40] sm:$0xff]
  %v467 = vld [vmem:[%s1 + $0xd48] sm:$0xff]
  %v468 = vld [vmem:[%s1 + $0xd50] sm:$0xff]
  %v469 = vld [vmem:[%s1 + $0xd58] sm:$0xff]
  %v470 = vld [vmem:[%s1 + $0xd60] sm:$0xff]
  %v471 = vld [vmem:[%s1 + $0xd68] sm:$0xff]
  %v472 = vld [vmem:[%s1 + $0xd70] sm:$0xff]
  %v473 = vld [vmem:[%s1 + $0xd78] sm:$0xff]
  %v502 = vunpack.c.l.b16 %v14
  %v503 = vunpack.c.h.b16 %v14
  %v504 = vunpack.c.l.b16 %v15
  %v505 = vunpack.c.h.b16 %v15
  %v506 = vunpack.c.l.b16 %v16
  %v507 = vunpack.c.h.b16 %v16
  %v508 = vunpack.c.l.b16 %v17
  %v509 = vunpack.c.h.b16 %v17
  %v510 = vunpack.c.l.b16 %v18
  %v511 = vunpack.c.h.b16 %v18
  %v512 = vunpack.c.l.b16 %v19
  %v513 = vunpack.c.h.b16 %v19
  %v514 = vunpack.c.l.b16 %v20
  %v515 = vunpack.c.h.b16 %v20
  %v516 = vunpack.c.l.b16 %v21
  %v517 = vunpack.c.h.b16 %v21
  %v518 = vunpack.c.l.b16 %v22
  %v519 = vunpack.c.h.b16 %v22
  %v520 = vunpack.c.l.b16 %v23
  %v521 = vunpack.c.h.b16 %v23
  %v522 = vunpack.c.l.b16 %v24
  %v523 = vunpack.c.h.b16 %v24
  %v524 = vunpack.c.l.b16 %v25
  %v525 = vunpack.c.h.b16 %v25
  %v526 = vunpack.c.l.b16 %v26
  %v527 = vunpack.c.h.b16 %v26
  %v528 = vunpack.c.l.b16 %v27
  %v529 = vunpack.c.l.b16 %v28
  %v530 = vunpack.c.h.b16 %v28
  %v531 = vunpack.c.l.b16 %v29
  %v532 = vunpack.c.h.b16 %v29
  %v533 = vunpack.c.l.b16 %v30
  %v534 = vunpack.c.h.b16 %v30
  %v535 = vunpack.c.l.b16 %v31
  %v536 = vunpack.c.h.b16 %v31
  %v537 = vunpack.c.l.b16 %v32
  %v538 = vunpack.c.h.b16 %v32
  %v539 = vunpack.c.l.b16 %v33
  %v540 = vunpack.c.h.b16 %v33
  %v541 = vunpack.c.l.b16 %v34
  %v542 = vunpack.c.h.b16 %v34
  %v543 = vunpack.c.l.b16 %v35
  %v544 = vunpack.c.h.b16 %v35
  %v545 = vunpack.c.l.b16 %v36
  %v546 = vunpack.c.h.b16 %v36
  %v547 = vunpack.c.l.b16 %v37
  %v548 = vunpack.c.h.b16 %v37
  %v549 = vunpack.c.l.b16 %v38
  %v550 = vunpack.c.h.b16 %v38
  %v551 = vunpack.c.l.b16 %v39
  %v552 = vunpack.c.h.b16 %v39
  %v553 = vunpack.c.l.b16 %v40
  %v554 = vunpack.c.h.b16 %v40
  %v555 = vunpack.c.l.b16 %v41
  %v556 = vpack.c.b16 %v529, %v502
  %v557 = vpack.c.b16 %v530, %v503
  %v558 = vpack.c.b16 %v531, %v504
  %v559 = vpack.c.b16 %v532, %v505
  %v560 = vpack.c.b16 %v533, %v506
  %v561 = vpack.c.b16 %v534, %v507
  %v562 = vpack.c.b16 %v535, %v508
  %v563 = vpack.c.b16 %v536, %v509
  %v564 = vpack.c.b16 %v537, %v510
  %v565 = vpack.c.b16 %v538, %v511
  %v566 = vpack.c.b16 %v539, %v512
  %v567 = vpack.c.b16 %v540, %v513
  %v568 = vpack.c.b16 %v541, %v514
  %v569 = vpack.c.b16 %v542, %v515
  %v570 = vpack.c.b16 %v543, %v516
  %v571 = vpack.c.b16 %v544, %v517
  %v572 = vpack.c.b16 %v545, %v518
  %v573 = vpack.c.b16 %v546, %v519
  %v574 = vpack.c.b16 %v547, %v520
  %v575 = vpack.c.b16 %v548, %v521
  %v576 = vpack.c.b16 %v549, %v522
  %v577 = vpack.c.b16 %v550, %v523
  %v578 = vpack.c.b16 %v551, %v524
  %v579 = vpack.c.b16 %v552, %v525
  %v580 = vpack.c.b16 %v553, %v526
  %v581 = vpack.c.b16 %v554, %v527
  %v582 = vpack.c.b16 %v555, %v528
  %v1042 = vunpack.c.l.b16 %v42
  %v1043 = vunpack.c.h.b16 %v42
  %v1044 = vunpack.c.l.b16 %v43
  %v1045 = vunpack.c.h.b16 %v43
  %v1046 = vunpack.c.l.b16 %v44
  %v1047 = vunpack.c.h.b16 %v44
  %v1048 = vunpack.c.l.b16 %v45
  %v1049 = vunpack.c.h.b16 %v45
  %v1050 = vunpack.c.l.b16 %v46
  %v1051 = vunpack.c.h.b16 %v46
  %v1052 = vunpack.c.l.b16 %v47
  %v1053 = vunpack.c.h.b16 %v47
  %v1054 = vunpack.c.l.b16 %v48
  %v1055 = vunpack.c.h.b16 %v48
  %v1056 = vunpack.c.l.b16 %v49
  %v1057 = vunpack.c.h.b16 %v49
  %v1058 = vunpack.c.l.b16 %v50
  %v1059 = vunpack.c.h.b16 %v50
  %v1060 = vunpack.c.l.b16 %v51
  %v1061 = vunpack.c.h.b16 %v51
  %v1062 = vunpack.c.l.b16 %v52
  %v1063 = vunpack.c.h.b16 %v52
  %v1064 = vunpack.c.l.b16 %v53
  %v1065 = vunpack.c.h.b16 %v53
  %v1066 = vunpack.c.l.b16 %v54
  %v1067 = vunpack.c.h.b16 %v54
  %v1068 = vunpack.c.l.b16 %v55
  %v1069 = vunpack.c.h.b16 %v55
  %v1070 = vunpack.c.l.b16 %v56
  %v1071 = vunpack.c.h.b16 %v56
  %v1072 = vunpack.c.l.b16 %v57
  %v1073 = vunpack.c.h.b16 %v57
  %v1074 = vunpack.c.l.b16 %v58
  %v1075 = vunpack.c.h.b16 %v58
  %v1076 = vunpack.c.l.b16 %v59
  %v1077 = vunpack.c.h.b16 %v59
  %v1078 = vunpack.c.l.b16 %v60
  %v1079 = vunpack.c.h.b16 %v60
  %v1080 = vunpack.c.l.b16 %v61
  %v1081 = vunpack.c.h.b16 %v61
  %v1082 = vunpack.c.l.b16 %v62
  %v1083 = vunpack.c.h.b16 %v62
  %v1084 = vunpack.c.l.b16 %v63
  %v1085 = vunpack.c.h.b16 %v63
  %v1086 = vunpack.c.l.b16 %v64
  %v1087 = vunpack.c.h.b16 %v64
  %v1088 = vunpack.c.l.b16 %v65
  %v1089 = vunpack.c.h.b16 %v65
  %v1090 = vunpack.c.l.b16 %v66
  %v1091 = vunpack.c.h.b16 %v66
  %v1092 = vunpack.c.l.b16 %v67
  %v1093 = vunpack.c.h.b16 %v67
  %v1094 = vunpack.c.l.b16 %v68
  %v1095 = vunpack.c.h.b16 %v68
  %v1096 = vunpack.c.l.b16 %v69
  %v1097 = vunpack.c.h.b16 %v69
  %v1098 = vunpack.c.l.b16 %v70
  %v1099 = vunpack.c.h.b16 %v70
  %v1100 = vunpack.c.l.b16 %v71
  %v1101 = vunpack.c.h.b16 %v71
  %v1102 = vunpack.c.l.b16 %v72
  %v1103 = vunpack.c.h.b16 %v72
  %v1104 = vunpack.c.l.b16 %v73
  %v1105 = vunpack.c.h.b16 %v73
  %v1106 = vunpack.c.l.b16 %v74
  %v1107 = vunpack.c.h.b16 %v74
  %v1108 = vunpack.c.l.b16 %v75
  %v1109 = vunpack.c.h.b16 %v75
  %v1110 = vunpack.c.l.b16 %v76
  %v1111 = vunpack.c.h.b16 %v76
  %v1112 = vunpack.c.l.b16 %v77
  %v1113 = vunpack.c.h.b16 %v77
  %v1114 = vunpack.c.l.b16 %v78
  %v1115 = vunpack.c.h.b16 %v78
  %v1116 = vunpack.c.l.b16 %v79
  %v1117 = vunpack.c.h.b16 %v79
  %v1118 = vunpack.c.l.b16 %v80
  %v1119 = vunpack.c.h.b16 %v80
  %v1120 = vunpack.c.l.b16 %v81
  %v1121 = vunpack.c.h.b16 %v81
  %v1122 = vunpack.c.l.b16 %v82
  %v1123 = vunpack.c.h.b16 %v82
  %v1124 = vunpack.c.l.b16 %v83
  %v1125 = vunpack.c.h.b16 %v83
  %v1126 = vunpack.c.l.b16 %v84
  %v1127 = vunpack.c.h.b16 %v84
  %v1128 = vunpack.c.l.b16 %v85
  %v1129 = vunpack.c.h.b16 %v85
  %v1130 = vunpack.c.l.b16 %v86
  %v1131 = vunpack.c.h.b16 %v86
  %v1132 = vunpack.c.l.b16 %v87
  %v1133 = vunpack.c.h.b16 %v87
  %v1134 = vunpack.c.l.b16 %v88
  %v1135 = vunpack.c.h.b16 %v88
  %v1136 = vunpack.c.l.b16 %v89
  %v1137 = vunpack.c.h.b16 %v89
  %v1138 = vunpack.c.l.b16 %v90
  %v1139 = vunpack.c.h.b16 %v90
  %v1140 = vunpack.c.l.b16 %v91
  %v1141 = vunpack.c.h.b16 %v91
  %v1142 = vunpack.c.l.b16 %v92
  %v1143 = vunpack.c.h.b16 %v92
  %v1144 = vunpack.c.l.b16 %v93
  %v1145 = vunpack.c.h.b16 %v93
  %v1146 = vunpack.c.l.b16 %v94
  %v1147 = vunpack.c.h.b16 %v94
  %v1148 = vunpack.c.l.b16 %v95
  %v1149 = vunpack.c.h.b16 %v95
  %v1150 = vunpack.c.l.b16 %v96
  %v1151 = vunpack.c.h.b16 %v96
  %v1152 = vunpack.c.l.b16 %v97
  %v1153 = vunpack.c.h.b16 %v97
  %v1154 = vunpack.c.l.b16 %v98
  %v1155 = vunpack.c.h.b16 %v98
  %v1156 = vunpack.c.l.b16 %v99
  %v1157 = vunpack.c.h.b16 %v99
  %v1158 = vunpack.c.l.b16 %v100
  %v1159 = vunpack.c.h.b16 %v100
  %v1160 = vunpack.c.l.b16 %v101
  %v1161 = vunpack.c.h.b16 %v101
  %v1162 = vunpack.c.l.b16 %v102
  %v1163 = vunpack.c.h.b16 %v102
  %v1164 = vunpack.c.l.b16 %v103
  %v1165 = vunpack.c.h.b16 %v103
  %v1166 = vunpack.c.l.b16 %v104
  %v1167 = vunpack.c.h.b16 %v104
  %v1168 = vunpack.c.l.b16 %v105
  %v1169 = vunpack.c.h.b16 %v105
  %v1170 = vunpack.c.l.b16 %v106
  %v1171 = vunpack.c.h.b16 %v106
  %v1172 = vunpack.c.l.b16 %v107
  %v1173 = vunpack.c.h.b16 %v107
  %v1174 = vunpack.c.l.b16 %v108
  %v1175 = vunpack.c.h.b16 %v108
  %v1176 = vunpack.c.l.b16 %v109
  %v1177 = vunpack.c.h.b16 %v109
  %v1178 = vunpack.c.l.b16 %v110
  %v1179 = vunpack.c.h.b16 %v110
  %v1180 = vunpack.c.l.b16 %v111
  %v1181 = vunpack.c.h.b16 %v111
  %v1182 = vunpack.c.l.b16 %v112
  %v1183 = vunpack.c.h.b16 %v112
  %v1184 = vunpack.c.l.b16 %v113
  %v1185 = vunpack.c.h.b16 %v113
  %v1186 = vunpack.c.l.b16 %v114
  %v1187 = vunpack.c.h.b16 %v114
  %v1188 = vunpack.c.l.b16 %v115
  %v1189 = vunpack.c.h.b16 %v115
  %v1190 = vunpack.c.l.b16 %v116
  %v1191 = vunpack.c.h.b16 %v116
  %v1192 = vunpack.c.l.b16 %v117
  %v1193 = vunpack.c.h.b16 %v117
  %v1194 = vunpack.c.l.b16 %v118
  %v1195 = vunpack.c.h.b16 %v118
  %v1196 = vunpack.c.l.b16 %v119
  %v1197 = vunpack.c.h.b16 %v119
  %v1198 = vunpack.c.l.b16 %v120
  %v1199 = vunpack.c.h.b16 %v120
  %v1200 = vunpack.c.l.b16 %v121
  %v1201 = vunpack.c.h.b16 %v121
  %v1202 = vunpack.c.l.b16 %v122
  %v1203 = vunpack.c.h.b16 %v122
  %v1204 = vunpack.c.l.b16 %v123
  %v1205 = vunpack.c.h.b16 %v123
  %v1206 = vunpack.c.l.b16 %v124
  %v1207 = vunpack.c.h.b16 %v124
  %v1208 = vunpack.c.l.b16 %v125
  %v1209 = vunpack.c.h.b16 %v125
  %v1210 = vunpack.c.l.b16 %v126
  %v1211 = vunpack.c.h.b16 %v126
  %v1212 = vunpack.c.l.b16 %v127
  %v1213 = vunpack.c.h.b16 %v127
  %v1214 = vunpack.c.l.b16 %v128
  %v1215 = vunpack.c.h.b16 %v128
  %v1216 = vunpack.c.l.b16 %v129
  %v1217 = vunpack.c.h.b16 %v129
  %v1218 = vunpack.c.l.b16 %v130
  %v1219 = vunpack.c.h.b16 %v130
  %v1220 = vunpack.c.l.b16 %v131
  %v1221 = vunpack.c.h.b16 %v131
  %v1222 = vunpack.c.l.b16 %v132
  %v1223 = vunpack.c.h.b16 %v132
  %v1224 = vunpack.c.l.b16 %v133
  %v1225 = vunpack.c.h.b16 %v133
  %v1226 = vunpack.c.l.b16 %v134
  %v1227 = vunpack.c.h.b16 %v134
  %v1228 = vunpack.c.l.b16 %v135
  %v1229 = vunpack.c.h.b16 %v135
  %v1230 = vunpack.c.l.b16 %v136
  %v1231 = vunpack.c.h.b16 %v136
  %v1232 = vunpack.c.l.b16 %v137
  %v1233 = vunpack.c.h.b16 %v137
  %v1234 = vunpack.c.l.b16 %v138
  %v1235 = vunpack.c.h.b16 %v138
  %v1236 = vunpack.c.l.b16 %v139
  %v1237 = vunpack.c.h.b16 %v139
  %v1238 = vunpack.c.l.b16 %v140
  %v1239 = vunpack.c.h.b16 %v140
  %v1240 = vunpack.c.l.b16 %v141
  %v1241 = vunpack.c.h.b16 %v141
  %v1242 = vunpack.c.l.b16 %v142
  %v1243 = vunpack.c.h.b16 %v142
  %v1244 = vunpack.c.l.b16 %v143
  %v1245 = vunpack.c.h.b16 %v143
  %v1246 = vunpack.c.l.b16 %v144
  %v1247 = vunpack.c.h.b16 %v144
  %v1248 = vunpack.c.l.b16 %v145
  %v1249 = vunpack.c.h.b16 %v145
  %v1250 = vunpack.c.l.b16 %v146
  %v1251 = vunpack.c.h.b16 %v146
  %v1252 = vunpack.c.l.b16 %v147
  %v1253 = vunpack.c.h.b16 %v147
  %v1254 = vunpack.c.l.b16 %v148
  %v1255 = vunpack.c.h.b16 %v148
  %v1256 = vunpack.c.l.b16 %v149
  %v1257 = vunpack.c.h.b16 %v149
  %v1258 = vunpack.c.l.b16 %v150
  %v1259 = vunpack.c.h.b16 %v150
  %v1260 = vunpack.c.l.b16 %v151
  %v1261 = vunpack.c.h.b16 %v151
  %v1262 = vunpack.c.l.b16 %v152
  %v1263 = vunpack.c.h.b16 %v152
  %v1264 = vunpack.c.l.b16 %v153
  %v1265 = vunpack.c.h.b16 %v153
  %v1266 = vunpack.c.l.b16 %v154
  %v1267 = vunpack.c.h.b16 %v154
  %v1268 = vunpack.c.l.b16 %v155
  %v1269 = vunpack.c.h.b16 %v155
  %v1270 = vunpack.c.l.b16 %v156
  %v1271 = vunpack.c.h.b16 %v156
  %v1272 = vunpack.c.l.b16 %v157
  %v1273 = vunpack.c.h.b16 %v157
  %v1274 = vunpack.c.l.b16 %v158
  %v1275 = vunpack.c.h.b16 %v158
  %v1276 = vunpack.c.l.b16 %v159
  %v1277 = vunpack.c.h.b16 %v159
  %v1278 = vunpack.c.l.b16 %v160
  %v1279 = vunpack.c.h.b16 %v160
  %v1280 = vunpack.c.l.b16 %v161
  %v1281 = vunpack.c.h.b16 %v161
  %v1282 = vunpack.c.l.b16 %v162
  %v1283 = vunpack.c.h.b16 %v162
  %v1284 = vunpack.c.l.b16 %v163
  %v1285 = vunpack.c.h.b16 %v163
  %v1286 = vunpack.c.l.b16 %v164
  %v1287 = vunpack.c.h.b16 %v164
  %v1288 = vunpack.c.l.b16 %v165
  %v1289 = vunpack.c.h.b16 %v165
  %v1290 = vunpack.c.l.b16 %v166
  %v1291 = vunpack.c.h.b16 %v166
  %v1292 = vunpack.c.l.b16 %v167
  %v1293 = vunpack.c.h.b16 %v167
  %v1294 = vunpack.c.l.b16 %v168
  %v1295 = vunpack.c.h.b16 %v168
  %v1296 = vunpack.c.l.b16 %v169
  %v1297 = vunpack.c.h.b16 %v169
  %v1298 = vunpack.c.l.b16 %v170
  %v1299 = vunpack.c.h.b16 %v170
  %v1300 = vunpack.c.l.b16 %v171
  %v1301 = vunpack.c.h.b16 %v171
  %v1302 = vunpack.c.l.b16 %v172
  %v1303 = vunpack.c.h.b16 %v172
  %v1304 = vunpack.c.l.b16 %v173
  %v1305 = vunpack.c.h.b16 %v173
  %v1306 = vunpack.c.l.b16 %v174
  %v1307 = vunpack.c.h.b16 %v174
  %v1308 = vunpack.c.l.b16 %v175
  %v1309 = vunpack.c.h.b16 %v175
  %v1310 = vunpack.c.l.b16 %v176
  %v1311 = vunpack.c.h.b16 %v176
  %v1312 = vunpack.c.l.b16 %v177
  %v1313 = vunpack.c.h.b16 %v177
  %v1314 = vunpack.c.l.b16 %v178
  %v1315 = vunpack.c.h.b16 %v178
  %v1316 = vunpack.c.l.b16 %v179
  %v1317 = vunpack.c.h.b16 %v179
  %v1318 = vunpack.c.l.b16 %v180
  %v1319 = vunpack.c.h.b16 %v180
  %v1320 = vunpack.c.l.b16 %v181
  %v1321 = vunpack.c.h.b16 %v181
  %v1322 = vunpack.c.l.b16 %v182
  %v1323 = vunpack.c.h.b16 %v182
  %v1324 = vunpack.c.l.b16 %v183
  %v1325 = vunpack.c.h.b16 %v183
  %v1326 = vunpack.c.l.b16 %v184
  %v1327 = vunpack.c.h.b16 %v184
  %v1328 = vunpack.c.l.b16 %v185
  %v1329 = vunpack.c.h.b16 %v185
  %v1330 = vunpack.c.l.b16 %v186
  %v1331 = vunpack.c.h.b16 %v186
  %v1332 = vunpack.c.l.b16 %v187
  %v1333 = vunpack.c.h.b16 %v187
  %v1334 = vunpack.c.l.b16 %v188
  %v1335 = vunpack.c.h.b16 %v188
  %v1336 = vunpack.c.l.b16 %v189
  %v1337 = vunpack.c.h.b16 %v189
  %v1338 = vunpack.c.l.b16 %v190
  %v1339 = vunpack.c.h.b16 %v190
  %v1340 = vunpack.c.l.b16 %v191
  %v1341 = vunpack.c.h.b16 %v191
  %v1342 = vunpack.c.l.b16 %v192
  %v1343 = vunpack.c.h.b16 %v192
  %v1344 = vunpack.c.l.b16 %v193
  %v1345 = vunpack.c.h.b16 %v193
  %v1346 = vunpack.c.l.b16 %v194
  %v1347 = vunpack.c.h.b16 %v194
  %v1348 = vunpack.c.l.b16 %v195
  %v1349 = vunpack.c.h.b16 %v195
  %v1350 = vunpack.c.l.b16 %v196
  %v1351 = vunpack.c.h.b16 %v196
  %v1352 = vunpack.c.l.b16 %v197
  %v1353 = vunpack.c.h.b16 %v197
  %v1354 = vunpack.c.l.b16 %v198
  %v1355 = vunpack.c.h.b16 %v198
  %v1356 = vunpack.c.l.b16 %v199
  %v1357 = vunpack.c.h.b16 %v199
  %v1358 = vunpack.c.l.b16 %v200
  %v1359 = vunpack.c.h.b16 %v200
  %v1360 = vunpack.c.l.b16 %v201
  %v1361 = vunpack.c.h.b16 %v201
  %v1362 = vunpack.c.l.b16 %v202
  %v1363 = vunpack.c.h.b16 %v202
  %v1364 = vunpack.c.l.b16 %v203
  %v1365 = vunpack.c.h.b16 %v203
  %v1366 = vunpack.c.l.b16 %v204
  %v1367 = vunpack.c.h.b16 %v204
  %v1368 = vunpack.c.l.b16 %v205
  %v1369 = vunpack.c.h.b16 %v205
  %v1370 = vunpack.c.l.b16 %v206
  %v1371 = vunpack.c.h.b16 %v206
  %v1372 = vunpack.c.l.b16 %v207
  %v1373 = vunpack.c.h.b16 %v207
  %v1374 = vunpack.c.l.b16 %v208
  %v1375 = vunpack.c.h.b16 %v208
  %v1376 = vunpack.c.l.b16 %v209
  %v1377 = vunpack.c.h.b16 %v209
  %v1378 = vunpack.c.l.b16 %v210
  %v1379 = vunpack.c.h.b16 %v210
  %v1380 = vunpack.c.l.b16 %v211
  %v1381 = vunpack.c.h.b16 %v211
  %v1382 = vunpack.c.l.b16 %v212
  %v1383 = vunpack.c.h.b16 %v212
  %v1384 = vunpack.c.l.b16 %v213
  %v1385 = vunpack.c.h.b16 %v213
  %v1386 = vunpack.c.l.b16 %v214
  %v1387 = vunpack.c.h.b16 %v214
  %v1388 = vunpack.c.l.b16 %v215
  %v1389 = vunpack.c.h.b16 %v215
  %v1390 = vunpack.c.l.b16 %v216
  %v1391 = vunpack.c.h.b16 %v216
  %v1392 = vunpack.c.l.b16 %v217
  %v1393 = vunpack.c.h.b16 %v217
  %v1394 = vunpack.c.l.b16 %v218
  %v1395 = vunpack.c.h.b16 %v218
  %v1396 = vunpack.c.l.b16 %v219
  %v1397 = vunpack.c.h.b16 %v219
  %v1398 = vunpack.c.l.b16 %v220
  %v1399 = vunpack.c.h.b16 %v220
  %v1400 = vunpack.c.l.b16 %v221
  %v1401 = vunpack.c.h.b16 %v221
  %v1402 = vunpack.c.l.b16 %v222
  %v1403 = vunpack.c.h.b16 %v222
  %v1404 = vunpack.c.l.b16 %v223
  %v1405 = vunpack.c.h.b16 %v223
  %v1406 = vunpack.c.l.b16 %v224
  %v1407 = vunpack.c.h.b16 %v224
  %v1408 = vunpack.c.l.b16 %v225
  %v1409 = vunpack.c.h.b16 %v225
  %v1410 = vunpack.c.l.b16 %v226
  %v1411 = vunpack.c.h.b16 %v226
  %v1412 = vunpack.c.l.b16 %v227
  %v1413 = vunpack.c.h.b16 %v227
  %v1414 = vunpack.c.l.b16 %v228
  %v1415 = vunpack.c.h.b16 %v228
  %v1416 = vunpack.c.l.b16 %v229
  %v1417 = vunpack.c.h.b16 %v229
  %v1418 = vunpack.c.l.b16 %v230
  %v1419 = vunpack.c.h.b16 %v230
  %v1420 = vunpack.c.l.b16 %v231
  %v1421 = vunpack.c.h.b16 %v231
  %v1422 = vunpack.c.l.b16 %v232
  %v1423 = vunpack.c.h.b16 %v232
  %v1424 = vunpack.c.l.b16 %v233
  %v1425 = vunpack.c.h.b16 %v233
  %v1426 = vunpack.c.l.b16 %v234
  %v1427 = vunpack.c.h.b16 %v234
  %v1428 = vunpack.c.l.b16 %v235
  %v1429 = vunpack.c.h.b16 %v235
  %v1430 = vunpack.c.l.b16 %v236
  %v1431 = vunpack.c.h.b16 %v236
  %v1432 = vunpack.c.l.b16 %v237
  %v1433 = vunpack.c.h.b16 %v237
  %v1434 = vunpack.c.l.b16 %v238
  %v1435 = vunpack.c.h.b16 %v238
  %v1436 = vunpack.c.l.b16 %v239
  %v1437 = vunpack.c.h.b16 %v239
  %v1438 = vunpack.c.l.b16 %v240
  %v1439 = vunpack.c.h.b16 %v240
  %v1440 = vunpack.c.l.b16 %v241
  %v1441 = vunpack.c.h.b16 %v241
  %v1442 = vunpack.c.l.b16 %v242
  %v1443 = vunpack.c.h.b16 %v242
  %v1444 = vunpack.c.l.b16 %v243
  %v1445 = vunpack.c.h.b16 %v243
  %v1446 = vunpack.c.l.b16 %v244
  %v1447 = vunpack.c.h.b16 %v244
  %v1448 = vunpack.c.l.b16 %v245
  %v1449 = vunpack.c.h.b16 %v245
  %v1450 = vunpack.c.l.b16 %v246
  %v1451 = vunpack.c.h.b16 %v246
  %v1452 = vunpack.c.l.b16 %v247
  %v1453 = vunpack.c.h.b16 %v247
  %v1454 = vunpack.c.l.b16 %v248
  %v1455 = vunpack.c.h.b16 %v248
  %v1456 = vunpack.c.l.b16 %v249
  %v1457 = vunpack.c.h.b16 %v249
  %v1458 = vunpack.c.l.b16 %v250
  %v1459 = vunpack.c.h.b16 %v250
  %v1460 = vunpack.c.l.b16 %v251
  %v1461 = vunpack.c.h.b16 %v251
  %v1462 = vunpack.c.l.b16 %v252
  %v1463 = vunpack.c.h.b16 %v252
  %v1464 = vunpack.c.l.b16 %v253
  %v1465 = vunpack.c.h.b16 %v253
  %v1466 = vunpack.c.l.b16 %v254
  %v1467 = vunpack.c.h.b16 %v254
  %v1468 = vunpack.c.l.b16 %v255
  %v1469 = vunpack.c.h.b16 %v255
  %v1470 = vunpack.c.l.b16 %v256
  %v1471 = vunpack.c.h.b16 %v256
  %v1472 = vunpack.c.l.b16 %v257
  %v1473 = vunpack.c.h.b16 %v257
  %v1474 = vunpack.c.l.b16 %v258
  %v1475 = vunpack.c.h.b16 %v258
  %v1476 = vunpack.c.l.b16 %v259
  %v1477 = vunpack.c.h.b16 %v259
  %v1478 = vunpack.c.l.b16 %v260
  %v1479 = vunpack.c.h.b16 %v260
  %v1480 = vunpack.c.l.b16 %v261
  %v1481 = vunpack.c.h.b16 %v261
  %v1482 = vunpack.c.l.b16 %v262
  %v1483 = vunpack.c.h.b16 %v262
  %v1484 = vunpack.c.l.b16 %v263
  %v1485 = vunpack.c.h.b16 %v263
  %v1486 = vunpack.c.l.b16 %v264
  %v1487 = vunpack.c.h.b16 %v264
  %v1488 = vunpack.c.l.b16 %v265
  %v1489 = vunpack.c.h.b16 %v265
  %v1490 = vunpack.c.l.b16 %v266
  %v1491 = vunpack.c.h.b16 %v266
  %v1492 = vunpack.c.l.b16 %v267
  %v1493 = vunpack.c.h.b16 %v267
  %v1494 = vunpack.c.l.b16 %v268
  %v1495 = vunpack.c.h.b16 %v268
  %v1496 = vunpack.c.l.b16 %v269
  %v1497 = vunpack.c.h.b16 %v269
  %v1498 = vunpack.c.l.b16 %v270
  %v1499 = vunpack.c.h.b16 %v270
  %v1500 = vunpack.c.l.b16 %v271
  %v1501 = vunpack.c.h.b16 %v271
  %v1502 = vunpack.c.l.b16 %v272
  %v1503 = vunpack.c.h.b16 %v272
  %v1504 = vunpack.c.l.b16 %v273
  %v1505 = vunpack.c.h.b16 %v273
  %v1506 = vunpack.c.l.b16 %v274
  %v1507 = vunpack.c.h.b16 %v274
  %v1508 = vunpack.c.l.b16 %v275
  %v1509 = vunpack.c.h.b16 %v275
  %v1510 = vunpack.c.l.b16 %v276
  %v1511 = vunpack.c.h.b16 %v276
  %v1512 = vunpack.c.l.b16 %v277
  %v1513 = vunpack.c.h.b16 %v277
  %v1514 = vunpack.c.l.b16 %v278
  %v1515 = vunpack.c.h.b16 %v278
  %v1516 = vunpack.c.l.b16 %v279
  %v1517 = vunpack.c.h.b16 %v279
  %v1518 = vunpack.c.l.b16 %v280
  %v1519 = vunpack.c.h.b16 %v280
  %v1520 = vunpack.c.l.b16 %v281
  %v1521 = vunpack.c.h.b16 %v281
  %v1522 = vunpack.c.l.b16 %v282
  %v1523 = vunpack.c.h.b16 %v282
  %v1524 = vunpack.c.l.b16 %v283
  %v1525 = vunpack.c.h.b16 %v283
  %v1526 = vunpack.c.l.b16 %v284
  %v1527 = vunpack.c.h.b16 %v284
  %v1528 = vunpack.c.l.b16 %v285
  %v1529 = vunpack.c.h.b16 %v285
  %v1530 = vunpack.c.l.b16 %v286
  %v1531 = vunpack.c.h.b16 %v286
  %v1532 = vunpack.c.l.b16 %v287
  %v1533 = vunpack.c.h.b16 %v287
  %v1534 = vunpack.c.l.b16 %v288
  %v1535 = vunpack.c.h.b16 %v288
  %v1536 = vunpack.c.l.b16 %v289
  %v1537 = vunpack.c.h.b16 %v289
  %v1538 = vunpack.c.l.b16 %v290
  %v1539 = vunpack.c.h.b16 %v290
  %v1540 = vunpack.c.l.b16 %v291
  %v1541 = vunpack.c.h.b16 %v291
  %v1542 = vunpack.c.l.b16 %v292
  %v1543 = vunpack.c.h.b16 %v292
  %v1544 = vunpack.c.l.b16 %v293
  %v1545 = vunpack.c.h.b16 %v293
  %v1546 = vunpack.c.l.b16 %v294
  %v1547 = vunpack.c.h.b16 %v294
  %v1548 = vunpack.c.l.b16 %v295
  %v1549 = vunpack.c.h.b16 %v295
  %v1550 = vunpack.c.l.b16 %v296
  %v1551 = vunpack.c.h.b16 %v296
  %v1552 = vunpack.c.l.b16 %v297
  %v1553 = vunpack.c.h.b16 %v297
  %v1554 = vunpack.c.l.b16 %v298
  %v1555 = vunpack.c.h.b16 %v298
  %v1556 = vunpack.c.l.b16 %v299
  %v1557 = vunpack.c.h.b16 %v299
  %v1558 = vunpack.c.l.b16 %v300
  %v1559 = vunpack.c.h.b16 %v300
  %v1560 = vunpack.c.l.b16 %v301
  %v1561 = vunpack.c.h.b16 %v301
  %v1562 = vunpack.c.l.b16 %v302
  %v1563 = vunpack.c.h.b16 %v302
  %v1564 = vunpack.c.l.b16 %v303
  %v1565 = vunpack.c.h.b16 %v303
  %v1566 = vunpack.c.l.b16 %v304
  %v1567 = vunpack.c.h.b16 %v304
  %v1568 = vunpack.c.l.b16 %v305
  %v1569 = vunpack.c.h.b16 %v305
  %v1570 = vunpack.c.l.b16 %v306
  %v1571 = vunpack.c.h.b16 %v306
  %v1572 = vunpack.c.l.b16 %v307
  %v1573 = vunpack.c.h.b16 %v307
  %v1574 = vunpack.c.l.b16 %v308
  %v1575 = vunpack.c.h.b16 %v308
  %v1576 = vunpack.c.l.b16 %v309
  %v1577 = vunpack.c.h.b16 %v309
  %v1578 = vunpack.c.l.b16 %v310
  %v1579 = vunpack.c.h.b16 %v310
  %v1580 = vunpack.c.l.b16 %v311
  %v1581 = vunpack.c.h.b16 %v311
  %v1582 = vunpack.c.l.b16 %v312
  %v1583 = vunpack.c.h.b16 %v312
  %v1584 = vunpack.c.l.b16 %v313
  %v1585 = vunpack.c.h.b16 %v313
  %v1586 = vunpack.c.l.b16 %v314
  %v1587 = vunpack.c.h.b16 %v314
  %v1588 = vunpack.c.l.b16 %v315
  %v1589 = vunpack.c.h.b16 %v315
  %v1590 = vunpack.c.l.b16 %v316
  %v1591 = vunpack.c.h.b16 %v316
  %v1592 = vunpack.c.l.b16 %v317
  %v1593 = vunpack.c.h.b16 %v317
  %v1594 = vunpack.c.l.b16 %v318
  %v1595 = vunpack.c.h.b16 %v318
  %v1596 = vunpack.c.l.b16 %v319
  %v1597 = vunpack.c.h.b16 %v319
  %v1598 = vunpack.c.l.b16 %v320
  %v1599 = vunpack.c.h.b16 %v320
  %v1600 = vunpack.c.l.b16 %v321
  %v1601 = vunpack.c.h.b16 %v321
  %v1602 = vunpack.c.l.b16 %v322
  %v1603 = vunpack.c.h.b16 %v322
  %v1604 = vunpack.c.l.b16 %v323
  %v1605 = vunpack.c.h.b16 %v323
  %v1606 = vunpack.c.l.b16 %v324
  %v1607 = vunpack.c.h.b16 %v324
  %v1608 = vunpack.c.l.b16 %v325
  %v1609 = vunpack.c.h.b16 %v325
  %v1610 = vunpack.c.l.b16 %v326
  %v1611 = vunpack.c.h.b16 %v326
  %v1612 = vunpack.c.l.b16 %v327
  %v1613 = vunpack.c.h.b16 %v327
  %v1614 = vunpack.c.l.b16 %v328
  %v1615 = vunpack.c.h.b16 %v328
  %v1616 = vunpack.c.l.b16 %v329
  %v1617 = vunpack.c.h.b16 %v329
  %v1618 = vunpack.c.l.b16 %v330
  %v1619 = vunpack.c.h.b16 %v330
  %v1620 = vunpack.c.l.b16 %v331
  %v1621 = vunpack.c.h.b16 %v331
  %v1622 = vunpack.c.l.b16 %v332
  %v1623 = vunpack.c.h.b16 %v332
  %v1624 = vunpack.c.l.b16 %v333
  %v1625 = vunpack.c.h.b16 %v333
  %v1626 = vunpack.c.l.b16 %v334
  %v1627 = vunpack.c.h.b16 %v334
  %v1628 = vunpack.c.l.b16 %v335
  %v1629 = vunpack.c.h.b16 %v335
  %v1630 = vunpack.c.l.b16 %v336
  %v1631 = vunpack.c.h.b16 %v336
  %v1632 = vunpack.c.l.b16 %v337
  %v1633 = vunpack.c.h.b16 %v337
  %v1634 = vunpack.c.l.b16 %v338
  %v1635 = vunpack.c.h.b16 %v338
  %v1636 = vunpack.c.l.b16 %v339
  %v1637 = vunpack.c.h.b16 %v339
  %v1638 = vunpack.c.l.b16 %v340
  %v1639 = vunpack.c.h.b16 %v340
  %v1640 = vunpack.c.l.b16 %v341
  %v1641 = vunpack.c.h.b16 %v341
  %v1642 = vunpack.c.l.b16 %v342
  %v1643 = vunpack.c.h.b16 %v342
  %v1644 = vunpack.c.l.b16 %v343
  %v1645 = vunpack.c.h.b16 %v343
  %v1646 = vunpack.c.l.b16 %v344
  %v1647 = vunpack.c.h.b16 %v344
  %v1648 = vunpack.c.l.b16 %v345
  %v1649 = vunpack.c.h.b16 %v345
  %v1650 = vunpack.c.l.b16 %v346
  %v1651 = vunpack.c.h.b16 %v346
  %v1652 = vunpack.c.l.b16 %v347
  %v1653 = vunpack.c.h.b16 %v347
  %v1654 = vunpack.c.l.b16 %v348
  %v1655 = vunpack.c.h.b16 %v348
  %v1656 = vunpack.c.l.b16 %v349
  %v1657 = vunpack.c.h.b16 %v349
  %v1658 = vunpack.c.l.b16 %v350
  %v1659 = vunpack.c.h.b16 %v350
  %v1660 = vunpack.c.l.b16 %v351
  %v1661 = vunpack.c.h.b16 %v351
  %v1662 = vunpack.c.l.b16 %v352
  %v1663 = vunpack.c.h.b16 %v352
  %v1664 = vunpack.c.l.b16 %v353
  %v1665 = vunpack.c.h.b16 %v353
  %v1666 = vunpack.c.l.b16 %v354
  %v1667 = vunpack.c.h.b16 %v354
  %v1668 = vunpack.c.l.b16 %v355
  %v1669 = vunpack.c.h.b16 %v355
  %v1670 = vunpack.c.l.b16 %v356
  %v1671 = vunpack.c.h.b16 %v356
  %v1672 = vunpack.c.l.b16 %v357
  %v1673 = vunpack.c.h.b16 %v357
  %v1674 = vunpack.c.l.b16 %v358
  %v1675 = vunpack.c.h.b16 %v358
  %v1676 = vunpack.c.l.b16 %v359
  %v1677 = vunpack.c.h.b16 %v359
  %v1678 = vunpack.c.l.b16 %v360
  %v1679 = vunpack.c.h.b16 %v360
  %v1680 = vunpack.c.l.b16 %v361
  %v1681 = vunpack.c.h.b16 %v361
  %v1682 = vunpack.c.l.b16 %v362
  %v1683 = vunpack.c.h.b16 %v362
  %v1684 = vunpack.c.l.b16 %v363
  %v1685 = vunpack.c.h.b16 %v363
  %v1686 = vunpack.c.l.b16 %v364
  %v1687 = vunpack.c.h.b16 %v364
  %v1688 = vunpack.c.l.b16 %v365
  %v1689 = vunpack.c.h.b16 %v365
  %v1690 = vunpack.c.l.b16 %v366
  %v1691 = vunpack.c.h.b16 %v366
  %v1692 = vunpack.c.l.b16 %v367
  %v1693 = vunpack.c.h.b16 %v367
  %v1694 = vunpack.c.l.b16 %v368
  %v1695 = vunpack.c.h.b16 %v368
  %v1696 = vunpack.c.l.b16 %v369
  %v1697 = vunpack.c.h.b16 %v369
  %v1698 = vunpack.c.l.b16 %v370
  %v1699 = vunpack.c.h.b16 %v370
  %v1700 = vunpack.c.l.b16 %v371
  %v1701 = vunpack.c.h.b16 %v371
  %v1702 = vunpack.c.l.b16 %v372
  %v1703 = vunpack.c.h.b16 %v372
  %v1704 = vunpack.c.l.b16 %v373
  %v1705 = vunpack.c.h.b16 %v373
  %v1706 = vunpack.c.l.b16 %v374
  %v1707 = vunpack.c.h.b16 %v374
  %v1708 = vunpack.c.l.b16 %v375
  %v1709 = vunpack.c.h.b16 %v375
  %v1710 = vunpack.c.l.b16 %v376
  %v1711 = vunpack.c.h.b16 %v376
  %v1712 = vunpack.c.l.b16 %v377
  %v1713 = vunpack.c.h.b16 %v377
  %v1714 = vunpack.c.l.b16 %v378
  %v1715 = vunpack.c.h.b16 %v378
  %v1716 = vunpack.c.l.b16 %v379
  %v1717 = vunpack.c.h.b16 %v379
  %v1718 = vunpack.c.l.b16 %v380
  %v1719 = vunpack.c.h.b16 %v380
  %v1720 = vunpack.c.l.b16 %v381
  %v1721 = vunpack.c.h.b16 %v381
  %v1722 = vunpack.c.l.b16 %v382
  %v1723 = vunpack.c.h.b16 %v382
  %v1724 = vunpack.c.l.b16 %v383
  %v1725 = vunpack.c.h.b16 %v383
  %v1726 = vunpack.c.l.b16 %v384
  %v1727 = vunpack.c.h.b16 %v384
  %v1728 = vunpack.c.l.b16 %v385
  %v1729 = vunpack.c.h.b16 %v385
  %v1730 = vunpack.c.l.b16 %v386
  %v1731 = vunpack.c.h.b16 %v386
  %v1732 = vunpack.c.l.b16 %v387
  %v1733 = vunpack.c.h.b16 %v387
  %v1734 = vunpack.c.l.b16 %v388
  %v1735 = vunpack.c.h.b16 %v388
  %v1736 = vunpack.c.l.b16 %v389
  %v1737 = vunpack.c.h.b16 %v389
  %v1738 = vunpack.c.l.b16 %v390
  %v1739 = vunpack.c.h.b16 %v390
  %v1740 = vunpack.c.l.b16 %v391
  %v1741 = vunpack.c.h.b16 %v391
  %v1742 = vunpack.c.l.b16 %v392
  %v1743 = vunpack.c.h.b16 %v392
  %v1744 = vunpack.c.l.b16 %v393
  %v1745 = vunpack.c.h.b16 %v393
  %v1746 = vunpack.c.l.b16 %v394
  %v1747 = vunpack.c.h.b16 %v394
  %v1748 = vunpack.c.l.b16 %v395
  %v1749 = vunpack.c.h.b16 %v395
  %v1750 = vunpack.c.l.b16 %v396
  %v1751 = vunpack.c.h.b16 %v396
  %v1752 = vunpack.c.l.b16 %v397
  %v1753 = vunpack.c.h.b16 %v397
  %v1754 = vunpack.c.l.b16 %v398
  %v1755 = vunpack.c.h.b16 %v398
  %v1756 = vunpack.c.l.b16 %v399
  %v1757 = vunpack.c.h.b16 %v399
  %v1758 = vunpack.c.l.b16 %v400
  %v1759 = vunpack.c.h.b16 %v400
  %v1760 = vunpack.c.l.b16 %v401
  %v1761 = vunpack.c.h.b16 %v401
  %v1762 = vunpack.c.l.b16 %v402
  %v1763 = vunpack.c.h.b16 %v402
  %v1764 = vunpack.c.l.b16 %v403
  %v1765 = vunpack.c.h.b16 %v403
  %v1766 = vunpack.c.l.b16 %v404
  %v1767 = vunpack.c.h.b16 %v404
  %v1768 = vunpack.c.l.b16 %v405
  %v1769 = vunpack.c.h.b16 %v405
  %v1770 = vunpack.c.l.b16 %v406
  %v1771 = vunpack.c.h.b16 %v406
  %v1772 = vunpack.c.l.b16 %v407
  %v1773 = vunpack.c.h.b16 %v407
  %v1774 = vunpack.c.l.b16 %v408
  %v1775 = vunpack.c.h.b16 %v408
  %v1776 = vunpack.c.l.b16 %v409
  %v1777 = vunpack.c.h.b16 %v409
  %v1778 = vunpack.c.l.b16 %v410
  %v1779 = vunpack.c.h.b16 %v410
  %v1780 = vunpack.c.l.b16 %v411
  %v1781 = vunpack.c.h.b16 %v411
  %v1782 = vunpack.c.l.b16 %v412
  %v1783 = vunpack.c.h.b16 %v412
  %v1784 = vunpack.c.l.b16 %v413
  %v1785 = vunpack.c.h.b16 %v413
  %v1786 = vunpack.c.l.b16 %v414
  %v1787 = vunpack.c.h.b16 %v414
  %v1788 = vunpack.c.l.b16 %v415
  %v1789 = vunpack.c.h.b16 %v415
  %v1790 = vunpack.c.l.b16 %v416
  %v1791 = vunpack.c.h.b16 %v416
  %v1792 = vunpack.c.l.b16 %v417
  %v1793 = vunpack.c.h.b16 %v417
  %v1794 = vunpack.c.l.b16 %v418
  %v1795 = vunpack.c.h.b16 %v418
  %v1796 = vunpack.c.l.b16 %v419
  %v1797 = vunpack.c.h.b16 %v419
  %v1798 = vunpack.c.l.b16 %v420
  %v1799 = vunpack.c.h.b16 %v420
  %v1800 = vunpack.c.l.b16 %v421
  %v1801 = vunpack.c.h.b16 %v421
  %v1802 = vunpack.c.l.b16 %v422
  %v1803 = vunpack.c.h.b16 %v422
  %v1804 = vunpack.c.l.b16 %v423
  %v1805 = vunpack.c.h.b16 %v423
  %v1806 = vunpack.c.l.b16 %v424
  %v1807 = vunpack.c.h.b16 %v424
  %v1808 = vunpack.c.l.b16 %v425
  %v1809 = vunpack.c.h.b16 %v425
  %v1810 = vunpack.c.l.b16 %v426
  %v1811 = vunpack.c.h.b16 %v426
  %v1812 = vunpack.c.l.b16 %v427
  %v1813 = vunpack.c.h.b16 %v427
  %v1814 = vunpack.c.l.b16 %v428
  %v1815 = vunpack.c.h.b16 %v428
  %v1816 = vunpack.c.l.b16 %v429
  %v1817 = vunpack.c.h.b16 %v429
  %v1818 = vunpack.c.l.b16 %v430
  %v1819 = vunpack.c.h.b16 %v430
  %v1820 = vunpack.c.l.b16 %v431
  %v1821 = vunpack.c.h.b16 %v431
  %v1822 = vunpack.c.l.b16 %v432
  %v1823 = vunpack.c.h.b16 %v432
  %v1824 = vunpack.c.l.b16 %v433
  %v1825 = vunpack.c.h.b16 %v433
  %v1826 = vunpack.c.l.b16 %v434
  %v1827 = vunpack.c.h.b16 %v434
  %v1828 = vunpack.c.l.b16 %v435
  %v1829 = vunpack.c.h.b16 %v435
  %v1830 = vunpack.c.l.b16 %v436
  %v1831 = vunpack.c.h.b16 %v436
  %v1832 = vunpack.c.l.b16 %v437
  %v1833 = vunpack.c.h.b16 %v437
  %v1834 = vunpack.c.l.b16 %v438
  %v1835 = vunpack.c.h.b16 %v438
  %v1836 = vunpack.c.l.b16 %v439
  %v1837 = vunpack.c.h.b16 %v439
  %v1838 = vunpack.c.l.b16 %v440
  %v1839 = vunpack.c.h.b16 %v440
  %v1840 = vunpack.c.l.b16 %v441
  %v1841 = vunpack.c.h.b16 %v441
  %v1842 = vunpack.c.l.b16 %v442
  %v1843 = vunpack.c.h.b16 %v442
  %v1844 = vunpack.c.l.b16 %v443
  %v1845 = vunpack.c.h.b16 %v443
  %v1846 = vunpack.c.l.b16 %v444
  %v1847 = vunpack.c.h.b16 %v444
  %v1848 = vunpack.c.l.b16 %v445
  %v1849 = vunpack.c.h.b16 %v445
  %v1850 = vunpack.c.l.b16 %v446
  %v1851 = vunpack.c.h.b16 %v446
  %v1852 = vunpack.c.l.b16 %v447
  %v1853 = vunpack.c.h.b16 %v447
  %v1854 = vunpack.c.l.b16 %v448
  %v1855 = vunpack.c.h.b16 %v448
  %v1856 = vunpack.c.l.b16 %v449
  %v1857 = vunpack.c.h.b16 %v449
  %v1858 = vunpack.c.l.b16 %v450
  %v1859 = vunpack.c.h.b16 %v450
  %v1860 = vunpack.c.l.b16 %v451
  %v1861 = vunpack.c.h.b16 %v451
  %v1862 = vunpack.c.l.b16 %v452
  %v1863 = vunpack.c.h.b16 %v452
  %v1864 = vunpack.c.l.b16 %v453
  %v1865 = vunpack.c.h.b16 %v453
  %v1866 = vunpack.c.l.b16 %v454
  %v1867 = vunpack.c.h.b16 %v454
  %v1868 = vunpack.c.l.b16 %v455
  %v1869 = vunpack.c.h.b16 %v455
  %v1870 = vunpack.c.l.b16 %v456
  %v1871 = vunpack.c.h.b16 %v456
  %v1872 = vunpack.c.l.b16 %v457
  %v1873 = vunpack.c.h.b16 %v457
  %v1874 = vunpack.c.l.b16 %v458
  %v1875 = vunpack.c.h.b16 %v458
  %v1876 = vunpack.c.l.b16 %v459
  %v1877 = vunpack.c.h.b16 %v459
  %v1878 = vunpack.c.l.b16 %v460
  %v1879 = vunpack.c.h.b16 %v460
  %v1880 = vunpack.c.l.b16 %v461
  %v1881 = vunpack.c.h.b16 %v461
  %v1882 = vunpack.c.l.b16 %v462
  %v1883 = vunpack.c.h.b16 %v462
  %v1884 = vunpack.c.l.b16 %v463
  %v1885 = vunpack.c.h.b16 %v463
  %v1886 = vunpack.c.l.b16 %v464
  %v1887 = vunpack.c.h.b16 %v464
  %v1888 = vunpack.c.l.b16 %v465
  %v1889 = vunpack.c.h.b16 %v465
  %v1890 = vunpack.c.l.b16 %v466
  %v1891 = vunpack.c.h.b16 %v466
  %v1892 = vunpack.c.l.b16 %v467
  %v1893 = vunpack.c.h.b16 %v467
  %v1894 = vunpack.c.l.b16 %v468
  %v1895 = vunpack.c.h.b16 %v468
  %v1896 = vunpack.c.l.b16 %v469
  %v1897 = vunpack.c.h.b16 %v469
  %v1898 = vunpack.c.l.b16 %v470
  %v1899 = vunpack.c.h.b16 %v470
  %v1900 = vunpack.c.l.b16 %v471
  %v1901 = vunpack.c.h.b16 %v471
  %v1902 = vunpack.c.l.b16 %v472
  %v1903 = vunpack.c.h.b16 %v472
  %v1904 = vunpack.c.l.b16 %v473
  %v1905 = vunpack.c.h.b16 %v473
  %v1906 = vpack.c.b16 %v1044, %v1042
  %v1907 = vpack.c.b16 %v1045, %v1043
  %v1908 = vpack.c.b16 %v1048, %v1046
  %v1909 = vpack.c.b16 %v1049, %v1047
  %v1910 = vpack.c.b16 %v1052, %v1050
  %v1911 = vpack.c.b16 %v1053, %v1051
  %v1912 = vpack.c.b16 %v1056, %v1054
  %v1913 = vpack.c.b16 %v1057, %v1055
  %v1914 = vpack.c.b16 %v1060, %v1058
  %v1915 = vpack.c.b16 %v1061, %v1059
  %v1916 = vpack.c.b16 %v1064, %v1062
  %v1917 = vpack.c.b16 %v1065, %v1063
  %v1918 = vpack.c.b16 %v1068, %v1066
  %v1919 = vpack.c.b16 %v1069, %v1067
  %v1920 = vpack.c.b16 %v1072, %v1070
  %v1921 = vpack.c.b16 %v1073, %v1071
  %v1922 = vpack.c.b16 %v1076, %v1074
  %v1923 = vpack.c.b16 %v1077, %v1075
  %v1924 = vpack.c.b16 %v1080, %v1078
  %v1925 = vpack.c.b16 %v1081, %v1079
  %v1926 = vpack.c.b16 %v1084, %v1082
  %v1927 = vpack.c.b16 %v1085, %v1083
  %v1928 = vpack.c.b16 %v1088, %v1086
  %v1929 = vpack.c.b16 %v1089, %v1087
  %v1930 = vpack.c.b16 %v1092, %v1090
  %v1931 = vpack.c.b16 %v1093, %v1091
  %v1932 = vpack.c.b16 %v1096, %v1094
  %v1933 = vpack.c.b16 %v1097, %v1095
  %v1934 = vpack.c.b16 %v1100, %v1098
  %v1935 = vpack.c.b16 %v1101, %v1099
  %v1936 = vpack.c.b16 %v1104, %v1102
  %v1937 = vpack.c.b16 %v1105, %v1103
  %v1938 = vpack.c.b16 %v1108, %v1106
  %v1939 = vpack.c.b16 %v1109, %v1107
  %v1940 = vpack.c.b16 %v1112, %v1110
  %v1941 = vpack.c.b16 %v1113, %v1111
  %v1942 = vpack.c.b16 %v1116, %v1114
  %v1943 = vpack.c.b16 %v1117, %v1115
  %v1944 = vpack.c.b16 %v1120, %v1118
  %v1945 = vpack.c.b16 %v1121, %v1119
  %v1946 = vpack.c.b16 %v1124, %v1122
  %v1947 = vpack.c.b16 %v1125, %v1123
  %v1948 = vpack.c.b16 %v1128, %v1126
  %v1949 = vpack.c.b16 %v1129, %v1127
  %v1950 = vpack.c.b16 %v1132, %v1130
  %v1951 = vpack.c.b16 %v1133, %v1131
  %v1952 = vpack.c.b16 %v1136, %v1134
  %v1953 = vpack.c.b16 %v1137, %v1135
  %v1954 = vpack.c.b16 %v1140, %v1138
  %v1955 = vpack.c.b16 %v1141, %v1139
  %v1956 = vpack.c.b16 %v1144, %v1142
  %v1957 = vpack.c.b16 %v1145, %v1143
  %v1958 = vpack.c.b16 %v1148, %v1146
  %v1959 = vpack.c.b16 %v1149, %v1147
  %v1960 = vpack.c.b16 %v1152, %v1150
  %v1961 = vpack.c.b16 %v1153, %v1151
  %v1962 = vpack.c.b16 %v1156, %v1154
  %v1963 = vpack.c.b16 %v1157, %v1155
  %v1964 = vpack.c.b16 %v1160, %v1158
  %v1965 = vpack.c.b16 %v1161, %v1159
  %v1966 = vpack.c.b16 %v1164, %v1162
  %v1967 = vpack.c.b16 %v1165, %v1163
  %v1968 = vpack.c.b16 %v1168, %v1166
  %v1969 = vpack.c.b16 %v1169, %v1167
  %v1970 = vpack.c.b16 %v1172, %v1170
  %v1971 = vpack.c.b16 %v1173, %v1171
  %v1972 = vpack.c.b16 %v1176, %v1174
  %v1973 = vpack.c.b16 %v1177, %v1175
  %v1974 = vpack.c.b16 %v1180, %v1178
  %v1975 = vpack.c.b16 %v1181, %v1179
  %v1976 = vpack.c.b16 %v1184, %v1182
  %v1977 = vpack.c.b16 %v1185, %v1183
  %v1978 = vpack.c.b16 %v1188, %v1186
  %v1979 = vpack.c.b16 %v1189, %v1187
  %v1980 = vpack.c.b16 %v1192, %v1190
  %v1981 = vpack.c.b16 %v1193, %v1191
  %v1982 = vpack.c.b16 %v1196, %v1194
  %v1983 = vpack.c.b16 %v1197, %v1195
  %v1984 = vpack.c.b16 %v1200, %v1198
  %v1985 = vpack.c.b16 %v1201, %v1199
  %v1986 = vpack.c.b16 %v1204, %v1202
  %v1987 = vpack.c.b16 %v1205, %v1203
  %v1988 = vpack.c.b16 %v1208, %v1206
  %v1989 = vpack.c.b16 %v1209, %v1207
  %v1990 = vpack.c.b16 %v1212, %v1210
  %v1991 = vpack.c.b16 %v1213, %v1211
  %v1992 = vpack.c.b16 %v1216, %v1214
  %v1993 = vpack.c.b16 %v1217, %v1215
  %v1994 = vpack.c.b16 %v1220, %v1218
  %v1995 = vpack.c.b16 %v1221, %v1219
  %v1996 = vpack.c.b16 %v1224, %v1222
  %v1997 = vpack.c.b16 %v1225, %v1223
  %v1998 = vpack.c.b16 %v1228, %v1226
  %v1999 = vpack.c.b16 %v1229, %v1227
  %v2000 = vpack.c.b16 %v1232, %v1230
  %v2001 = vpack.c.b16 %v1233, %v1231
  %v2002 = vpack.c.b16 %v1236, %v1234
  %v2003 = vpack.c.b16 %v1237, %v1235
  %v2004 = vpack.c.b16 %v1240, %v1238
  %v2005 = vpack.c.b16 %v1241, %v1239
  %v2006 = vpack.c.b16 %v1244, %v1242
  %v2007 = vpack.c.b16 %v1245, %v1243
  %v2008 = vpack.c.b16 %v1248, %v1246
  %v2009 = vpack.c.b16 %v1249, %v1247
  %v2010 = vpack.c.b16 %v1252, %v1250
  %v2011 = vpack.c.b16 %v1253, %v1251
  %v2012 = vpack.c.b16 %v1256, %v1254
  %v2013 = vpack.c.b16 %v1257, %v1255
  %v2014 = vpack.c.b16 %v1260, %v1258
  %v2015 = vpack.c.b16 %v1261, %v1259
  %v2016 = vpack.c.b16 %v1264, %v1262
  %v2017 = vpack.c.b16 %v1265, %v1263
  %v2018 = vpack.c.b16 %v1268, %v1266
  %v2019 = vpack.c.b16 %v1269, %v1267
  %v2020 = vpack.c.b16 %v1272, %v1270
  %v2021 = vpack.c.b16 %v1273, %v1271
  %v2022 = vpack.c.b16 %v1276, %v1274
  %v2023 = vpack.c.b16 %v1277, %v1275
  %v2024 = vpack.c.b16 %v1280, %v1278
  %v2025 = vpack.c.b16 %v1281, %v1279
  %v2026 = vpack.c.b16 %v1284, %v1282
  %v2027 = vpack.c.b16 %v1285, %v1283
  %v2028 = vpack.c.b16 %v1288, %v1286
  %v2029 = vpack.c.b16 %v1289, %v1287
  %v2030 = vpack.c.b16 %v1292, %v1290
  %v2031 = vpack.c.b16 %v1293, %v1291
  %v2032 = vpack.c.b16 %v1296, %v1294
  %v2033 = vpack.c.b16 %v1297, %v1295
  %v2034 = vpack.c.b16 %v1300, %v1298
  %v2035 = vpack.c.b16 %v1301, %v1299
  %v2036 = vpack.c.b16 %v1304, %v1302
  %v2037 = vpack.c.b16 %v1305, %v1303
  %v2038 = vpack.c.b16 %v1308, %v1306
  %v2039 = vpack.c.b16 %v1309, %v1307
  %v2040 = vpack.c.b16 %v1312, %v1310
  %v2041 = vpack.c.b16 %v1313, %v1311
  %v2042 = vpack.c.b16 %v1316, %v1314
  %v2043 = vpack.c.b16 %v1317, %v1315
  %v2044 = vpack.c.b16 %v1320, %v1318
  %v2045 = vpack.c.b16 %v1321, %v1319
  %v2046 = vpack.c.b16 %v1324, %v1322
  %v2047 = vpack.c.b16 %v1325, %v1323
  %v2048 = vpack.c.b16 %v1328, %v1326
  %v2049 = vpack.c.b16 %v1329, %v1327
  %v2050 = vpack.c.b16 %v1332, %v1330
  %v2051 = vpack.c.b16 %v1333, %v1331
  %v2052 = vpack.c.b16 %v1336, %v1334
  %v2053 = vpack.c.b16 %v1337, %v1335
  %v2054 = vpack.c.b16 %v1340, %v1338
  %v2055 = vpack.c.b16 %v1341, %v1339
  %v2056 = vpack.c.b16 %v1344, %v1342
  %v2057 = vpack.c.b16 %v1345, %v1343
  %v2058 = vpack.c.b16 %v1348, %v1346
  %v2059 = vpack.c.b16 %v1349, %v1347
  %v2060 = vpack.c.b16 %v1352, %v1350
  %v2061 = vpack.c.b16 %v1353, %v1351
  %v2062 = vpack.c.b16 %v1356, %v1354
  %v2063 = vpack.c.b16 %v1357, %v1355
  %v2064 = vpack.c.b16 %v1360, %v1358
  %v2065 = vpack.c.b16 %v1361, %v1359
  %v2066 = vpack.c.b16 %v1364, %v1362
  %v2067 = vpack.c.b16 %v1365, %v1363
  %v2068 = vpack.c.b16 %v1368, %v1366
  %v2069 = vpack.c.b16 %v1369, %v1367
  %v2070 = vpack.c.b16 %v1372, %v1370
  %v2071 = vpack.c.b16 %v1373, %v1371
  %v2072 = vpack.c.b16 %v1376, %v1374
  %v2073 = vpack.c.b16 %v1377, %v1375
  %v2074 = vpack.c.b16 %v1380, %v1378
  %v2075 = vpack.c.b16 %v1381, %v1379
  %v2076 = vpack.c.b16 %v1384, %v1382
  %v2077 = vpack.c.b16 %v1385, %v1383
  %v2078 = vpack.c.b16 %v1388, %v1386
  %v2079 = vpack.c.b16 %v1389, %v1387
  %v2080 = vpack.c.b16 %v1392, %v1390
  %v2081 = vpack.c.b16 %v1393, %v1391
  %v2082 = vpack.c.b16 %v1396, %v1394
  %v2083 = vpack.c.b16 %v1397, %v1395
  %v2084 = vpack.c.b16 %v1400, %v1398
  %v2085 = vpack.c.b16 %v1401, %v1399
  %v2086 = vpack.c.b16 %v1404, %v1402
  %v2087 = vpack.c.b16 %v1405, %v1403
  %v2088 = vpack.c.b16 %v1408, %v1406
  %v2089 = vpack.c.b16 %v1409, %v1407
  %v2090 = vpack.c.b16 %v1412, %v1410
  %v2091 = vpack.c.b16 %v1413, %v1411
  %v2092 = vpack.c.b16 %v1416, %v1414
  %v2093 = vpack.c.b16 %v1417, %v1415
  %v2094 = vpack.c.b16 %v1420, %v1418
  %v2095 = vpack.c.b16 %v1421, %v1419
  %v2096 = vpack.c.b16 %v1424, %v1422
  %v2097 = vpack.c.b16 %v1425, %v1423
  %v2098 = vpack.c.b16 %v1428, %v1426
  %v2099 = vpack.c.b16 %v1429, %v1427
  %v2100 = vpack.c.b16 %v1432, %v1430
  %v2101 = vpack.c.b16 %v1433, %v1431
  %v2102 = vpack.c.b16 %v1436, %v1434
  %v2103 = vpack.c.b16 %v1437, %v1435
  %v2104 = vpack.c.b16 %v1440, %v1438
  %v2105 = vpack.c.b16 %v1441, %v1439
  %v2106 = vpack.c.b16 %v1444, %v1442
  %v2107 = vpack.c.b16 %v1445, %v1443
  %v2108 = vpack.c.b16 %v1448, %v1446
  %v2109 = vpack.c.b16 %v1449, %v1447
  %v2110 = vpack.c.b16 %v1452, %v1450
  %v2111 = vpack.c.b16 %v1453, %v1451
  %v2112 = vpack.c.b16 %v1456, %v1454
  %v2113 = vpack.c.b16 %v1457, %v1455
  %v2114 = vpack.c.b16 %v1460, %v1458
  %v2115 = vpack.c.b16 %v1461, %v1459
  %v2116 = vpack.c.b16 %v1464, %v1462
  %v2117 = vpack.c.b16 %v1465, %v1463
  %v2118 = vpack.c.b16 %v1468, %v1466
  %v2119 = vpack.c.b16 %v1469, %v1467
  %v2120 = vpack.c.b16 %v1472, %v1470
  %v2121 = vpack.c.b16 %v1473, %v1471
  %v2122 = vpack.c.b16 %v1476, %v1474
  %v2123 = vpack.c.b16 %v1477, %v1475
  %v2124 = vpack.c.b16 %v1480, %v1478
  %v2125 = vpack.c.b16 %v1481, %v1479
  %v2126 = vpack.c.b16 %v1484, %v1482
  %v2127 = vpack.c.b16 %v1485, %v1483
  %v2128 = vpack.c.b16 %v1488, %v1486
  %v2129 = vpack.c.b16 %v1489, %v1487
  %v2130 = vpack.c.b16 %v1492, %v1490
  %v2131 = vpack.c.b16 %v1493, %v1491
  %v2132 = vpack.c.b16 %v1496, %v1494
  %v2133 = vpack.c.b16 %v1497, %v1495
  %v2134 = vpack.c.b16 %v1500, %v1498
  %v2135 = vpack.c.b16 %v1501, %v1499
  %v2136 = vpack.c.b16 %v1504, %v1502
  %v2137 = vpack.c.b16 %v1505, %v1503
  %v2138 = vpack.c.b16 %v1508, %v1506
  %v2139 = vpack.c.b16 %v1509, %v1507
  %v2140 = vpack.c.b16 %v1512, %v1510
  %v2141 = vpack.c.b16 %v1513, %v1511
  %v2142 = vpack.c.b16 %v1516, %v1514
  %v2143 = vpack.c.b16 %v1517, %v1515
  %v2144 = vpack.c.b16 %v1520, %v1518
  %v2145 = vpack.c.b16 %v1521, %v1519
  %v2146 = vpack.c.b16 %v1524, %v1522
  %v2147 = vpack.c.b16 %v1525, %v1523
  %v2148 = vpack.c.b16 %v1528, %v1526
  %v2149 = vpack.c.b16 %v1529, %v1527
  %v2150 = vpack.c.b16 %v1532, %v1530
  %v2151 = vpack.c.b16 %v1533, %v1531
  %v2152 = vpack.c.b16 %v1536, %v1534
  %v2153 = vpack.c.b16 %v1537, %v1535
  %v2154 = vpack.c.b16 %v1540, %v1538
  %v2155 = vpack.c.b16 %v1541, %v1539
  %v2156 = vpack.c.b16 %v1544, %v1542
  %v2157 = vpack.c.b16 %v1545, %v1543
  %v2158 = vpack.c.b16 %v1548, %v1546
  %v2159 = vpack.c.b16 %v1549, %v1547
  %v2160 = vpack.c.b16 %v1552, %v1550
  %v2161 = vpack.c.b16 %v1553, %v1551
  %v2162 = vpack.c.b16 %v1556, %v1554
  %v2163 = vpack.c.b16 %v1557, %v1555
  %v2164 = vpack.c.b16 %v1560, %v1558
  %v2165 = vpack.c.b16 %v1561, %v1559
  %v2166 = vpack.c.b16 %v1564, %v1562
  %v2167 = vpack.c.b16 %v1565, %v1563
  %v2168 = vpack.c.b16 %v1568, %v1566
  %v2169 = vpack.c.b16 %v1569, %v1567
  %v2170 = vpack.c.b16 %v1572, %v1570
  %v2171 = vpack.c.b16 %v1573, %v1571
  %v2172 = vpack.c.b16 %v1576, %v1574
  %v2173 = vpack.c.b16 %v1577, %v1575
  %v2174 = vpack.c.b16 %v1580, %v1578
  %v2175 = vpack.c.b16 %v1581, %v1579
  %v2176 = vpack.c.b16 %v1584, %v1582
  %v2177 = vpack.c.b16 %v1585, %v1583
  %v2178 = vpack.c.b16 %v1588, %v1586
  %v2179 = vpack.c.b16 %v1589, %v1587
  %v2180 = vpack.c.b16 %v1592, %v1590
  %v2181 = vpack.c.b16 %v1593, %v1591
  %v2182 = vpack.c.b16 %v1596, %v1594
  %v2183 = vpack.c.b16 %v1597, %v1595
  %v2184 = vpack.c.b16 %v1600, %v1598
  %v2185 = vpack.c.b16 %v1601, %v1599
  %v2186 = vpack.c.b16 %v1604, %v1602
  %v2187 = vpack.c.b16 %v1605, %v1603
  %v2188 = vpack.c.b16 %v1608, %v1606
  %v2189 = vpack.c.b16 %v1609, %v1607
  %v2190 = vpack.c.b16 %v1612, %v1610
  %v2191 = vpack.c.b16 %v1613, %v1611
  %v2192 = vpack.c.b16 %v1616, %v1614
  %v2193 = vpack.c.b16 %v1617, %v1615
  %v2194 = vpack.c.b16 %v1620, %v1618
  %v2195 = vpack.c.b16 %v1621, %v1619
  %v2196 = vpack.c.b16 %v1624, %v1622
  %v2197 = vpack.c.b16 %v1625, %v1623
  %v2198 = vpack.c.b16 %v1628, %v1626
  %v2199 = vpack.c.b16 %v1629, %v1627
  %v2200 = vpack.c.b16 %v1632, %v1630
  %v2201 = vpack.c.b16 %v1633, %v1631
  %v2202 = vpack.c.b16 %v1636, %v1634
  %v2203 = vpack.c.b16 %v1637, %v1635
  %v2204 = vpack.c.b16 %v1640, %v1638
  %v2205 = vpack.c.b16 %v1641, %v1639
  %v2206 = vpack.c.b16 %v1644, %v1642
  %v2207 = vpack.c.b16 %v1645, %v1643
  %v2208 = vpack.c.b16 %v1648, %v1646
  %v2209 = vpack.c.b16 %v1649, %v1647
  %v2210 = vpack.c.b16 %v1652, %v1650
  %v2211 = vpack.c.b16 %v1653, %v1651
  %v2212 = vpack.c.b16 %v1656, %v1654
  %v2213 = vpack.c.b16 %v1657, %v1655
  %v2214 = vpack.c.b16 %v1660, %v1658
  %v2215 = vpack.c.b16 %v1661, %v1659
  %v2216 = vpack.c.b16 %v1664, %v1662
  %v2217 = vpack.c.b16 %v1665, %v1663
  %v2218 = vpack.c.b16 %v1668, %v1666
  %v2219 = vpack.c.b16 %v1669, %v1667
  %v2220 = vpack.c.b16 %v1672, %v1670
  %v2221 = vpack.c.b16 %v1673, %v1671
  %v2222 = vpack.c.b16 %v1676, %v1674
  %v2223 = vpack.c.b16 %v1677, %v1675
  %v2224 = vpack.c.b16 %v1680, %v1678
  %v2225 = vpack.c.b16 %v1681, %v1679
  %v2226 = vpack.c.b16 %v1684, %v1682
  %v2227 = vpack.c.b16 %v1685, %v1683
  %v2228 = vpack.c.b16 %v1688, %v1686
  %v2229 = vpack.c.b16 %v1689, %v1687
  %v2230 = vpack.c.b16 %v1692, %v1690
  %v2231 = vpack.c.b16 %v1693, %v1691
  %v2232 = vpack.c.b16 %v1696, %v1694
  %v2233 = vpack.c.b16 %v1697, %v1695
  %v2234 = vpack.c.b16 %v1700, %v1698
  %v2235 = vpack.c.b16 %v1701, %v1699
  %v2236 = vpack.c.b16 %v1704, %v1702
  %v2237 = vpack.c.b16 %v1705, %v1703
  %v2238 = vpack.c.b16 %v1708, %v1706
  %v2239 = vpack.c.b16 %v1709, %v1707
  %v2240 = vpack.c.b16 %v1712, %v1710
  %v2241 = vpack.c.b16 %v1713, %v1711
  %v2242 = vpack.c.b16 %v1716, %v1714
  %v2243 = vpack.c.b16 %v1717, %v1715
  %v2244 = vpack.c.b16 %v1720, %v1718
  %v2245 = vpack.c.b16 %v1721, %v1719
  %v2246 = vpack.c.b16 %v1724, %v1722
  %v2247 = vpack.c.b16 %v1725, %v1723
  %v2248 = vpack.c.b16 %v1728, %v1726
  %v2249 = vpack.c.b16 %v1729, %v1727
  %v2250 = vpack.c.b16 %v1732, %v1730
  %v2251 = vpack.c.b16 %v1733, %v1731
  %v2252 = vpack.c.b16 %v1736, %v1734
  %v2253 = vpack.c.b16 %v1737, %v1735
  %v2254 = vpack.c.b16 %v1740, %v1738
  %v2255 = vpack.c.b16 %v1741, %v1739
  %v2256 = vpack.c.b16 %v1744, %v1742
  %v2257 = vpack.c.b16 %v1745, %v1743
  %v2258 = vpack.c.b16 %v1748, %v1746
  %v2259 = vpack.c.b16 %v1749, %v1747
  %v2260 = vpack.c.b16 %v1752, %v1750
  %v2261 = vpack.c.b16 %v1753, %v1751
  %v2262 = vpack.c.b16 %v1756, %v1754
  %v2263 = vpack.c.b16 %v1757, %v1755
  %v2264 = vpack.c.b16 %v1760, %v1758
  %v2265 = vpack.c.b16 %v1761, %v1759
  %v2266 = vpack.c.b16 %v1764, %v1762
  %v2267 = vpack.c.b16 %v1765, %v1763
  %v2268 = vpack.c.b16 %v1768, %v1766
  %v2269 = vpack.c.b16 %v1769, %v1767
  %v2270 = vpack.c.b16 %v1772, %v1770
  %v2271 = vpack.c.b16 %v1773, %v1771
  %v2272 = vpack.c.b16 %v1776, %v1774
  %v2273 = vpack.c.b16 %v1777, %v1775
  %v2274 = vpack.c.b16 %v1780, %v1778
  %v2275 = vpack.c.b16 %v1781, %v1779
  %v2276 = vpack.c.b16 %v1784, %v1782
  %v2277 = vpack.c.b16 %v1785, %v1783
  %v2278 = vpack.c.b16 %v1788, %v1786
  %v2279 = vpack.c.b16 %v1789, %v1787
  %v2280 = vpack.c.b16 %v1792, %v1790
  %v2281 = vpack.c.b16 %v1793, %v1791
  %v2282 = vpack.c.b16 %v1796, %v1794
  %v2283 = vpack.c.b16 %v1797, %v1795
  %v2284 = vpack.c.b16 %v1800, %v1798
  %v2285 = vpack.c.b16 %v1801, %v1799
  %v2286 = vpack.c.b16 %v1804, %v1802
  %v2287 = vpack.c.b16 %v1805, %v1803
  %v2288 = vpack.c.b16 %v1808, %v1806
  %v2289 = vpack.c.b16 %v1809, %v1807
  %v2290 = vpack.c.b16 %v1812, %v1810
  %v2291 = vpack.c.b16 %v1813, %v1811
  %v2292 = vpack.c.b16 %v1816, %v1814
  %v2293 = vpack.c.b16 %v1817, %v1815
  %v2294 = vpack.c.b16 %v1820, %v1818
  %v2295 = vpack.c.b16 %v1821, %v1819
  %v2296 = vpack.c.b16 %v1824, %v1822
  %v2297 = vpack.c.b16 %v1825, %v1823
  %v2298 = vpack.c.b16 %v1828, %v1826
  %v2299 = vpack.c.b16 %v1829, %v1827
  %v2300 = vpack.c.b16 %v1832, %v1830
  %v2301 = vpack.c.b16 %v1833, %v1831
  %v2302 = vpack.c.b16 %v1836, %v1834
  %v2303 = vpack.c.b16 %v1837, %v1835
  %v2304 = vpack.c.b16 %v1840, %v1838
  %v2305 = vpack.c.b16 %v1841, %v1839
  %v2306 = vpack.c.b16 %v1844, %v1842
  %v2307 = vpack.c.b16 %v1845, %v1843
  %v2308 = vpack.c.b16 %v1848, %v1846
  %v2309 = vpack.c.b16 %v1849, %v1847
  %v2310 = vpack.c.b16 %v1852, %v1850
  %v2311 = vpack.c.b16 %v1853, %v1851
  %v2312 = vpack.c.b16 %v1856, %v1854
  %v2313 = vpack.c.b16 %v1857, %v1855
  %v2314 = vpack.c.b16 %v1860, %v1858
  %v2315 = vpack.c.b16 %v1861, %v1859
  %v2316 = vpack.c.b16 %v1864, %v1862
  %v2317 = vpack.c.b16 %v1865, %v1863
  %v2318 = vpack.c.b16 %v1868, %v1866
  %v2319 = vpack.c.b16 %v1869, %v1867
  %v2320 = vpack.c.b16 %v1872, %v1870
  %v2321 = vpack.c.b16 %v1873, %v1871
  %v2322 = vpack.c.b16 %v1876, %v1874
  %v2323 = vpack.c.b16 %v1877, %v1875
  %v2324 = vpack.c.b16 %v1880, %v1878
  %v2325 = vpack.c.b16 %v1881, %v1879
  %v2326 = vpack.c.b16 %v1884, %v1882
  %v2327 = vpack.c.b16 %v1885, %v1883
  %v2328 = vpack.c.b16 %v1888, %v1886
  %v2329 = vpack.c.b16 %v1889, %v1887
  %v2330 = vpack.c.b16 %v1892, %v1890
  %v2331 = vpack.c.b16 %v1893, %v1891
  %v2332 = vpack.c.b16 %v1896, %v1894
  %v2333 = vpack.c.b16 %v1897, %v1895
  %v2334 = vpack.c.b16 %v1900, %v1898
  %v2335 = vpack.c.b16 %v1901, %v1899
  %v2336 = vpack.c.b16 %v1904, %v1902
  %v2337 = vpack.c.b16 %v1905, %v1903
  %2770 = vmatpush.bf16.msra.mxu0 %v1920
  %2771 = vmatpush.bf16.msra.mxu0 %v1918
  %2772 = vmatpush.bf16.msra.mxu0 %v1916
  %2773 = vmatpush.bf16.msra.mxu0 %v1914
  %2774 = vmatpush.bf16.msra.mxu0 %v1912
  %2775 = vmatpush.bf16.msra.mxu0 %v1910
  %2776 = vmatpush.bf16.msra.mxu0 %v1908
  %2777 = vmatpush.bf16.msra.mxu0 %v1906
  %2778 = vmatmul.bf16.gmra.mxu0 %v556
  %v2779 = vpop.f32.mrf.mxu0
  %v2780 = vadd.f32 0.0, %v2779
  %v2781 = vpop.f32.mrf.mxu0
  %v2782 = vadd.f32 0.0, %v2781
  %2783 = vdwg.mxu0
  %2784 = vmatpush.bf16.msra.mxu0 %v1936
  %2785 = vmatpush.bf16.msra.mxu0 %v1934
  %2786 = vmatpush.bf16.msra.mxu0 %v1932
  %2787 = vmatpush.bf16.msra.mxu0 %v1930
  %2788 = vmatpush.bf16.msra.mxu0 %v1928
  %2789 = vmatpush.bf16.msra.mxu0 %v1926
  %2790 = vmatpush.bf16.msra.mxu0 %v1924
  %2791 = vmatpush.bf16.msra.mxu0 %v1922
  %2792 = vmatmul.bf16.gmra.mxu0 %v557
  %v2793 = vpop.f32.mrf.mxu0
  %v2794 = vadd.f32 %v2780, %v2793
  %v2795 = vpop.f32.mrf.mxu0
  %v2796 = vadd.f32 %v2782, %v2795
  %2797 = vdwg.mxu0
  %2798 = vmatpush.bf16.msra.mxu0 %v1952
  %2799 = vmatpush.bf16.msra.mxu0 %v1950
  %2800 = vmatpush.bf16.msra.mxu0 %v1948
  %2801 = vmatpush.bf16.msra.mxu0 %v1946
  %2802 = vmatpush.bf16.msra.mxu0 %v1944
  %2803 = vmatpush.bf16.msra.mxu0 %v1942
  %2804 = vmatpush.bf16.msra.mxu0 %v1940
  %2805 = vmatpush.bf16.msra.mxu0 %v1938
  %2806 = vmatmul.bf16.gmra.mxu0 %v558
  %v2807 = vpop.f32.mrf.mxu0
  %v2808 = vadd.f32 %v2794, %v2807
  %v2809 = vpop.f32.mrf.mxu0
  %v2810 = vadd.f32 %v2796, %v2809
  %2811 = vdwg.mxu0
  %2812 = vmatpush.bf16.msra.mxu0 %v1968
  %2813 = vmatpush.bf16.msra.mxu0 %v1966
  %2814 = vmatpush.bf16.msra.mxu0 %v1964
  %2815 = vmatpush.bf16.msra.mxu0 %v1962
  %2816 = vmatpush.bf16.msra.mxu0 %v1960
  %2817 = vmatpush.bf16.msra.mxu0 %v1958
  %2818 = vmatpush.bf16.msra.mxu0 %v1956
  %2819 = vmatpush.bf16.msra.mxu0 %v1954
  %2820 = vmatmul.bf16.gmra.mxu0 %v559
  %v2821 = vpop.f32.mrf.mxu0
  %v2822 = vadd.f32 %v2808, %v2821
  %v2823 = vpop.f32.mrf.mxu0
  %v2824 = vadd.f32 %v2810, %v2823
  %2825 = vdwg.mxu0
  %2826 = vmatpush.bf16.msra.mxu0 %v1984
  %2827 = vmatpush.bf16.msra.mxu0 %v1982
  %2828 = vmatpush.bf16.msra.mxu0 %v1980
  %2829 = vmatpush.bf16.msra.mxu0 %v1978
  %2830 = vmatpush.bf16.msra.mxu0 %v1976
  %2831 = vmatpush.bf16.msra.mxu0 %v1974
  %2832 = vmatpush.bf16.msra.mxu0 %v1972
  %2833 = vmatpush.bf16.msra.mxu0 %v1970
  %2834 = vmatmul.bf16.gmra.mxu0 %v560
  %v2835 = vpop.f32.mrf.mxu0
  %v2836 = vadd.f32 %v2822, %v2835
  %v2837 = vpop.f32.mrf.mxu0
  %v2838 = vadd.f32 %v2824, %v2837
  %2839 = vdwg.mxu0
  %2840 = vmatpush.bf16.msra.mxu0 %v2000
  %2841 = vmatpush.bf16.msra.mxu0 %v1998
  %2842 = vmatpush.bf16.msra.mxu0 %v1996
  %2843 = vmatpush.bf16.msra.mxu0 %v1994
  %2844 = vmatpush.bf16.msra.mxu0 %v1992
  %2845 = vmatpush.bf16.msra.mxu0 %v1990
  %2846 = vmatpush.bf16.msra.mxu0 %v1988
  %2847 = vmatpush.bf16.msra.mxu0 %v1986
  %2848 = vmatmul.bf16.gmra.mxu0 %v561
  %v2849 = vpop.f32.mrf.mxu0
  %v2850 = vadd.f32 %v2836, %v2849
  %v2851 = vpop.f32.mrf.mxu0
  %v2852 = vadd.f32 %v2838, %v2851
  %2853 = vdwg.mxu0
  %2854 = vmatpush.bf16.msra.mxu0 %v2016
  %2855 = vmatpush.bf16.msra.mxu0 %v2014
  %2856 = vmatpush.bf16.msra.mxu0 %v2012
  %2857 = vmatpush.bf16.msra.mxu0 %v2010
  %2858 = vmatpush.bf16.msra.mxu0 %v2008
  %2859 = vmatpush.bf16.msra.mxu0 %v2006
  %2860 = vmatpush.bf16.msra.mxu0 %v2004
  %2861 = vmatpush.bf16.msra.mxu0 %v2002
  %2862 = vmatmul.bf16.gmra.mxu0 %v562
  %v2863 = vpop.f32.mrf.mxu0
  %v2864 = vadd.f32 %v2850, %v2863
  %v2865 = vpop.f32.mrf.mxu0
  %v2866 = vadd.f32 %v2852, %v2865
  %2867 = vdwg.mxu0
  %2868 = vmatpush.bf16.msra.mxu0 %v2032
  %2869 = vmatpush.bf16.msra.mxu0 %v2030
  %2870 = vmatpush.bf16.msra.mxu0 %v2028
  %2871 = vmatpush.bf16.msra.mxu0 %v2026
  %2872 = vmatpush.bf16.msra.mxu0 %v2024
  %2873 = vmatpush.bf16.msra.mxu0 %v2022
  %2874 = vmatpush.bf16.msra.mxu0 %v2020
  %2875 = vmatpush.bf16.msra.mxu0 %v2018
  %2876 = vmatmul.bf16.gmra.mxu0 %v563
  %v2877 = vpop.f32.mrf.mxu0
  %v2878 = vadd.f32 %v2864, %v2877
  %v2879 = vpop.f32.mrf.mxu0
  %v2880 = vadd.f32 %v2866, %v2879
  %2881 = vdwg.mxu0
  %2882 = vmatpush.bf16.msra.mxu0 %v2048
  %2883 = vmatpush.bf16.msra.mxu0 %v2046
  %2884 = vmatpush.bf16.msra.mxu0 %v2044
  %2885 = vmatpush.bf16.msra.mxu0 %v2042
  %2886 = vmatpush.bf16.msra.mxu0 %v2040
  %2887 = vmatpush.bf16.msra.mxu0 %v2038
  %2888 = vmatpush.bf16.msra.mxu0 %v2036
  %2889 = vmatpush.bf16.msra.mxu0 %v2034
  %2890 = vmatmul.bf16.gmra.mxu0 %v564
  %v2891 = vpop.f32.mrf.mxu0
  %v2892 = vadd.f32 %v2878, %v2891
  %v2893 = vpop.f32.mrf.mxu0
  %v2894 = vadd.f32 %v2880, %v2893
  %2895 = vdwg.mxu0
  %2896 = vmatpush.bf16.msra.mxu0 %v2064
  %2897 = vmatpush.bf16.msra.mxu0 %v2062
  %2898 = vmatpush.bf16.msra.mxu0 %v2060
  %2899 = vmatpush.bf16.msra.mxu0 %v2058
  %2900 = vmatpush.bf16.msra.mxu0 %v2056
  %2901 = vmatpush.bf16.msra.mxu0 %v2054
  %2902 = vmatpush.bf16.msra.mxu0 %v2052
  %2903 = vmatpush.bf16.msra.mxu0 %v2050
  %2904 = vmatmul.bf16.gmra.mxu0 %v565
  %v2905 = vpop.f32.mrf.mxu0
  %v2906 = vadd.f32 %v2892, %v2905
  %v2907 = vpop.f32.mrf.mxu0
  %v2908 = vadd.f32 %v2894, %v2907
  %2909 = vdwg.mxu0
  %2910 = vmatpush.bf16.msra.mxu0 %v2080
  %2911 = vmatpush.bf16.msra.mxu0 %v2078
  %2912 = vmatpush.bf16.msra.mxu0 %v2076
  %2913 = vmatpush.bf16.msra.mxu0 %v2074
  %2914 = vmatpush.bf16.msra.mxu0 %v2072
  %2915 = vmatpush.bf16.msra.mxu0 %v2070
  %2916 = vmatpush.bf16.msra.mxu0 %v2068
  %2917 = vmatpush.bf16.msra.mxu0 %v2066
  %2918 = vmatmul.bf16.gmra.mxu0 %v566
  %v2919 = vpop.f32.mrf.mxu0
  %v2920 = vadd.f32 %v2906, %v2919
  %v2921 = vpop.f32.mrf.mxu0
  %v2922 = vadd.f32 %v2908, %v2921
  %2923 = vdwg.mxu0
  %2924 = vmatpush.bf16.msra.mxu0 %v2096
  %2925 = vmatpush.bf16.msra.mxu0 %v2094
  %2926 = vmatpush.bf16.msra.mxu0 %v2092
  %2927 = vmatpush.bf16.msra.mxu0 %v2090
  %2928 = vmatpush.bf16.msra.mxu0 %v2088
  %2929 = vmatpush.bf16.msra.mxu0 %v2086
  %2930 = vmatpush.bf16.msra.mxu0 %v2084
  %2931 = vmatpush.bf16.msra.mxu0 %v2082
  %2932 = vmatmul.bf16.gmra.mxu0 %v567
  %v2933 = vpop.f32.mrf.mxu0
  %v2934 = vadd.f32 %v2920, %v2933
  %v2935 = vpop.f32.mrf.mxu0
  %v2936 = vadd.f32 %v2922, %v2935
  %2937 = vdwg.mxu0
  %2938 = vmatpush.bf16.msra.mxu0 %v2112
  %2939 = vmatpush.bf16.msra.mxu0 %v2110
  %2940 = vmatpush.bf16.msra.mxu0 %v2108
  %2941 = vmatpush.bf16.msra.mxu0 %v2106
  %2942 = vmatpush.bf16.msra.mxu0 %v2104
  %2943 = vmatpush.bf16.msra.mxu0 %v2102
  %2944 = vmatpush.bf16.msra.mxu0 %v2100
  %2945 = vmatpush.bf16.msra.mxu0 %v2098
  %2946 = vmatmul.bf16.gmra.mxu0 %v568
  %v2947 = vpop.f32.mrf.mxu0
  %v2948 = vadd.f32 %v2934, %v2947
  %v2949 = vpop.f32.mrf.mxu0
  %v2950 = vadd.f32 %v2936, %v2949
  %2951 = vdwg.mxu0
  %2952 = vmatpush.bf16.msra.mxu0 %v2128
  %2953 = vmatpush.bf16.msra.mxu0 %v2126
  %2954 = vmatpush.bf16.msra.mxu0 %v2124
  %2955 = vmatpush.bf16.msra.mxu0 %v2122
  %2956 = vmatpush.bf16.msra.mxu0 %v2120
  %2957 = vmatpush.bf16.msra.mxu0 %v2118
  %2958 = vmatpush.bf16.msra.mxu0 %v2116
  %2959 = vmatpush.bf16.msra.mxu0 %v2114
  %2960 = vmatmul.bf16.gmra.mxu0 %v569
  %v2961 = vpop.f32.mrf.mxu0
  %v2962 = vadd.f32 %v2948, %v2961
  %v2963 = vpop.f32.mrf.mxu0
  %v2964 = vadd.f32 %v2950, %v2963
  %2965 = vdwg.mxu0
  %2966 = vmatpush.bf16.msra.mxu0 %v2144
  %2967 = vmatpush.bf16.msra.mxu0 %v2142
  %2968 = vmatpush.bf16.msra.mxu0 %v2140
  %2969 = vmatpush.bf16.msra.mxu0 %v2138
  %2970 = vmatpush.bf16.msra.mxu0 %v2136
  %2971 = vmatpush.bf16.msra.mxu0 %v2134
  %2972 = vmatpush.bf16.msra.mxu0 %v2132
  %2973 = vmatpush.bf16.msra.mxu0 %v2130
  %2974 = vmatmul.bf16.gmra.mxu0 %v570
  %v2975 = vpop.f32.mrf.mxu0
  %v2976 = vadd.f32 %v2962, %v2975
  %v2977 = vpop.f32.mrf.mxu0
  %v2978 = vadd.f32 %v2964, %v2977
  %2979 = vdwg.mxu0
  %2980 = vmatpush.bf16.msra.mxu0 %v2160
  %2981 = vmatpush.bf16.msra.mxu0 %v2158
  %2982 = vmatpush.bf16.msra.mxu0 %v2156
  %2983 = vmatpush.bf16.msra.mxu0 %v2154
  %2984 = vmatpush.bf16.msra.mxu0 %v2152
  %2985 = vmatpush.bf16.msra.mxu0 %v2150
  %2986 = vmatpush.bf16.msra.mxu0 %v2148
  %2987 = vmatpush.bf16.msra.mxu0 %v2146
  %2988 = vmatmul.bf16.gmra.mxu0 %v571
  %v2989 = vpop.f32.mrf.mxu0
  %v2990 = vadd.f32 %v2976, %v2989
  %v2991 = vpop.f32.mrf.mxu0
  %v2992 = vadd.f32 %v2978, %v2991
  %2993 = vdwg.mxu0
  %2994 = vmatpush.bf16.msra.mxu0 %v2176
  %2995 = vmatpush.bf16.msra.mxu0 %v2174
  %2996 = vmatpush.bf16.msra.mxu0 %v2172
  %2997 = vmatpush.bf16.msra.mxu0 %v2170
  %2998 = vmatpush.bf16.msra.mxu0 %v2168
  %2999 = vmatpush.bf16.msra.mxu0 %v2166
  %3000 = vmatpush.bf16.msra.mxu0 %v2164
  %3001 = vmatpush.bf16.msra.mxu0 %v2162
  %3002 = vmatmul.bf16.gmra.mxu0 %v572
  %v3003 = vpop.f32.mrf.mxu0
  %v3004 = vadd.f32 %v2990, %v3003
  %v3005 = vpop.f32.mrf.mxu0
  %v3006 = vadd.f32 %v2992, %v3005
  %3007 = vdwg.mxu0
  %3008 = vmatpush.bf16.msra.mxu0 %v2192
  %3009 = vmatpush.bf16.msra.mxu0 %v2190
  %3010 = vmatpush.bf16.msra.mxu0 %v2188
  %3011 = vmatpush.bf16.msra.mxu0 %v2186
  %3012 = vmatpush.bf16.msra.mxu0 %v2184
  %3013 = vmatpush.bf16.msra.mxu0 %v2182
  %3014 = vmatpush.bf16.msra.mxu0 %v2180
  %3015 = vmatpush.bf16.msra.mxu0 %v2178
  %3016 = vmatmul.bf16.gmra.mxu0 %v573
  %v3017 = vpop.f32.mrf.mxu0
  %v3018 = vadd.f32 %v3004, %v3017
  %v3019 = vpop.f32.mrf.mxu0
  %v3020 = vadd.f32 %v3006, %v3019
  %3021 = vdwg.mxu0
  %3022 = vmatpush.bf16.msra.mxu0 %v2208
  %3023 = vmatpush.bf16.msra.mxu0 %v2206
  %3024 = vmatpush.bf16.msra.mxu0 %v2204
  %3025 = vmatpush.bf16.msra.mxu0 %v2202
  %3026 = vmatpush.bf16.msra.mxu0 %v2200
  %3027 = vmatpush.bf16.msra.mxu0 %v2198
  %3028 = vmatpush.bf16.msra.mxu0 %v2196
  %3029 = vmatpush.bf16.msra.mxu0 %v2194
  %3030 = vmatmul.bf16.gmra.mxu0 %v574
  %v3031 = vpop.f32.mrf.mxu0
  %v3032 = vadd.f32 %v3018, %v3031
  %v3033 = vpop.f32.mrf.mxu0
  %v3034 = vadd.f32 %v3020, %v3033
  %3035 = vdwg.mxu0
  %3036 = vmatpush.bf16.msra.mxu0 %v2224
  %3037 = vmatpush.bf16.msra.mxu0 %v2222
  %3038 = vmatpush.bf16.msra.mxu0 %v2220
  %3039 = vmatpush.bf16.msra.mxu0 %v2218
  %3040 = vmatpush.bf16.msra.mxu0 %v2216
  %3041 = vmatpush.bf16.msra.mxu0 %v2214
  %3042 = vmatpush.bf16.msra.mxu0 %v2212
  %3043 = vmatpush.bf16.msra.mxu0 %v2210
  %3044 = vmatmul.bf16.gmra.mxu0 %v575
  %v3045 = vpop.f32.mrf.mxu0
  %v3046 = vadd.f32 %v3032, %v3045
  %v3047 = vpop.f32.mrf.mxu0
  %v3048 = vadd.f32 %v3034, %v3047
  %3049 = vdwg.mxu0
  %3050 = vmatpush.bf16.msra.mxu0 %v2240
  %3051 = vmatpush.bf16.msra.mxu0 %v2238
  %3052 = vmatpush.bf16.msra.mxu0 %v2236
  %3053 = vmatpush.bf16.msra.mxu0 %v2234
  %3054 = vmatpush.bf16.msra.mxu0 %v2232
  %3055 = vmatpush.bf16.msra.mxu0 %v2230
  %3056 = vmatpush.bf16.msra.mxu0 %v2228
  %3057 = vmatpush.bf16.msra.mxu0 %v2226
  %3058 = vmatmul.bf16.gmra.mxu0 %v576
  %v3059 = vpop.f32.mrf.mxu0
  %v3060 = vadd.f32 %v3046, %v3059
  %v3061 = vpop.f32.mrf.mxu0
  %v3062 = vadd.f32 %v3048, %v3061
  %3063 = vdwg.mxu0
  %3064 = vmatpush.bf16.msra.mxu0 %v2256
  %3065 = vmatpush.bf16.msra.mxu0 %v2254
  %3066 = vmatpush.bf16.msra.mxu0 %v2252
  %3067 = vmatpush.bf16.msra.mxu0 %v2250
  %3068 = vmatpush.bf16.msra.mxu0 %v2248
  %3069 = vmatpush.bf16.msra.mxu0 %v2246
  %3070 = vmatpush.bf16.msra.mxu0 %v2244
  %3071 = vmatpush.bf16.msra.mxu0 %v2242
  %3072 = vmatmul.bf16.gmra.mxu0 %v577
  %v3073 = vpop.f32.mrf.mxu0
  %v3074 = vadd.f32 %v3060, %v3073
  %v3075 = vpop.f32.mrf.mxu0
  %v3076 = vadd.f32 %v3062, %v3075
  %3077 = vdwg.mxu0
  %3078 = vmatpush.bf16.msra.mxu0 %v2272
  %3079 = vmatpush.bf16.msra.mxu0 %v2270
  %3080 = vmatpush.bf16.msra.mxu0 %v2268
  %3081 = vmatpush.bf16.msra.mxu0 %v2266
  %3082 = vmatpush.bf16.msra.mxu0 %v2264
  %3083 = vmatpush.bf16.msra.mxu0 %v2262
  %3084 = vmatpush.bf16.msra.mxu0 %v2260
  %3085 = vmatpush.bf16.msra.mxu0 %v2258
  %3086 = vmatmul.bf16.gmra.mxu0 %v578
  %v3087 = vpop.f32.mrf.mxu0
  %v3088 = vadd.f32 %v3074, %v3087
  %v3089 = vpop.f32.mrf.mxu0
  %v3090 = vadd.f32 %v3076, %v3089
  %3091 = vdwg.mxu0
  %3092 = vmatpush.bf16.msra.mxu0 %v2288
  %3093 = vmatpush.bf16.msra.mxu0 %v2286
  %3094 = vmatpush.bf16.msra.mxu0 %v2284
  %3095 = vmatpush.bf16.msra.mxu0 %v2282
  %3096 = vmatpush.bf16.msra.mxu0 %v2280
  %3097 = vmatpush.bf16.msra.mxu0 %v2278
  %3098 = vmatpush.bf16.msra.mxu0 %v2276
  %3099 = vmatpush.bf16.msra.mxu0 %v2274
  %3100 = vmatmul.bf16.gmra.mxu0 %v579
  %v3101 = vpop.f32.mrf.mxu0
  %v3102 = vadd.f32 %v3088, %v3101
  %v3103 = vpop.f32.mrf.mxu0
  %v3104 = vadd.f32 %v3090, %v3103
  %3105 = vdwg.mxu0
  %3106 = vmatpush.bf16.msra.mxu0 %v2304
  %3107 = vmatpush.bf16.msra.mxu0 %v2302
  %3108 = vmatpush.bf16.msra.mxu0 %v2300
  %3109 = vmatpush.bf16.msra.mxu0 %v2298
  %3110 = vmatpush.bf16.msra.mxu0 %v2296
  %3111 = vmatpush.bf16.msra.mxu0 %v2294
  %3112 = vmatpush.bf16.msra.mxu0 %v2292
  %3113 = vmatpush.bf16.msra.mxu0 %v2290
  %3114 = vmatmul.bf16.gmra.mxu0 %v580
  %v3115 = vpop.f32.mrf.mxu0
  %v3116 = vadd.f32 %v3102, %v3115
  %v3117 = vpop.f32.mrf.mxu0
  %v3118 = vadd.f32 %v3104, %v3117
  %3119 = vdwg.mxu0
  %3120 = vmatpush.bf16.msra.mxu0 %v2320
  %3121 = vmatpush.bf16.msra.mxu0 %v2318
  %3122 = vmatpush.bf16.msra.mxu0 %v2316
  %3123 = vmatpush.bf16.msra.mxu0 %v2314
  %3124 = vmatpush.bf16.msra.mxu0 %v2312
  %3125 = vmatpush.bf16.msra.mxu0 %v2310
  %3126 = vmatpush.bf16.msra.mxu0 %v2308
  %3127 = vmatpush.bf16.msra.mxu0 %v2306
  %3128 = vmatmul.bf16.gmra.mxu0 %v581
  %v3129 = vpop.f32.mrf.mxu0
  %v3130 = vadd.f32 %v3116, %v3129
  %v3131 = vpop.f32.mrf.mxu0
  %v3132 = vadd.f32 %v3118, %v3131
  %3133 = vdwg.mxu0
  %3134 = vmatpush.bf16.msra.mxu0 %v2336
  %3135 = vmatpush.bf16.msra.mxu0 %v2334
  %3136 = vmatpush.bf16.msra.mxu0 %v2332
  %3137 = vmatpush.bf16.msra.mxu0 %v2330
  %3138 = vmatpush.bf16.msra.mxu0 %v2328
  %3139 = vmatpush.bf16.msra.mxu0 %v2326
  %3140 = vmatpush.bf16.msra.mxu0 %v2324
  %3141 = vmatpush.bf16.msra.mxu0 %v2322
  %3142 = vmatmul.bf16.gmra.mxu0 %v582
  %v3143 = vpop.f32.mrf.mxu0
  %v3144 = vadd.f32 %v3130, %v3143
  %v3145 = vpop.f32.mrf.mxu0
  %v3146 = vadd.f32 %v3132, %v3145
  %3147 = vdwg.mxu0
  %3148 = vmatpush.bf16.msra.mxu0 %v1921
  %3149 = vmatpush.bf16.msra.mxu0 %v1919
  %3150 = vmatpush.bf16.msra.mxu0 %v1917
  %3151 = vmatpush.bf16.msra.mxu0 %v1915
  %3152 = vmatpush.bf16.msra.mxu0 %v1913
  %3153 = vmatpush.bf16.msra.mxu0 %v1911
  %3154 = vmatpush.bf16.msra.mxu0 %v1909
  %3155 = vmatpush.bf16.msra.mxu0 %v1907
  %3156 = vmatmul.bf16.gmra.mxu0 %v556
  %v3157 = vpop.f32.mrf.mxu0
  %v3158 = vadd.f32 0.0, %v3157
  %v3159 = vpop.f32.mrf.mxu0
  %v3160 = vadd.f32 0.0, %v3159
  %3161 = vdwg.mxu0
  %3162 = vmatpush.bf16.msra.mxu0 %v1937
  %3163 = vmatpush.bf16.msra.mxu0 %v1935
  %3164 = vmatpush.bf16.msra.mxu0 %v1933
  %3165 = vmatpush.bf16.msra.mxu0 %v1931
  %3166 = vmatpush.bf16.msra.mxu0 %v1929
  %3167 = vmatpush.bf16.msra.mxu0 %v1927
  %3168 = vmatpush.bf16.msra.mxu0 %v1925
  %3169 = vmatpush.bf16.msra.mxu0 %v1923
  %3170 = vmatmul.bf16.gmra.mxu0 %v557
  %v3171 = vpop.f32.mrf.mxu0
  %v3172 = vadd.f32 %v3158, %v3171
  %v3173 = vpop.f32.mrf.mxu0
  %v3174 = vadd.f32 %v3160, %v3173
  %3175 = vdwg.mxu0
  %3176 = vmatpush.bf16.msra.mxu0 %v1953
  %3177 = vmatpush.bf16.msra.mxu0 %v1951
  %3178 = vmatpush.bf16.msra.mxu0 %v1949
  %3179 = vmatpush.bf16.msra.mxu0 %v1947
  %3180 = vmatpush.bf16.msra.mxu0 %v1945
  %3181 = vmatpush.bf16.msra.mxu0 %v1943
  %3182 = vmatpush.bf16.msra.mxu0 %v1941
  %3183 = vmatpush.bf16.msra.mxu0 %v1939
  %3184 = vmatmul.bf16.gmra.mxu0 %v558
  %v3185 = vpop.f32.mrf.mxu0
  %v3186 = vadd.f32 %v3172, %v3185
  %v3187 = vpop.f32.mrf.mxu0
  %v3188 = vadd.f32 %v3174, %v3187
  %3189 = vdwg.mxu0
  %3190 = vmatpush.bf16.msra.mxu0 %v1969
  %3191 = vmatpush.bf16.msra.mxu0 %v1967
  %3192 = vmatpush.bf16.msra.mxu0 %v1965
  %3193 = vmatpush.bf16.msra.mxu0 %v1963
  %3194 = vmatpush.bf16.msra.mxu0 %v1961
  %3195 = vmatpush.bf16.msra.mxu0 %v1959
  %3196 = vmatpush.bf16.msra.mxu0 %v1957
  %3197 = vmatpush.bf16.msra.mxu0 %v1955
  %3198 = vmatmul.bf16.gmra.mxu0 %v559
  %v3199 = vpop.f32.mrf.mxu0
  %v3200 = vadd.f32 %v3186, %v3199
  %v3201 = vpop.f32.mrf.mxu0
  %v3202 = vadd.f32 %v3188, %v3201
  %3203 = vdwg.mxu0
  %3204 = vmatpush.bf16.msra.mxu0 %v1985
  %3205 = vmatpush.bf16.msra.mxu0 %v1983
  %3206 = vmatpush.bf16.msra.mxu0 %v1981
  %3207 = vmatpush.bf16.msra.mxu0 %v1979
  %3208 = vmatpush.bf16.msra.mxu0 %v1977
  %3209 = vmatpush.bf16.msra.mxu0 %v1975
  %3210 = vmatpush.bf16.msra.mxu0 %v1973
  %3211 = vmatpush.bf16.msra.mxu0 %v1971
  %3212 = vmatmul.bf16.gmra.mxu0 %v560
  %v3213 = vpop.f32.mrf.mxu0
  %v3214 = vadd.f32 %v3200, %v3213
  %v3215 = vpop.f32.mrf.mxu0
  %v3216 = vadd.f32 %v3202, %v3215
  %3217 = vdwg.mxu0
  %3218 = vmatpush.bf16.msra.mxu0 %v2001
  %3219 = vmatpush.bf16.msra.mxu0 %v1999
  %3220 = vmatpush.bf16.msra.mxu0 %v1997
  %3221 = vmatpush.bf16.msra.mxu0 %v1995
  %3222 = vmatpush.bf16.msra.mxu0 %v1993
  %3223 = vmatpush.bf16.msra.mxu0 %v1991
  %3224 = vmatpush.bf16.msra.mxu0 %v1989
  %3225 = vmatpush.bf16.msra.mxu0 %v1987
  %3226 = vmatmul.bf16.gmra.mxu0 %v561
  %v3227 = vpop.f32.mrf.mxu0
  %v3228 = vadd.f32 %v3214, %v3227
  %v3229 = vpop.f32.mrf.mxu0
  %v3230 = vadd.f32 %v3216, %v3229
  %3231 = vdwg.mxu0
  %3232 = vmatpush.bf16.msra.mxu0 %v2017
  %3233 = vmatpush.bf16.msra.mxu0 %v2015
  %3234 = vmatpush.bf16.msra.mxu0 %v2013
  %3235 = vmatpush.bf16.msra.mxu0 %v2011
  %3236 = vmatpush.bf16.msra.mxu0 %v2009
  %3237 = vmatpush.bf16.msra.mxu0 %v2007
  %3238 = vmatpush.bf16.msra.mxu0 %v2005
  %3239 = vmatpush.bf16.msra.mxu0 %v2003
  %3240 = vmatmul.bf16.gmra.mxu0 %v562
  %v3241 = vpop.f32.mrf.mxu0
  %v3242 = vadd.f32 %v3228, %v3241
  %v3243 = vpop.f32.mrf.mxu0
  %v3244 = vadd.f32 %v3230, %v3243
  %3245 = vdwg.mxu0
  %3246 = vmatpush.bf16.msra.mxu0 %v2033
  %3247 = vmatpush.bf16.msra.mxu0 %v2031
  %3248 = vmatpush.bf16.msra.mxu0 %v2029
  %3249 = vmatpush.bf16.msra.mxu0 %v2027
  %3250 = vmatpush.bf16.msra.mxu0 %v2025
  %3251 = vmatpush.bf16.msra.mxu0 %v2023
  %3252 = vmatpush.bf16.msra.mxu0 %v2021
  %3253 = vmatpush.bf16.msra.mxu0 %v2019
  %3254 = vmatmul.bf16.gmra.mxu0 %v563
  %v3255 = vpop.f32.mrf.mxu0
  %v3256 = vadd.f32 %v3242, %v3255
  %v3257 = vpop.f32.mrf.mxu0
  %v3258 = vadd.f32 %v3244, %v3257
  %3259 = vdwg.mxu0
  %3260 = vmatpush.bf16.msra.mxu0 %v2049
  %3261 = vmatpush.bf16.msra.mxu0 %v2047
  %3262 = vmatpush.bf16.msra.mxu0 %v2045
  %3263 = vmatpush.bf16.msra.mxu0 %v2043
  %3264 = vmatpush.bf16.msra.mxu0 %v2041
  %3265 = vmatpush.bf16.msra.mxu0 %v2039
  %3266 = vmatpush.bf16.msra.mxu0 %v2037
  %3267 = vmatpush.bf16.msra.mxu0 %v2035
  %3268 = vmatmul.bf16.gmra.mxu0 %v564
  %v3269 = vpop.f32.mrf.mxu0
  %v3270 = vadd.f32 %v3256, %v3269
  %v3271 = vpop.f32.mrf.mxu0
  %v3272 = vadd.f32 %v3258, %v3271
  %3273 = vdwg.mxu0
  %3274 = vmatpush.bf16.msra.mxu0 %v2065
  %3275 = vmatpush.bf16.msra.mxu0 %v2063
  %3276 = vmatpush.bf16.msra.mxu0 %v2061
  %3277 = vmatpush.bf16.msra.mxu0 %v2059
  %3278 = vmatpush.bf16.msra.mxu0 %v2057
  %3279 = vmatpush.bf16.msra.mxu0 %v2055
  %3280 = vmatpush.bf16.msra.mxu0 %v2053
  %3281 = vmatpush.bf16.msra.mxu0 %v2051
  %3282 = vmatmul.bf16.gmra.mxu0 %v565
  %v3283 = vpop.f32.mrf.mxu0
  %v3284 = vadd.f32 %v3270, %v3283
  %v3285 = vpop.f32.mrf.mxu0
  %v3286 = vadd.f32 %v3272, %v3285
  %3287 = vdwg.mxu0
  %3288 = vmatpush.bf16.msra.mxu0 %v2081
  %3289 = vmatpush.bf16.msra.mxu0 %v2079
  %3290 = vmatpush.bf16.msra.mxu0 %v2077
  %3291 = vmatpush.bf16.msra.mxu0 %v2075
  %3292 = vmatpush.bf16.msra.mxu0 %v2073
  %3293 = vmatpush.bf16.msra.mxu0 %v2071
  %3294 = vmatpush.bf16.msra.mxu0 %v2069
  %3295 = vmatpush.bf16.msra.mxu0 %v2067
  %3296 = vmatmul.bf16.gmra.mxu0 %v566
  %v3297 = vpop.f32.mrf.mxu0
  %v3298 = vadd.f32 %v3284, %v3297
  %v3299 = vpop.f32.mrf.mxu0
  %v3300 = vadd.f32 %v3286, %v3299
  %3301 = vdwg.mxu0
  %3302 = vmatpush.bf16.msra.mxu0 %v2097
  %3303 = vmatpush.bf16.msra.mxu0 %v2095
  %3304 = vmatpush.bf16.msra.mxu0 %v2093
  %3305 = vmatpush.bf16.msra.mxu0 %v2091
  %3306 = vmatpush.bf16.msra.mxu0 %v2089
  %3307 = vmatpush.bf16.msra.mxu0 %v2087
  %3308 = vmatpush.bf16.msra.mxu0 %v2085
  %3309 = vmatpush.bf16.msra.mxu0 %v2083
  %3310 = vmatmul.bf16.gmra.mxu0 %v567
  %v3311 = vpop.f32.mrf.mxu0
  %v3312 = vadd.f32 %v3298, %v3311
  %v3313 = vpop.f32.mrf.mxu0
  %v3314 = vadd.f32 %v3300, %v3313
  %3315 = vdwg.mxu0
  %3316 = vmatpush.bf16.msra.mxu0 %v2113
  %3317 = vmatpush.bf16.msra.mxu0 %v2111
  %3318 = vmatpush.bf16.msra.mxu0 %v2109
  %3319 = vmatpush.bf16.msra.mxu0 %v2107
  %3320 = vmatpush.bf16.msra.mxu0 %v2105
  %3321 = vmatpush.bf16.msra.mxu0 %v2103
  %3322 = vmatpush.bf16.msra.mxu0 %v2101
  %3323 = vmatpush.bf16.msra.mxu0 %v2099
  %3324 = vmatmul.bf16.gmra.mxu0 %v568
  %v3325 = vpop.f32.mrf.mxu0
  %v3326 = vadd.f32 %v3312, %v3325
  %v3327 = vpop.f32.mrf.mxu0
  %v3328 = vadd.f32 %v3314, %v3327
  %3329 = vdwg.mxu0
  %3330 = vmatpush.bf16.msra.mxu0 %v2129
  %3331 = vmatpush.bf16.msra.mxu0 %v2127
  %3332 = vmatpush.bf16.msra.mxu0 %v2125
  %3333 = vmatpush.bf16.msra.mxu0 %v2123
  %3334 = vmatpush.bf16.msra.mxu0 %v2121
  %3335 = vmatpush.bf16.msra.mxu0 %v2119
  %3336 = vmatpush.bf16.msra.mxu0 %v2117
  %3337 = vmatpush.bf16.msra.mxu0 %v2115
  %3338 = vmatmul.bf16.gmra.mxu0 %v569
  %v3339 = vpop.f32.mrf.mxu0
  %v3340 = vadd.f32 %v3326, %v3339
  %v3341 = vpop.f32.mrf.mxu0
  %v3342 = vadd.f32 %v3328, %v3341
  %3343 = vdwg.mxu0
  %3344 = vmatpush.bf16.msra.mxu0 %v2145
  %3345 = vmatpush.bf16.msra.mxu0 %v2143
  %3346 = vmatpush.bf16.msra.mxu0 %v2141
  %3347 = vmatpush.bf16.msra.mxu0 %v2139
  %3348 = vmatpush.bf16.msra.mxu0 %v2137
  %3349 = vmatpush.bf16.msra.mxu0 %v2135
  %3350 = vmatpush.bf16.msra.mxu0 %v2133
  %3351 = vmatpush.bf16.msra.mxu0 %v2131
  %3352 = vmatmul.bf16.gmra.mxu0 %v570
  %v3353 = vpop.f32.mrf.mxu0
  %v3354 = vadd.f32 %v3340, %v3353
  %v3355 = vpop.f32.mrf.mxu0
  %v3356 = vadd.f32 %v3342, %v3355
  %3357 = vdwg.mxu0
  %3358 = vmatpush.bf16.msra.mxu0 %v2161
  %3359 = vmatpush.bf16.msra.mxu0 %v2159
  %3360 = vmatpush.bf16.msra.mxu0 %v2157
  %3361 = vmatpush.bf16.msra.mxu0 %v2155
  %3362 = vmatpush.bf16.msra.mxu0 %v2153
  %3363 = vmatpush.bf16.msra.mxu0 %v2151
  %3364 = vmatpush.bf16.msra.mxu0 %v2149
  %3365 = vmatpush.bf16.msra.mxu0 %v2147
  %3366 = vmatmul.bf16.gmra.mxu0 %v571
  %v3367 = vpop.f32.mrf.mxu0
  %v3368 = vadd.f32 %v3354, %v3367
  %v3369 = vpop.f32.mrf.mxu0
  %v3370 = vadd.f32 %v3356, %v3369
  %3371 = vdwg.mxu0
  %3372 = vmatpush.bf16.msra.mxu0 %v2177
  %3373 = vmatpush.bf16.msra.mxu0 %v2175
  %3374 = vmatpush.bf16.msra.mxu0 %v2173
  %3375 = vmatpush.bf16.msra.mxu0 %v2171
  %3376 = vmatpush.bf16.msra.mxu0 %v2169
  %3377 = vmatpush.bf16.msra.mxu0 %v2167
  %3378 = vmatpush.bf16.msra.mxu0 %v2165
  %3379 = vmatpush.bf16.msra.mxu0 %v2163
  %3380 = vmatmul.bf16.gmra.mxu0 %v572
  %v3381 = vpop.f32.mrf.mxu0
  %v3382 = vadd.f32 %v3368, %v3381
  %v3383 = vpop.f32.mrf.mxu0
  %v3384 = vadd.f32 %v3370, %v3383
  %3385 = vdwg.mxu0
  %3386 = vmatpush.bf16.msra.mxu0 %v2193
  %3387 = vmatpush.bf16.msra.mxu0 %v2191
  %3388 = vmatpush.bf16.msra.mxu0 %v2189
  %3389 = vmatpush.bf16.msra.mxu0 %v2187
  %3390 = vmatpush.bf16.msra.mxu0 %v2185
  %3391 = vmatpush.bf16.msra.mxu0 %v2183
  %3392 = vmatpush.bf16.msra.mxu0 %v2181
  %3393 = vmatpush.bf16.msra.mxu0 %v2179
  %3394 = vmatmul.bf16.gmra.mxu0 %v573
  %v3395 = vpop.f32.mrf.mxu0
  %v3396 = vadd.f32 %v3382, %v3395
  %v3397 = vpop.f32.mrf.mxu0
  %v3398 = vadd.f32 %v3384, %v3397
  %3399 = vdwg.mxu0
  %3400 = vmatpush.bf16.msra.mxu0 %v2209
  %3401 = vmatpush.bf16.msra.mxu0 %v2207
  %3402 = vmatpush.bf16.msra.mxu0 %v2205
  %3403 = vmatpush.bf16.msra.mxu0 %v2203
  %3404 = vmatpush.bf16.msra.mxu0 %v2201
  %3405 = vmatpush.bf16.msra.mxu0 %v2199
  %3406 = vmatpush.bf16.msra.mxu0 %v2197
  %3407 = vmatpush.bf16.msra.mxu0 %v2195
  %3408 = vmatmul.bf16.gmra.mxu0 %v574
  %v3409 = vpop.f32.mrf.mxu0
  %v3410 = vadd.f32 %v3396, %v3409
  %v3411 = vpop.f32.mrf.mxu0
  %v3412 = vadd.f32 %v3398, %v3411
  %3413 = vdwg.mxu0
  %3414 = vmatpush.bf16.msra.mxu0 %v2225
  %3415 = vmatpush.bf16.msra.mxu0 %v2223
  %3416 = vmatpush.bf16.msra.mxu0 %v2221
  %3417 = vmatpush.bf16.msra.mxu0 %v2219
  %3418 = vmatpush.bf16.msra.mxu0 %v2217
  %3419 = vmatpush.bf16.msra.mxu0 %v2215
  %3420 = vmatpush.bf16.msra.mxu0 %v2213
  %3421 = vmatpush.bf16.msra.mxu0 %v2211
  %3422 = vmatmul.bf16.gmra.mxu0 %v575
  %v3423 = vpop.f32.mrf.mxu0
  %v3424 = vadd.f32 %v3410, %v3423
  %v3425 = vpop.f32.mrf.mxu0
  %v3426 = vadd.f32 %v3412, %v3425
  %3427 = vdwg.mxu0
  %3428 = vmatpush.bf16.msra.mxu0 %v2241
  %3429 = vmatpush.bf16.msra.mxu0 %v2239
  %3430 = vmatpush.bf16.msra.mxu0 %v2237
  %3431 = vmatpush.bf16.msra.mxu0 %v2235
  %3432 = vmatpush.bf16.msra.mxu0 %v2233
  %3433 = vmatpush.bf16.msra.mxu0 %v2231
  %3434 = vmatpush.bf16.msra.mxu0 %v2229
  %3435 = vmatpush.bf16.msra.mxu0 %v2227
  %3436 = vmatmul.bf16.gmra.mxu0 %v576
  %v3437 = vpop.f32.mrf.mxu0
  %v3438 = vadd.f32 %v3424, %v3437
  %v3439 = vpop.f32.mrf.mxu0
  %v3440 = vadd.f32 %v3426, %v3439
  %3441 = vdwg.mxu0
  %3442 = vmatpush.bf16.msra.mxu0 %v2257
  %3443 = vmatpush.bf16.msra.mxu0 %v2255
  %3444 = vmatpush.bf16.msra.mxu0 %v2253
  %3445 = vmatpush.bf16.msra.mxu0 %v2251
  %3446 = vmatpush.bf16.msra.mxu0 %v2249
  %3447 = vmatpush.bf16.msra.mxu0 %v2247
  %3448 = vmatpush.bf16.msra.mxu0 %v2245
  %3449 = vmatpush.bf16.msra.mxu0 %v2243
  %3450 = vmatmul.bf16.gmra.mxu0 %v577
  %v3451 = vpop.f32.mrf.mxu0
  %v3452 = vadd.f32 %v3438, %v3451
  %v3453 = vpop.f32.mrf.mxu0
  %v3454 = vadd.f32 %v3440, %v3453
  %3455 = vdwg.mxu0
  %3456 = vmatpush.bf16.msra.mxu0 %v2273
  %3457 = vmatpush.bf16.msra.mxu0 %v2271
  %3458 = vmatpush.bf16.msra.mxu0 %v2269
  %3459 = vmatpush.bf16.msra.mxu0 %v2267
  %3460 = vmatpush.bf16.msra.mxu0 %v2265
  %3461 = vmatpush.bf16.msra.mxu0 %v2263
  %3462 = vmatpush.bf16.msra.mxu0 %v2261
  %3463 = vmatpush.bf16.msra.mxu0 %v2259
  %3464 = vmatmul.bf16.gmra.mxu0 %v578
  %v3465 = vpop.f32.mrf.mxu0
  %v3466 = vadd.f32 %v3452, %v3465
  %v3467 = vpop.f32.mrf.mxu0
  %v3468 = vadd.f32 %v3454, %v3467
  %3469 = vdwg.mxu0
  %3470 = vmatpush.bf16.msra.mxu0 %v2289
  %3471 = vmatpush.bf16.msra.mxu0 %v2287
  %3472 = vmatpush.bf16.msra.mxu0 %v2285
  %3473 = vmatpush.bf16.msra.mxu0 %v2283
  %3474 = vmatpush.bf16.msra.mxu0 %v2281
  %3475 = vmatpush.bf16.msra.mxu0 %v2279
  %3476 = vmatpush.bf16.msra.mxu0 %v2277
  %3477 = vmatpush.bf16.msra.mxu0 %v2275
  %3478 = vmatmul.bf16.gmra.mxu0 %v579
  %v3479 = vpop.f32.mrf.mxu0
  %v3480 = vadd.f32 %v3466, %v3479
  %v3481 = vpop.f32.mrf.mxu0
  %v3482 = vadd.f32 %v3468, %v3481
  %3483 = vdwg.mxu0
  %3484 = vmatpush.bf16.msra.mxu0 %v2305
  %3485 = vmatpush.bf16.msra.mxu0 %v2303
  %3486 = vmatpush.bf16.msra.mxu0 %v2301
  %3487 = vmatpush.bf16.msra.mxu0 %v2299
  %3488 = vmatpush.bf16.msra.mxu0 %v2297
  %3489 = vmatpush.bf16.msra.mxu0 %v2295
  %3490 = vmatpush.bf16.msra.mxu0 %v2293
  %3491 = vmatpush.bf16.msra.mxu0 %v2291
  %3492 = vmatmul.bf16.gmra.mxu0 %v580
  %v3493 = vpop.f32.mrf.mxu0
  %v3494 = vadd.f32 %v3480, %v3493
  %v3495 = vpop.f32.mrf.mxu0
  %v3496 = vadd.f32 %v3482, %v3495
  %3497 = vdwg.mxu0
  %3498 = vmatpush.bf16.msra.mxu0 %v2321
  %3499 = vmatpush.bf16.msra.mxu0 %v2319
  %3500 = vmatpush.bf16.msra.mxu0 %v2317
  %3501 = vmatpush.bf16.msra.mxu0 %v2315
  %3502 = vmatpush.bf16.msra.mxu0 %v2313
  %3503 = vmatpush.bf16.msra.mxu0 %v2311
  %3504 = vmatpush.bf16.msra.mxu0 %v2309
  %3505 = vmatpush.bf16.msra.mxu0 %v2307
  %3506 = vmatmul.bf16.gmra.mxu0 %v581
  %v3507 = vpop.f32.mrf.mxu0
  %v3508 = vadd.f32 %v3494, %v3507
  %v3509 = vpop.f32.mrf.mxu0
  %v3510 = vadd.f32 %v3496, %v3509
  %3511 = vdwg.mxu0
  %3512 = vmatpush.bf16.msra.mxu0 %v2337
  %3513 = vmatpush.bf16.msra.mxu0 %v2335
  %3514 = vmatpush.bf16.msra.mxu0 %v2333
  %3515 = vmatpush.bf16.msra.mxu0 %v2331
  %3516 = vmatpush.bf16.msra.mxu0 %v2329
  %3517 = vmatpush.bf16.msra.mxu0 %v2327
  %3518 = vmatpush.bf16.msra.mxu0 %v2325
  %3519 = vmatpush.bf16.msra.mxu0 %v2323
  %3520 = vmatmul.bf16.gmra.mxu0 %v582
  %v3521 = vpop.f32.mrf.mxu0
  %v3522 = vadd.f32 %v3508, %v3521
  %v3523 = vpop.f32.mrf.mxu0
  %v3524 = vadd.f32 %v3510, %v3523
  %3525 = vdwg.mxu0
  %v3526 = vld [vmem:[%s2] sm:$0xff]
  %v3527 = vld [vmem:[%s2 + $0x8] sm:$0xff]
  %3529 = vset.pattern.permute.xlu0 0
  %3530 = vperm.xlu0 %3529, %v3526
  %v3531 = vpop.permute.xlu0 %3530
  %3534 = vset.pattern.permute.xlu0 0
  %3535 = vperm.xlu0 %3534, %v3527
  %v3536 = vpop.permute.xlu0 %3535
  %v3538 = vmul.f32 %v3144, %v3531
  %v3539 = vmul.f32 %v3522, %v3531
  %v3540 = vmul.f32 %v3146, %v3536
  %v3541 = vmul.f32 %v3524, %v3536
  %v3542 = vadd.f32 %v3538, %v3540
  %v3543 = vrot.slane %v3542, 4
  %v3544 = vadd.f32 %v3542, %v3543
  %v3545 = vrot.slane %v3544, 2
  %v3546 = vadd.f32 %v3544, %v3545
  %v3547 = vrot.slane %v3546, 1
  %v3548 = vadd.f32 %v3546, %v3547
  %v3549 = vadd.f32 %v3539, %v3541
  %v3550 = vrot.slane %v3549, 4
  %v3551 = vadd.f32 %v3549, %v3550
  %v3552 = vrot.slane %v3551, 2
  %v3553 = vadd.f32 %v3551, %v3552
  %v3554 = vrot.slane %v3553, 1
  %v3555 = vadd.f32 %v3553, %v3554
  %v3556 = vmul.f32 %v3548, 0.0625
  %v3557 = vmul.f32 %v3555, 0.0625
  %v3558 = vsub.f32 %v3538, %v3556
  %v3559 = vsub.f32 %v3539, %v3557
  %v3560 = vsub.f32 %v3540, %v3556
  %v3561 = vsub.f32 %v3541, %v3557
  %v3562 = vmul.f32 %v3558, %v3558
  %v3563 = vmul.f32 %v3559, %v3559
  %v3564 = vmul.f32 %v3560, %v3560
  %v3565 = vmul.f32 %v3561, %v3561
  %v3566 = vadd.f32 %v3562, %v3564
  %v3567 = vrot.slane %v3566, 4
  %v3568 = vadd.f32 %v3566, %v3567
  %v3569 = vrot.slane %v3568, 2
  %v3570 = vadd.f32 %v3568, %v3569
  %v3571 = vrot.slane %v3570, 1
  %v3572 = vadd.f32 %v3570, %v3571
  %v3573 = vadd.f32 %v3563, %v3565
  %v3574 = vrot.slane %v3573, 4
  %v3575 = vadd.f32 %v3573, %v3574
  %v3576 = vrot.slane %v3575, 2
  %v3577 = vadd.f32 %v3575, %v3576
  %v3578 = vrot.slane %v3577, 1
  %v3579 = vadd.f32 %v3577, %v3578
  %v3580 = vmul.f32 %v3572, 0.0625
  %v3581 = vmul.f32 %v3579, 0.0625
  %v3582 = vadd.f32 %v3580, 1e-05
  %v3583 = vadd.f32 %v3581, 1e-05
  %v3584 = vrsqrt.pop %v3582
  %v3585 = vmul.f32 %v3584, %v3582
  %v3586 = vmul.f32 %v3585, %v3584
  %v3587 = vmul.f32 0.5, %v3586
  %v3588 = vsub.f32 1.5, %v3587
  %v3589 = vmul.f32 %v3584, %v3588
  %vm3590 = vweird.f32 %v3582
  %vm3591 = vweird.f32 %v3584
  %vm3592 = vmor %vm3590, %vm3591
  %v3593 = vsel %vm3592, %v3584, %v3589
  %v3594 = vrsqrt.pop %v3583
  %v3595 = vmul.f32 %v3594, %v3583
  %v3596 = vmul.f32 %v3595, %v3594
  %v3597 = vmul.f32 0.5, %v3596
  %v3598 = vsub.f32 1.5, %v3597
  %v3599 = vmul.f32 %v3594, %v3598
  %vm3600 = vweird.f32 %v3583
  %vm3601 = vweird.f32 %v3594
  %vm3602 = vmor %vm3600, %vm3601
  %v3603 = vsel %vm3602, %v3594, %v3599
  %v3604 = vmul.f32 %v3558, %v3593
  %v3605 = vmul.f32 %v3559, %v3603
  %v3606 = vmul.f32 %v3560, %v3593
  %v3607 = vmul.f32 %v3561, %v3603
  %v3608 = vmax.f32 %v3604, 0.0
  %v3609 = vmax.f32 %v3605, 0.0
  %v3610 = vmax.f32 %v3606, 0.0
  %v3611 = vmax.f32 %v3607, 0.0
  %3612 = vst [vmem:[%s3] sm:$0xff] %v3608
  %3613 = vst [vmem:[%s3 + $0x8] sm:$0xff] %v3609
  %3614 = vst [vmem:[%s3 + $0x10] sm:$0xff] %v3610
  %3615 = vst [vmem:[%s3 + $0x18] sm:$0xff] %v3611
  // Predicated region
  $region14: #{discriminator_forward.6} parent=0 // pred_check
    _
  $region15: #{discriminator_forward.6} parent=0 // pred_check_branch
    %3617 = sbr.rel (0) target = $region17
  $region16: #{discriminator_forward.6} parent=0 // pred_region
    _
  $region17: #{discriminator_forward.6} parent=0 // pred_fallthru
    _
  // Predicated region
  $region18: #{discriminator_forward.6} parent=0 // pred_check
    _
  $region19: #{discriminator_forward.6} parent=0 // pred_check_branch
    %3619 = sbr.rel (0) target = $region21
  $region20: #{discriminator_forward.6} parent=0 // pred_region
    _
  $region21: #{discriminator_forward.6} parent=0 // pred_fallthru
    _

// kernel: discriminator_forward.7
$region0: #{discriminator_forward.7}
  #allocation0 [shape = 'u32[]', space=smem, size = 0x4, offset = 0x4, fixed_abs, tag = 'smem constant byte address 0x4 - core index']
  #allocation1 [shape = 'u32[72,128]{1,0:T(1,128)}', space=vmem, size = 0x9000, scoped, tag = 'internal scratch']
  %s0 = inlined_call_operand.vmem [shape: bf16[8,2048], index: 0, kind: input, shape index: {}]
  %s1 = inlined_call_operand.vmem [shape: f32[8,1], index: 1, kind: input, shape index: {}]
  %s2 = inlined_call_operand.vmem [shape: bf16[2048,512], index: 2, kind: input, shape index: {}]
  %s3 = inlined_call_operand.vmem [shape: bf16[512,512], index: 3, kind: input, shape index: {}]
  %s4 = inlined_call_operand.vmem [shape: bf16[512,512], index: 4, kind: input, shape index: {}]
  %s5 = inlined_call_operand.vmem [shape: bf16[512,128], index: 5, kind: input, shape index: {}]
  %s6 = inlined_call_operand.vmem [shape: f32[8,128], index: 6, kind: output, shape index: {}]
  %s7 = sld [smem:[#allocation0]]
  $region34: #{discriminator_forward.7} parent=0
    _
  %s9 = ssub.s32 1, %s7
  %s10 = scalar_select 0, %s9, %s7
  // Predicated region
  $region2: #{discriminator_forward.7} parent=0 // pred_check
    _
  $region3: #{discriminator_forward.7} parent=0 // pred_check_branch
    %12 = sbr.rel (0) target = $region5
  $region4: #{discriminator_forward.7} parent=0 // pred_region
    _
  $region5: #{discriminator_forward.7} parent=0 // pred_fallthru
    _
  // Predicated region
  $region6: #{discriminator_forward.7} parent=0 // pred_check
    _
  $region7: #{discriminator_forward.7} parent=0 // pred_check_branch
    %14 = sbr.rel (0) target = $region9
  $region8: #{discriminator_forward.7} parent=0 // pred_region
    _
  $region9: #{discriminator_forward.7} parent=0 // pred_fallthru
    _
  // Predicated region
  $region10: #{discriminator_forward.7} parent=0 // pred_check
    _
  $region11: #{discriminator_forward.7} parent=0 // pred_check_branch
    %16 = sbr.rel (0) target = $region13
  $region12: #{discriminator_forward.7} parent=0 // pred_region
    _
  $region13: #{discriminator_forward.7} parent=0 // pred_fallthru
    _
  // Predicated region
  $region14: #{discriminator_forward.7} parent=0 // pred_check
    _
  $region15: #{discriminator_forward.7} parent=0 // pred_check_branch
    %18 = sbr.rel (0) target = $region17
  $region16: #{discriminator_forward.7} parent=0 // pred_region
    _
  $region17: #{discriminator_forward.7} parent=0 // pred_fallthru
    _
  // Predicated region
  $region18: #{discriminator_forward.7} parent=0 // pred_check
    _
  $region19: #{discriminator_forward.7} parent=0 // pred_check_branch
    %20 = sbr.rel (0) target = $region21
  $region20: #{discriminator_forward.7} parent=0 // pred_region
    _
  $region21: #{discriminator_forward.7} parent=0 // pred_fallthru
    _
  // Predicated region
  $region22: #{discriminator_forward.7} parent=0 // pred_check
    _
  $region23: #{discriminator_forward.7} parent=0 // pred_check_branch
    %22 = sbr.rel (0) target = $region25
  $region24: #{discriminator_forward.7} parent=0 // pred_region
    _
  $region25: #{discriminator_forward.7} parent=0 // pred_fallthru
    _
  %v23 = vld [vmem:[%s1] sm:$0xff]
  %v24 = vld [vmem:[%s0] sm:$0xff]
  %v25 = vld [vmem:[%s0 + $0x8] sm:$0xff]
  %v26 = vld [vmem:[%s0 + $0x10] sm:$0xff]
  %v27 = vld [vmem:[%s0 + $0x18] sm:$0xff]
  %v28 = vld [vmem:[%s0 + $0x20] sm:$0xff]
  %v29 = vld [vmem:[%s0 + $0x28] sm:$0xff]
  %v30 = vld [vmem:[%s0 + $0x30] sm:$0xff]
  %v31 = vld [vmem:[%s0 + $0x38] sm:$0xff]
  %v32 = vld [vmem:[%s2] sm:$0xff]
  %v33 = vld [vmem:[%s2 + $0x8] sm:$0xff]
  %v34 = vld [vmem:[%s2 + $0x10] sm:$0xff]
  %v35 = vld [vmem:[%s2 + $0x18] sm:$0xff]
  %v36 = vld [vmem:[%s2 + $0x20] sm:$0xff]
  %v37 = vld [vmem:[%s2 + $0x28] sm:$0xff]
  %v38 = vld [vmem:[%s2 + $0x30] sm:$0xff]
  %v39 = vld [vmem:[%s2 + $0x38] sm:$0xff]
  %v40 = vld [vmem:[%s2 + $0x40] sm:$0xff]
  %v41 = vld [vmem:[%s2 + $0x48] sm:$0xff]
  %v42 = vld [vmem:[%s2 + $0x50] sm:$0xff]
  %v43 = vld [vmem:[%s2 + $0x58] sm:$0xff]
  %v44 = vld [vmem:[%s2 + $0x60] sm:$0xff]
  %v45 = vld [vmem:[%s2 + $0x68] sm:$0xff]
  %v46 = vld [vmem:[%s2 + $0x70] sm:$0xff]
  %v47 = vld [vmem:[%s2 + $0x78] sm:$0xff]
  %v48 = vld [vmem:[%s2 + $0x80] sm:$0xff]
  %v49 = vld [vmem:[%s2 + $0x88] sm:$0xff]
  %v50 = vld [vmem:[%s2 + $0x90] sm:$0xff]
  %v51 = vld [vmem:[%s2 + $0x98] sm:$0xff]
  %v52 = vld [vmem:[%s2 + $0xa0] sm:$0xff]
  %v53 = vld [vmem:[%s2 + $0xa8] sm:$0xff]
  %v54 = vld [vmem:[%s2 + $0xb0] sm:$0xff]
  %v55 = vld [vmem:[%s2 + $0xb8] sm:$0xff]
  %v56 = vld [vmem:[%s2 + $0xc0] sm:$0xff]
  %v57 = vld [vmem:[%s2 + $0xc8] sm:$0xff]
  %v58 = vld [vmem:[%s2 + $0xd0] sm:$0xff]
  %v59 = vld [vmem:[%s2 + $0xd8] sm:$0xff]
  %v60 = vld [vmem:[%s2 + $0xe0] sm:$0xff]
  %v61 = vld [vmem:[%s2 + $0xe8] sm:$0xff]
  %v62 = vld [vmem:[%s2 + $0xf0] sm:$0xff]
  %v63 = vld [vmem:[%s2 + $0xf8] sm:$0xff]
  %v64 = vld [vmem:[%s2 + $0x100] sm:$0xff]
  %v65 = vld [vmem:[%s2 + $0x108] sm:$0xff]
  %v66 = vld [vmem:[%s2 + $0x110] sm:$0xff]
  %v67 = vld [vmem:[%s2 + $0x118] sm:$0xff]
  %v68 = vld [vmem:[%s2 + $0x120] sm:$0xff]
  %v69 = vld [vmem:[%s2 + $0x128] sm:$0xff]
  %v70 = vld [vmem:[%s2 + $0x130] sm:$0xff]
  %v71 = vld [vmem:[%s2 + $0x138] sm:$0xff]
  %v72 = vld [vmem:[%s2 + $0x140] sm:$0xff]
  %v73 = vld [vmem:[%s2 + $0x148] sm:$0xff]
  %v74 = vld [vmem:[%s2 + $0x150] sm:$0xff]
  %v75 = vld [vmem:[%s2 + $0x158] sm:$0xff]
  %v76 = vld [vmem:[%s2 + $0x160] sm:$0xff]
  %v77 = vld [vmem:[%s2 + $0x168] sm:$0xff]
  %v78 = vld [vmem:[%s2 + $0x170] sm:$0xff]
  %v79 = vld [vmem:[%s2 + $0x178] sm:$0xff]
  %v80 = vld [vmem:[%s2 + $0x180] sm:$0xff]
  %v81 = vld [vmem:[%s2 + $0x188] sm:$0xff]
  %v82 = vld [vmem:[%s2 + $0x190] sm:$0xff]
  %v83 = vld [vmem:[%s2 + $0x198] sm:$0xff]
  %v84 = vld [vmem:[%s2 + $0x1a0] sm:$0xff]
  %v85 = vld [vmem:[%s2 + $0x1a8] sm:$0xff]
  %v86 = vld [vmem:[%s2 + $0x1b0] sm:$0xff]
  %v87 = vld [vmem:[%s2 + $0x1b8] sm:$0xff]
  %v88 = vld [vmem:[%s2 + $0x1c0] sm:$0xff]
  %v89 = vld [vmem:[%s2 + $0x1c8] sm:$0xff]
  %v90 = vld [vmem:[%s2 + $0x1d0] sm:$0xff]
  %v91 = vld [vmem:[%s2 + $0x1d8] sm:$0xff]
  %v92 = vld [vmem:[%s2 + $0x1e0] sm:$0xff]
  %v93 = vld [vmem:[%s2 + $0x1e8] sm:$0xff]
  %v94 = vld [vmem:[%s2 + $0x1f0] sm:$0xff]
  %v95 = vld [vmem:[%s2 + $0x1f8] sm:$0xff]
  %v96 = vld [vmem:[%s2 + $0x200] sm:$0xff]
  %v97 = vld [vmem:[%s2 + $0x208] sm:$0xff]
  %v98 = vld [vmem:[%s2 + $0x210] sm:$0xff]
  %v99 = vld [vmem:[%s2 + $0x218] sm:$0xff]
  %v100 = vld [vmem:[%s2 + $0x220] sm:$0xff]
  %v101 = vld [vmem:[%s2 + $0x228] sm:$0xff]
  %v102 = vld [vmem:[%s2 + $0x230] sm:$0xff]
  %v103 = vld [vmem:[%s2 + $0x238] sm:$0xff]
  %v104 = vld [vmem:[%s2 + $0x240] sm:$0xff]
  %v105 = vld [vmem:[%s2 + $0x248] sm:$0xff]
  %v106 = vld [vmem:[%s2 + $0x250] sm:$0xff]
  %v107 = vld [vmem:[%s2 + $0x258] sm:$0xff]
  %v108 = vld [vmem:[%s2 + $0x260] sm:$0xff]
  %v109 = vld [vmem:[%s2 + $0x268] sm:$0xff]
  %v110 = vld [vmem:[%s2 + $0x270] sm:$0xff]
  %v111 = vld [vmem:[%s2 + $0x278] sm:$0xff]
  %v112 = vld [vmem:[%s2 + $0x280] sm:$0xff]
  %v113 = vld [vmem:[%s2 + $0x288] sm:$0xff]
  %v114 = vld [vmem:[%s2 + $0x290] sm:$0xff]
  %v115 = vld [vmem:[%s2 + $0x298] sm:$0xff]
  %v116 = vld [vmem:[%s2 + $0x2a0] sm:$0xff]
  %v117 = vld [vmem:[%s2 + $0x2a8] sm:$0xff]
  %v118 = vld [vmem:[%s2 + $0x2b0] sm:$0xff]
  %v119 = vld [vmem:[%s2 + $0x2b8] sm:$0xff]
  %v120 = vld [vmem:[%s2 + $0x2c0] sm:$0xff]
  %v121 = vld [vmem:[%s2 + $0x2c8] sm:$0xff]
  %v122 = vld [vmem:[%s2 + $0x2d0] sm:$0xff]
  %v123 = vld [vmem:[%s2 + $0x2d8] sm:$0xff]
  %v124 = vld [vmem:[%s2 + $0x2e0] sm:$0xff]
  %v125 = vld [vmem:[%s2 + $0x2e8] sm:$0xff]
  %v126 = vld [vmem:[%s2 + $0x2f0] sm:$0xff]
  %v127 = vld [vmem:[%s2 + $0x2f8] sm:$0xff]
  %v128 = vld [vmem:[%s2 + $0x300] sm:$0xff]
  %v129 = vld [vmem:[%s2 + $0x308] sm:$0xff]
  %v130 = vld [vmem:[%s2 + $0x310] sm:$0xff]
  %v131 = vld [vmem:[%s2 + $0x318] sm:$0xff]
  %v132 = vld [vmem:[%s2 + $0x320] sm:$0xff]
  %v133 = vld [vmem:[%s2 + $0x328] sm:$0xff]
  %v134 = vld [vmem:[%s2 + $0x330] sm:$0xff]
  %v135 = vld [vmem:[%s2 + $0x338] sm:$0xff]
  %v136 = vld [vmem:[%s2 + $0x340] sm:$0xff]
  %v137 = vld [vmem:[%s2 + $0x348] sm:$0xff]
  %v138 = vld [vmem:[%s2 + $0x350] sm:$0xff]
  %v139 = vld [vmem:[%s2 + $0x358] sm:$0xff]
  %v140 = vld [vmem:[%s2 + $0x360] sm:$0xff]
  %v141 = vld [vmem:[%s2 + $0x368] sm:$0xff]
  %v142 = vld [vmem:[%s2 + $0x370] sm:$0xff]
  %v143 = vld [vmem:[%s2 + $0x378] sm:$0xff]
  %v144 = vld [vmem:[%s2 + $0x380] sm:$0xff]
  %v145 = vld [vmem:[%s2 + $0x388] sm:$0xff]
  %v146 = vld [vmem:[%s2 + $0x390] sm:$0xff]
  %v147 = vld [vmem:[%s2 + $0x398] sm:$0xff]
  %v148 = vld [vmem:[%s2 + $0x3a0] sm:$0xff]
  %v149 = vld [vmem:[%s2 + $0x3a8] sm:$0xff]
  %v150 = vld [vmem:[%s2 + $0x3b0] sm:$0xff]
  %v151 = vld [vmem:[%s2 + $0x3b8] sm:$0xff]
  %v152 = vld [vmem:[%s2 + $0x3c0] sm:$0xff]
  %v153 = vld [vmem:[%s2 + $0x3c8] sm:$0xff]
  %v154 = vld [vmem:[%s2 + $0x3d0] sm:$0xff]
  %v155 = vld [vmem:[%s2 + $0x3d8] sm:$0xff]
  %v156 = vld [vmem:[%s2 + $0x3e0] sm:$0xff]
  %v157 = vld [vmem:[%s2 + $0x3e8] sm:$0xff]
  %v158 = vld [vmem:[%s2 + $0x3f0] sm:$0xff]
  %v159 = vld [vmem:[%s2 + $0x3f8] sm:$0xff]
  %v160 = vld [vmem:[%s2 + $0x400] sm:$0xff]
  %v161 = vld [vmem:[%s2 + $0x408] sm:$0xff]
  %v162 = vld [vmem:[%s2 + $0x410] sm:$0xff]
  %v163 = vld [vmem:[%s2 + $0x418] sm:$0xff]
  %v164 = vld [vmem:[%s2 + $0x420] sm:$0xff]
  %v165 = vld [vmem:[%s2 + $0x428] sm:$0xff]
  %v166 = vld [vmem:[%s2 + $0x430] sm:$0xff]
  %v167 = vld [vmem:[%s2 + $0x438] sm:$0xff]
  %v168 = vld [vmem:[%s2 + $0x440] sm:$0xff]
  %v169 = vld [vmem:[%s2 + $0x448] sm:$0xff]
  %v170 = vld [vmem:[%s2 + $0x450] sm:$0xff]
  %v171 = vld [vmem:[%s2 + $0x458] sm:$0xff]
  %v172 = vld [vmem:[%s2 + $0x460] sm:$0xff]
  %v173 = vld [vmem:[%s2 + $0x468] sm:$0xff]
  %v174 = vld [vmem:[%s2 + $0x470] sm:$0xff]
  %v175 = vld [vmem:[%s2 + $0x478] sm:$0xff]
  %v176 = vld [vmem:[%s2 + $0x480] sm:$0xff]
  %v177 = vld [vmem:[%s2 + $0x488] sm:$0xff]
  %v178 = vld [vmem:[%s2 + $0x490] sm:$0xff]
  %v179 = vld [vmem:[%s2 + $0x498] sm:$0xff]
  %v180 = vld [vmem:[%s2 + $0x4a0] sm:$0xff]
  %v181 = vld [vmem:[%s2 + $0x4a8] sm:$0xff]
  %v182 = vld [vmem:[%s2 + $0x4b0] sm:$0xff]
  %v183 = vld [vmem:[%s2 + $0x4b8] sm:$0xff]
  %v184 = vld [vmem:[%s2 + $0x4c0] sm:$0xff]
  %v185 = vld [vmem:[%s2 + $0x4c8] sm:$0xff]
  %v186 = vld [vmem:[%s2 + $0x4d0] sm:$0xff]
  %v187 = vld [vmem:[%s2 + $0x4d8] sm:$0xff]
  %v188 = vld [vmem:[%s2 + $0x4e0] sm:$0xff]
  %v189 = vld [vmem:[%s2 + $0x4e8] sm:$0xff]
  %v190 = vld [vmem:[%s2 + $0x4f0] sm:$0xff]
  %v191 = vld [vmem:[%s2 + $0x4f8] sm:$0xff]
  %v192 = vld [vmem:[%s2 + $0x500] sm:$0xff]
  %v193 = vld [vmem:[%s2 + $0x508] sm:$0xff]
  %v194 = vld [vmem:[%s2 + $0x510] sm:$0xff]
  %v195 = vld [vmem:[%s2 + $0x518] sm:$0xff]
  %v196 = vld [vmem:[%s2 + $0x520] sm:$0xff]
  %v197 = vld [vmem:[%s2 + $0x528] sm:$0xff]
  %v198 = vld [vmem:[%s2 + $0x530] sm:$0xff]
  %v199 = vld [vmem:[%s2 + $0x538] sm:$0xff]
  %v200 = vld [vmem:[%s2 + $0x540] sm:$0xff]
  %v201 = vld [vmem:[%s2 + $0x548] sm:$0xff]
  %v202 = vld [vmem:[%s2 + $0x550] sm:$0xff]
  %v203 = vld [vmem:[%s2 + $0x558] sm:$0xff]
  %v204 = vld [vmem:[%s2 + $0x560] sm:$0xff]
  %v205 = vld [vmem:[%s2 + $0x568] sm:$0xff]
  %v206 = vld [vmem:[%s2 + $0x570] sm:$0xff]
  %v207 = vld [vmem:[%s2 + $0x578] sm:$0xff]
  %v208 = vld [vmem:[%s2 + $0x580] sm:$0xff]
  %v209 = vld [vmem:[%s2 + $0x588] sm:$0xff]
  %v210 = vld [vmem:[%s2 + $0x590] sm:$0xff]
  %v211 = vld [vmem:[%s2 + $0x598] sm:$0xff]
  %v212 = vld [vmem:[%s2 + $0x5a0] sm:$0xff]
  %v213 = vld [vmem:[%s2 + $0x5a8] sm:$0xff]
  %v214 = vld [vmem:[%s2 + $0x5b0] sm:$0xff]
  %v215 = vld [vmem:[%s2 + $0x5b8] sm:$0xff]
  %v216 = vld [vmem:[%s2 + $0x5c0] sm:$0xff]
  %v217 = vld [vmem:[%s2 + $0x5c8] sm:$0xff]
  %v218 = vld [vmem:[%s2 + $0x5d0] sm:$0xff]
  %v219 = vld [vmem:[%s2 + $0x5d8] sm:$0xff]
  %v220 = vld [vmem:[%s2 + $0x5e0] sm:$0xff]
  %v221 = vld [vmem:[%s2 + $0x5e8] sm:$0xff]
  %v222 = vld [vmem:[%s2 + $0x5f0] sm:$0xff]
  %v223 = vld [vmem:[%s2 + $0x5f8] sm:$0xff]
  %v224 = vld [vmem:[%s2 + $0x600] sm:$0xff]
  %v225 = vld [vmem:[%s2 + $0x608] sm:$0xff]
  %v226 = vld [vmem:[%s2 + $0x610] sm:$0xff]
  %v227 = vld [vmem:[%s2 + $0x618] sm:$0xff]
  %v228 = vld [vmem:[%s2 + $0x620] sm:$0xff]
  %v229 = vld [vmem:[%s2 + $0x628] sm:$0xff]
  %v230 = vld [vmem:[%s2 + $0x630] sm:$0xff]
  %v231 = vld [vmem:[%s2 + $0x638] sm:$0xff]
  %v232 = vld [vmem:[%s2 + $0x640] sm:$0xff]
  %v233 = vld [vmem:[%s2 + $0x648] sm:$0xff]
  %v234 = vld [vmem:[%s2 + $0x650] sm:$0xff]
  %v235 = vld [vmem:[%s2 + $0x658] sm:$0xff]
  %v236 = vld [vmem:[%s2 + $0x660] sm:$0xff]
  %v237 = vld [vmem:[%s2 + $0x668] sm:$0xff]
  %v238 = vld [vmem:[%s2 + $0x670] sm:$0xff]
  %v239 = vld [vmem:[%s2 + $0x678] sm:$0xff]
  %v240 = vld [vmem:[%s2 + $0x680] sm:$0xff]
  %v241 = vld [vmem:[%s2 + $0x688] sm:$0xff]
  %v242 = vld [vmem:[%s2 + $0x690] sm:$0xff]
  %v243 = vld [vmem:[%s2 + $0x698] sm:$0xff]
  %v244 = vld [vmem:[%s2 + $0x6a0] sm:$0xff]
  %v245 = vld [vmem:[%s2 + $0x6a8] sm:$0xff]
  %v246 = vld [vmem:[%s2 + $0x6b0] sm:$0xff]
  %v247 = vld [vmem:[%s2 + $0x6b8] sm:$0xff]
  %v248 = vld [vmem:[%s2 + $0x6c0] sm:$0xff]
  %v249 = vld [vmem:[%s2 + $0x6c8] sm:$0xff]
  %v250 = vld [vmem:[%s2 + $0x6d0] sm:$0xff]
  %v251 = vld [vmem:[%s2 + $0x6d8] sm:$0xff]
  %v252 = vld [vmem:[%s2 + $0x6e0] sm:$0xff]
  %v253 = vld [vmem:[%s2 + $0x6e8] sm:$0xff]
  %v254 = vld [vmem:[%s2 + $0x6f0] sm:$0xff]
  %v255 = vld [vmem:[%s2 + $0x6f8] sm:$0xff]
  %v256 = vld [vmem:[%s2 + $0x700] sm:$0xff]
  %v257 = vld [vmem:[%s2 + $0x708] sm:$0xff]
  %v258 = vld [vmem:[%s2 + $0x710] sm:$0xff]
  %v259 = vld [vmem:[%s2 + $0x718] sm:$0xff]
  %v260 = vld [vmem:[%s2 + $0x720] sm:$0xff]
  %v261 = vld [vmem:[%s2 + $0x728] sm:$0xff]
  %v262 = vld [vmem:[%s2 + $0x730] sm:$0xff]
  %v263 = vld [vmem:[%s2 + $0x738] sm:$0xff]
  %v264 = vld [vmem:[%s2 + $0x740] sm:$0xff]
  %v265 = vld [vmem:[%s2 + $0x748] sm:$0xff]
  %v266 = vld [vmem:[%s2 + $0x750] sm:$0xff]
  %v267 = vld [vmem:[%s2 + $0x758] sm:$0xff]
  %v268 = vld [vmem:[%s2 + $0x760] sm:$0xff]
  %v269 = vld [vmem:[%s2 + $0x768] sm:$0xff]
  %v270 = vld [vmem:[%s2 + $0x770] sm:$0xff]
  %v271 = vld [vmem:[%s2 + $0x778] sm:$0xff]
  %v272 = vld [vmem:[%s2 + $0x780] sm:$0xff]
  %v273 = vld [vmem:[%s2 + $0x788] sm:$0xff]
  %v274 = vld [vmem:[%s2 + $0x790] sm:$0xff]
  %v275 = vld [vmem:[%s2 + $0x798] sm:$0xff]
  %v276 = vld [vmem:[%s2 + $0x7a0] sm:$0xff]
  %v277 = vld [vmem:[%s2 + $0x7a8] sm:$0xff]
  %v278 = vld [vmem:[%s2 + $0x7b0] sm:$0xff]
  %v279 = vld [vmem:[%s2 + $0x7b8] sm:$0xff]
  %v280 = vld [vmem:[%s2 + $0x7c0] sm:$0xff]
  %v281 = vld [vmem:[%s2 + $0x7c8] sm:$0xff]
  %v282 = vld [vmem:[%s2 + $0x7d0] sm:$0xff]
  %v283 = vld [vmem:[%s2 + $0x7d8] sm:$0xff]
  %v284 = vld [vmem:[%s2 + $0x7e0] sm:$0xff]
  %v285 = vld [vmem:[%s2 + $0x7e8] sm:$0xff]
  %v286 = vld [vmem:[%s2 + $0x7f0] sm:$0xff]
  %v287 = vld [vmem:[%s2 + $0x7f8] sm:$0xff]
  %v288 = vld [vmem:[%s2 + $0x800] sm:$0xff]
  %v289 = vld [vmem:[%s2 + $0x808] sm:$0xff]
  %v290 = vld [vmem:[%s2 + $0x810] sm:$0xff]
  %v291 = vld [vmem:[%s2 + $0x818] sm:$0xff]
  %v292 = vld [vmem:[%s2 + $0x820] sm:$0xff]
  %v293 = vld [vmem:[%s2 + $0x828] sm:$0xff]
  %v294 = vld [vmem:[%s2 + $0x830] sm:$0xff]
  %v295 = vld [vmem:[%s2 + $0x838] sm:$0xff]
  %v296 = vld [vmem:[%s2 + $0x840] sm:$0xff]
  %v297 = vld [vmem:[%s2 + $0x848] sm:$0xff]
  %v298 = vld [vmem:[%s2 + $0x850] sm:$0xff]
  %v299 = vld [vmem:[%s2 + $0x858] sm:$0xff]
  %v300 = vld [vmem:[%s2 + $0x860] sm:$0xff]
  %v301 = vld [vmem:[%s2 + $0x868] sm:$0xff]
  %v302 = vld [vmem:[%s2 + $0x870] sm:$0xff]
  %v303 = vld [vmem:[%s2 + $0x878] sm:$0xff]
  %v304 = vld [vmem:[%s2 + $0x880] sm:$0xff]
  %v305 = vld [vmem:[%s2 + $0x888] sm:$0xff]
  %v306 = vld [vmem:[%s2 + $0x890] sm:$0xff]
  %v307 = vld [vmem:[%s2 + $0x898] sm:$0xff]
  %v308 = vld [vmem:[%s2 + $0x8a0] sm:$0xff]
  %v309 = vld [vmem:[%s2 + $0x8a8] sm:$0xff]
  %v310 = vld [vmem:[%s2 + $0x8b0] sm:$0xff]
  %v311 = vld [vmem:[%s2 + $0x8b8] sm:$0xff]
  %v312 = vld [vmem:[%s2 + $0x8c0] sm:$0xff]
  %v313 = vld [vmem:[%s2 + $0x8c8] sm:$0xff]
  %v314 = vld [vmem:[%s2 + $0x8d0] sm:$0xff]
  %v315 = vld [vmem:[%s2 + $0x8d8] sm:$0xff]
  %v316 = vld [vmem:[%s2 + $0x8e0] sm:$0xff]
  %v317 = vld [vmem:[%s2 + $0x8e8] sm:$0xff]
  %v318 = vld [vmem:[%s2 + $0x8f0] sm:$0xff]
  %v319 = vld [vmem:[%s2 + $0x8f8] sm:$0xff]
  %v320 = vld [vmem:[%s2 + $0x900] sm:$0xff]
  %v321 = vld [vmem:[%s2 + $0x908] sm:$0xff]
  %v322 = vld [vmem:[%s2 + $0x910] sm:$0xff]
  %v323 = vld [vmem:[%s2 + $0x918] sm:$0xff]
  %v324 = vld [vmem:[%s2 + $0x920] sm:$0xff]
  %v325 = vld [vmem:[%s2 + $0x928] sm:$0xff]
  %v326 = vld [vmem:[%s2 + $0x930] sm:$0xff]
  %v327 = vld [vmem:[%s2 + $0x938] sm:$0xff]
  %v328 = vld [vmem:[%s2 + $0x940] sm:$0xff]
  %v329 = vld [vmem:[%s2 + $0x948] sm:$0xff]
  %v330 = vld [vmem:[%s2 + $0x950] sm:$0xff]
  %v331 = vld [vmem:[%s2 + $0x958] sm:$0xff]
  %v332 = vld [vmem:[%s2 + $0x960] sm:$0xff]
  %v333 = vld [vmem:[%s2 + $0x968] sm:$0xff]
  %v334 = vld [vmem:[%s2 + $0x970] sm:$0xff]
  %v335 = vld [vmem:[%s2 + $0x978] sm:$0xff]
  %v336 = vld [vmem:[%s2 + $0x980] sm:$0xff]
  %v337 = vld [vmem:[%s2 + $0x988] sm:$0xff]
  %v338 = vld [vmem:[%s2 + $0x990] sm:$0xff]
  %v339 = vld [vmem:[%s2 + $0x998] sm:$0xff]
  %v340 = vld [vmem:[%s2 + $0x9a0] sm:$0xff]
  %v341 = vld [vmem:[%s2 + $0x9a8] sm:$0xff]
  %v342 = vld [vmem:[%s2 + $0x9b0] sm:$0xff]
  %v343 = vld [vmem:[%s2 + $0x9b8] sm:$0xff]
  %v344 = vld [vmem:[%s2 + $0x9c0] sm:$0xff]
  %v345 = vld [vmem:[%s2 + $0x9c8] sm:$0xff]
  %v346 = vld [vmem:[%s2 + $0x9d0] sm:$0xff]
  %v347 = vld [vmem:[%s2 + $0x9d8] sm:$0xff]
  %v348 = vld [vmem:[%s2 + $0x9e0] sm:$0xff]
  %v349 = vld [vmem:[%s2 + $0x9e8] sm:$0xff]
  %v350 = vld [vmem:[%s2 + $0x9f0] sm:$0xff]
  %v351 = vld [vmem:[%s2 + $0x9f8] sm:$0xff]
  %v352 = vld [vmem:[%s2 + $0xa00] sm:$0xff]
  %v353 = vld [vmem:[%s2 + $0xa08] sm:$0xff]
  %v354 = vld [vmem:[%s2 + $0xa10] sm:$0xff]
  %v355 = vld [vmem:[%s2 + $0xa18] sm:$0xff]
  %v356 = vld [vmem:[%s2 + $0xa20] sm:$0xff]
  %v357 = vld [vmem:[%s2 + $0xa28] sm:$0xff]
  %v358 = vld [vmem:[%s2 + $0xa30] sm:$0xff]
  %v359 = vld [vmem:[%s2 + $0xa38] sm:$0xff]
  %v360 = vld [vmem:[%s2 + $0xa40] sm:$0xff]
  %v361 = vld [vmem:[%s2 + $0xa48] sm:$0xff]
  %v362 = vld [vmem:[%s2 + $0xa50] sm:$0xff]
  %v363 = vld [vmem:[%s2 + $0xa58] sm:$0xff]
  %v364 = vld [vmem:[%s2 + $0xa60] sm:$0xff]
  %v365 = vld [vmem:[%s2 + $0xa68] sm:$0xff]
  %v366 = vld [vmem:[%s2 + $0xa70] sm:$0xff]
  %v367 = vld [vmem:[%s2 + $0xa78] sm:$0xff]
  %v368 = vld [vmem:[%s2 + $0xa80] sm:$0xff]
  %v369 = vld [vmem:[%s2 + $0xa88] sm:$0xff]
  %v370 = vld [vmem:[%s2 + $0xa90] sm:$0xff]
  %v371 = vld [vmem:[%s2 + $0xa98] sm:$0xff]
  %v372 = vld [vmem:[%s2 + $0xaa0] sm:$0xff]
  %v373 = vld [vmem:[%s2 + $0xaa8] sm:$0xff]
  %v374 = vld [vmem:[%s2 + $0xab0] sm:$0xff]
  %v375 = vld [vmem:[%s2 + $0xab8] sm:$0xff]
  %v376 = vld [vmem:[%s2 + $0xac0] sm:$0xff]
  %v377 = vld [vmem:[%s2 + $0xac8] sm:$0xff]
  %v378 = vld [vmem:[%s2 + $0xad0] sm:$0xff]
  %v379 = vld [vmem:[%s2 + $0xad8] sm:$0xff]
  %v380 = vld [vmem:[%s2 + $0xae0] sm:$0xff]
  %v381 = vld [vmem:[%s2 + $0xae8] sm:$0xff]
  %v382 = vld [vmem:[%s2 + $0xaf0] sm:$0xff]
  %v383 = vld [vmem:[%s2 + $0xaf8] sm:$0xff]
  %v384 = vld [vmem:[%s2 + $0xb00] sm:$0xff]
  %v385 = vld [vmem:[%s2 + $0xb08] sm:$0xff]
  %v386 = vld [vmem:[%s2 + $0xb10] sm:$0xff]
  %v387 = vld [vmem:[%s2 + $0xb18] sm:$0xff]
  %v388 = vld [vmem:[%s2 + $0xb20] sm:$0xff]
  %v389 = vld [vmem:[%s2 + $0xb28] sm:$0xff]
  %v390 = vld [vmem:[%s2 + $0xb30] sm:$0xff]
  %v391 = vld [vmem:[%s2 + $0xb38] sm:$0xff]
  %v392 = vld [vmem:[%s2 + $0xb40] sm:$0xff]
  %v393 = vld [vmem:[%s2 + $0xb48] sm:$0xff]
  %v394 = vld [vmem:[%s2 + $0xb50] sm:$0xff]
  %v395 = vld [vmem:[%s2 + $0xb58] sm:$0xff]
  %v396 = vld [vmem:[%s2 + $0xb60] sm:$0xff]
  %v397 = vld [vmem:[%s2 + $0xb68] sm:$0xff]
  %v398 = vld [vmem:[%s2 + $0xb70] sm:$0xff]
  %v399 = vld [vmem:[%s2 + $0xb78] sm:$0xff]
  %v400 = vld [vmem:[%s2 + $0xb80] sm:$0xff]
  %v401 = vld [vmem:[%s2 + $0xb88] sm:$0xff]
  %v402 = vld [vmem:[%s2 + $0xb90] sm:$0xff]
  %v403 = vld [vmem:[%s2 + $0xb98] sm:$0xff]
  %v404 = vld [vmem:[%s2 + $0xba0] sm:$0xff]
  %v405 = vld [vmem:[%s2 + $0xba8] sm:$0xff]
  %v406 = vld [vmem:[%s2 + $0xbb0] sm:$0xff]
  %v407 = vld [vmem:[%s2 + $0xbb8] sm:$0xff]
  %v408 = vld [vmem:[%s2 + $0xbc0] sm:$0xff]
  %v409 = vld [vmem:[%s2 + $0xbc8] sm:$0xff]
  %v410 = vld [vmem:[%s2 + $0xbd0] sm:$0xff]
  %v411 = vld [vmem:[%s2 + $0xbd8] sm:$0xff]
  %v412 = vld [vmem:[%s2 + $0xbe0] sm:$0xff]
  %v413 = vld [vmem:[%s2 + $0xbe8] sm:$0xff]
  %v414 = vld [vmem:[%s2 + $0xbf0] sm:$0xff]
  %v415 = vld [vmem:[%s2 + $0xbf8] sm:$0xff]
  %v416 = vld [vmem:[%s2 + $0xc00] sm:$0xff]
  %v417 = vld [vmem:[%s2 + $0xc08] sm:$0xff]
  %v418 = vld [vmem:[%s2 + $0xc10] sm:$0xff]
  %v419 = vld [vmem:[%s2 + $0xc18] sm:$0xff]
  %v420 = vld [vmem:[%s2 + $0xc20] sm:$0xff]
  %v421 = vld [vmem:[%s2 + $0xc28] sm:$0xff]
  %v422 = vld [vmem:[%s2 + $0xc30] sm:$0xff]
  %v423 = vld [vmem:[%s2 + $0xc38] sm:$0xff]
  %v424 = vld [vmem:[%s2 + $0xc40] sm:$0xff]
  %v425 = vld [vmem:[%s2 + $0xc48] sm:$0xff]
  %v426 = vld [vmem:[%s2 + $0xc50] sm:$0xff]
  %v427 = vld [vmem:[%s2 + $0xc58] sm:$0xff]
  %v428 = vld [vmem:[%s2 + $0xc60] sm:$0xff]
  %v429 = vld [vmem:[%s2 + $0xc68] sm:$0xff]
  %v430 = vld [vmem:[%s2 + $0xc70] sm:$0xff]
  %v431 = vld [vmem:[%s2 + $0xc78] sm:$0xff]
  %v432 = vld [vmem:[%s2 + $0xc80] sm:$0xff]
  %v433 = vld [vmem:[%s2 + $0xc88] sm:$0xff]
  %v434 = vld [vmem:[%s2 + $0xc90] sm:$0xff]
  %v435 = vld [vmem:[%s2 + $0xc98] sm:$0xff]
  %v436 = vld [vmem:[%s2 + $0xca0] sm:$0xff]
  %v437 = vld [vmem:[%s2 + $0xca8] sm:$0xff]
  %v438 = vld [vmem:[%s2 + $0xcb0] sm:$0xff]
  %v439 = vld [vmem:[%s2 + $0xcb8] sm:$0xff]
  %v440 = vld [vmem:[%s2 + $0xcc0] sm:$0xff]
  %v441 = vld [vmem:[%s2 + $0xcc8] sm:$0xff]
  %v442 = vld [vmem:[%s2 + $0xcd0] sm:$0xff]
  %v443 = vld [vmem:[%s2 + $0xcd8] sm:$0xff]
  %v444 = vld [vmem:[%s2 + $0xce0] sm:$0xff]
  %v445 = vld [vmem:[%s2 + $0xce8] sm:$0xff]
  %v446 = vld [vmem:[%s2 + $0xcf0] sm:$0xff]
  %v447 = vld [vmem:[%s2 + $0xcf8] sm:$0xff]
  %v448 = vld [vmem:[%s2 + $0xd00] sm:$0xff]
  %v449 = vld [vmem:[%s2 + $0xd08] sm:$0xff]
  %v450 = vld [vmem:[%s2 + $0xd10] sm:$0xff]
  %v451 = vld [vmem:[%s2 + $0xd18] sm:$0xff]
  %v452 = vld [vmem:[%s2 + $0xd20] sm:$0xff]
  %v453 = vld [vmem:[%s2 + $0xd28] sm:$0xff]
  %v454 = vld [vmem:[%s2 + $0xd30] sm:$0xff]
  %v455 = vld [vmem:[%s2 + $0xd38] sm:$0xff]
  %v456 = vld [vmem:[%s2 + $0xd40] sm:$0xff]
  %v457 = vld [vmem:[%s2 + $0xd48] sm:$0xff]
  %v458 = vld [vmem:[%s2 + $0xd50] sm:$0xff]
  %v459 = vld [vmem:[%s2 + $0xd58] sm:$0xff]
  %v460 = vld [vmem:[%s2 + $0xd60] sm:$0xff]
  %v461 = vld [vmem:[%s2 + $0xd68] sm:$0xff]
  %v462 = vld [vmem:[%s2 + $0xd70] sm:$0xff]
  %v463 = vld [vmem:[%s2 + $0xd78] sm:$0xff]
  %v464 = vld [vmem:[%s2 + $0xd80] sm:$0xff]
  %v465 = vld [vmem:[%s2 + $0xd88] sm:$0xff]
  %v466 = vld [vmem:[%s2 + $0xd90] sm:$0xff]
  %v467 = vld [vmem:[%s2 + $0xd98] sm:$0xff]
  %v468 = vld [vmem:[%s2 + $0xda0] sm:$0xff]
  %v469 = vld [vmem:[%s2 + $0xda8] sm:$0xff]
  %v470 = vld [vmem:[%s2 + $0xdb0] sm:$0xff]
  %v471 = vld [vmem:[%s2 + $0xdb8] sm:$0xff]
  %v472 = vld [vmem:[%s2 + $0xdc0] sm:$0xff]
  %v473 = vld [vmem:[%s2 + $0xdc8] sm:$0xff]
  %v474 = vld [vmem:[%s2 + $0xdd0] sm:$0xff]
  %v475 = vld [vmem:[%s2 + $0xdd8] sm:$0xff]
  %v476 = vld [vmem:[%s2 + $0xde0] sm:$0xff]
  %v477 = vld [vmem:[%s2 + $0xde8] sm:$0xff]
  %v478 = vld [vmem:[%s2 + $0xdf0] sm:$0xff]
  %v479 = vld [vmem:[%s2 + $0xdf8] sm:$0xff]
  %v480 = vld [vmem:[%s2 + $0xe00] sm:$0xff]
  %v481 = vld [vmem:[%s2 + $0xe08] sm:$0xff]
  %v482 = vld [vmem:[%s2 + $0xe10] sm:$0xff]
  %v483 = vld [vmem:[%s2 + $0xe18] sm:$0xff]
  %v484 = vld [vmem:[%s2 + $0xe20] sm:$0xff]
  %v485 = vld [vmem:[%s2 + $0xe28] sm:$0xff]
  %v486 = vld [vmem:[%s2 + $0xe30] sm:$0xff]
  %v487 = vld [vmem:[%s2 + $0xe38] sm:$0xff]
  %v488 = vld [vmem:[%s2 + $0xe40] sm:$0xff]
  %v489 = vld [vmem:[%s2 + $0xe48] sm:$0xff]
  %v490 = vld [vmem:[%s2 + $0xe50] sm:$0xff]
  %v491 = vld [vmem:[%s2 + $0xe58] sm:$0xff]
  %v492 = vld [vmem:[%s2 + $0xe60] sm:$0xff]
  %v493 = vld [vmem:[%s2 + $0xe68] sm:$0xff]
  %v494 = vld [vmem:[%s2 + $0xe70] sm:$0xff]
  %v495 = vld [vmem:[%s2 + $0xe78] sm:$0xff]
  %v496 = vld [vmem:[%s2 + $0xe80] sm:$0xff]
  %v497 = vld [vmem:[%s2 + $0xe88] sm:$0xff]
  %v498 = vld [vmem:[%s2 + $0xe90] sm:$0xff]
  %v499 = vld [vmem:[%s2 + $0xe98] sm:$0xff]
  %v500 = vld [vmem:[%s2 + $0xea0] sm:$0xff]
  %v501 = vld [vmem:[%s2 + $0xea8] sm:$0xff]
  %v502 = vld [vmem:[%s2 + $0xeb0] sm:$0xff]
  %v503 = vld [vmem:[%s2 + $0xeb8] sm:$0xff]
  %v504 = vld [vmem:[%s2 + $0xec0] sm:$0xff]
  %v505 = vld [vmem:[%s2 + $0xec8] sm:$0xff]
  %v506 = vld [vmem:[%s2 + $0xed0] sm:$0xff]
  %v507 = vld [vmem:[%s2 + $0xed8] sm:$0xff]
  %v508 = vld [vmem:[%s2 + $0xee0] sm:$0xff]
  %v509 = vld [vmem:[%s2 + $0xee8] sm:$0xff]
  %v510 = vld [vmem:[%s2 + $0xef0] sm:$0xff]
  %v511 = vld [vmem:[%s2 + $0xef8] sm:$0xff]
  %v512 = vld [vmem:[%s2 + $0xf00] sm:$0xff]
  %v513 = vld [vmem:[%s2 + $0xf08] sm:$0xff]
  %v514 = vld [vmem:[%s2 + $0xf10] sm:$0xff]
  %v515 = vld [vmem:[%s2 + $0xf18] sm:$0xff]
  %v516 = vld [vmem:[%s2 + $0xf20] sm:$0xff]
  %v517 = vld [vmem:[%s2 + $0xf28] sm:$0xff]
  %v518 = vld [vmem:[%s2 + $0xf30] sm:$0xff]
  %v519 = vld [vmem:[%s2 + $0xf38] sm:$0xff]
  %v520 = vld [vmem:[%s2 + $0xf40] sm:$0xff]
  %v521 = vld [vmem:[%s2 + $0xf48] sm:$0xff]
  %v522 = vld [vmem:[%s2 + $0xf50] sm:$0xff]
  %v523 = vld [vmem:[%s2 + $0xf58] sm:$0xff]
  %v524 = vld [vmem:[%s2 + $0xf60] sm:$0xff]
  %v525 = vld [vmem:[%s2 + $0xf68] sm:$0xff]
  %v526 = vld [vmem:[%s2 + $0xf70] sm:$0xff]
  %v527 = vld [vmem:[%s2 + $0xf78] sm:$0xff]
  %v528 = vld [vmem:[%s2 + $0xf80] sm:$0xff]
  %v529 = vld [vmem:[%s2 + $0xf88] sm:$0xff]
  %v530 = vld [vmem:[%s2 + $0xf90] sm:$0xff]
  %v531 = vld [vmem:[%s2 + $0xf98] sm:$0xff]
  %v532 = vld [vmem:[%s2 + $0xfa0] sm:$0xff]
  %v533 = vld [vmem:[%s2 + $0xfa8] sm:$0xff]
  %v534 = vld [vmem:[%s2 + $0xfb0] sm:$0xff]
  %v535 = vld [vmem:[%s2 + $0xfb8] sm:$0xff]
  %v536 = vld [vmem:[%s2 + $0xfc0] sm:$0xff]
  %v537 = vld [vmem:[%s2 + $0xfc8] sm:$0xff]
  %v538 = vld [vmem:[%s2 + $0xfd0] sm:$0xff]
  %v539 = vld [vmem:[%s2 + $0xfd8] sm:$0xff]
  %v540 = vld [vmem:[%s2 + $0xfe0] sm:$0xff]
  %v541 = vld [vmem:[%s2 + $0xfe8] sm:$0xff]
  %v542 = vld [vmem:[%s2 + $0xff0] sm:$0xff]
  %v543 = vld [vmem:[%s2 + $0xff8] sm:$0xff]
  %v552 = vunpack.c.l.b16 %v24
  %v553 = vunpack.c.h.b16 %v24
  %v554 = vunpack.c.l.b16 %v25
  %v555 = vunpack.c.h.b16 %v25
  %v556 = vunpack.c.l.b16 %v26
  %v557 = vunpack.c.h.b16 %v26
  %v558 = vunpack.c.l.b16 %v27
  %v559 = vunpack.c.h.b16 %v27
  %v560 = vunpack.c.l.b16 %v28
  %v561 = vunpack.c.h.b16 %v28
  %v562 = vunpack.c.l.b16 %v29
  %v563 = vunpack.c.h.b16 %v29
  %v564 = vunpack.c.l.b16 %v30
  %v565 = vunpack.c.h.b16 %v30
  %v566 = vunpack.c.l.b16 %v31
  %v567 = vunpack.c.h.b16 %v31
  %v568 = vpack.c.b16 %v552, %v552
  %v569 = vpack.c.b16 %v553, %v553
  %v570 = vpack.c.b16 %v554, %v554
  %v571 = vpack.c.b16 %v555, %v555
  %v572 = vpack.c.b16 %v556, %v556
  %v573 = vpack.c.b16 %v557, %v557
  %v574 = vpack.c.b16 %v558, %v558
  %v575 = vpack.c.b16 %v559, %v559
  %v576 = vpack.c.b16 %v560, %v560
  %v577 = vpack.c.b16 %v561, %v561
  %v578 = vpack.c.b16 %v562, %v562
  %v579 = vpack.c.b16 %v563, %v563
  %v580 = vpack.c.b16 %v564, %v564
  %v581 = vpack.c.b16 %v565, %v565
  %v582 = vpack.c.b16 %v566, %v566
  %v583 = vpack.c.b16 %v567, %v567
  %v1112 = vunpack.c.l.b16 %v32
  %v1113 = vunpack.c.h.b16 %v32
  %v1114 = vunpack.c.l.b16 %v33
  %v1115 = vunpack.c.h.b16 %v33
  %v1116 = vunpack.c.l.b16 %v34
  %v1117 = vunpack.c.h.b16 %v34
  %v1118 = vunpack.c.l.b16 %v35
  %v1119 = vunpack.c.h.b16 %v35
  %v1120 = vunpack.c.l.b16 %v36
  %v1121 = vunpack.c.h.b16 %v36
  %v1122 = vunpack.c.l.b16 %v37
  %v1123 = vunpack.c.h.b16 %v37
  %v1124 = vunpack.c.l.b16 %v38
  %v1125 = vunpack.c.h.b16 %v38
  %v1126 = vunpack.c.l.b16 %v39
  %v1127 = vunpack.c.h.b16 %v39
  %v1128 = vunpack.c.l.b16 %v40
  %v1129 = vunpack.c.h.b16 %v40
  %v1130 = vunpack.c.l.b16 %v41
  %v1131 = vunpack.c.h.b16 %v41
  %v1132 = vunpack.c.l.b16 %v42
  %v1133 = vunpack.c.h.b16 %v42
  %v1134 = vunpack.c.l.b16 %v43
  %v1135 = vunpack.c.h.b16 %v43
  %v1136 = vunpack.c.l.b16 %v44
  %v1137 = vunpack.c.h.b16 %v44
  %v1138 = vunpack.c.l.b16 %v45
  %v1139 = vunpack.c.h.b16 %v45
  %v1140 = vunpack.c.l.b16 %v46
  %v1141 = vunpack.c.h.b16 %v46
  %v1142 = vunpack.c.l.b16 %v47
  %v1143 = vunpack.c.h.b16 %v47
  %v1144 = vunpack.c.l.b16 %v48
  %v1145 = vunpack.c.h.b16 %v48
  %v1146 = vunpack.c.l.b16 %v49
  %v1147 = vunpack.c.h.b16 %v49
  %v1148 = vunpack.c.l.b16 %v50
  %v1149 = vunpack.c.h.b16 %v50
  %v1150 = vunpack.c.l.b16 %v51
  %v1151 = vunpack.c.h.b16 %v51
  %v1152 = vunpack.c.l.b16 %v52
  %v1153 = vunpack.c.h.b16 %v52
  %v1154 = vunpack.c.l.b16 %v53
  %v1155 = vunpack.c.h.b16 %v53
  %v1156 = vunpack.c.l.b16 %v54
  %v1157 = vunpack.c.h.b16 %v54
  %v1158 = vunpack.c.l.b16 %v55
  %v1159 = vunpack.c.h.b16 %v55
  %v1160 = vunpack.c.l.b16 %v56
  %v1161 = vunpack.c.h.b16 %v56
  %v1162 = vunpack.c.l.b16 %v57
  %v1163 = vunpack.c.h.b16 %v57
  %v1164 = vunpack.c.l.b16 %v58
  %v1165 = vunpack.c.h.b16 %v58
  %v1166 = vunpack.c.l.b16 %v59
  %v1167 = vunpack.c.h.b16 %v59
  %v1168 = vunpack.c.l.b16 %v60
  %v1169 = vunpack.c.h.b16 %v60
  %v1170 = vunpack.c.l.b16 %v61
  %v1171 = vunpack.c.h.b16 %v61
  %v1172 = vunpack.c.l.b16 %v62
  %v1173 = vunpack.c.h.b16 %v62
  %v1174 = vunpack.c.l.b16 %v63
  %v1175 = vunpack.c.h.b16 %v63
  %v1176 = vunpack.c.l.b16 %v64
  %v1177 = vunpack.c.h.b16 %v64
  %v1178 = vunpack.c.l.b16 %v65
  %v1179 = vunpack.c.h.b16 %v65
  %v1180 = vunpack.c.l.b16 %v66
  %v1181 = vunpack.c.h.b16 %v66
  %v1182 = vunpack.c.l.b16 %v67
  %v1183 = vunpack.c.h.b16 %v67
  %v1184 = vunpack.c.l.b16 %v68
  %v1185 = vunpack.c.h.b16 %v68
  %v1186 = vunpack.c.l.b16 %v69
  %v1187 = vunpack.c.h.b16 %v69
  %v1188 = vunpack.c.l.b16 %v70
  %v1189 = vunpack.c.h.b16 %v70
  %v1190 = vunpack.c.l.b16 %v71
  %v1191 = vunpack.c.h.b16 %v71
  %v1192 = vunpack.c.l.b16 %v72
  %v1193 = vunpack.c.h.b16 %v72
  %v1194 = vunpack.c.l.b16 %v73
  %v1195 = vunpack.c.h.b16 %v73
  %v1196 = vunpack.c.l.b16 %v74
  %v1197 = vunpack.c.h.b16 %v74
  %v1198 = vunpack.c.l.b16 %v75
  %v1199 = vunpack.c.h.b16 %v75
  %v1200 = vunpack.c.l.b16 %v76
  %v1201 = vunpack.c.h.b16 %v76
  %v1202 = vunpack.c.l.b16 %v77
  %v1203 = vunpack.c.h.b16 %v77
  %v1204 = vunpack.c.l.b16 %v78
  %v1205 = vunpack.c.h.b16 %v78
  %v1206 = vunpack.c.l.b16 %v79
  %v1207 = vunpack.c.h.b16 %v79
  %v1208 = vunpack.c.l.b16 %v80
  %v1209 = vunpack.c.h.b16 %v80
  %v1210 = vunpack.c.l.b16 %v81
  %v1211 = vunpack.c.h.b16 %v81
  %v1212 = vunpack.c.l.b16 %v82
  %v1213 = vunpack.c.h.b16 %v82
  %v1214 = vunpack.c.l.b16 %v83
  %v1215 = vunpack.c.h.b16 %v83
  %v1216 = vunpack.c.l.b16 %v84
  %v1217 = vunpack.c.h.b16 %v84
  %v1218 = vunpack.c.l.b16 %v85
  %v1219 = vunpack.c.h.b16 %v85
  %v1220 = vunpack.c.l.b16 %v86
  %v1221 = vunpack.c.h.b16 %v86
  %v1222 = vunpack.c.l.b16 %v87
  %v1223 = vunpack.c.h.b16 %v87
  %v1224 = vunpack.c.l.b16 %v88
  %v1225 = vunpack.c.h.b16 %v88
  %v1226 = vunpack.c.l.b16 %v89
  %v1227 = vunpack.c.h.b16 %v89
  %v1228 = vunpack.c.l.b16 %v90
  %v1229 = vunpack.c.h.b16 %v90
  %v1230 = vunpack.c.l.b16 %v91
  %v1231 = vunpack.c.h.b16 %v91
  %v1232 = vunpack.c.l.b16 %v92
  %v1233 = vunpack.c.h.b16 %v92
  %v1234 = vunpack.c.l.b16 %v93
  %v1235 = vunpack.c.h.b16 %v93
  %v1236 = vunpack.c.l.b16 %v94
  %v1237 = vunpack.c.h.b16 %v94
  %v1238 = vunpack.c.l.b16 %v95
  %v1239 = vunpack.c.h.b16 %v95
  %v1240 = vunpack.c.l.b16 %v96
  %v1241 = vunpack.c.h.b16 %v96
  %v1242 = vunpack.c.l.b16 %v97
  %v1243 = vunpack.c.h.b16 %v97
  %v1244 = vunpack.c.l.b16 %v98
  %v1245 = vunpack.c.h.b16 %v98
  %v1246 = vunpack.c.l.b16 %v99
  %v1247 = vunpack.c.h.b16 %v99
  %v1248 = vunpack.c.l.b16 %v100
  %v1249 = vunpack.c.h.b16 %v100
  %v1250 = vunpack.c.l.b16 %v101
  %v1251 = vunpack.c.h.b16 %v101
  %v1252 = vunpack.c.l.b16 %v102
  %v1253 = vunpack.c.h.b16 %v102
  %v1254 = vunpack.c.l.b16 %v103
  %v1255 = vunpack.c.h.b16 %v103
  %v1256 = vunpack.c.l.b16 %v104
  %v1257 = vunpack.c.h.b16 %v104
  %v1258 = vunpack.c.l.b16 %v105
  %v1259 = vunpack.c.h.b16 %v105
  %v1260 = vunpack.c.l.b16 %v106
  %v1261 = vunpack.c.h.b16 %v106
  %v1262 = vunpack.c.l.b16 %v107
  %v1263 = vunpack.c.h.b16 %v107
  %v1264 = vunpack.c.l.b16 %v108
  %v1265 = vunpack.c.h.b16 %v108
  %v1266 = vunpack.c.l.b16 %v109
  %v1267 = vunpack.c.h.b16 %v109
  %v1268 = vunpack.c.l.b16 %v110
  %v1269 = vunpack.c.h.b16 %v110
  %v1270 = vunpack.c.l.b16 %v111
  %v1271 = vunpack.c.h.b16 %v111
  %v1272 = vunpack.c.l.b16 %v112
  %v1273 = vunpack.c.h.b16 %v112
  %v1274 = vunpack.c.l.b16 %v113
  %v1275 = vunpack.c.h.b16 %v113
  %v1276 = vunpack.c.l.b16 %v114
  %v1277 = vunpack.c.h.b16 %v114
  %v1278 = vunpack.c.l.b16 %v115
  %v1279 = vunpack.c.h.b16 %v115
  %v1280 = vunpack.c.l.b16 %v116
  %v1281 = vunpack.c.h.b16 %v116
  %v1282 = vunpack.c.l.b16 %v117
  %v1283 = vunpack.c.h.b16 %v117
  %v1284 = vunpack.c.l.b16 %v118
  %v1285 = vunpack.c.h.b16 %v118
  %v1286 = vunpack.c.l.b16 %v119
  %v1287 = vunpack.c.h.b16 %v119
  %v1288 = vunpack.c.l.b16 %v120
  %v1289 = vunpack.c.h.b16 %v120
  %v1290 = vunpack.c.l.b16 %v121
  %v1291 = vunpack.c.h.b16 %v121
  %v1292 = vunpack.c.l.b16 %v122
  %v1293 = vunpack.c.h.b16 %v122
  %v1294 = vunpack.c.l.b16 %v123
  %v1295 = vunpack.c.h.b16 %v123
  %v1296 = vunpack.c.l.b16 %v124
  %v1297 = vunpack.c.h.b16 %v124
  %v1298 = vunpack.c.l.b16 %v125
  %v1299 = vunpack.c.h.b16 %v125
  %v1300 = vunpack.c.l.b16 %v126
  %v1301 = vunpack.c.h.b16 %v126
  %v1302 = vunpack.c.l.b16 %v127
  %v1303 = vunpack.c.h.b16 %v127
  %v1304 = vunpack.c.l.b16 %v128
  %v1305 = vunpack.c.h.b16 %v128
  %v1306 = vunpack.c.l.b16 %v129
  %v1307 = vunpack.c.h.b16 %v129
  %v1308 = vunpack.c.l.b16 %v130
  %v1309 = vunpack.c.h.b16 %v130
  %v1310 = vunpack.c.l.b16 %v131
  %v1311 = vunpack.c.h.b16 %v131
  %v1312 = vunpack.c.l.b16 %v132
  %v1313 = vunpack.c.h.b16 %v132
  %v1314 = vunpack.c.l.b16 %v133
  %v1315 = vunpack.c.h.b16 %v133
  %v1316 = vunpack.c.l.b16 %v134
  %v1317 = vunpack.c.h.b16 %v134
  %v1318 = vunpack.c.l.b16 %v135
  %v1319 = vunpack.c.h.b16 %v135
  %v1320 = vunpack.c.l.b16 %v136
  %v1321 = vunpack.c.h.b16 %v136
  %v1322 = vunpack.c.l.b16 %v137
  %v1323 = vunpack.c.h.b16 %v137
  %v1324 = vunpack.c.l.b16 %v138
  %v1325 = vunpack.c.h.b16 %v138
  %v1326 = vunpack.c.l.b16 %v139
  %v1327 = vunpack.c.h.b16 %v139
  %v1328 = vunpack.c.l.b16 %v140
  %v1329 = vunpack.c.h.b16 %v140
  %v1330 = vunpack.c.l.b16 %v141
  %v1331 = vunpack.c.h.b16 %v141
  %v1332 = vunpack.c.l.b16 %v142
  %v1333 = vunpack.c.h.b16 %v142
  %v1334 = vunpack.c.l.b16 %v143
  %v1335 = vunpack.c.h.b16 %v143
  %v1336 = vunpack.c.l.b16 %v144
  %v1337 = vunpack.c.h.b16 %v144
  %v1338 = vunpack.c.l.b16 %v145
  %v1339 = vunpack.c.h.b16 %v145
  %v1340 = vunpack.c.l.b16 %v146
  %v1341 = vunpack.c.h.b16 %v146
  %v1342 = vunpack.c.l.b16 %v147
  %v1343 = vunpack.c.h.b16 %v147
  %v1344 = vunpack.c.l.b16 %v148
  %v1345 = vunpack.c.h.b16 %v148
  %v1346 = vunpack.c.l.b16 %v149
  %v1347 = vunpack.c.h.b16 %v149
  %v1348 = vunpack.c.l.b16 %v150
  %v1349 = vunpack.c.h.b16 %v150
  %v1350 = vunpack.c.l.b16 %v151
  %v1351 = vunpack.c.h.b16 %v151
  %v1352 = vunpack.c.l.b16 %v152
  %v1353 = vunpack.c.h.b16 %v152
  %v1354 = vunpack.c.l.b16 %v153
  %v1355 = vunpack.c.h.b16 %v153
  %v1356 = vunpack.c.l.b16 %v154
  %v1357 = vunpack.c.h.b16 %v154
  %v1358 = vunpack.c.l.b16 %v155
  %v1359 = vunpack.c.h.b16 %v155
  %v1360 = vunpack.c.l.b16 %v156
  %v1361 = vunpack.c.h.b16 %v156
  %v1362 = vunpack.c.l.b16 %v157
  %v1363 = vunpack.c.h.b16 %v157
  %v1364 = vunpack.c.l.b16 %v158
  %v1365 = vunpack.c.h.b16 %v158
  %v1366 = vunpack.c.l.b16 %v159
  %v1367 = vunpack.c.h.b16 %v159
  %v1368 = vunpack.c.l.b16 %v160
  %v1369 = vunpack.c.h.b16 %v160
  %v1370 = vunpack.c.l.b16 %v161
  %v1371 = vunpack.c.h.b16 %v161
  %v1372 = vunpack.c.l.b16 %v162
  %v1373 = vunpack.c.h.b16 %v162
  %v1374 = vunpack.c.l.b16 %v163
  %v1375 = vunpack.c.h.b16 %v163
  %v1376 = vunpack.c.l.b16 %v164
  %v1377 = vunpack.c.h.b16 %v164
  %v1378 = vunpack.c.l.b16 %v165
  %v1379 = vunpack.c.h.b16 %v165
  %v1380 = vunpack.c.l.b16 %v166
  %v1381 = vunpack.c.h.b16 %v166
  %v1382 = vunpack.c.l.b16 %v167
  %v1383 = vunpack.c.h.b16 %v167
  %v1384 = vunpack.c.l.b16 %v168
  %v1385 = vunpack.c.h.b16 %v168
  %v1386 = vunpack.c.l.b16 %v169
  %v1387 = vunpack.c.h.b16 %v169
  %v1388 = vunpack.c.l.b16 %v170
  %v1389 = vunpack.c.h.b16 %v170
  %v1390 = vunpack.c.l.b16 %v171
  %v1391 = vunpack.c.h.b16 %v171
  %v1392 = vunpack.c.l.b16 %v172
  %v1393 = vunpack.c.h.b16 %v172
  %v1394 = vunpack.c.l.b16 %v173
  %v1395 = vunpack.c.h.b16 %v173
  %v1396 = vunpack.c.l.b16 %v174
  %v1397 = vunpack.c.h.b16 %v174
  %v1398 = vunpack.c.l.b16 %v175
  %v1399 = vunpack.c.h.b16 %v175
  %v1400 = vunpack.c.l.b16 %v176
  %v1401 = vunpack.c.h.b16 %v176
  %v1402 = vunpack.c.l.b16 %v177
  %v1403 = vunpack.c.h.b16 %v177
  %v1404 = vunpack.c.l.b16 %v178
  %v1405 = vunpack.c.h.b16 %v178
  %v1406 = vunpack.c.l.b16 %v179
  %v1407 = vunpack.c.h.b16 %v179
  %v1408 = vunpack.c.l.b16 %v180
  %v1409 = vunpack.c.h.b16 %v180
  %v1410 = vunpack.c.l.b16 %v181
  %v1411 = vunpack.c.h.b16 %v181
  %v1412 = vunpack.c.l.b16 %v182
  %v1413 = vunpack.c.h.b16 %v182
  %v1414 = vunpack.c.l.b16 %v183
  %v1415 = vunpack.c.h.b16 %v183
  %v1416 = vunpack.c.l.b16 %v184
  %v1417 = vunpack.c.h.b16 %v184
  %v1418 = vunpack.c.l.b16 %v185
  %v1419 = vunpack.c.h.b16 %v185
  %v1420 = vunpack.c.l.b16 %v186
  %v1421 = vunpack.c.h.b16 %v186
  %v1422 = vunpack.c.l.b16 %v187
  %v1423 = vunpack.c.h.b16 %v187
  %v1424 = vunpack.c.l.b16 %v188
  %v1425 = vunpack.c.h.b16 %v188
  %v1426 = vunpack.c.l.b16 %v189
  %v1427 = vunpack.c.h.b16 %v189
  %v1428 = vunpack.c.l.b16 %v190
  %v1429 = vunpack.c.h.b16 %v190
  %v1430 = vunpack.c.l.b16 %v191
  %v1431 = vunpack.c.h.b16 %v191
  %v1432 = vunpack.c.l.b16 %v192
  %v1433 = vunpack.c.h.b16 %v192
  %v1434 = vunpack.c.l.b16 %v193
  %v1435 = vunpack.c.h.b16 %v193
  %v1436 = vunpack.c.l.b16 %v194
  %v1437 = vunpack.c.h.b16 %v194
  %v1438 = vunpack.c.l.b16 %v195
  %v1439 = vunpack.c.h.b16 %v195
  %v1440 = vunpack.c.l.b16 %v196
  %v1441 = vunpack.c.h.b16 %v196
  %v1442 = vunpack.c.l.b16 %v197
  %v1443 = vunpack.c.h.b16 %v197
  %v1444 = vunpack.c.l.b16 %v198
  %v1445 = vunpack.c.h.b16 %v198
  %v1446 = vunpack.c.l.b16 %v199
  %v1447 = vunpack.c.h.b16 %v199
  %v1448 = vunpack.c.l.b16 %v200
  %v1449 = vunpack.c.h.b16 %v200
  %v1450 = vunpack.c.l.b16 %v201
  %v1451 = vunpack.c.h.b16 %v201
  %v1452 = vunpack.c.l.b16 %v202
  %v1453 = vunpack.c.h.b16 %v202
  %v1454 = vunpack.c.l.b16 %v203
  %v1455 = vunpack.c.h.b16 %v203
  %v1456 = vunpack.c.l.b16 %v204
  %v1457 = vunpack.c.h.b16 %v204
  %v1458 = vunpack.c.l.b16 %v205
  %v1459 = vunpack.c.h.b16 %v205
  %v1460 = vunpack.c.l.b16 %v206
  %v1461 = vunpack.c.h.b16 %v206
  %v1462 = vunpack.c.l.b16 %v207
  %v1463 = vunpack.c.h.b16 %v207
  %v1464 = vunpack.c.l.b16 %v208
  %v1465 = vunpack.c.h.b16 %v208
  %v1466 = vunpack.c.l.b16 %v209
  %v1467 = vunpack.c.h.b16 %v209
  %v1468 = vunpack.c.l.b16 %v210
  %v1469 = vunpack.c.h.b16 %v210
  %v1470 = vunpack.c.l.b16 %v211
  %v1471 = vunpack.c.h.b16 %v211
  %v1472 = vunpack.c.l.b16 %v212
  %v1473 = vunpack.c.h.b16 %v212
  %v1474 = vunpack.c.l.b16 %v213
  %v1475 = vunpack.c.h.b16 %v213
  %v1476 = vunpack.c.l.b16 %v214
  %v1477 = vunpack.c.h.b16 %v214
  %v1478 = vunpack.c.l.b16 %v215
  %v1479 = vunpack.c.h.b16 %v215
  %v1480 = vunpack.c.l.b16 %v216
  %v1481 = vunpack.c.h.b16 %v216
  %v1482 = vunpack.c.l.b16 %v217
  %v1483 = vunpack.c.h.b16 %v217
  %v1484 = vunpack.c.l.b16 %v218
  %v1485 = vunpack.c.h.b16 %v218
  %v1486 = vunpack.c.l.b16 %v219
  %v1487 = vunpack.c.h.b16 %v219
  %v1488 = vunpack.c.l.b16 %v220
  %v1489 = vunpack.c.h.b16 %v220
  %v1490 = vunpack.c.l.b16 %v221
  %v1491 = vunpack.c.h.b16 %v221
  %v1492 = vunpack.c.l.b16 %v222
  %v1493 = vunpack.c.h.b16 %v222
  %v1494 = vunpack.c.l.b16 %v223
  %v1495 = vunpack.c.h.b16 %v223
  %v1496 = vunpack.c.l.b16 %v224
  %v1497 = vunpack.c.h.b16 %v224
  %v1498 = vunpack.c.l.b16 %v225
  %v1499 = vunpack.c.h.b16 %v225
  %v1500 = vunpack.c.l.b16 %v226
  %v1501 = vunpack.c.h.b16 %v226
  %v1502 = vunpack.c.l.b16 %v227
  %v1503 = vunpack.c.h.b16 %v227
  %v1504 = vunpack.c.l.b16 %v228
  %v1505 = vunpack.c.h.b16 %v228
  %v1506 = vunpack.c.l.b16 %v229
  %v1507 = vunpack.c.h.b16 %v229
  %v1508 = vunpack.c.l.b16 %v230
  %v1509 = vunpack.c.h.b16 %v230
  %v1510 = vunpack.c.l.b16 %v231
  %v1511 = vunpack.c.h.b16 %v231
  %v1512 = vunpack.c.l.b16 %v232
  %v1513 = vunpack.c.h.b16 %v232
  %v1514 = vunpack.c.l.b16 %v233
  %v1515 = vunpack.c.h.b16 %v233
  %v1516 = vunpack.c.l.b16 %v234
  %v1517 = vunpack.c.h.b16 %v234
  %v1518 = vunpack.c.l.b16 %v235
  %v1519 = vunpack.c.h.b16 %v235
  %v1520 = vunpack.c.l.b16 %v236
  %v1521 = vunpack.c.h.b16 %v236
  %v1522 = vunpack.c.l.b16 %v237
  %v1523 = vunpack.c.h.b16 %v237
  %v1524 = vunpack.c.l.b16 %v238
  %v1525 = vunpack.c.h.b16 %v238
  %v1526 = vunpack.c.l.b16 %v239
  %v1527 = vunpack.c.h.b16 %v239
  %v1528 = vunpack.c.l.b16 %v240
  %v1529 = vunpack.c.h.b16 %v240
  %v1530 = vunpack.c.l.b16 %v241
  %v1531 = vunpack.c.h.b16 %v241
  %v1532 = vunpack.c.l.b16 %v242
  %v1533 = vunpack.c.h.b16 %v242
  %v1534 = vunpack.c.l.b16 %v243
  %v1535 = vunpack.c.h.b16 %v243
  %v1536 = vunpack.c.l.b16 %v244
  %v1537 = vunpack.c.h.b16 %v244
  %v1538 = vunpack.c.l.b16 %v245
  %v1539 = vunpack.c.h.b16 %v245
  %v1540 = vunpack.c.l.b16 %v246
  %v1541 = vunpack.c.h.b16 %v246
  %v1542 = vunpack.c.l.b16 %v247
  %v1543 = vunpack.c.h.b16 %v247
  %v1544 = vunpack.c.l.b16 %v248
  %v1545 = vunpack.c.h.b16 %v248
  %v1546 = vunpack.c.l.b16 %v249
  %v1547 = vunpack.c.h.b16 %v249
  %v1548 = vunpack.c.l.b16 %v250
  %v1549 = vunpack.c.h.b16 %v250
  %v1550 = vunpack.c.l.b16 %v251
  %v1551 = vunpack.c.h.b16 %v251
  %v1552 = vunpack.c.l.b16 %v252
  %v1553 = vunpack.c.h.b16 %v252
  %v1554 = vunpack.c.l.b16 %v253
  %v1555 = vunpack.c.h.b16 %v253
  %v1556 = vunpack.c.l.b16 %v254
  %v1557 = vunpack.c.h.b16 %v254
  %v1558 = vunpack.c.l.b16 %v255
  %v1559 = vunpack.c.h.b16 %v255
  %v1560 = vunpack.c.l.b16 %v256
  %v1561 = vunpack.c.h.b16 %v256
  %v1562 = vunpack.c.l.b16 %v257
  %v1563 = vunpack.c.h.b16 %v257
  %v1564 = vunpack.c.l.b16 %v258
  %v1565 = vunpack.c.h.b16 %v258
  %v1566 = vunpack.c.l.b16 %v259
  %v1567 = vunpack.c.h.b16 %v259
  %v1568 = vunpack.c.l.b16 %v260
  %v1569 = vunpack.c.h.b16 %v260
  %v1570 = vunpack.c.l.b16 %v261
  %v1571 = vunpack.c.h.b16 %v261
  %v1572 = vunpack.c.l.b16 %v262
  %v1573 = vunpack.c.h.b16 %v262
  %v1574 = vunpack.c.l.b16 %v263
  %v1575 = vunpack.c.h.b16 %v263
  %v1576 = vunpack.c.l.b16 %v264
  %v1577 = vunpack.c.h.b16 %v264
  %v1578 = vunpack.c.l.b16 %v265
  %v1579 = vunpack.c.h.b16 %v265
  %v1580 = vunpack.c.l.b16 %v266
  %v1581 = vunpack.c.h.b16 %v266
  %v1582 = vunpack.c.l.b16 %v267
  %v1583 = vunpack.c.h.b16 %v267
  %v1584 = vunpack.c.l.b16 %v268
  %v1585 = vunpack.c.h.b16 %v268
  %v1586 = vunpack.c.l.b16 %v269
  %v1587 = vunpack.c.h.b16 %v269
  %v1588 = vunpack.c.l.b16 %v270
  %v1589 = vunpack.c.h.b16 %v270
  %v1590 = vunpack.c.l.b16 %v271
  %v1591 = vunpack.c.h.b16 %v271
  %v1592 = vunpack.c.l.b16 %v272
  %v1593 = vunpack.c.h.b16 %v272
  %v1594 = vunpack.c.l.b16 %v273
  %v1595 = vunpack.c.h.b16 %v273
  %v1596 = vunpack.c.l.b16 %v274
  %v1597 = vunpack.c.h.b16 %v274
  %v1598 = vunpack.c.l.b16 %v275
  %v1599 = vunpack.c.h.b16 %v275
  %v1600 = vunpack.c.l.b16 %v276
  %v1601 = vunpack.c.h.b16 %v276
  %v1602 = vunpack.c.l.b16 %v277
  %v1603 = vunpack.c.h.b16 %v277
  %v1604 = vunpack.c.l.b16 %v278
  %v1605 = vunpack.c.h.b16 %v278
  %v1606 = vunpack.c.l.b16 %v279
  %v1607 = vunpack.c.h.b16 %v279
  %v1608 = vunpack.c.l.b16 %v280
  %v1609 = vunpack.c.h.b16 %v280
  %v1610 = vunpack.c.l.b16 %v281
  %v1611 = vunpack.c.h.b16 %v281
  %v1612 = vunpack.c.l.b16 %v282
  %v1613 = vunpack.c.h.b16 %v282
  %v1614 = vunpack.c.l.b16 %v283
  %v1615 = vunpack.c.h.b16 %v283
  %v1616 = vunpack.c.l.b16 %v284
  %v1617 = vunpack.c.h.b16 %v284
  %v1618 = vunpack.c.l.b16 %v285
  %v1619 = vunpack.c.h.b16 %v285
  %v1620 = vunpack.c.l.b16 %v286
  %v1621 = vunpack.c.h.b16 %v286
  %v1622 = vunpack.c.l.b16 %v287
  %v1623 = vunpack.c.h.b16 %v287
  %v1624 = vunpack.c.l.b16 %v288
  %v1625 = vunpack.c.h.b16 %v288
  %v1626 = vunpack.c.l.b16 %v289
  %v1627 = vunpack.c.h.b16 %v289
  %v1628 = vunpack.c.l.b16 %v290
  %v1629 = vunpack.c.h.b16 %v290
  %v1630 = vunpack.c.l.b16 %v291
  %v1631 = vunpack.c.h.b16 %v291
  %v1632 = vunpack.c.l.b16 %v292
  %v1633 = vunpack.c.h.b16 %v292
  %v1634 = vunpack.c.l.b16 %v293
  %v1635 = vunpack.c.h.b16 %v293
  %v1636 = vunpack.c.l.b16 %v294
  %v1637 = vunpack.c.h.b16 %v294
  %v1638 = vunpack.c.l.b16 %v295
  %v1639 = vunpack.c.h.b16 %v295
  %v1640 = vunpack.c.l.b16 %v296
  %v1641 = vunpack.c.h.b16 %v296
  %v1642 = vunpack.c.l.b16 %v297
  %v1643 = vunpack.c.h.b16 %v297
  %v1644 = vunpack.c.l.b16 %v298
  %v1645 = vunpack.c.h.b16 %v298
  %v1646 = vunpack.c.l.b16 %v299
  %v1647 = vunpack.c.h.b16 %v299
  %v1648 = vunpack.c.l.b16 %v300
  %v1649 = vunpack.c.h.b16 %v300
  %v1650 = vunpack.c.l.b16 %v301
  %v1651 = vunpack.c.h.b16 %v301
  %v1652 = vunpack.c.l.b16 %v302
  %v1653 = vunpack.c.h.b16 %v302
  %v1654 = vunpack.c.l.b16 %v303
  %v1655 = vunpack.c.h.b16 %v303
  %v1656 = vunpack.c.l.b16 %v304
  %v1657 = vunpack.c.h.b16 %v304
  %v1658 = vunpack.c.l.b16 %v305
  %v1659 = vunpack.c.h.b16 %v305
  %v1660 = vunpack.c.l.b16 %v306
  %v1661 = vunpack.c.h.b16 %v306
  %v1662 = vunpack.c.l.b16 %v307
  %v1663 = vunpack.c.h.b16 %v307
  %v1664 = vunpack.c.l.b16 %v308
  %v1665 = vunpack.c.h.b16 %v308
  %v1666 = vunpack.c.l.b16 %v309
  %v1667 = vunpack.c.h.b16 %v309
  %v1668 = vunpack.c.l.b16 %v310
  %v1669 = vunpack.c.h.b16 %v310
  %v1670 = vunpack.c.l.b16 %v311
  %v1671 = vunpack.c.h.b16 %v311
  %v1672 = vunpack.c.l.b16 %v312
  %v1673 = vunpack.c.h.b16 %v312
  %v1674 = vunpack.c.l.b16 %v313
  %v1675 = vunpack.c.h.b16 %v313
  %v1676 = vunpack.c.l.b16 %v314
  %v1677 = vunpack.c.h.b16 %v314
  %v1678 = vunpack.c.l.b16 %v315
  %v1679 = vunpack.c.h.b16 %v315
  %v1680 = vunpack.c.l.b16 %v316
  %v1681 = vunpack.c.h.b16 %v316
  %v1682 = vunpack.c.l.b16 %v317
  %v1683 = vunpack.c.h.b16 %v317
  %v1684 = vunpack.c.l.b16 %v318
  %v1685 = vunpack.c.h.b16 %v318
  %v1686 = vunpack.c.l.b16 %v319
  %v1687 = vunpack.c.h.b16 %v319
  %v1688 = vunpack.c.l.b16 %v320
  %v1689 = vunpack.c.h.b16 %v320
  %v1690 = vunpack.c.l.b16 %v321
  %v1691 = vunpack.c.h.b16 %v321
  %v1692 = vunpack.c.l.b16 %v322
  %v1693 = vunpack.c.h.b16 %v322
  %v1694 = vunpack.c.l.b16 %v323
  %v1695 = vunpack.c.h.b16 %v323
  %v1696 = vunpack.c.l.b16 %v324
  %v1697 = vunpack.c.h.b16 %v324
  %v1698 = vunpack.c.l.b16 %v325
  %v1699 = vunpack.c.h.b16 %v325
  %v1700 = vunpack.c.l.b16 %v326
  %v1701 = vunpack.c.h.b16 %v326
  %v1702 = vunpack.c.l.b16 %v327
  %v1703 = vunpack.c.h.b16 %v327
  %v1704 = vunpack.c.l.b16 %v328
  %v1705 = vunpack.c.h.b16 %v328
  %v1706 = vunpack.c.l.b16 %v329
  %v1707 = vunpack.c.h.b16 %v329
  %v1708 = vunpack.c.l.b16 %v330
  %v1709 = vunpack.c.h.b16 %v330
  %v1710 = vunpack.c.l.b16 %v331
  %v1711 = vunpack.c.h.b16 %v331
  %v1712 = vunpack.c.l.b16 %v332
  %v1713 = vunpack.c.h.b16 %v332
  %v1714 = vunpack.c.l.b16 %v333
  %v1715 = vunpack.c.h.b16 %v333
  %v1716 = vunpack.c.l.b16 %v334
  %v1717 = vunpack.c.h.b16 %v334
  %v1718 = vunpack.c.l.b16 %v335
  %v1719 = vunpack.c.h.b16 %v335
  %v1720 = vunpack.c.l.b16 %v336
  %v1721 = vunpack.c.h.b16 %v336
  %v1722 = vunpack.c.l.b16 %v337
  %v1723 = vunpack.c.h.b16 %v337
  %v1724 = vunpack.c.l.b16 %v338
  %v1725 = vunpack.c.h.b16 %v338
  %v1726 = vunpack.c.l.b16 %v339
  %v1727 = vunpack.c.h.b16 %v339
  %v1728 = vunpack.c.l.b16 %v340
  %v1729 = vunpack.c.h.b16 %v340
  %v1730 = vunpack.c.l.b16 %v341
  %v1731 = vunpack.c.h.b16 %v341
  %v1732 = vunpack.c.l.b16 %v342
  %v1733 = vunpack.c.h.b16 %v342
  %v1734 = vunpack.c.l.b16 %v343
  %v1735 = vunpack.c.h.b16 %v343
  %v1736 = vunpack.c.l.b16 %v344
  %v1737 = vunpack.c.h.b16 %v344
  %v1738 = vunpack.c.l.b16 %v345
  %v1739 = vunpack.c.h.b16 %v345
  %v1740 = vunpack.c.l.b16 %v346
  %v1741 = vunpack.c.h.b16 %v346
  %v1742 = vunpack.c.l.b16 %v347
  %v1743 = vunpack.c.h.b16 %v347
  %v1744 = vunpack.c.l.b16 %v348
  %v1745 = vunpack.c.h.b16 %v348
  %v1746 = vunpack.c.l.b16 %v349
  %v1747 = vunpack.c.h.b16 %v349
  %v1748 = vunpack.c.l.b16 %v350
  %v1749 = vunpack.c.h.b16 %v350
  %v1750 = vunpack.c.l.b16 %v351
  %v1751 = vunpack.c.h.b16 %v351
  %v1752 = vunpack.c.l.b16 %v352
  %v1753 = vunpack.c.h.b16 %v352
  %v1754 = vunpack.c.l.b16 %v353
  %v1755 = vunpack.c.h.b16 %v353
  %v1756 = vunpack.c.l.b16 %v354
  %v1757 = vunpack.c.h.b16 %v354
  %v1758 = vunpack.c.l.b16 %v355
  %v1759 = vunpack.c.h.b16 %v355
  %v1760 = vunpack.c.l.b16 %v356
  %v1761 = vunpack.c.h.b16 %v356
  %v1762 = vunpack.c.l.b16 %v357
  %v1763 = vunpack.c.h.b16 %v357
  %v1764 = vunpack.c.l.b16 %v358
  %v1765 = vunpack.c.h.b16 %v358
  %v1766 = vunpack.c.l.b16 %v359
  %v1767 = vunpack.c.h.b16 %v359
  %v1768 = vunpack.c.l.b16 %v360
  %v1769 = vunpack.c.h.b16 %v360
  %v1770 = vunpack.c.l.b16 %v361
  %v1771 = vunpack.c.h.b16 %v361
  %v1772 = vunpack.c.l.b16 %v362
  %v1773 = vunpack.c.h.b16 %v362
  %v1774 = vunpack.c.l.b16 %v363
  %v1775 = vunpack.c.h.b16 %v363
  %v1776 = vunpack.c.l.b16 %v364
  %v1777 = vunpack.c.h.b16 %v364
  %v1778 = vunpack.c.l.b16 %v365
  %v1779 = vunpack.c.h.b16 %v365
  %v1780 = vunpack.c.l.b16 %v366
  %v1781 = vunpack.c.h.b16 %v366
  %v1782 = vunpack.c.l.b16 %v367
  %v1783 = vunpack.c.h.b16 %v367
  %v1784 = vunpack.c.l.b16 %v368
  %v1785 = vunpack.c.h.b16 %v368
  %v1786 = vunpack.c.l.b16 %v369
  %v1787 = vunpack.c.h.b16 %v369
  %v1788 = vunpack.c.l.b16 %v370
  %v1789 = vunpack.c.h.b16 %v370
  %v1790 = vunpack.c.l.b16 %v371
  %v1791 = vunpack.c.h.b16 %v371
  %v1792 = vunpack.c.l.b16 %v372
  %v1793 = vunpack.c.h.b16 %v372
  %v1794 = vunpack.c.l.b16 %v373
  %v1795 = vunpack.c.h.b16 %v373
  %v1796 = vunpack.c.l.b16 %v374
  %v1797 = vunpack.c.h.b16 %v374
  %v1798 = vunpack.c.l.b16 %v375
  %v1799 = vunpack.c.h.b16 %v375
  %v1800 = vunpack.c.l.b16 %v376
  %v1801 = vunpack.c.h.b16 %v376
  %v1802 = vunpack.c.l.b16 %v377
  %v1803 = vunpack.c.h.b16 %v377
  %v1804 = vunpack.c.l.b16 %v378
  %v1805 = vunpack.c.h.b16 %v378
  %v1806 = vunpack.c.l.b16 %v379
  %v1807 = vunpack.c.h.b16 %v379
  %v1808 = vunpack.c.l.b16 %v380
  %v1809 = vunpack.c.h.b16 %v380
  %v1810 = vunpack.c.l.b16 %v381
  %v1811 = vunpack.c.h.b16 %v381
  %v1812 = vunpack.c.l.b16 %v382
  %v1813 = vunpack.c.h.b16 %v382
  %v1814 = vunpack.c.l.b16 %v383
  %v1815 = vunpack.c.h.b16 %v383
  %v1816 = vunpack.c.l.b16 %v384
  %v1817 = vunpack.c.h.b16 %v384
  %v1818 = vunpack.c.l.b16 %v385
  %v1819 = vunpack.c.h.b16 %v385
  %v1820 = vunpack.c.l.b16 %v386
  %v1821 = vunpack.c.h.b16 %v386
  %v1822 = vunpack.c.l.b16 %v387
  %v1823 = vunpack.c.h.b16 %v387
  %v1824 = vunpack.c.l.b16 %v388
  %v1825 = vunpack.c.h.b16 %v388
  %v1826 = vunpack.c.l.b16 %v389
  %v1827 = vunpack.c.h.b16 %v389
  %v1828 = vunpack.c.l.b16 %v390
  %v1829 = vunpack.c.h.b16 %v390
  %v1830 = vunpack.c.l.b16 %v391
  %v1831 = vunpack.c.h.b16 %v391
  %v1832 = vunpack.c.l.b16 %v392
  %v1833 = vunpack.c.h.b16 %v392
  %v1834 = vunpack.c.l.b16 %v393
  %v1835 = vunpack.c.h.b16 %v393
  %v1836 = vunpack.c.l.b16 %v394
  %v1837 = vunpack.c.h.b16 %v394
  %v1838 = vunpack.c.l.b16 %v395
  %v1839 = vunpack.c.h.b16 %v395
  %v1840 = vunpack.c.l.b16 %v396
  %v1841 = vunpack.c.h.b16 %v396
  %v1842 = vunpack.c.l.b16 %v397
  %v1843 = vunpack.c.h.b16 %v397
  %v1844 = vunpack.c.l.b16 %v398
  %v1845 = vunpack.c.h.b16 %v398
  %v1846 = vunpack.c.l.b16 %v399
  %v1847 = vunpack.c.h.b16 %v399
  %v1848 = vunpack.c.l.b16 %v400
  %v1849 = vunpack.c.h.b16 %v400
  %v1850 = vunpack.c.l.b16 %v401
  %v1851 = vunpack.c.h.b16 %v401
  %v1852 = vunpack.c.l.b16 %v402
  %v1853 = vunpack.c.h.b16 %v402
  %v1854 = vunpack.c.l.b16 %v403
  %v1855 = vunpack.c.h.b16 %v403
  %v1856 = vunpack.c.l.b16 %v404
  %v1857 = vunpack.c.h.b16 %v404
  %v1858 = vunpack.c.l.b16 %v405
  %v1859 = vunpack.c.h.b16 %v405
  %v1860 = vunpack.c.l.b16 %v406
  %v1861 = vunpack.c.h.b16 %v406
  %v1862 = vunpack.c.l.b16 %v407
  %v1863 = vunpack.c.h.b16 %v407
  %v1864 = vunpack.c.l.b16 %v408
  %v1865 = vunpack.c.h.b16 %v408
  %v1866 = vunpack.c.l.b16 %v409
  %v1867 = vunpack.c.h.b16 %v409
  %v1868 = vunpack.c.l.b16 %v410
  %v1869 = vunpack.c.h.b16 %v410
  %v1870 = vunpack.c.l.b16 %v411
  %v1871 = vunpack.c.h.b16 %v411
  %v1872 = vunpack.c.l.b16 %v412
  %v1873 = vunpack.c.h.b16 %v412
  %v1874 = vunpack.c.l.b16 %v413
  %v1875 = vunpack.c.h.b16 %v413
  %v1876 = vunpack.c.l.b16 %v414
  %v1877 = vunpack.c.h.b16 %v414
  %v1878 = vunpack.c.l.b16 %v415
  %v1879 = vunpack.c.h.b16 %v415
  %v1880 = vunpack.c.l.b16 %v416
  %v1881 = vunpack.c.h.b16 %v416
  %v1882 = vunpack.c.l.b16 %v417
  %v1883 = vunpack.c.h.b16 %v417
  %v1884 = vunpack.c.l.b16 %v418
  %v1885 = vunpack.c.h.b16 %v418
  %v1886 = vunpack.c.l.b16 %v419
  %v1887 = vunpack.c.h.b16 %v419
  %v1888 = vunpack.c.l.b16 %v420
  %v1889 = vunpack.c.h.b16 %v420
  %v1890 = vunpack.c.l.b16 %v421
  %v1891 = vunpack.c.h.b16 %v421
  %v1892 = vunpack.c.l.b16 %v422
  %v1893 = vunpack.c.h.b16 %v422
  %v1894 = vunpack.c.l.b16 %v423
  %v1895 = vunpack.c.h.b16 %v423
  %v1896 = vunpack.c.l.b16 %v424
  %v1897 = vunpack.c.h.b16 %v424
  %v1898 = vunpack.c.l.b16 %v425
  %v1899 = vunpack.c.h.b16 %v425
  %v1900 = vunpack.c.l.b16 %v426
  %v1901 = vunpack.c.h.b16 %v426
  %v1902 = vunpack.c.l.b16 %v427
  %v1903 = vunpack.c.h.b16 %v427
  %v1904 = vunpack.c.l.b16 %v428
  %v1905 = vunpack.c.h.b16 %v428
  %v1906 = vunpack.c.l.b16 %v429
  %v1907 = vunpack.c.h.b16 %v429
  %v1908 = vunpack.c.l.b16 %v430
  %v1909 = vunpack.c.h.b16 %v430
  %v1910 = vunpack.c.l.b16 %v431
  %v1911 = vunpack.c.h.b16 %v431
  %v1912 = vunpack.c.l.b16 %v432
  %v1913 = vunpack.c.h.b16 %v432
  %v1914 = vunpack.c.l.b16 %v433
  %v1915 = vunpack.c.h.b16 %v433
  %v1916 = vunpack.c.l.b16 %v434
  %v1917 = vunpack.c.h.b16 %v434
  %v1918 = vunpack.c.l.b16 %v435
  %v1919 = vunpack.c.h.b16 %v435
  %v1920 = vunpack.c.l.b16 %v436
  %v1921 = vunpack.c.h.b16 %v436
  %v1922 = vunpack.c.l.b16 %v437
  %v1923 = vunpack.c.h.b16 %v437
  %v1924 = vunpack.c.l.b16 %v438
  %v1925 = vunpack.c.h.b16 %v438
  %v1926 = vunpack.c.l.b16 %v439
  %v1927 = vunpack.c.h.b16 %v439
  %v1928 = vunpack.c.l.b16 %v440
  %v1929 = vunpack.c.h.b16 %v440
  %v1930 = vunpack.c.l.b16 %v441
  %v1931 = vunpack.c.h.b16 %v441
  %v1932 = vunpack.c.l.b16 %v442
  %v1933 = vunpack.c.h.b16 %v442
  %v1934 = vunpack.c.l.b16 %v443
  %v1935 = vunpack.c.h.b16 %v443
  %v1936 = vunpack.c.l.b16 %v444
  %v1937 = vunpack.c.h.b16 %v444
  %v1938 = vunpack.c.l.b16 %v445
  %v1939 = vunpack.c.h.b16 %v445
  %v1940 = vunpack.c.l.b16 %v446
  %v1941 = vunpack.c.h.b16 %v446
  %v1942 = vunpack.c.l.b16 %v447
  %v1943 = vunpack.c.h.b16 %v447
  %v1944 = vunpack.c.l.b16 %v448
  %v1945 = vunpack.c.h.b16 %v448
  %v1946 = vunpack.c.l.b16 %v449
  %v1947 = vunpack.c.h.b16 %v449
  %v1948 = vunpack.c.l.b16 %v450
  %v1949 = vunpack.c.h.b16 %v450
  %v1950 = vunpack.c.l.b16 %v451
  %v1951 = vunpack.c.h.b16 %v451
  %v1952 = vunpack.c.l.b16 %v452
  %v1953 = vunpack.c.h.b16 %v452
  %v1954 = vunpack.c.l.b16 %v453
  %v1955 = vunpack.c.h.b16 %v453
  %v1956 = vunpack.c.l.b16 %v454
  %v1957 = vunpack.c.h.b16 %v454
  %v1958 = vunpack.c.l.b16 %v455
  %v1959 = vunpack.c.h.b16 %v455
  %v1960 = vunpack.c.l.b16 %v456
  %v1961 = vunpack.c.h.b16 %v456
  %v1962 = vunpack.c.l.b16 %v457
  %v1963 = vunpack.c.h.b16 %v457
  %v1964 = vunpack.c.l.b16 %v458
  %v1965 = vunpack.c.h.b16 %v458
  %v1966 = vunpack.c.l.b16 %v459
  %v1967 = vunpack.c.h.b16 %v459
  %v1968 = vunpack.c.l.b16 %v460
  %v1969 = vunpack.c.h.b16 %v460
  %v1970 = vunpack.c.l.b16 %v461
  %v1971 = vunpack.c.h.b16 %v461
  %v1972 = vunpack.c.l.b16 %v462
  %v1973 = vunpack.c.h.b16 %v462
  %v1974 = vunpack.c.l.b16 %v463
  %v1975 = vunpack.c.h.b16 %v463
  %v1976 = vunpack.c.l.b16 %v464
  %v1977 = vunpack.c.h.b16 %v464
  %v1978 = vunpack.c.l.b16 %v465
  %v1979 = vunpack.c.h.b16 %v465
  %v1980 = vunpack.c.l.b16 %v466
  %v1981 = vunpack.c.h.b16 %v466
  %v1982 = vunpack.c.l.b16 %v467
  %v1983 = vunpack.c.h.b16 %v467
  %v1984 = vunpack.c.l.b16 %v468
  %v1985 = vunpack.c.h.b16 %v468
  %v1986 = vunpack.c.l.b16 %v469
  %v1987 = vunpack.c.h.b16 %v469
  %v1988 = vunpack.c.l.b16 %v470
  %v1989 = vunpack.c.h.b16 %v470
  %v1990 = vunpack.c.l.b16 %v471
  %v1991 = vunpack.c.h.b16 %v471
  %v1992 = vunpack.c.l.b16 %v472
  %v1993 = vunpack.c.h.b16 %v472
  %v1994 = vunpack.c.l.b16 %v473
  %v1995 = vunpack.c.h.b16 %v473
  %v1996 = vunpack.c.l.b16 %v474
  %v1997 = vunpack.c.h.b16 %v474
  %v1998 = vunpack.c.l.b16 %v475
  %v1999 = vunpack.c.h.b16 %v475
  %v2000 = vunpack.c.l.b16 %v476
  %v2001 = vunpack.c.h.b16 %v476
  %v2002 = vunpack.c.l.b16 %v477
  %v2003 = vunpack.c.h.b16 %v477
  %v2004 = vunpack.c.l.b16 %v478
  %v2005 = vunpack.c.h.b16 %v478
  %v2006 = vunpack.c.l.b16 %v479
  %v2007 = vunpack.c.h.b16 %v479
  %v2008 = vunpack.c.l.b16 %v480
  %v2009 = vunpack.c.h.b16 %v480
  %v2010 = vunpack.c.l.b16 %v481
  %v2011 = vunpack.c.h.b16 %v481
  %v2012 = vunpack.c.l.b16 %v482
  %v2013 = vunpack.c.h.b16 %v482
  %v2014 = vunpack.c.l.b16 %v483
  %v2015 = vunpack.c.h.b16 %v483
  %v2016 = vunpack.c.l.b16 %v484
  %v2017 = vunpack.c.h.b16 %v484
  %v2018 = vunpack.c.l.b16 %v485
  %v2019 = vunpack.c.h.b16 %v485
  %v2020 = vunpack.c.l.b16 %v486
  %v2021 = vunpack.c.h.b16 %v486
  %v2022 = vunpack.c.l.b16 %v487
  %v2023 = vunpack.c.h.b16 %v487
  %v2024 = vunpack.c.l.b16 %v488
  %v2025 = vunpack.c.h.b16 %v488
  %v2026 = vunpack.c.l.b16 %v489
  %v2027 = vunpack.c.h.b16 %v489
  %v2028 = vunpack.c.l.b16 %v490
  %v2029 = vunpack.c.h.b16 %v490
  %v2030 = vunpack.c.l.b16 %v491
  %v2031 = vunpack.c.h.b16 %v491
  %v2032 = vunpack.c.l.b16 %v492
  %v2033 = vunpack.c.h.b16 %v492
  %v2034 = vunpack.c.l.b16 %v493
  %v2035 = vunpack.c.h.b16 %v493
  %v2036 = vunpack.c.l.b16 %v494
  %v2037 = vunpack.c.h.b16 %v494
  %v2038 = vunpack.c.l.b16 %v495
  %v2039 = vunpack.c.h.b16 %v495
  %v2040 = vunpack.c.l.b16 %v496
  %v2041 = vunpack.c.h.b16 %v496
  %v2042 = vunpack.c.l.b16 %v497
  %v2043 = vunpack.c.h.b16 %v497
  %v2044 = vunpack.c.l.b16 %v498
  %v2045 = vunpack.c.h.b16 %v498
  %v2046 = vunpack.c.l.b16 %v499
  %v2047 = vunpack.c.h.b16 %v499
  %v2048 = vunpack.c.l.b16 %v500
  %v2049 = vunpack.c.h.b16 %v500
  %v2050 = vunpack.c.l.b16 %v501
  %v2051 = vunpack.c.h.b16 %v501
  %v2052 = vunpack.c.l.b16 %v502
  %v2053 = vunpack.c.h.b16 %v502
  %v2054 = vunpack.c.l.b16 %v503
  %v2055 = vunpack.c.h.b16 %v503
  %v2056 = vunpack.c.l.b16 %v504
  %v2057 = vunpack.c.h.b16 %v504
  %v2058 = vunpack.c.l.b16 %v505
  %v2059 = vunpack.c.h.b16 %v505
  %v2060 = vunpack.c.l.b16 %v506
  %v2061 = vunpack.c.h.b16 %v506
  %v2062 = vunpack.c.l.b16 %v507
  %v2063 = vunpack.c.h.b16 %v507
  %v2064 = vunpack.c.l.b16 %v508
  %v2065 = vunpack.c.h.b16 %v508
  %v2066 = vunpack.c.l.b16 %v509
  %v2067 = vunpack.c.h.b16 %v509
  %v2068 = vunpack.c.l.b16 %v510
  %v2069 = vunpack.c.h.b16 %v510
  %v2070 = vunpack.c.l.b16 %v511
  %v2071 = vunpack.c.h.b16 %v511
  %v2072 = vunpack.c.l.b16 %v512
  %v2073 = vunpack.c.h.b16 %v512
  %v2074 = vunpack.c.l.b16 %v513
  %v2075 = vunpack.c.h.b16 %v513
  %v2076 = vunpack.c.l.b16 %v514
  %v2077 = vunpack.c.h.b16 %v514
  %v2078 = vunpack.c.l.b16 %v515
  %v2079 = vunpack.c.h.b16 %v515
  %v2080 = vunpack.c.l.b16 %v516
  %v2081 = vunpack.c.h.b16 %v516
  %v2082 = vunpack.c.l.b16 %v517
  %v2083 = vunpack.c.h.b16 %v517
  %v2084 = vunpack.c.l.b16 %v518
  %v2085 = vunpack.c.h.b16 %v518
  %v2086 = vunpack.c.l.b16 %v519
  %v2087 = vunpack.c.h.b16 %v519
  %v2088 = vunpack.c.l.b16 %v520
  %v2089 = vunpack.c.h.b16 %v520
  %v2090 = vunpack.c.l.b16 %v521
  %v2091 = vunpack.c.h.b16 %v521
  %v2092 = vunpack.c.l.b16 %v522
  %v2093 = vunpack.c.h.b16 %v522
  %v2094 = vunpack.c.l.b16 %v523
  %v2095 = vunpack.c.h.b16 %v523
  %v2096 = vunpack.c.l.b16 %v524
  %v2097 = vunpack.c.h.b16 %v524
  %v2098 = vunpack.c.l.b16 %v525
  %v2099 = vunpack.c.h.b16 %v525
  %v2100 = vunpack.c.l.b16 %v526
  %v2101 = vunpack.c.h.b16 %v526
  %v2102 = vunpack.c.l.b16 %v527
  %v2103 = vunpack.c.h.b16 %v527
  %v2104 = vunpack.c.l.b16 %v528
  %v2105 = vunpack.c.h.b16 %v528
  %v2106 = vunpack.c.l.b16 %v529
  %v2107 = vunpack.c.h.b16 %v529
  %v2108 = vunpack.c.l.b16 %v530
  %v2109 = vunpack.c.h.b16 %v530
  %v2110 = vunpack.c.l.b16 %v531
  %v2111 = vunpack.c.h.b16 %v531
  %v2112 = vunpack.c.l.b16 %v532
  %v2113 = vunpack.c.h.b16 %v532
  %v2114 = vunpack.c.l.b16 %v533
  %v2115 = vunpack.c.h.b16 %v533
  %v2116 = vunpack.c.l.b16 %v534
  %v2117 = vunpack.c.h.b16 %v534
  %v2118 = vunpack.c.l.b16 %v535
  %v2119 = vunpack.c.h.b16 %v535
  %v2120 = vunpack.c.l.b16 %v536
  %v2121 = vunpack.c.h.b16 %v536
  %v2122 = vunpack.c.l.b16 %v537
  %v2123 = vunpack.c.h.b16 %v537
  %v2124 = vunpack.c.l.b16 %v538
  %v2125 = vunpack.c.h.b16 %v538
  %v2126 = vunpack.c.l.b16 %v539
  %v2127 = vunpack.c.h.b16 %v539
  %v2128 = vunpack.c.l.b16 %v540
  %v2129 = vunpack.c.h.b16 %v540
  %v2130 = vunpack.c.l.b16 %v541
  %v2131 = vunpack.c.h.b16 %v541
  %v2132 = vunpack.c.l.b16 %v542
  %v2133 = vunpack.c.h.b16 %v542
  %v2134 = vunpack.c.l.b16 %v543
  %v2135 = vunpack.c.h.b16 %v543
  %v2136 = vpack.c.b16 %v1116, %v1112
  %v2137 = vpack.c.b16 %v1117, %v1113
  %v2138 = vpack.c.b16 %v1118, %v1114
  %v2139 = vpack.c.b16 %v1119, %v1115
  %v2140 = vpack.c.b16 %v1124, %v1120
  %v2141 = vpack.c.b16 %v1125, %v1121
  %v2142 = vpack.c.b16 %v1126, %v1122
  %v2143 = vpack.c.b16 %v1127, %v1123
  %v2144 = vpack.c.b16 %v1132, %v1128
  %v2145 = vpack.c.b16 %v1133, %v1129
  %v2146 = vpack.c.b16 %v1134, %v1130
  %v2147 = vpack.c.b16 %v1135, %v1131
  %v2148 = vpack.c.b16 %v1140, %v1136
  %v2149 = vpack.c.b16 %v1141, %v1137
  %v2150 = vpack.c.b16 %v1142, %v1138
  %v2151 = vpack.c.b16 %v1143, %v1139
  %v2152 = vpack.c.b16 %v1148, %v1144
  %v2153 = vpack.c.b16 %v1149, %v1145
  %v2154 = vpack.c.b16 %v1150, %v1146
  %v2155 = vpack.c.b16 %v1151, %v1147
  %v2156 = vpack.c.b16 %v1156, %v1152
  %v2157 = vpack.c.b16 %v1157, %v1153
  %v2158 = vpack.c.b16 %v1158, %v1154
  %v2159 = vpack.c.b16 %v1159, %v1155
  %v2160 = vpack.c.b16 %v1164, %v1160
  %v2161 = vpack.c.b16 %v1165, %v1161
  %v2162 = vpack.c.b16 %v1166, %v1162
  %v2163 = vpack.c.b16 %v1167, %v1163
  %v2164 = vpack.c.b16 %v1172, %v1168
  %v2165 = vpack.c.b16 %v1173, %v1169
  %v2166 = vpack.c.b16 %v1174, %v1170
  %v2167 = vpack.c.b16 %v1175, %v1171
  %v2168 = vpack.c.b16 %v1180, %v1176
  %v2169 = vpack.c.b16 %v1181, %v1177
  %v2170 = vpack.c.b16 %v1182, %v1178
  %v2171 = vpack.c.b16 %v1183, %v1179
  %v2172 = vpack.c.b16 %v1188, %v1184
  %v2173 = vpack.c.b16 %v1189, %v1185
  %v2174 = vpack.c.b16 %v1190, %v1186
  %v2175 = vpack.c.b16 %v1191, %v1187
  %v2176 = vpack.c.b16 %v1196, %v1192
  %v2177 = vpack.c.b16 %v1197, %v1193
  %v2178 = vpack.c.b16 %v1198, %v1194
  %v2179 = vpack.c.b16 %v1199, %v1195
  %v2180 = vpack.c.b16 %v1204, %v1200
  %v2181 = vpack.c.b16 %v1205, %v1201
  %v2182 = vpack.c.b16 %v1206, %v1202
  %v2183 = vpack.c.b16 %v1207, %v1203
  %v2184 = vpack.c.b16 %v1212, %v1208
  %v2185 = vpack.c.b16 %v1213, %v1209
  %v2186 = vpack.c.b16 %v1214, %v1210
  %v2187 = vpack.c.b16 %v1215, %v1211
  %v2188 = vpack.c.b16 %v1220, %v1216
  %v2189 = vpack.c.b16 %v1221, %v1217
  %v2190 = vpack.c.b16 %v1222, %v1218
  %v2191 = vpack.c.b16 %v1223, %v1219
  %v2192 = vpack.c.b16 %v1228, %v1224
  %v2193 = vpack.c.b16 %v1229, %v1225
  %v2194 = vpack.c.b16 %v1230, %v1226
  %v2195 = vpack.c.b16 %v1231, %v1227
  %v2196 = vpack.c.b16 %v1236, %v1232
  %v2197 = vpack.c.b16 %v1237, %v1233
  %v2198 = vpack.c.b16 %v1238, %v1234
  %v2199 = vpack.c.b16 %v1239, %v1235
  %v2200 = vpack.c.b16 %v1244, %v1240
  %v2201 = vpack.c.b16 %v1245, %v1241
  %v2202 = vpack.c.b16 %v1246, %v1242
  %v2203 = vpack.c.b16 %v1247, %v1243
  %v2204 = vpack.c.b16 %v1252, %v1248
  %v2205 = vpack.c.b16 %v1253, %v1249
  %v2206 = vpack.c.b16 %v1254, %v1250
  %v2207 = vpack.c.b16 %v1255, %v1251
  %v2208 = vpack.c.b16 %v1260, %v1256
  %v2209 = vpack.c.b16 %v1261, %v1257
  %v2210 = vpack.c.b16 %v1262, %v1258
  %v2211 = vpack.c.b16 %v1263, %v1259
  %v2212 = vpack.c.b16 %v1268, %v1264
  %v2213 = vpack.c.b16 %v1269, %v1265
  %v2214 = vpack.c.b16 %v1270, %v1266
  %v2215 = vpack.c.b16 %v1271, %v1267
  %v2216 = vpack.c.b16 %v1276, %v1272
  %v2217 = vpack.c.b16 %v1277, %v1273
  %v2218 = vpack.c.b16 %v1278, %v1274
  %v2219 = vpack.c.b16 %v1279, %v1275
  %v2220 = vpack.c.b16 %v1284, %v1280
  %v2221 = vpack.c.b16 %v1285, %v1281
  %v2222 = vpack.c.b16 %v1286, %v1282
  %v2223 = vpack.c.b16 %v1287, %v1283
  %v2224 = vpack.c.b16 %v1292, %v1288
  %v2225 = vpack.c.b16 %v1293, %v1289
  %v2226 = vpack.c.b16 %v1294, %v1290
  %v2227 = vpack.c.b16 %v1295, %v1291
  %v2228 = vpack.c.b16 %v1300, %v1296
  %v2229 = vpack.c.b16 %v1301, %v1297
  %v2230 = vpack.c.b16 %v1302, %v1298
  %v2231 = vpack.c.b16 %v1303, %v1299
  %v2232 = vpack.c.b16 %v1308, %v1304
  %v2233 = vpack.c.b16 %v1309, %v1305
  %v2234 = vpack.c.b16 %v1310, %v1306
  %v2235 = vpack.c.b16 %v1311, %v1307
  %v2236 = vpack.c.b16 %v1316, %v1312
  %v2237 = vpack.c.b16 %v1317, %v1313
  %v2238 = vpack.c.b16 %v1318, %v1314
  %v2239 = vpack.c.b16 %v1319, %v1315
  %v2240 = vpack.c.b16 %v1324, %v1320
  %v2241 = vpack.c.b16 %v1325, %v1321
  %v2242 = vpack.c.b16 %v1326, %v1322
  %v2243 = vpack.c.b16 %v1327, %v1323
  %v2244 = vpack.c.b16 %v1332, %v1328
  %v2245 = vpack.c.b16 %v1333, %v1329
  %v2246 = vpack.c.b16 %v1334, %v1330
  %v2247 = vpack.c.b16 %v1335, %v1331
  %v2248 = vpack.c.b16 %v1340, %v1336
  %v2249 = vpack.c.b16 %v1341, %v1337
  %v2250 = vpack.c.b16 %v1342, %v1338
  %v2251 = vpack.c.b16 %v1343, %v1339
  %v2252 = vpack.c.b16 %v1348, %v1344
  %v2253 = vpack.c.b16 %v1349, %v1345
  %v2254 = vpack.c.b16 %v1350, %v1346
  %v2255 = vpack.c.b16 %v1351, %v1347
  %v2256 = vpack.c.b16 %v1356, %v1352
  %v2257 = vpack.c.b16 %v1357, %v1353
  %v2258 = vpack.c.b16 %v1358, %v1354
  %v2259 = vpack.c.b16 %v1359, %v1355
  %v2260 = vpack.c.b16 %v1364, %v1360
  %v2261 = vpack.c.b16 %v1365, %v1361
  %v2262 = vpack.c.b16 %v1366, %v1362
  %v2263 = vpack.c.b16 %v1367, %v1363
  %v2264 = vpack.c.b16 %v1372, %v1368
  %v2265 = vpack.c.b16 %v1373, %v1369
  %v2266 = vpack.c.b16 %v1374, %v1370
  %v2267 = vpack.c.b16 %v1375, %v1371
  %v2268 = vpack.c.b16 %v1380, %v1376
  %v2269 = vpack.c.b16 %v1381, %v1377
  %v2270 = vpack.c.b16 %v1382, %v1378
  %v2271 = vpack.c.b16 %v1383, %v1379
  %v2272 = vpack.c.b16 %v1388, %v1384
  %v2273 = vpack.c.b16 %v1389, %v1385
  %v2274 = vpack.c.b16 %v1390, %v1386
  %v2275 = vpack.c.b16 %v1391, %v1387
  %v2276 = vpack.c.b16 %v1396, %v1392
  %v2277 = vpack.c.b16 %v1397, %v1393
  %v2278 = vpack.c.b16 %v1398, %v1394
  %v2279 = vpack.c.b16 %v1399, %v1395
  %v2280 = vpack.c.b16 %v1404, %v1400
  %v2281 = vpack.c.b16 %v1405, %v1401
  %v2282 = vpack.c.b16 %v1406, %v1402
  %v2283 = vpack.c.b16 %v1407, %v1403
  %v2284 = vpack.c.b16 %v1412, %v1408
  %v2285 = vpack.c.b16 %v1413, %v1409
  %v2286 = vpack.c.b16 %v1414, %v1410
  %v2287 = vpack.c.b16 %v1415, %v1411
  %v2288 = vpack.c.b16 %v1420, %v1416
  %v2289 = vpack.c.b16 %v1421, %v1417
  %v2290 = vpack.c.b16 %v1422, %v1418
  %v2291 = vpack.c.b16 %v1423, %v1419
  %v2292 = vpack.c.b16 %v1428, %v1424
  %v2293 = vpack.c.b16 %v1429, %v1425
  %v2294 = vpack.c.b16 %v1430, %v1426
  %v2295 = vpack.c.b16 %v1431, %v1427
  %v2296 = vpack.c.b16 %v1436, %v1432
  %v2297 = vpack.c.b16 %v1437, %v1433
  %v2298 = vpack.c.b16 %v1438, %v1434
  %v2299 = vpack.c.b16 %v1439, %v1435
  %v2300 = vpack.c.b16 %v1444, %v1440
  %v2301 = vpack.c.b16 %v1445, %v1441
  %v2302 = vpack.c.b16 %v1446, %v1442
  %v2303 = vpack.c.b16 %v1447, %v1443
  %v2304 = vpack.c.b16 %v1452, %v1448
  %v2305 = vpack.c.b16 %v1453, %v1449
  %v2306 = vpack.c.b16 %v1454, %v1450
  %v2307 = vpack.c.b16 %v1455, %v1451
  %v2308 = vpack.c.b16 %v1460, %v1456
  %v2309 = vpack.c.b16 %v1461, %v1457
  %v2310 = vpack.c.b16 %v1462, %v1458
  %v2311 = vpack.c.b16 %v1463, %v1459
  %v2312 = vpack.c.b16 %v1468, %v1464
  %v2313 = vpack.c.b16 %v1469, %v1465
  %v2314 = vpack.c.b16 %v1470, %v1466
  %v2315 = vpack.c.b16 %v1471, %v1467
  %v2316 = vpack.c.b16 %v1476, %v1472
  %v2317 = vpack.c.b16 %v1477, %v1473
  %v2318 = vpack.c.b16 %v1478, %v1474
  %v2319 = vpack.c.b16 %v1479, %v1475
  %v2320 = vpack.c.b16 %v1484, %v1480
  %v2321 = vpack.c.b16 %v1485, %v1481
  %v2322 = vpack.c.b16 %v1486, %v1482
  %v2323 = vpack.c.b16 %v1487, %v1483
  %v2324 = vpack.c.b16 %v1492, %v1488
  %v2325 = vpack.c.b16 %v1493, %v1489
  %v2326 = vpack.c.b16 %v1494, %v1490
  %v2327 = vpack.c.b16 %v1495, %v1491
  %v2328 = vpack.c.b16 %v1500, %v1496
  %v2329 = vpack.c.b16 %v1501, %v1497
  %v2330 = vpack.c.b16 %v1502, %v1498
  %v2331 = vpack.c.b16 %v1503, %v1499
  %v2332 = vpack.c.b16 %v1508, %v1504
  %v2333 = vpack.c.b16 %v1509, %v1505
  %v2334 = vpack.c.b16 %v1510, %v1506
  %v2335 = vpack.c.b16 %v1511, %v1507
  %v2336 = vpack.c.b16 %v1516, %v1512
  %v2337 = vpack.c.b16 %v1517, %v1513
  %v2338 = vpack.c.b16 %v1518, %v1514
  %v2339 = vpack.c.b16 %v1519, %v1515
  %v2340 = vpack.c.b16 %v1524, %v1520
  %v2341 = vpack.c.b16 %v1525, %v1521
  %v2342 = vpack.c.b16 %v1526, %v1522
  %v2343 = vpack.c.b16 %v1527, %v1523
  %v2344 = vpack.c.b16 %v1532, %v1528
  %v2345 = vpack.c.b16 %v1533, %v1529
  %v2346 = vpack.c.b16 %v1534, %v1530
  %v2347 = vpack.c.b16 %v1535, %v1531
  %v2348 = vpack.c.b16 %v1540, %v1536
  %v2349 = vpack.c.b16 %v1541, %v1537
  %v2350 = vpack.c.b16 %v1542, %v1538
  %v2351 = vpack.c.b16 %v1543, %v1539
  %v2352 = vpack.c.b16 %v1548, %v1544
  %v2353 = vpack.c.b16 %v1549, %v1545
  %v2354 = vpack.c.b16 %v1550, %v1546
  %v2355 = vpack.c.b16 %v1551, %v1547
  %v2356 = vpack.c.b16 %v1556, %v1552
  %v2357 = vpack.c.b16 %v1557, %v1553
  %v2358 = vpack.c.b16 %v1558, %v1554
  %v2359 = vpack.c.b16 %v1559, %v1555
  %v2360 = vpack.c.b16 %v1564, %v1560
  %v2361 = vpack.c.b16 %v1565, %v1561
  %v2362 = vpack.c.b16 %v1566, %v1562
  %v2363 = vpack.c.b16 %v1567, %v1563
  %v2364 = vpack.c.b16 %v1572, %v1568
  %v2365 = vpack.c.b16 %v1573, %v1569
  %v2366 = vpack.c.b16 %v1574, %v1570
  %v2367 = vpack.c.b16 %v1575, %v1571
  %v2368 = vpack.c.b16 %v1580, %v1576
  %v2369 = vpack.c.b16 %v1581, %v1577
  %v2370 = vpack.c.b16 %v1582, %v1578
  %v2371 = vpack.c.b16 %v1583, %v1579
  %v2372 = vpack.c.b16 %v1588, %v1584
  %v2373 = vpack.c.b16 %v1589, %v1585
  %v2374 = vpack.c.b16 %v1590, %v1586
  %v2375 = vpack.c.b16 %v1591, %v1587
  %v2376 = vpack.c.b16 %v1596, %v1592
  %v2377 = vpack.c.b16 %v1597, %v1593
  %v2378 = vpack.c.b16 %v1598, %v1594
  %v2379 = vpack.c.b16 %v1599, %v1595
  %v2380 = vpack.c.b16 %v1604, %v1600
  %v2381 = vpack.c.b16 %v1605, %v1601
  %v2382 = vpack.c.b16 %v1606, %v1602
  %v2383 = vpack.c.b16 %v1607, %v1603
  %v2384 = vpack.c.b16 %v1612, %v1608
  %v2385 = vpack.c.b16 %v1613, %v1609
  %v2386 = vpack.c.b16 %v1614, %v1610
  %v2387 = vpack.c.b16 %v1615, %v1611
  %v2388 = vpack.c.b16 %v1620, %v1616
  %v2389 = vpack.c.b16 %v1621, %v1617
  %v2390 = vpack.c.b16 %v1622, %v1618
  %v2391 = vpack.c.b16 %v1623, %v1619
  %v2392 = vpack.c.b16 %v1628, %v1624
  %v2393 = vpack.c.b16 %v1629, %v1625
  %v2394 = vpack.c.b16 %v1630, %v1626
  %v2395 = vpack.c.b16 %v1631, %v1627
  %v2396 = vpack.c.b16 %v1636, %v1632
  %v2397 = vpack.c.b16 %v1637, %v1633
  %v2398 = vpack.c.b16 %v1638, %v1634
  %v2399 = vpack.c.b16 %v1639, %v1635
  %v2400 = vpack.c.b16 %v1644, %v1640
  %v2401 = vpack.c.b16 %v1645, %v1641
  %v2402 = vpack.c.b16 %v1646, %v1642
  %v2403 = vpack.c.b16 %v1647, %v1643
  %v2404 = vpack.c.b16 %v1652, %v1648
  %v2405 = vpack.c.b16 %v1653, %v1649
  %v2406 = vpack.c.b16 %v1654, %v1650
  %v2407 = vpack.c.b16 %v1655, %v1651
  %v2408 = vpack.c.b16 %v1660, %v1656
  %v2409 = vpack.c.b16 %v1661, %v1657
  %v2410 = vpack.c.b16 %v1662, %v1658
  %v2411 = vpack.c.b16 %v1663, %v1659
  %v2412 = vpack.c.b16 %v1668, %v1664
  %v2413 = vpack.c.b16 %v1669, %v1665
  %v2414 = vpack.c.b16 %v1670, %v1666
  %v2415 = vpack.c.b16 %v1671, %v1667
  %v2416 = vpack.c.b16 %v1676, %v1672
  %v2417 = vpack.c.b16 %v1677, %v1673
  %v2418 = vpack.c.b16 %v1678, %v1674
  %v2419 = vpack.c.b16 %v1679, %v1675
  %v2420 = vpack.c.b16 %v1684, %v1680
  %v2421 = vpack.c.b16 %v1685, %v1681
  %v2422 = vpack.c.b16 %v1686, %v1682
  %v2423 = vpack.c.b16 %v1687, %v1683
  %v2424 = vpack.c.b16 %v1692, %v1688
  %v2425 = vpack.c.b16 %v1693, %v1689
  %v2426 = vpack.c.b16 %v1694, %v1690
  %v2427 = vpack.c.b16 %v1695, %v1691
  %v2428 = vpack.c.b16 %v1700, %v1696
  %v2429 = vpack.c.b16 %v1701, %v1697
  %v2430 = vpack.c.b16 %v1702, %v1698
  %v2431 = vpack.c.b16 %v1703, %v1699
  %v2432 = vpack.c.b16 %v1708, %v1704
  %v2433 = vpack.c.b16 %v1709, %v1705
  %v2434 = vpack.c.b16 %v1710, %v1706
  %v2435 = vpack.c.b16 %v1711, %v1707
  %v2436 = vpack.c.b16 %v1716, %v1712
  %v2437 = vpack.c.b16 %v1717, %v1713
  %v2438 = vpack.c.b16 %v1718, %v1714
  %v2439 = vpack.c.b16 %v1719, %v1715
  %v2440 = vpack.c.b16 %v1724, %v1720
  %v2441 = vpack.c.b16 %v1725, %v1721
  %v2442 = vpack.c.b16 %v1726, %v1722
  %v2443 = vpack.c.b16 %v1727, %v1723
  %v2444 = vpack.c.b16 %v1732, %v1728
  %v2445 = vpack.c.b16 %v1733, %v1729
  %v2446 = vpack.c.b16 %v1734, %v1730
  %v2447 = vpack.c.b16 %v1735, %v1731
  %v2448 = vpack.c.b16 %v1740, %v1736
  %v2449 = vpack.c.b16 %v1741, %v1737
  %v2450 = vpack.c.b16 %v1742, %v1738
  %v2451 = vpack.c.b16 %v1743, %v1739
  %v2452 = vpack.c.b16 %v1748, %v1744
  %v2453 = vpack.c.b16 %v1749, %v1745
  %v2454 = vpack.c.b16 %v1750, %v1746
  %v2455 = vpack.c.b16 %v1751, %v1747
  %v2456 = vpack.c.b16 %v1756, %v1752
  %v2457 = vpack.c.b16 %v1757, %v1753
  %v2458 = vpack.c.b16 %v1758, %v1754
  %v2459 = vpack.c.b16 %v1759, %v1755
  %v2460 = vpack.c.b16 %v1764, %v1760
  %v2461 = vpack.c.b16 %v1765, %v1761
  %v2462 = vpack.c.b16 %v1766, %v1762
  %v2463 = vpack.c.b16 %v1767, %v1763
  %v2464 = vpack.c.b16 %v1772, %v1768
  %v2465 = vpack.c.b16 %v1773, %v1769
  %v2466 = vpack.c.b16 %v1774, %v1770
  %v2467 = vpack.c.b16 %v1775, %v1771
  %v2468 = vpack.c.b16 %v1780, %v1776
  %v2469 = vpack.c.b16 %v1781, %v1777
  %v2470 = vpack.c.b16 %v1782, %v1778
  %v2471 = vpack.c.b16 %v1783, %v1779
  %v2472 = vpack.c.b16 %v1788, %v1784
  %v2473 = vpack.c.b16 %v1789, %v1785
  %v2474 = vpack.c.b16 %v1790, %v1786
  %v2475 = vpack.c.b16 %v1791, %v1787
  %v2476 = vpack.c.b16 %v1796, %v1792
  %v2477 = vpack.c.b16 %v1797, %v1793
  %v2478 = vpack.c.b16 %v1798, %v1794
  %v2479 = vpack.c.b16 %v1799, %v1795
  %v2480 = vpack.c.b16 %v1804, %v1800
  %v2481 = vpack.c.b16 %v1805, %v1801
  %v2482 = vpack.c.b16 %v1806, %v1802
  %v2483 = vpack.c.b16 %v1807, %v1803
  %v2484 = vpack.c.b16 %v1812, %v1808
  %v2485 = vpack.c.b16 %v1813, %v1809
  %v2486 = vpack.c.b16 %v1814, %v1810
  %v2487 = vpack.c.b16 %v1815, %v1811
  %v2488 = vpack.c.b16 %v1820, %v1816
  %v2489 = vpack.c.b16 %v1821, %v1817
  %v2490 = vpack.c.b16 %v1822, %v1818
  %v2491 = vpack.c.b16 %v1823, %v1819
  %v2492 = vpack.c.b16 %v1828, %v1824
  %v2493 = vpack.c.b16 %v1829, %v1825
  %v2494 = vpack.c.b16 %v1830, %v1826
  %v2495 = vpack.c.b16 %v1831, %v1827
  %v2496 = vpack.c.b16 %v1836, %v1832
  %v2497 = vpack.c.b16 %v1837, %v1833
  %v2498 = vpack.c.b16 %v1838, %v1834
  %v2499 = vpack.c.b16 %v1839, %v1835
  %v2500 = vpack.c.b16 %v1844, %v1840
  %v2501 = vpack.c.b16 %v1845, %v1841
  %v2502 = vpack.c.b16 %v1846, %v1842
  %v2503 = vpack.c.b16 %v1847, %v1843
  %v2504 = vpack.c.b16 %v1852, %v1848
  %v2505 = vpack.c.b16 %v1853, %v1849
  %v2506 = vpack.c.b16 %v1854, %v1850
  %v2507 = vpack.c.b16 %v1855, %v1851
  %v2508 = vpack.c.b16 %v1860, %v1856
  %v2509 = vpack.c.b16 %v1861, %v1857
  %v2510 = vpack.c.b16 %v1862, %v1858
  %v2511 = vpack.c.b16 %v1863, %v1859
  %v2512 = vpack.c.b16 %v1868, %v1864
  %v2513 = vpack.c.b16 %v1869, %v1865
  %v2514 = vpack.c.b16 %v1870, %v1866
  %v2515 = vpack.c.b16 %v1871, %v1867
  %v2516 = vpack.c.b16 %v1876, %v1872
  %v2517 = vpack.c.b16 %v1877, %v1873
  %v2518 = vpack.c.b16 %v1878, %v1874
  %v2519 = vpack.c.b16 %v1879, %v1875
  %v2520 = vpack.c.b16 %v1884, %v1880
  %v2521 = vpack.c.b16 %v1885, %v1881
  %v2522 = vpack.c.b16 %v1886, %v1882
  %v2523 = vpack.c.b16 %v1887, %v1883
  %v2524 = vpack.c.b16 %v1892, %v1888
  %v2525 = vpack.c.b16 %v1893, %v1889
  %v2526 = vpack.c.b16 %v1894, %v1890
  %v2527 = vpack.c.b16 %v1895, %v1891
  %v2528 = vpack.c.b16 %v1900, %v1896
  %v2529 = vpack.c.b16 %v1901, %v1897
  %v2530 = vpack.c.b16 %v1902, %v1898
  %v2531 = vpack.c.b16 %v1903, %v1899
  %v2532 = vpack.c.b16 %v1908, %v1904
  %v2533 = vpack.c.b16 %v1909, %v1905
  %v2534 = vpack.c.b16 %v1910, %v1906
  %v2535 = vpack.c.b16 %v1911, %v1907
  %v2536 = vpack.c.b16 %v1916, %v1912
  %v2537 = vpack.c.b16 %v1917, %v1913
  %v2538 = vpack.c.b16 %v1918, %v1914
  %v2539 = vpack.c.b16 %v1919, %v1915
  %v2540 = vpack.c.b16 %v1924, %v1920
  %v2541 = vpack.c.b16 %v1925, %v1921
  %v2542 = vpack.c.b16 %v1926, %v1922
  %v2543 = vpack.c.b16 %v1927, %v1923
  %v2544 = vpack.c.b16 %v1932, %v1928
  %v2545 = vpack.c.b16 %v1933, %v1929
  %v2546 = vpack.c.b16 %v1934, %v1930
  %v2547 = vpack.c.b16 %v1935, %v1931
  %v2548 = vpack.c.b16 %v1940, %v1936
  %v2549 = vpack.c.b16 %v1941, %v1937
  %v2550 = vpack.c.b16 %v1942, %v1938
  %v2551 = vpack.c.b16 %v1943, %v1939
  %v2552 = vpack.c.b16 %v1948, %v1944
  %v2553 = vpack.c.b16 %v1949, %v1945
  %v2554 = vpack.c.b16 %v1950, %v1946
  %v2555 = vpack.c.b16 %v1951, %v1947
  %v2556 = vpack.c.b16 %v1956, %v1952
  %v2557 = vpack.c.b16 %v1957, %v1953
  %v2558 = vpack.c.b16 %v1958, %v1954
  %v2559 = vpack.c.b16 %v1959, %v1955
  %v2560 = vpack.c.b16 %v1964, %v1960
  %v2561 = vpack.c.b16 %v1965, %v1961
  %v2562 = vpack.c.b16 %v1966, %v1962
  %v2563 = vpack.c.b16 %v1967, %v1963
  %v2564 = vpack.c.b16 %v1972, %v1968
  %v2565 = vpack.c.b16 %v1973, %v1969
  %v2566 = vpack.c.b16 %v1974, %v1970
  %v2567 = vpack.c.b16 %v1975, %v1971
  %v2568 = vpack.c.b16 %v1980, %v1976
  %v2569 = vpack.c.b16 %v1981, %v1977
  %v2570 = vpack.c.b16 %v1982, %v1978
  %v2571 = vpack.c.b16 %v1983, %v1979
  %v2572 = vpack.c.b16 %v1988, %v1984
  %v2573 = vpack.c.b16 %v1989, %v1985
  %v2574 = vpack.c.b16 %v1990, %v1986
  %v2575 = vpack.c.b16 %v1991, %v1987
  %v2576 = vpack.c.b16 %v1996, %v1992
  %v2577 = vpack.c.b16 %v1997, %v1993
  %v2578 = vpack.c.b16 %v1998, %v1994
  %v2579 = vpack.c.b16 %v1999, %v1995
  %v2580 = vpack.c.b16 %v2004, %v2000
  %v2581 = vpack.c.b16 %v2005, %v2001
  %v2582 = vpack.c.b16 %v2006, %v2002
  %v2583 = vpack.c.b16 %v2007, %v2003
  %v2584 = vpack.c.b16 %v2012, %v2008
  %v2585 = vpack.c.b16 %v2013, %v2009
  %v2586 = vpack.c.b16 %v2014, %v2010
  %v2587 = vpack.c.b16 %v2015, %v2011
  %v2588 = vpack.c.b16 %v2020, %v2016
  %v2589 = vpack.c.b16 %v2021, %v2017
  %v2590 = vpack.c.b16 %v2022, %v2018
  %v2591 = vpack.c.b16 %v2023, %v2019
  %v2592 = vpack.c.b16 %v2028, %v2024
  %v2593 = vpack.c.b16 %v2029, %v2025
  %v2594 = vpack.c.b16 %v2030, %v2026
  %v2595 = vpack.c.b16 %v2031, %v2027
  %v2596 = vpack.c.b16 %v2036, %v2032
  %v2597 = vpack.c.b16 %v2037, %v2033
  %v2598 = vpack.c.b16 %v2038, %v2034
  %v2599 = vpack.c.b16 %v2039, %v2035
  %v2600 = vpack.c.b16 %v2044, %v2040
  %v2601 = vpack.c.b16 %v2045, %v2041
  %v2602 = vpack.c.b16 %v2046, %v2042
  %v2603 = vpack.c.b16 %v2047, %v2043
  %v2604 = vpack.c.b16 %v2052, %v2048
  %v2605 = vpack.c.b16 %v2053, %v2049
  %v2606 = vpack.c.b16 %v2054, %v2050
  %v2607 = vpack.c.b16 %v2055, %v2051
  %v2608 = vpack.c.b16 %v2060, %v2056
  %v2609 = vpack.c.b16 %v2061, %v2057
  %v2610 = vpack.c.b16 %v2062, %v2058
  %v2611 = vpack.c.b16 %v2063, %v2059
  %v2612 = vpack.c.b16 %v2068, %v2064
  %v2613 = vpack.c.b16 %v2069, %v2065
  %v2614 = vpack.c.b16 %v2070, %v2066
  %v2615 = vpack.c.b16 %v2071, %v2067
  %v2616 = vpack.c.b16 %v2076, %v2072
  %v2617 = vpack.c.b16 %v2077, %v2073
  %v2618 = vpack.c.b16 %v2078, %v2074
  %v2619 = vpack.c.b16 %v2079, %v2075
  %v2620 = vpack.c.b16 %v2084, %v2080
  %v2621 = vpack.c.b16 %v2085, %v2081
  %v2622 = vpack.c.b16 %v2086, %v2082
  %v2623 = vpack.c.b16 %v2087, %v2083
  %v2624 = vpack.c.b16 %v2092, %v2088
  %v2625 = vpack.c.b16 %v2093, %v2089
  %v2626 = vpack.c.b16 %v2094, %v2090
  %v2627 = vpack.c.b16 %v2095, %v2091
  %v2628 = vpack.c.b16 %v2100, %v2096
  %v2629 = vpack.c.b16 %v2101, %v2097
  %v2630 = vpack.c.b16 %v2102, %v2098
  %v2631 = vpack.c.b16 %v2103, %v2099
  %v2632 = vpack.c.b16 %v2108, %v2104
  %v2633 = vpack.c.b16 %v2109, %v2105
  %v2634 = vpack.c.b16 %v2110, %v2106
  %v2635 = vpack.c.b16 %v2111, %v2107
  %v2636 = vpack.c.b16 %v2116, %v2112
  %v2637 = vpack.c.b16 %v2117, %v2113
  %v2638 = vpack.c.b16 %v2118, %v2114
  %v2639 = vpack.c.b16 %v2119, %v2115
  %v2640 = vpack.c.b16 %v2124, %v2120
  %v2641 = vpack.c.b16 %v2125, %v2121
  %v2642 = vpack.c.b16 %v2126, %v2122
  %v2643 = vpack.c.b16 %v2127, %v2123
  %v2644 = vpack.c.b16 %v2132, %v2128
  %v2645 = vpack.c.b16 %v2133, %v2129
  %v2646 = vpack.c.b16 %v2134, %v2130
  %v2647 = vpack.c.b16 %v2135, %v2131
  %3160 = vmatpush.bf16.msra.mxu0 %v2164
  %3161 = vmatpush.bf16.msra.mxu0 %v2160
  %3162 = vmatpush.bf16.msra.mxu0 %v2156
  %3163 = vmatpush.bf16.msra.mxu0 %v2152
  %3164 = vmatpush.bf16.msra.mxu0 %v2148
  %3165 = vmatpush.bf16.msra.mxu0 %v2144
  %3166 = vmatpush.bf16.msra.mxu0 %v2140
  %3167 = vmatpush.bf16.msra.mxu0 %v2136
  %3168 = vmatmul.bf16.gmra.mxu0 %v568
  %v3169 = vpop.f32.mrf.mxu0
  %v3170 = vadd.f32 0.0, %v3169
  %v3171 = vpop.f32.mrf.mxu0
  %3172 = vdwg.mxu0
  %3173 = vmatpush.bf16.msra.mxu0 %v2196
  %3174 = vmatpush.bf16.msra.mxu0 %v2192
  %3175 = vmatpush.bf16.msra.mxu0 %v2188
  %3176 = vmatpush.bf16.msra.mxu0 %v2184
  %3177 = vmatpush.bf16.msra.mxu0 %v2180
  %3178 = vmatpush.bf16.msra.mxu0 %v2176
  %3179 = vmatpush.bf16.msra.mxu0 %v2172
  %3180 = vmatpush.bf16.msra.mxu0 %v2168
  %3181 = vmatmul.bf16.gmra.mxu0 %v569
  %v3182 = vpop.f32.mrf.mxu0
  %v3183 = vadd.f32 %v3170, %v3182
  %v3184 = vpop.f32.mrf.mxu0
  %3185 = vdwg.mxu0
  %3186 = vmatpush.bf16.msra.mxu0 %v2228
  %3187 = vmatpush.bf16.msra.mxu0 %v2224
  %3188 = vmatpush.bf16.msra.mxu0 %v2220
  %3189 = vmatpush.bf16.msra.mxu0 %v2216
  %3190 = vmatpush.bf16.msra.mxu0 %v2212
  %3191 = vmatpush.bf16.msra.mxu0 %v2208
  %3192 = vmatpush.bf16.msra.mxu0 %v2204
  %3193 = vmatpush.bf16.msra.mxu0 %v2200
  %3194 = vmatmul.bf16.gmra.mxu0 %v570
  %v3195 = vpop.f32.mrf.mxu0
  %v3196 = vadd.f32 %v3183, %v3195
  %v3197 = vpop.f32.mrf.mxu0
  %3198 = vdwg.mxu0
  %3199 = vmatpush.bf16.msra.mxu0 %v2260
  %3200 = vmatpush.bf16.msra.mxu0 %v2256
  %3201 = vmatpush.bf16.msra.mxu0 %v2252
  %3202 = vmatpush.bf16.msra.mxu0 %v2248
  %3203 = vmatpush.bf16.msra.mxu0 %v2244
  %3204 = vmatpush.bf16.msra.mxu0 %v2240
  %3205 = vmatpush.bf16.msra.mxu0 %v2236
  %3206 = vmatpush.bf16.msra.mxu0 %v2232
  %3207 = vmatmul.bf16.gmra.mxu0 %v571
  %v3208 = vpop.f32.mrf.mxu0
  %v3209 = vadd.f32 %v3196, %v3208
  %v3210 = vpop.f32.mrf.mxu0
  %3211 = vdwg.mxu0
  %3212 = vmatpush.bf16.msra.mxu0 %v2292
  %3213 = vmatpush.bf16.msra.mxu0 %v2288
  %3214 = vmatpush.bf16.msra.mxu0 %v2284
  %3215 = vmatpush.bf16.msra.mxu0 %v2280
  %3216 = vmatpush.bf16.msra.mxu0 %v2276
  %3217 = vmatpush.bf16.msra.mxu0 %v2272
  %3218 = vmatpush.bf16.msra.mxu0 %v2268
  %3219 = vmatpush.bf16.msra.mxu0 %v2264
  %3220 = vmatmul.bf16.gmra.mxu0 %v572
  %v3221 = vpop.f32.mrf.mxu0
  %v3222 = vadd.f32 %v3209, %v3221
  %v3223 = vpop.f32.mrf.mxu0
  %3224 = vdwg.mxu0
  %3225 = vmatpush.bf16.msra.mxu0 %v2324
  %3226 = vmatpush.bf16.msra.mxu0 %v2320
  %3227 = vmatpush.bf16.msra.mxu0 %v2316
  %3228 = vmatpush.bf16.msra.mxu0 %v2312
  %3229 = vmatpush.bf16.msra.mxu0 %v2308
  %3230 = vmatpush.bf16.msra.mxu0 %v2304
  %3231 = vmatpush.bf16.msra.mxu0 %v2300
  %3232 = vmatpush.bf16.msra.mxu0 %v2296
  %3233 = vmatmul.bf16.gmra.mxu0 %v573
  %v3234 = vpop.f32.mrf.mxu0
  %v3235 = vadd.f32 %v3222, %v3234
  %v3236 = vpop.f32.mrf.mxu0
  %3237 = vdwg.mxu0
  %3238 = vmatpush.bf16.msra.mxu0 %v2356
  %3239 = vmatpush.bf16.msra.mxu0 %v2352
  %3240 = vmatpush.bf16.msra.mxu0 %v2348
  %3241 = vmatpush.bf16.msra.mxu0 %v2344
  %3242 = vmatpush.bf16.msra.mxu0 %v2340
  %3243 = vmatpush.bf16.msra.mxu0 %v2336
  %3244 = vmatpush.bf16.msra.mxu0 %v2332
  %3245 = vmatpush.bf16.msra.mxu0 %v2328
  %3246 = vmatmul.bf16.gmra.mxu0 %v574
  %v3247 = vpop.f32.mrf.mxu0
  %v3248 = vadd.f32 %v3235, %v3247
  %v3249 = vpop.f32.mrf.mxu0
  %3250 = vdwg.mxu0
  %3251 = vmatpush.bf16.msra.mxu0 %v2388
  %3252 = vmatpush.bf16.msra.mxu0 %v2384
  %3253 = vmatpush.bf16.msra.mxu0 %v2380
  %3254 = vmatpush.bf16.msra.mxu0 %v2376
  %3255 = vmatpush.bf16.msra.mxu0 %v2372
  %3256 = vmatpush.bf16.msra.mxu0 %v2368
  %3257 = vmatpush.bf16.msra.mxu0 %v2364
  %3258 = vmatpush.bf16.msra.mxu0 %v2360
  %3259 = vmatmul.bf16.gmra.mxu0 %v575
  %v3260 = vpop.f32.mrf.mxu0
  %v3261 = vadd.f32 %v3248, %v3260
  %v3262 = vpop.f32.mrf.mxu0
  %3263 = vdwg.mxu0
  %3264 = vmatpush.bf16.msra.mxu0 %v2420
  %3265 = vmatpush.bf16.msra.mxu0 %v2416
  %3266 = vmatpush.bf16.msra.mxu0 %v2412
  %3267 = vmatpush.bf16.msra.mxu0 %v2408
  %3268 = vmatpush.bf16.msra.mxu0 %v2404
  %3269 = vmatpush.bf16.msra.mxu0 %v2400
  %3270 = vmatpush.bf16.msra.mxu0 %v2396
  %3271 = vmatpush.bf16.msra.mxu0 %v2392
  %3272 = vmatmul.bf16.gmra.mxu0 %v576
  %v3273 = vpop.f32.mrf.mxu0
  %v3274 = vadd.f32 %v3261, %v3273
  %v3275 = vpop.f32.mrf.mxu0
  %3276 = vdwg.mxu0
  %3277 = vmatpush.bf16.msra.mxu0 %v2452
  %3278 = vmatpush.bf16.msra.mxu0 %v2448
  %3279 = vmatpush.bf16.msra.mxu0 %v2444
  %3280 = vmatpush.bf16.msra.mxu0 %v2440
  %3281 = vmatpush.bf16.msra.mxu0 %v2436
  %3282 = vmatpush.bf16.msra.mxu0 %v2432
  %3283 = vmatpush.bf16.msra.mxu0 %v2428
  %3284 = vmatpush.bf16.msra.mxu0 %v2424
  %3285 = vmatmul.bf16.gmra.mxu0 %v577
  %v3286 = vpop.f32.mrf.mxu0
  %v3287 = vadd.f32 %v3274, %v3286
  %v3288 = vpop.f32.mrf.mxu0
  %3289 = vdwg.mxu0
  %3290 = vmatpush.bf16.msra.mxu0 %v2484
  %3291 = vmatpush.bf16.msra.mxu0 %v2480
  %3292 = vmatpush.bf16.msra.mxu0 %v2476
  %3293 = vmatpush.bf16.msra.mxu0 %v2472
  %3294 = vmatpush.bf16.msra.mxu0 %v2468
  %3295 = vmatpush.bf16.msra.mxu0 %v2464
  %3296 = vmatpush.bf16.msra.mxu0 %v2460
  %3297 = vmatpush.bf16.msra.mxu0 %v2456
  %3298 = vmatmul.bf16.gmra.mxu0 %v578
  %v3299 = vpop.f32.mrf.mxu0
  %v3300 = vadd.f32 %v3287, %v3299
  %v3301 = vpop.f32.mrf.mxu0
  %3302 = vdwg.mxu0
  %3303 = vmatpush.bf16.msra.mxu0 %v2516
  %3304 = vmatpush.bf16.msra.mxu0 %v2512
  %3305 = vmatpush.bf16.msra.mxu0 %v2508
  %3306 = vmatpush.bf16.msra.mxu0 %v2504
  %3307 = vmatpush.bf16.msra.mxu0 %v2500
  %3308 = vmatpush.bf16.msra.mxu0 %v2496
  %3309 = vmatpush.bf16.msra.mxu0 %v2492
  %3310 = vmatpush.bf16.msra.mxu0 %v2488
  %3311 = vmatmul.bf16.gmra.mxu0 %v579
  %v3312 = vpop.f32.mrf.mxu0
  %v3313 = vadd.f32 %v3300, %v3312
  %v3314 = vpop.f32.mrf.mxu0
  %3315 = vdwg.mxu0
  %3316 = vmatpush.bf16.msra.mxu0 %v2548
  %3317 = vmatpush.bf16.msra.mxu0 %v2544
  %3318 = vmatpush.bf16.msra.mxu0 %v2540
  %3319 = vmatpush.bf16.msra.mxu0 %v2536
  %3320 = vmatpush.bf16.msra.mxu0 %v2532
  %3321 = vmatpush.bf16.msra.mxu0 %v2528
  %3322 = vmatpush.bf16.msra.mxu0 %v2524
  %3323 = vmatpush.bf16.msra.mxu0 %v2520
  %3324 = vmatmul.bf16.gmra.mxu0 %v580
  %v3325 = vpop.f32.mrf.mxu0
  %v3326 = vadd.f32 %v3313, %v3325
  %v3327 = vpop.f32.mrf.mxu0
  %3328 = vdwg.mxu0
  %3329 = vmatpush.bf16.msra.mxu0 %v2580
  %3330 = vmatpush.bf16.msra.mxu0 %v2576
  %3331 = vmatpush.bf16.msra.mxu0 %v2572
  %3332 = vmatpush.bf16.msra.mxu0 %v2568
  %3333 = vmatpush.bf16.msra.mxu0 %v2564
  %3334 = vmatpush.bf16.msra.mxu0 %v2560
  %3335 = vmatpush.bf16.msra.mxu0 %v2556
  %3336 = vmatpush.bf16.msra.mxu0 %v2552
  %3337 = vmatmul.bf16.gmra.mxu0 %v581
  %v3338 = vpop.f32.mrf.mxu0
  %v3339 = vadd.f32 %v3326, %v3338
  %v3340 = vpop.f32.mrf.mxu0
  %3341 = vdwg.mxu0
  %3342 = vmatpush.bf16.msra.mxu0 %v2612
  %3343 = vmatpush.bf16.msra.mxu0 %v2608
  %3344 = vmatpush.bf16.msra.mxu0 %v2604
  %3345 = vmatpush.bf16.msra.mxu0 %v2600
  %3346 = vmatpush.bf16.msra.mxu0 %v2596
  %3347 = vmatpush.bf16.msra.mxu0 %v2592
  %3348 = vmatpush.bf16.msra.mxu0 %v2588
  %3349 = vmatpush.bf16.msra.mxu0 %v2584
  %3350 = vmatmul.bf16.gmra.mxu0 %v582
  %v3351 = vpop.f32.mrf.mxu0
  %v3352 = vadd.f32 %v3339, %v3351
  %v3353 = vpop.f32.mrf.mxu0
  %3354 = vdwg.mxu0
  %3355 = vmatpush.bf16.msra.mxu0 %v2644
  %3356 = vmatpush.bf16.msra.mxu0 %v2640
  %3357 = vmatpush.bf16.msra.mxu0 %v2636
  %3358 = vmatpush.bf16.msra.mxu0 %v2632
  %3359 = vmatpush.bf16.msra.mxu0 %v2628
  %3360 = vmatpush.bf16.msra.mxu0 %v2624
  %3361 = vmatpush.bf16.msra.mxu0 %v2620
  %3362 = vmatpush.bf16.msra.mxu0 %v2616
  %3363 = vmatmul.bf16.gmra.mxu0 %v583
  %v3364 = vpop.f32.mrf.mxu0
  %v3365 = vadd.f32 %v3352, %v3364
  %v3366 = vpop.f32.mrf.mxu0
  %3367 = vdwg.mxu0
  %3368 = vmatpush.bf16.msra.mxu0 %v2165
  %3369 = vmatpush.bf16.msra.mxu0 %v2161
  %3370 = vmatpush.bf16.msra.mxu0 %v2157
  %3371 = vmatpush.bf16.msra.mxu0 %v2153
  %3372 = vmatpush.bf16.msra.mxu0 %v2149
  %3373 = vmatpush.bf16.msra.mxu0 %v2145
  %3374 = vmatpush.bf16.msra.mxu0 %v2141
  %3375 = vmatpush.bf16.msra.mxu0 %v2137
  %3376 = vmatmul.bf16.gmra.mxu0 %v568
  %v3377 = vpop.f32.mrf.mxu0
  %v3378 = vadd.f32 0.0, %v3377
  %v3379 = vpop.f32.mrf.mxu0
  %3380 = vdwg.mxu0
  %3381 = vmatpush.bf16.msra.mxu0 %v2197
  %3382 = vmatpush.bf16.msra.mxu0 %v2193
  %3383 = vmatpush.bf16.msra.mxu0 %v2189
  %3384 = vmatpush.bf16.msra.mxu0 %v2185
  %3385 = vmatpush.bf16.msra.mxu0 %v2181
  %3386 = vmatpush.bf16.msra.mxu0 %v2177
  %3387 = vmatpush.bf16.msra.mxu0 %v2173
  %3388 = vmatpush.bf16.msra.mxu0 %v2169
  %3389 = vmatmul.bf16.gmra.mxu0 %v569
  %v3390 = vpop.f32.mrf.mxu0
  %v3391 = vadd.f32 %v3378, %v3390
  %v3392 = vpop.f32.mrf.mxu0
  %3393 = vdwg.mxu0
  %3394 = vmatpush.bf16.msra.mxu0 %v2229
  %3395 = vmatpush.bf16.msra.mxu0 %v2225
  %3396 = vmatpush.bf16.msra.mxu0 %v2221
  %3397 = vmatpush.bf16.msra.mxu0 %v2217
  %3398 = vmatpush.bf16.msra.mxu0 %v2213
  %3399 = vmatpush.bf16.msra.mxu0 %v2209
  %3400 = vmatpush.bf16.msra.mxu0 %v2205
  %3401 = vmatpush.bf16.msra.mxu0 %v2201
  %3402 = vmatmul.bf16.gmra.mxu0 %v570
  %v3403 = vpop.f32.mrf.mxu0
  %v3404 = vadd.f32 %v3391, %v3403
  %v3405 = vpop.f32.mrf.mxu0
  %3406 = vdwg.mxu0
  %3407 = vmatpush.bf16.msra.mxu0 %v2261
  %3408 = vmatpush.bf16.msra.mxu0 %v2257
  %3409 = vmatpush.bf16.msra.mxu0 %v2253
  %3410 = vmatpush.bf16.msra.mxu0 %v2249
  %3411 = vmatpush.bf16.msra.mxu0 %v2245
  %3412 = vmatpush.bf16.msra.mxu0 %v2241
  %3413 = vmatpush.bf16.msra.mxu0 %v2237
  %3414 = vmatpush.bf16.msra.mxu0 %v2233
  %3415 = vmatmul.bf16.gmra.mxu0 %v571
  %v3416 = vpop.f32.mrf.mxu0
  %v3417 = vadd.f32 %v3404, %v3416
  %v3418 = vpop.f32.mrf.mxu0
  %3419 = vdwg.mxu0
  %3420 = vmatpush.bf16.msra.mxu0 %v2293
  %3421 = vmatpush.bf16.msra.mxu0 %v2289
  %3422 = vmatpush.bf16.msra.mxu0 %v2285
  %3423 = vmatpush.bf16.msra.mxu0 %v2281
  %3424 = vmatpush.bf16.msra.mxu0 %v2277
  %3425 = vmatpush.bf16.msra.mxu0 %v2273
  %3426 = vmatpush.bf16.msra.mxu0 %v2269
  %3427 = vmatpush.bf16.msra.mxu0 %v2265
  %3428 = vmatmul.bf16.gmra.mxu0 %v572
  %v3429 = vpop.f32.mrf.mxu0
  %v3430 = vadd.f32 %v3417, %v3429
  %v3431 = vpop.f32.mrf.mxu0
  %3432 = vdwg.mxu0
  %3433 = vmatpush.bf16.msra.mxu0 %v2325
  %3434 = vmatpush.bf16.msra.mxu0 %v2321
  %3435 = vmatpush.bf16.msra.mxu0 %v2317
  %3436 = vmatpush.bf16.msra.mxu0 %v2313
  %3437 = vmatpush.bf16.msra.mxu0 %v2309
  %3438 = vmatpush.bf16.msra.mxu0 %v2305
  %3439 = vmatpush.bf16.msra.mxu0 %v2301
  %3440 = vmatpush.bf16.msra.mxu0 %v2297
  %3441 = vmatmul.bf16.gmra.mxu0 %v573
  %v3442 = vpop.f32.mrf.mxu0
  %v3443 = vadd.f32 %v3430, %v3442
  %v3444 = vpop.f32.mrf.mxu0
  %3445 = vdwg.mxu0
  %3446 = vmatpush.bf16.msra.mxu0 %v2357
  %3447 = vmatpush.bf16.msra.mxu0 %v2353
  %3448 = vmatpush.bf16.msra.mxu0 %v2349
  %3449 = vmatpush.bf16.msra.mxu0 %v2345
  %3450 = vmatpush.bf16.msra.mxu0 %v2341
  %3451 = vmatpush.bf16.msra.mxu0 %v2337
  %3452 = vmatpush.bf16.msra.mxu0 %v2333
  %3453 = vmatpush.bf16.msra.mxu0 %v2329
  %3454 = vmatmul.bf16.gmra.mxu0 %v574
  %v3455 = vpop.f32.mrf.mxu0
  %v3456 = vadd.f32 %v3443, %v3455
  %v3457 = vpop.f32.mrf.mxu0
  %3458 = vdwg.mxu0
  %3459 = vmatpush.bf16.msra.mxu0 %v2389
  %3460 = vmatpush.bf16.msra.mxu0 %v2385
  %3461 = vmatpush.bf16.msra.mxu0 %v2381
  %3462 = vmatpush.bf16.msra.mxu0 %v2377
  %3463 = vmatpush.bf16.msra.mxu0 %v2373
  %3464 = vmatpush.bf16.msra.mxu0 %v2369
  %3465 = vmatpush.bf16.msra.mxu0 %v2365
  %3466 = vmatpush.bf16.msra.mxu0 %v2361
  %3467 = vmatmul.bf16.gmra.mxu0 %v575
  %v3468 = vpop.f32.mrf.mxu0
  %v3469 = vadd.f32 %v3456, %v3468
  %v3470 = vpop.f32.mrf.mxu0
  %3471 = vdwg.mxu0
  %3472 = vmatpush.bf16.msra.mxu0 %v2421
  %3473 = vmatpush.bf16.msra.mxu0 %v2417
  %3474 = vmatpush.bf16.msra.mxu0 %v2413
  %3475 = vmatpush.bf16.msra.mxu0 %v2409
  %3476 = vmatpush.bf16.msra.mxu0 %v2405
  %3477 = vmatpush.bf16.msra.mxu0 %v2401
  %3478 = vmatpush.bf16.msra.mxu0 %v2397
  %3479 = vmatpush.bf16.msra.mxu0 %v2393
  %3480 = vmatmul.bf16.gmra.mxu0 %v576
  %v3481 = vpop.f32.mrf.mxu0
  %v3482 = vadd.f32 %v3469, %v3481
  %v3483 = vpop.f32.mrf.mxu0
  %3484 = vdwg.mxu0
  %3485 = vmatpush.bf16.msra.mxu0 %v2453
  %3486 = vmatpush.bf16.msra.mxu0 %v2449
  %3487 = vmatpush.bf16.msra.mxu0 %v2445
  %3488 = vmatpush.bf16.msra.mxu0 %v2441
  %3489 = vmatpush.bf16.msra.mxu0 %v2437
  %3490 = vmatpush.bf16.msra.mxu0 %v2433
  %3491 = vmatpush.bf16.msra.mxu0 %v2429
  %3492 = vmatpush.bf16.msra.mxu0 %v2425
  %3493 = vmatmul.bf16.gmra.mxu0 %v577
  %v3494 = vpop.f32.mrf.mxu0
  %v3495 = vadd.f32 %v3482, %v3494
  %v3496 = vpop.f32.mrf.mxu0
  %3497 = vdwg.mxu0
  %3498 = vmatpush.bf16.msra.mxu0 %v2485
  %3499 = vmatpush.bf16.msra.mxu0 %v2481
  %3500 = vmatpush.bf16.msra.mxu0 %v2477
  %3501 = vmatpush.bf16.msra.mxu0 %v2473
  %3502 = vmatpush.bf16.msra.mxu0 %v2469
  %3503 = vmatpush.bf16.msra.mxu0 %v2465
  %3504 = vmatpush.bf16.msra.mxu0 %v2461
  %3505 = vmatpush.bf16.msra.mxu0 %v2457
  %3506 = vmatmul.bf16.gmra.mxu0 %v578
  %v3507 = vpop.f32.mrf.mxu0
  %v3508 = vadd.f32 %v3495, %v3507
  %v3509 = vpop.f32.mrf.mxu0
  %3510 = vdwg.mxu0
  %3511 = vmatpush.bf16.msra.mxu0 %v2517
  %3512 = vmatpush.bf16.msra.mxu0 %v2513
  %3513 = vmatpush.bf16.msra.mxu0 %v2509
  %3514 = vmatpush.bf16.msra.mxu0 %v2505
  %3515 = vmatpush.bf16.msra.mxu0 %v2501
  %3516 = vmatpush.bf16.msra.mxu0 %v2497
  %3517 = vmatpush.bf16.msra.mxu0 %v2493
  %3518 = vmatpush.bf16.msra.mxu0 %v2489
  %3519 = vmatmul.bf16.gmra.mxu0 %v579
  %v3520 = vpop.f32.mrf.mxu0
  %v3521 = vadd.f32 %v3508, %v3520
  %v3522 = vpop.f32.mrf.mxu0
  %3523 = vdwg.mxu0
  %3524 = vmatpush.bf16.msra.mxu0 %v2549
  %3525 = vmatpush.bf16.msra.mxu0 %v2545
  %3526 = vmatpush.bf16.msra.mxu0 %v2541
  %3527 = vmatpush.bf16.msra.mxu0 %v2537
  %3528 = vmatpush.bf16.msra.mxu0 %v2533
  %3529 = vmatpush.bf16.msra.mxu0 %v2529
  %3530 = vmatpush.bf16.msra.mxu0 %v2525
  %3531 = vmatpush.bf16.msra.mxu0 %v2521
  %3532 = vmatmul.bf16.gmra.mxu0 %v580
  %v3533 = vpop.f32.mrf.mxu0
  %v3534 = vadd.f32 %v3521, %v3533
  %v3535 = vpop.f32.mrf.mxu0
  %3536 = vdwg.mxu0
  %3537 = vmatpush.bf16.msra.mxu0 %v2581
  %3538 = vmatpush.bf16.msra.mxu0 %v2577
  %3539 = vmatpush.bf16.msra.mxu0 %v2573
  %3540 = vmatpush.bf16.msra.mxu0 %v2569
  %3541 = vmatpush.bf16.msra.mxu0 %v2565
  %3542 = vmatpush.bf16.msra.mxu0 %v2561
  %3543 = vmatpush.bf16.msra.mxu0 %v2557
  %3544 = vmatpush.bf16.msra.mxu0 %v2553
  %3545 = vmatmul.bf16.gmra.mxu0 %v581
  %v3546 = vpop.f32.mrf.mxu0
  %v3547 = vadd.f32 %v3534, %v3546
  %v3548 = vpop.f32.mrf.mxu0
  %3549 = vdwg.mxu0
  %3550 = vmatpush.bf16.msra.mxu0 %v2613
  %3551 = vmatpush.bf16.msra.mxu0 %v2609
  %3552 = vmatpush.bf16.msra.mxu0 %v2605
  %3553 = vmatpush.bf16.msra.mxu0 %v2601
  %3554 = vmatpush.bf16.msra.mxu0 %v2597
  %3555 = vmatpush.bf16.msra.mxu0 %v2593
  %3556 = vmatpush.bf16.msra.mxu0 %v2589
  %3557 = vmatpush.bf16.msra.mxu0 %v2585
  %3558 = vmatmul.bf16.gmra.mxu0 %v582
  %v3559 = vpop.f32.mrf.mxu0
  %v3560 = vadd.f32 %v3547, %v3559
  %v3561 = vpop.f32.mrf.mxu0
  %3562 = vdwg.mxu0
  %3563 = vmatpush.bf16.msra.mxu0 %v2645
  %3564 = vmatpush.bf16.msra.mxu0 %v2641
  %3565 = vmatpush.bf16.msra.mxu0 %v2637
  %3566 = vmatpush.bf16.msra.mxu0 %v2633
  %3567 = vmatpush.bf16.msra.mxu0 %v2629
  %3568 = vmatpush.bf16.msra.mxu0 %v2625
  %3569 = vmatpush.bf16.msra.mxu0 %v2621
  %3570 = vmatpush.bf16.msra.mxu0 %v2617
  %3571 = vmatmul.bf16.gmra.mxu0 %v583
  %v3572 = vpop.f32.mrf.mxu0
  %v3573 = vadd.f32 %v3560, %v3572
  %v3574 = vpop.f32.mrf.mxu0
  %3575 = vdwg.mxu0
  %3576 = vmatpush.bf16.msra.mxu0 %v2166
  %3577 = vmatpush.bf16.msra.mxu0 %v2162
  %3578 = vmatpush.bf16.msra.mxu0 %v2158
  %3579 = vmatpush.bf16.msra.mxu0 %v2154
  %3580 = vmatpush.bf16.msra.mxu0 %v2150
  %3581 = vmatpush.bf16.msra.mxu0 %v2146
  %3582 = vmatpush.bf16.msra.mxu0 %v2142
  %3583 = vmatpush.bf16.msra.mxu0 %v2138
  %3584 = vmatmul.bf16.gmra.mxu0 %v568
  %v3585 = vpop.f32.mrf.mxu0
  %v3586 = vadd.f32 0.0, %v3585
  %v3587 = vpop.f32.mrf.mxu0
  %3588 = vdwg.mxu0
  %3589 = vmatpush.bf16.msra.mxu0 %v2198
  %3590 = vmatpush.bf16.msra.mxu0 %v2194
  %3591 = vmatpush.bf16.msra.mxu0 %v2190
  %3592 = vmatpush.bf16.msra.mxu0 %v2186
  %3593 = vmatpush.bf16.msra.mxu0 %v2182
  %3594 = vmatpush.bf16.msra.mxu0 %v2178
  %3595 = vmatpush.bf16.msra.mxu0 %v2174
  %3596 = vmatpush.bf16.msra.mxu0 %v2170
  %3597 = vmatmul.bf16.gmra.mxu0 %v569
  %v3598 = vpop.f32.mrf.mxu0
  %v3599 = vadd.f32 %v3586, %v3598
  %v3600 = vpop.f32.mrf.mxu0
  %3601 = vdwg.mxu0
  %3602 = vmatpush.bf16.msra.mxu0 %v2230
  %3603 = vmatpush.bf16.msra.mxu0 %v2226
  %3604 = vmatpush.bf16.msra.mxu0 %v2222
  %3605 = vmatpush.bf16.msra.mxu0 %v2218
  %3606 = vmatpush.bf16.msra.mxu0 %v2214
  %3607 = vmatpush.bf16.msra.mxu0 %v2210
  %3608 = vmatpush.bf16.msra.mxu0 %v2206
  %3609 = vmatpush.bf16.msra.mxu0 %v2202
  %3610 = vmatmul.bf16.gmra.mxu0 %v570
  %v3611 = vpop.f32.mrf.mxu0
  %v3612 = vadd.f32 %v3599, %v3611
  %v3613 = vpop.f32.mrf.mxu0
  %3614 = vdwg.mxu0
  %3615 = vmatpush.bf16.msra.mxu0 %v2262
  %3616 = vmatpush.bf16.msra.mxu0 %v2258
  %3617 = vmatpush.bf16.msra.mxu0 %v2254
  %3618 = vmatpush.bf16.msra.mxu0 %v2250
  %3619 = vmatpush.bf16.msra.mxu0 %v2246
  %3620 = vmatpush.bf16.msra.mxu0 %v2242
  %3621 = vmatpush.bf16.msra.mxu0 %v2238
  %3622 = vmatpush.bf16.msra.mxu0 %v2234
  %3623 = vmatmul.bf16.gmra.mxu0 %v571
  %v3624 = vpop.f32.mrf.mxu0
  %v3625 = vadd.f32 %v3612, %v3624
  %v3626 = vpop.f32.mrf.mxu0
  %3627 = vdwg.mxu0
  %3628 = vmatpush.bf16.msra.mxu0 %v2294
  %3629 = vmatpush.bf16.msra.mxu0 %v2290
  %3630 = vmatpush.bf16.msra.mxu0 %v2286
  %3631 = vmatpush.bf16.msra.mxu0 %v2282
  %3632 = vmatpush.bf16.msra.mxu0 %v2278
  %3633 = vmatpush.bf16.msra.mxu0 %v2274
  %3634 = vmatpush.bf16.msra.mxu0 %v2270
  %3635 = vmatpush.bf16.msra.mxu0 %v2266
  %3636 = vmatmul.bf16.gmra.mxu0 %v572
  %v3637 = vpop.f32.mrf.mxu0
  %v3638 = vadd.f32 %v3625, %v3637
  %v3639 = vpop.f32.mrf.mxu0
  %3640 = vdwg.mxu0
  %3641 = vmatpush.bf16.msra.mxu0 %v2326
  %3642 = vmatpush.bf16.msra.mxu0 %v2322
  %3643 = vmatpush.bf16.msra.mxu0 %v2318
  %3644 = vmatpush.bf16.msra.mxu0 %v2314
  %3645 = vmatpush.bf16.msra.mxu0 %v2310
  %3646 = vmatpush.bf16.msra.mxu0 %v2306
  %3647 = vmatpush.bf16.msra.mxu0 %v2302
  %3648 = vmatpush.bf16.msra.mxu0 %v2298
  %3649 = vmatmul.bf16.gmra.mxu0 %v573
  %v3650 = vpop.f32.mrf.mxu0
  %v3651 = vadd.f32 %v3638, %v3650
  %v3652 = vpop.f32.mrf.mxu0
  %3653 = vdwg.mxu0
  %3654 = vmatpush.bf16.msra.mxu0 %v2358
  %3655 = vmatpush.bf16.msra.mxu0 %v2354
  %3656 = vmatpush.bf16.msra.mxu0 %v2350
  %3657 = vmatpush.bf16.msra.mxu0 %v2346
  %3658 = vmatpush.bf16.msra.mxu0 %v2342
  %3659 = vmatpush.bf16.msra.mxu0 %v2338
  %3660 = vmatpush.bf16.msra.mxu0 %v2334
  %3661 = vmatpush.bf16.msra.mxu0 %v2330
  %3662 = vmatmul.bf16.gmra.mxu0 %v574
  %v3663 = vpop.f32.mrf.mxu0
  %v3664 = vadd.f32 %v3651, %v3663
  %v3665 = vpop.f32.mrf.mxu0
  %3666 = vdwg.mxu0
  %3667 = vmatpush.bf16.msra.mxu0 %v2390
  %3668 = vmatpush.bf16.msra.mxu0 %v2386
  %3669 = vmatpush.bf16.msra.mxu0 %v2382
  %3670 = vmatpush.bf16.msra.mxu0 %v2378
  %3671 = vmatpush.bf16.msra.mxu0 %v2374
  %3672 = vmatpush.bf16.msra.mxu0 %v2370
  %3673 = vmatpush.bf16.msra.mxu0 %v2366
  %3674 = vmatpush.bf16.msra.mxu0 %v2362
  %3675 = vmatmul.bf16.gmra.mxu0 %v575
  %v3676 = vpop.f32.mrf.mxu0
  %v3677 = vadd.f32 %v3664, %v3676
  %v3678 = vpop.f32.mrf.mxu0
  %3679 = vdwg.mxu0
  %3680 = vmatpush.bf16.msra.mxu0 %v2422
  %3681 = vmatpush.bf16.msra.mxu0 %v2418
  %3682 = vmatpush.bf16.msra.mxu0 %v2414
  %3683 = vmatpush.bf16.msra.mxu0 %v2410
  %3684 = vmatpush.bf16.msra.mxu0 %v2406
  %3685 = vmatpush.bf16.msra.mxu0 %v2402
  %3686 = vmatpush.bf16.msra.mxu0 %v2398
  %3687 = vmatpush.bf16.msra.mxu0 %v2394
  %3688 = vmatmul.bf16.gmra.mxu0 %v576
  %v3689 = vpop.f32.mrf.mxu0
  %v3690 = vadd.f32 %v3677, %v3689
  %v3691 = vpop.f32.mrf.mxu0
  %3692 = vdwg.mxu0
  %3693 = vmatpush.bf16.msra.mxu0 %v2454
  %3694 = vmatpush.bf16.msra.mxu0 %v2450
  %3695 = vmatpush.bf16.msra.mxu0 %v2446
  %3696 = vmatpush.bf16.msra.mxu0 %v2442
  %3697 = vmatpush.bf16.msra.mxu0 %v2438
  %3698 = vmatpush.bf16.msra.mxu0 %v2434
  %3699 = vmatpush.bf16.msra.mxu0 %v2430
  %3700 = vmatpush.bf16.msra.mxu0 %v2426
  %3701 = vmatmul.bf16.gmra.mxu0 %v577
  %v3702 = vpop.f32.mrf.mxu0
  %v3703 = vadd.f32 %v3690, %v3702
  %v3704 = vpop.f32.mrf.mxu0
  %3705 = vdwg.mxu0
  %3706 = vmatpush.bf16.msra.mxu0 %v2486
  %3707 = vmatpush.bf16.msra.mxu0 %v2482
  %3708 = vmatpush.bf16.msra.mxu0 %v2478
  %3709 = vmatpush.bf16.msra.mxu0 %v2474
  %3710 = vmatpush.bf16.msra.mxu0 %v2470
  %3711 = vmatpush.bf16.msra.mxu0 %v2466
  %3712 = vmatpush.bf16.msra.mxu0 %v2462
  %3713 = vmatpush.bf16.msra.mxu0 %v2458
  %3714 = vmatmul.bf16.gmra.mxu0 %v578
  %v3715 = vpop.f32.mrf.mxu0
  %v3716 = vadd.f32 %v3703, %v3715
  %v3717 = vpop.f32.mrf.mxu0
  %3718 = vdwg.mxu0
  %3719 = vmatpush.bf16.msra.mxu0 %v2518
  %3720 = vmatpush.bf16.msra.mxu0 %v2514
  %3721 = vmatpush.bf16.msra.mxu0 %v2510
  %3722 = vmatpush.bf16.msra.mxu0 %v2506
  %3723 = vmatpush.bf16.msra.mxu0 %v2502
  %3724 = vmatpush.bf16.msra.mxu0 %v2498
  %3725 = vmatpush.bf16.msra.mxu0 %v2494
  %3726 = vmatpush.bf16.msra.mxu0 %v2490
  %3727 = vmatmul.bf16.gmra.mxu0 %v579
  %v3728 = vpop.f32.mrf.mxu0
  %v3729 = vadd.f32 %v3716, %v3728
  %v3730 = vpop.f32.mrf.mxu0
  %3731 = vdwg.mxu0
  %3732 = vmatpush.bf16.msra.mxu0 %v2550
  %3733 = vmatpush.bf16.msra.mxu0 %v2546
  %3734 = vmatpush.bf16.msra.mxu0 %v2542
  %3735 = vmatpush.bf16.msra.mxu0 %v2538
  %3736 = vmatpush.bf16.msra.mxu0 %v2534
  %3737 = vmatpush.bf16.msra.mxu0 %v2530
  %3738 = vmatpush.bf16.msra.mxu0 %v2526
  %3739 = vmatpush.bf16.msra.mxu0 %v2522
  %3740 = vmatmul.bf16.gmra.mxu0 %v580
  %v3741 = vpop.f32.mrf.mxu0
  %v3742 = vadd.f32 %v3729, %v3741
  %v3743 = vpop.f32.mrf.mxu0
  %3744 = vdwg.mxu0
  %3745 = vmatpush.bf16.msra.mxu0 %v2582
  %3746 = vmatpush.bf16.msra.mxu0 %v2578
  %3747 = vmatpush.bf16.msra.mxu0 %v2574
  %3748 = vmatpush.bf16.msra.mxu0 %v2570
  %3749 = vmatpush.bf16.msra.mxu0 %v2566
  %3750 = vmatpush.bf16.msra.mxu0 %v2562
  %3751 = vmatpush.bf16.msra.mxu0 %v2558
  %3752 = vmatpush.bf16.msra.mxu0 %v2554
  %3753 = vmatmul.bf16.gmra.mxu0 %v581
  %v3754 = vpop.f32.mrf.mxu0
  %v3755 = vadd.f32 %v3742, %v3754
  %v3756 = vpop.f32.mrf.mxu0
  %3757 = vdwg.mxu0
  %3758 = vmatpush.bf16.msra.mxu0 %v2614
  %3759 = vmatpush.bf16.msra.mxu0 %v2610
  %3760 = vmatpush.bf16.msra.mxu0 %v2606
  %3761 = vmatpush.bf16.msra.mxu0 %v2602
  %3762 = vmatpush.bf16.msra.mxu0 %v2598
  %3763 = vmatpush.bf16.msra.mxu0 %v2594
  %3764 = vmatpush.bf16.msra.mxu0 %v2590
  %3765 = vmatpush.bf16.msra.mxu0 %v2586
  %3766 = vmatmul.bf16.gmra.mxu0 %v582
  %v3767 = vpop.f32.mrf.mxu0
  %v3768 = vadd.f32 %v3755, %v3767
  %v3769 = vpop.f32.mrf.mxu0
  %3770 = vdwg.mxu0
  %3771 = vmatpush.bf16.msra.mxu0 %v2646
  %3772 = vmatpush.bf16.msra.mxu0 %v2642
  %3773 = vmatpush.bf16.msra.mxu0 %v2638
  %3774 = vmatpush.bf16.msra.mxu0 %v2634
  %3775 = vmatpush.bf16.msra.mxu0 %v2630
  %3776 = vmatpush.bf16.msra.mxu0 %v2626
  %3777 = vmatpush.bf16.msra.mxu0 %v2622
  %3778 = vmatpush.bf16.msra.mxu0 %v2618
  %3779 = vmatmul.bf16.gmra.mxu0 %v583
  %v3780 = vpop.f32.mrf.mxu0
  %v3781 = vadd.f32 %v3768, %v3780
  %v3782 = vpop.f32.mrf.mxu0
  %3783 = vdwg.mxu0
  %3784 = vmatpush.bf16.msra.mxu0 %v2167
  %3785 = vmatpush.bf16.msra.mxu0 %v2163
  %3786 = vmatpush.bf16.msra.mxu0 %v2159
  %3787 = vmatpush.bf16.msra.mxu0 %v2155
  %3788 = vmatpush.bf16.msra.mxu0 %v2151
  %3789 = vmatpush.bf16.msra.mxu0 %v2147
  %3790 = vmatpush.bf16.msra.mxu0 %v2143
  %3791 = vmatpush.bf16.msra.mxu0 %v2139
  %3792 = vmatmul.bf16.gmra.mxu0 %v568
  %v3793 = vpop.f32.mrf.mxu0
  %v3794 = vadd.f32 0.0, %v3793
  %v3795 = vpop.f32.mrf.mxu0
  %3796 = vdwg.mxu0
  %3797 = vmatpush.bf16.msra.mxu0 %v2199
  %3798 = vmatpush.bf16.msra.mxu0 %v2195
  %3799 = vmatpush.bf16.msra.mxu0 %v2191
  %3800 = vmatpush.bf16.msra.mxu0 %v2187
  %3801 = vmatpush.bf16.msra.mxu0 %v2183
  %3802 = vmatpush.bf16.msra.mxu0 %v2179
  %3803 = vmatpush.bf16.msra.mxu0 %v2175
  %3804 = vmatpush.bf16.msra.mxu0 %v2171
  %3805 = vmatmul.bf16.gmra.mxu0 %v569
  %v3806 = vpop.f32.mrf.mxu0
  %v3807 = vadd.f32 %v3794, %v3806
  %v3808 = vpop.f32.mrf.mxu0
  %3809 = vdwg.mxu0
  %3810 = vmatpush.bf16.msra.mxu0 %v2231
  %3811 = vmatpush.bf16.msra.mxu0 %v2227
  %3812 = vmatpush.bf16.msra.mxu0 %v2223
  %3813 = vmatpush.bf16.msra.mxu0 %v2219
  %3814 = vmatpush.bf16.msra.mxu0 %v2215
  %3815 = vmatpush.bf16.msra.mxu0 %v2211
  %3816 = vmatpush.bf16.msra.mxu0 %v2207
  %3817 = vmatpush.bf16.msra.mxu0 %v2203
  %3818 = vmatmul.bf16.gmra.mxu0 %v570
  %v3819 = vpop.f32.mrf.mxu0
  %v3820 = vadd.f32 %v3807, %v3819
  %v3821 = vpop.f32.mrf.mxu0
  %3822 = vdwg.mxu0
  %3823 = vmatpush.bf16.msra.mxu0 %v2263
  %3824 = vmatpush.bf16.msra.mxu0 %v2259
  %3825 = vmatpush.bf16.msra.mxu0 %v2255
  %3826 = vmatpush.bf16.msra.mxu0 %v2251
  %3827 = vmatpush.bf16.msra.mxu0 %v2247
  %3828 = vmatpush.bf16.msra.mxu0 %v2243
  %3829 = vmatpush.bf16.msra.mxu0 %v2239
  %3830 = vmatpush.bf16.msra.mxu0 %v2235
  %3831 = vmatmul.bf16.gmra.mxu0 %v571
  %v3832 = vpop.f32.mrf.mxu0
  %v3833 = vadd.f32 %v3820, %v3832
  %v3834 = vpop.f32.mrf.mxu0
  %3835 = vdwg.mxu0
  %3836 = vmatpush.bf16.msra.mxu0 %v2295
  %3837 = vmatpush.bf16.msra.mxu0 %v2291
  %3838 = vmatpush.bf16.msra.mxu0 %v2287
  %3839 = vmatpush.bf16.msra.mxu0 %v2283
  %3840 = vmatpush.bf16.msra.mxu0 %v2279
  %3841 = vmatpush.bf16.msra.mxu0 %v2275
  %3842 = vmatpush.bf16.msra.mxu0 %v2271
  %3843 = vmatpush.bf16.msra.mxu0 %v2267
  %3844 = vmatmul.bf16.gmra.mxu0 %v572
  %v3845 = vpop.f32.mrf.mxu0
  %v3846 = vadd.f32 %v3833, %v3845
  %v3847 = vpop.f32.mrf.mxu0
  %3848 = vdwg.mxu0
  %3849 = vmatpush.bf16.msra.mxu0 %v2327
  %3850 = vmatpush.bf16.msra.mxu0 %v2323
  %3851 = vmatpush.bf16.msra.mxu0 %v2319
  %3852 = vmatpush.bf16.msra.mxu0 %v2315
  %3853 = vmatpush.bf16.msra.mxu0 %v2311
  %3854 = vmatpush.bf16.msra.mxu0 %v2307
  %3855 = vmatpush.bf16.msra.mxu0 %v2303
  %3856 = vmatpush.bf16.msra.mxu0 %v2299
  %3857 = vmatmul.bf16.gmra.mxu0 %v573
  %v3858 = vpop.f32.mrf.mxu0
  %v3859 = vadd.f32 %v3846, %v3858
  %v3860 = vpop.f32.mrf.mxu0
  %3861 = vdwg.mxu0
  %3862 = vmatpush.bf16.msra.mxu0 %v2359
  %3863 = vmatpush.bf16.msra.mxu0 %v2355
  %3864 = vmatpush.bf16.msra.mxu0 %v2351
  %3865 = vmatpush.bf16.msra.mxu0 %v2347
  %3866 = vmatpush.bf16.msra.mxu0 %v2343
  %3867 = vmatpush.bf16.msra.mxu0 %v2339
  %3868 = vmatpush.bf16.msra.mxu0 %v2335
  %3869 = vmatpush.bf16.msra.mxu0 %v2331
  %3870 = vmatmul.bf16.gmra.mxu0 %v574
  %v3871 = vpop.f32.mrf.mxu0
  %v3872 = vadd.f32 %v3859, %v3871
  %v3873 = vpop.f32.mrf.mxu0
  %3874 = vdwg.mxu0
  %3875 = vmatpush.bf16.msra.mxu0 %v2391
  %3876 = vmatpush.bf16.msra.mxu0 %v2387
  %3877 = vmatpush.bf16.msra.mxu0 %v2383
  %3878 = vmatpush.bf16.msra.mxu0 %v2379
  %3879 = vmatpush.bf16.msra.mxu0 %v2375
  %3880 = vmatpush.bf16.msra.mxu0 %v2371
  %3881 = vmatpush.bf16.msra.mxu0 %v2367
  %3882 = vmatpush.bf16.msra.mxu0 %v2363
  %3883 = vmatmul.bf16.gmra.mxu0 %v575
  %v3884 = vpop.f32.mrf.mxu0
  %v3885 = vadd.f32 %v3872, %v3884
  %v3886 = vpop.f32.mrf.mxu0
  %3887 = vdwg.mxu0
  %3888 = vmatpush.bf16.msra.mxu0 %v2423
  %3889 = vmatpush.bf16.msra.mxu0 %v2419
  %3890 = vmatpush.bf16.msra.mxu0 %v2415
  %3891 = vmatpush.bf16.msra.mxu0 %v2411
  %3892 = vmatpush.bf16.msra.mxu0 %v2407
  %3893 = vmatpush.bf16.msra.mxu0 %v2403
  %3894 = vmatpush.bf16.msra.mxu0 %v2399
  %3895 = vmatpush.bf16.msra.mxu0 %v2395
  %3896 = vmatmul.bf16.gmra.mxu0 %v576
  %v3897 = vpop.f32.mrf.mxu0
  %v3898 = vadd.f32 %v3885, %v3897
  %v3899 = vpop.f32.mrf.mxu0
  %3900 = vdwg.mxu0
  %3901 = vmatpush.bf16.msra.mxu0 %v2455
  %3902 = vmatpush.bf16.msra.mxu0 %v2451
  %3903 = vmatpush.bf16.msra.mxu0 %v2447
  %3904 = vmatpush.bf16.msra.mxu0 %v2443
  %3905 = vmatpush.bf16.msra.mxu0 %v2439
  %3906 = vmatpush.bf16.msra.mxu0 %v2435
  %3907 = vmatpush.bf16.msra.mxu0 %v2431
  %3908 = vmatpush.bf16.msra.mxu0 %v2427
  %3909 = vmatmul.bf16.gmra.mxu0 %v577
  %v3910 = vpop.f32.mrf.mxu0
  %v3911 = vadd.f32 %v3898, %v3910
  %v3912 = vpop.f32.mrf.mxu0
  %3913 = vdwg.mxu0
  %3914 = vmatpush.bf16.msra.mxu0 %v2487
  %3915 = vmatpush.bf16.msra.mxu0 %v2483
  %3916 = vmatpush.bf16.msra.mxu0 %v2479
  %3917 = vmatpush.bf16.msra.mxu0 %v2475
  %3918 = vmatpush.bf16.msra.mxu0 %v2471
  %3919 = vmatpush.bf16.msra.mxu0 %v2467
  %3920 = vmatpush.bf16.msra.mxu0 %v2463
  %3921 = vmatpush.bf16.msra.mxu0 %v2459
  %3922 = vmatmul.bf16.gmra.mxu0 %v578
  %v3923 = vpop.f32.mrf.mxu0
  %v3924 = vadd.f32 %v3911, %v3923
  %v3925 = vpop.f32.mrf.mxu0
  %3926 = vdwg.mxu0
  %3927 = vmatpush.bf16.msra.mxu0 %v2519
  %3928 = vmatpush.bf16.msra.mxu0 %v2515
  %3929 = vmatpush.bf16.msra.mxu0 %v2511
  %3930 = vmatpush.bf16.msra.mxu0 %v2507
  %3931 = vmatpush.bf16.msra.mxu0 %v2503
  %3932 = vmatpush.bf16.msra.mxu0 %v2499
  %3933 = vmatpush.bf16.msra.mxu0 %v2495
  %3934 = vmatpush.bf16.msra.mxu0 %v2491
  %3935 = vmatmul.bf16.gmra.mxu0 %v579
  %v3936 = vpop.f32.mrf.mxu0
  %v3937 = vadd.f32 %v3924, %v3936
  %v3938 = vpop.f32.mrf.mxu0
  %3939 = vdwg.mxu0
  %3940 = vmatpush.bf16.msra.mxu0 %v2551
  %3941 = vmatpush.bf16.msra.mxu0 %v2547
  %3942 = vmatpush.bf16.msra.mxu0 %v2543
  %3943 = vmatpush.bf16.msra.mxu0 %v2539
  %3944 = vmatpush.bf16.msra.mxu0 %v2535
  %3945 = vmatpush.bf16.msra.mxu0 %v2531
  %3946 = vmatpush.bf16.msra.mxu0 %v2527
  %3947 = vmatpush.bf16.msra.mxu0 %v2523
  %3948 = vmatmul.bf16.gmra.mxu0 %v580
  %v3949 = vpop.f32.mrf.mxu0
  %v3950 = vadd.f32 %v3937, %v3949
  %v3951 = vpop.f32.mrf.mxu0
  %3952 = vdwg.mxu0
  %3953 = vmatpush.bf16.msra.mxu0 %v2583
  %3954 = vmatpush.bf16.msra.mxu0 %v2579
  %3955 = vmatpush.bf16.msra.mxu0 %v2575
  %3956 = vmatpush.bf16.msra.mxu0 %v2571
  %3957 = vmatpush.bf16.msra.mxu0 %v2567
  %3958 = vmatpush.bf16.msra.mxu0 %v2563
  %3959 = vmatpush.bf16.msra.mxu0 %v2559
  %3960 = vmatpush.bf16.msra.mxu0 %v2555
  %3961 = vmatmul.bf16.gmra.mxu0 %v581
  %v3962 = vpop.f32.mrf.mxu0
  %v3963 = vadd.f32 %v3950, %v3962
  %v3964 = vpop.f32.mrf.mxu0
  %3965 = vdwg.mxu0
  %3966 = vmatpush.bf16.msra.mxu0 %v2615
  %3967 = vmatpush.bf16.msra.mxu0 %v2611
  %3968 = vmatpush.bf16.msra.mxu0 %v2607
  %3969 = vmatpush.bf16.msra.mxu0 %v2603
  %3970 = vmatpush.bf16.msra.mxu0 %v2599
  %3971 = vmatpush.bf16.msra.mxu0 %v2595
  %3972 = vmatpush.bf16.msra.mxu0 %v2591
  %3973 = vmatpush.bf16.msra.mxu0 %v2587
  %3974 = vmatmul.bf16.gmra.mxu0 %v582
  %v3975 = vpop.f32.mrf.mxu0
  %v3976 = vadd.f32 %v3963, %v3975
  %v3977 = vpop.f32.mrf.mxu0
  %3978 = vdwg.mxu0
  %3979 = vmatpush.bf16.msra.mxu0 %v2647
  %3980 = vmatpush.bf16.msra.mxu0 %v2643
  %3981 = vmatpush.bf16.msra.mxu0 %v2639
  %3982 = vmatpush.bf16.msra.mxu0 %v2635
  %3983 = vmatpush.bf16.msra.mxu0 %v2631
  %3984 = vmatpush.bf16.msra.mxu0 %v2627
  %3985 = vmatpush.bf16.msra.mxu0 %v2623
  %3986 = vmatpush.bf16.msra.mxu0 %v2619
  %3987 = vmatmul.bf16.gmra.mxu0 %v583
  %v3988 = vpop.f32.mrf.mxu0
  %v3989 = vadd.f32 %v3976, %v3988
  %v3990 = vpop.f32.mrf.mxu0
  %3991 = vdwg.mxu0
  %3993 = vset.pattern.permute.xlu0 0
  %3994 = vperm.xlu0 %3993, %v23
  %v3995 = vpop.permute.xlu0 %3994
  %v3997 = vmul.f32 %v3365, %v3995
  %v3998 = vmul.f32 %v3573, %v3995
  %v3999 = vmul.f32 %v3781, %v3995
  %v4000 = vmul.f32 %v3989, %v3995
  %v4001 = vrot.slane %v3997, 4
  %v4002 = vadd.f32 %v3997, %v4001
  %v4003 = vrot.slane %v4002, 2
  %v4004 = vadd.f32 %v4002, %v4003
  %v4005 = vrot.slane %v4004, 1
  %v4006 = vadd.f32 %v4004, %v4005
  %v4007 = vrot.slane %v3998, 4
  %v4008 = vadd.f32 %v3998, %v4007
  %v4009 = vrot.slane %v4008, 2
  %v4010 = vadd.f32 %v4008, %v4009
  %v4011 = vrot.slane %v4010, 1
  %v4012 = vadd.f32 %v4010, %v4011
  %v4013 = vrot.slane %v3999, 4
  %v4014 = vadd.f32 %v3999, %v4013
  %v4015 = vrot.slane %v4014, 2
  %v4016 = vadd.f32 %v4014, %v4015
  %v4017 = vrot.slane %v4016, 1
  %v4018 = vadd.f32 %v4016, %v4017
  %v4019 = vrot.slane %v4000, 4
  %v4020 = vadd.f32 %v4000, %v4019
  %v4021 = vrot.slane %v4020, 2
  %v4022 = vadd.f32 %v4020, %v4021
  %v4023 = vrot.slane %v4022, 1
  %v4024 = vadd.f32 %v4022, %v4023
  %v4025 = vmul.f32 %v4006, 0.5
  %v4026 = vmul.f32 %v4012, 0.5
  %v4027 = vmul.f32 %v4018, 0.5
  %v4028 = vmul.f32 %v4024, 0.5
  %v4029 = vsub.f32 %v3997, %v4025
  %v4030 = vsub.f32 %v3998, %v4026
  %v4031 = vsub.f32 %v3999, %v4027
  %v4032 = vsub.f32 %v4000, %v4028
  %v4033 = vmul.f32 %v3997, %v3997
  %v4034 = vmul.f32 %v3998, %v3998
  %v4035 = vmul.f32 %v3999, %v3999
  %v4036 = vmul.f32 %v4000, %v4000
  %v4037 = vrot.slane %v4033, 4
  %v4038 = vadd.f32 %v4033, %v4037
  %v4039 = vrot.slane %v4038, 2
  %v4040 = vadd.f32 %v4038, %v4039
  %v4041 = vrot.slane %v4040, 1
  %v4042 = vadd.f32 %v4040, %v4041
  %v4043 = vrot.slane %v4034, 4
  %v4044 = vadd.f32 %v4034, %v4043
  %v4045 = vrot.slane %v4044, 2
  %v4046 = vadd.f32 %v4044, %v4045
  %v4047 = vrot.slane %v4046, 1
  %v4048 = vadd.f32 %v4046, %v4047
  %v4049 = vrot.slane %v4035, 4
  %v4050 = vadd.f32 %v4035, %v4049
  %v4051 = vrot.slane %v4050, 2
  %v4052 = vadd.f32 %v4050, %v4051
  %v4053 = vrot.slane %v4052, 1
  %v4054 = vadd.f32 %v4052, %v4053
  %v4055 = vrot.slane %v4036, 4
  %v4056 = vadd.f32 %v4036, %v4055
  %v4057 = vrot.slane %v4056, 2
  %v4058 = vadd.f32 %v4056, %v4057
  %v4059 = vrot.slane %v4058, 1
  %v4060 = vadd.f32 %v4058, %v4059
  %v4061 = vmul.f32 %v4042, 0.5
  %v4062 = vmul.f32 %v4048, 0.5
  %v4063 = vmul.f32 %v4054, 0.5
  %v4064 = vmul.f32 %v4060, 0.5
  %v4065 = vmul.f32 %v4025, %v4025
  %v4066 = vmul.f32 %v4026, %v4026
  %v4067 = vmul.f32 %v4027, %v4027
  %v4068 = vmul.f32 %v4028, %v4028
  %v4069 = vsub.f32 %v4061, %v4065
  %v4070 = vsub.f32 %v4062, %v4066
  %v4071 = vsub.f32 %v4063, %v4067
  %v4072 = vsub.f32 %v4064, %v4068
  %v4073 = vmax.f32 %v4069, 0.0
  %v4074 = vmax.f32 %v4070, 0.0
  %v4075 = vmax.f32 %v4071, 0.0
  %v4076 = vmax.f32 %v4072, 0.0
  %v4077 = vadd.f32 %v4073, 1e-05
  %v4078 = vadd.f32 %v4074, 1e-05
  %v4079 = vadd.f32 %v4075, 1e-05
  %v4080 = vadd.f32 %v4076, 1e-05
  %v4081 = vrsqrt.pop %v4077
  %v4082 = vmul.f32 %v4081, %v4077
  %v4083 = vmul.f32 %v4082, %v4081
  %v4084 = vmul.f32 0.5, %v4083
  %v4085 = vsub.f32 1.5, %v4084
  %v4086 = vmul.f32 %v4081, %v4085
  %vm4087 = vweird.f32 %v4077
  %vm4088 = vweird.f32 %v4081
  %vm4089 = vmor %vm4087, %vm4088
  %v4090 = vsel %vm4089, %v4081, %v4086
  %v4091 = vrsqrt.pop %v4078
  %v4092 = vmul.f32 %v4091, %v4078
  %v4093 = vmul.f32 %v4092, %v4091
  %v4094 = vmul.f32 0.5, %v4093
  %v4095 = vsub.f32 1.5, %v4094
  %v4096 = vmul.f32 %v4091, %v4095
  %vm4097 = vweird.f32 %v4078
  %vm4098 = vweird.f32 %v4091
  %vm4099 = vmor %vm4097, %vm4098
  %v4100 = vsel %vm4099, %v4091, %v4096
  %v4101 = vrsqrt.pop %v4079
  %v4102 = vmul.f32 %v4101, %v4079
  %v4103 = vmul.f32 %v4102, %v4101
  %v4104 = vmul.f32 0.5, %v4103
  %v4105 = vsub.f32 1.5, %v4104
  %v4106 = vmul.f32 %v4101, %v4105
  %vm4107 = vweird.f32 %v4079
  %vm4108 = vweird.f32 %v4101
  %vm4109 = vmor %vm4107, %vm4108
  %v4110 = vsel %vm4109, %v4101, %v4106
  %v4111 = vrsqrt.pop %v4080
  %v4112 = vmul.f32 %v4111, %v4080
  %v4113 = vmul.f32 %v4112, %v4111
  %v4114 = vmul.f32 0.5, %v4113
  %v4115 = vsub.f32 1.5, %v4114
  %v4116 = vmul.f32 %v4111, %v4115
  %vm4117 = vweird.f32 %v4080
  %vm4118 = vweird.f32 %v4111
  %vm4119 = vmor %vm4117, %vm4118
  %v4120 = vsel %vm4119, %v4111, %v4116
  %v4121 = vmul.f32 %v4029, %v4090
  %v4122 = vmul.f32 %v4030, %v4100
  %v4123 = vmul.f32 %v4031, %v4110
  %v4124 = vmul.f32 %v4032, %v4120
  %v4125 = vmax.f32 %v4121, 0.0
  %v4126 = vmax.f32 %v4122, 0.0
  %v4127 = vmax.f32 %v4123, 0.0
  %v4128 = vmax.f32 %v4124, 0.0
  %vm4129 = vcmp.gt.f32.partialorder %v23, 0.0
  %v4130 = vsel %vm4129, 1, 0
  %v4131 = vcvt.s32.f32 %v4130
  %4133 = vset.pattern.permute.xlu0 0
  %4134 = vperm.xlu0 %4133, %v4131
  %v4135 = vpop.permute.xlu0 %4134
  %v4137 = vmul.f32 %v4125, %v4135
  %v4138 = vmul.f32 %v4126, %v4135
  %v4139 = vmul.f32 %v4127, %v4135
  %v4140 = vmul.f32 %v4128, %v4135
  %v4141 = vpack.c.bf16 %v4137, %v4137
  %v4142 = vpack.c.bf16 %v4138, %v4138
  %v4143 = vpack.c.bf16 %v4139, %v4139
  %v4144 = vpack.c.bf16 %v4140, %v4140
  %v4145 = vld [vmem:[%s3] sm:$0xff]
  %v4146 = vld [vmem:[%s3 + $0x8] sm:$0xff]
  %v4147 = vld [vmem:[%s3 + $0x10] sm:$0xff]
  %v4148 = vld [vmem:[%s3 + $0x18] sm:$0xff]
  %v4149 = vld [vmem:[%s3 + $0x20] sm:$0xff]
  %v4150 = vld [vmem:[%s3 + $0x28] sm:$0xff]
  %v4151 = vld [vmem:[%s3 + $0x30] sm:$0xff]
  %v4152 = vld [vmem:[%s3 + $0x38] sm:$0xff]
  %v4153 = vld [vmem:[%s3 + $0x40] sm:$0xff]
  %v4154 = vld [vmem:[%s3 + $0x48] sm:$0xff]
  %v4155 = vld [vmem:[%s3 + $0x50] sm:$0xff]
  %v4156 = vld [vmem:[%s3 + $0x58] sm:$0xff]
  %v4157 = vld [vmem:[%s3 + $0x60] sm:$0xff]
  %v4158 = vld [vmem:[%s3 + $0x68] sm:$0xff]
  %v4159 = vld [vmem:[%s3 + $0x70] sm:$0xff]
  %v4160 = vld [vmem:[%s3 + $0x78] sm:$0xff]
  %v4161 = vld [vmem:[%s3 + $0x80] sm:$0xff]
  %v4162 = vld [vmem:[%s3 + $0x88] sm:$0xff]
  %v4163 = vld [vmem:[%s3 + $0x90] sm:$0xff]
  %v4164 = vld [vmem:[%s3 + $0x98] sm:$0xff]
  %v4165 = vld [vmem:[%s3 + $0xa0] sm:$0xff]
  %v4166 = vld [vmem:[%s3 + $0xa8] sm:$0xff]
  %v4167 = vld [vmem:[%s3 + $0xb0] sm:$0xff]
  %v4168 = vld [vmem:[%s3 + $0xb8] sm:$0xff]
  %v4169 = vld [vmem:[%s3 + $0xc0] sm:$0xff]
  %v4170 = vld [vmem:[%s3 + $0xc8] sm:$0xff]
  %v4171 = vld [vmem:[%s3 + $0xd0] sm:$0xff]
  %v4172 = vld [vmem:[%s3 + $0xd8] sm:$0xff]
  %v4173 = vld [vmem:[%s3 + $0xe0] sm:$0xff]
  %v4174 = vld [vmem:[%s3 + $0xe8] sm:$0xff]
  %v4175 = vld [vmem:[%s3 + $0xf0] sm:$0xff]
  %v4176 = vld [vmem:[%s3 + $0xf8] sm:$0xff]
  %v4177 = vld [vmem:[%s3 + $0x100] sm:$0xff]
  %v4178 = vld [vmem:[%s3 + $0x108] sm:$0xff]
  %v4179 = vld [vmem:[%s3 + $0x110] sm:$0xff]
  %v4180 = vld [vmem:[%s3 + $0x118] sm:$0xff]
  %v4181 = vld [vmem:[%s3 + $0x120] sm:$0xff]
  %v4182 = vld [vmem:[%s3 + $0x128] sm:$0xff]
  %v4183 = vld [vmem:[%s3 + $0x130] sm:$0xff]
  %v4184 = vld [vmem:[%s3 + $0x138] sm:$0xff]
  %v4185 = vld [vmem:[%s3 + $0x140] sm:$0xff]
  %v4186 = vld [vmem:[%s3 + $0x148] sm:$0xff]
  %v4187 = vld [vmem:[%s3 + $0x150] sm:$0xff]
  %v4188 = vld [vmem:[%s3 + $0x158] sm:$0xff]
  %v4189 = vld [vmem:[%s3 + $0x160] sm:$0xff]
  %v4190 = vld [vmem:[%s3 + $0x168] sm:$0xff]
  %v4191 = vld [vmem:[%s3 + $0x170] sm:$0xff]
  %v4192 = vld [vmem:[%s3 + $0x178] sm:$0xff]
  %v4193 = vld [vmem:[%s3 + $0x180] sm:$0xff]
  %v4194 = vld [vmem:[%s3 + $0x188] sm:$0xff]
  %v4195 = vld [vmem:[%s3 + $0x190] sm:$0xff]
  %v4196 = vld [vmem:[%s3 + $0x198] sm:$0xff]
  %v4197 = vld [vmem:[%s3 + $0x1a0] sm:$0xff]
  %v4198 = vld [vmem:[%s3 + $0x1a8] sm:$0xff]
  %v4199 = vld [vmem:[%s3 + $0x1b0] sm:$0xff]
  %v4200 = vld [vmem:[%s3 + $0x1b8] sm:$0xff]
  %v4201 = vld [vmem:[%s3 + $0x1c0] sm:$0xff]
  %v4202 = vld [vmem:[%s3 + $0x1c8] sm:$0xff]
  %v4203 = vld [vmem:[%s3 + $0x1d0] sm:$0xff]
  %v4204 = vld [vmem:[%s3 + $0x1d8] sm:$0xff]
  %v4205 = vld [vmem:[%s3 + $0x1e0] sm:$0xff]
  %v4206 = vld [vmem:[%s3 + $0x1e8] sm:$0xff]
  %v4207 = vld [vmem:[%s3 + $0x1f0] sm:$0xff]
  %v4208 = vld [vmem:[%s3 + $0x1f8] sm:$0xff]
  %v4209 = vld [vmem:[%s3 + $0x200] sm:$0xff]
  %v4210 = vld [vmem:[%s3 + $0x208] sm:$0xff]
  %v4211 = vld [vmem:[%s3 + $0x210] sm:$0xff]
  %v4212 = vld [vmem:[%s3 + $0x218] sm:$0xff]
  %v4213 = vld [vmem:[%s3 + $0x220] sm:$0xff]
  %v4214 = vld [vmem:[%s3 + $0x228] sm:$0xff]
  %v4215 = vld [vmem:[%s3 + $0x230] sm:$0xff]
  %v4216 = vld [vmem:[%s3 + $0x238] sm:$0xff]
  %v4217 = vld [vmem:[%s3 + $0x240] sm:$0xff]
  %v4218 = vld [vmem:[%s3 + $0x248] sm:$0xff]
  %v4219 = vld [vmem:[%s3 + $0x250] sm:$0xff]
  %v4220 = vld [vmem:[%s3 + $0x258] sm:$0xff]
  %v4221 = vld [vmem:[%s3 + $0x260] sm:$0xff]
  %v4222 = vld [vmem:[%s3 + $0x268] sm:$0xff]
  %v4223 = vld [vmem:[%s3 + $0x270] sm:$0xff]
  %v4224 = vld [vmem:[%s3 + $0x278] sm:$0xff]
  %v4225 = vld [vmem:[%s3 + $0x280] sm:$0xff]
  %v4226 = vld [vmem:[%s3 + $0x288] sm:$0xff]
  %v4227 = vld [vmem:[%s3 + $0x290] sm:$0xff]
  %v4228 = vld [vmem:[%s3 + $0x298] sm:$0xff]
  %v4229 = vld [vmem:[%s3 + $0x2a0] sm:$0xff]
  %v4230 = vld [vmem:[%s3 + $0x2a8] sm:$0xff]
  %v4231 = vld [vmem:[%s3 + $0x2b0] sm:$0xff]
  %v4232 = vld [vmem:[%s3 + $0x2b8] sm:$0xff]
  %v4233 = vld [vmem:[%s3 + $0x2c0] sm:$0xff]
  %v4234 = vld [vmem:[%s3 + $0x2c8] sm:$0xff]
  %v4235 = vld [vmem:[%s3 + $0x2d0] sm:$0xff]
  %v4236 = vld [vmem:[%s3 + $0x2d8] sm:$0xff]
  %v4237 = vld [vmem:[%s3 + $0x2e0] sm:$0xff]
  %v4238 = vld [vmem:[%s3 + $0x2e8] sm:$0xff]
  %v4239 = vld [vmem:[%s3 + $0x2f0] sm:$0xff]
  %v4240 = vld [vmem:[%s3 + $0x2f8] sm:$0xff]
  %v4241 = vld [vmem:[%s3 + $0x300] sm:$0xff]
  %v4242 = vld [vmem:[%s3 + $0x308] sm:$0xff]
  %v4243 = vld [vmem:[%s3 + $0x310] sm:$0xff]
  %v4244 = vld [vmem:[%s3 + $0x318] sm:$0xff]
  %v4245 = vld [vmem:[%s3 + $0x320] sm:$0xff]
  %v4246 = vld [vmem:[%s3 + $0x328] sm:$0xff]
  %v4247 = vld [vmem:[%s3 + $0x330] sm:$0xff]
  %v4248 = vld [vmem:[%s3 + $0x338] sm:$0xff]
  %v4249 = vld [vmem:[%s3 + $0x340] sm:$0xff]
  %v4250 = vld [vmem:[%s3 + $0x348] sm:$0xff]
  %v4251 = vld [vmem:[%s3 + $0x350] sm:$0xff]
  %v4252 = vld [vmem:[%s3 + $0x358] sm:$0xff]
  %v4253 = vld [vmem:[%s3 + $0x360] sm:$0xff]
  %v4254 = vld [vmem:[%s3 + $0x368] sm:$0xff]
  %v4255 = vld [vmem:[%s3 + $0x370] sm:$0xff]
  %v4256 = vld [vmem:[%s3 + $0x378] sm:$0xff]
  %v4257 = vld [vmem:[%s3 + $0x380] sm:$0xff]
  %v4258 = vld [vmem:[%s3 + $0x388] sm:$0xff]
  %v4259 = vld [vmem:[%s3 + $0x390] sm:$0xff]
  %v4260 = vld [vmem:[%s3 + $0x398] sm:$0xff]
  %v4261 = vld [vmem:[%s3 + $0x3a0] sm:$0xff]
  %v4262 = vld [vmem:[%s3 + $0x3a8] sm:$0xff]
  %v4263 = vld [vmem:[%s3 + $0x3b0] sm:$0xff]
  %v4264 = vld [vmem:[%s3 + $0x3b8] sm:$0xff]
  %v4265 = vld [vmem:[%s3 + $0x3c0] sm:$0xff]
  %v4266 = vld [vmem:[%s3 + $0x3c8] sm:$0xff]
  %v4267 = vld [vmem:[%s3 + $0x3d0] sm:$0xff]
  %v4268 = vld [vmem:[%s3 + $0x3d8] sm:$0xff]
  %v4269 = vld [vmem:[%s3 + $0x3e0] sm:$0xff]
  %v4270 = vld [vmem:[%s3 + $0x3e8] sm:$0xff]
  %v4271 = vld [vmem:[%s3 + $0x3f0] sm:$0xff]
  %v4272 = vld [vmem:[%s3 + $0x3f8] sm:$0xff]
  %v4401 = vunpack.c.l.b16 %v4145
  %v4402 = vunpack.c.h.b16 %v4145
  %v4403 = vunpack.c.l.b16 %v4146
  %v4404 = vunpack.c.h.b16 %v4146
  %v4405 = vunpack.c.l.b16 %v4147
  %v4406 = vunpack.c.h.b16 %v4147
  %v4407 = vunpack.c.l.b16 %v4148
  %v4408 = vunpack.c.h.b16 %v4148
  %v4409 = vunpack.c.l.b16 %v4149
  %v4410 = vunpack.c.h.b16 %v4149
  %v4411 = vunpack.c.l.b16 %v4150
  %v4412 = vunpack.c.h.b16 %v4150
  %v4413 = vunpack.c.l.b16 %v4151
  %v4414 = vunpack.c.h.b16 %v4151
  %v4415 = vunpack.c.l.b16 %v4152
  %v4416 = vunpack.c.h.b16 %v4152
  %v4417 = vunpack.c.l.b16 %v4153
  %v4418 = vunpack.c.h.b16 %v4153
  %v4419 = vunpack.c.l.b16 %v4154
  %v4420 = vunpack.c.h.b16 %v4154
  %v4421 = vunpack.c.l.b16 %v4155
  %v4422 = vunpack.c.h.b16 %v4155
  %v4423 = vunpack.c.l.b16 %v4156
  %v4424 = vunpack.c.h.b16 %v4156
  %v4425 = vunpack.c.l.b16 %v4157
  %v4426 = vunpack.c.h.b16 %v4157
  %v4427 = vunpack.c.l.b16 %v4158
  %v4428 = vunpack.c.h.b16 %v4158
  %v4429 = vunpack.c.l.b16 %v4159
  %v4430 = vunpack.c.h.b16 %v4159
  %v4431 = vunpack.c.l.b16 %v4160
  %v4432 = vunpack.c.h.b16 %v4160
  %v4433 = vunpack.c.l.b16 %v4161
  %v4434 = vunpack.c.h.b16 %v4161
  %v4435 = vunpack.c.l.b16 %v4162
  %v4436 = vunpack.c.h.b16 %v4162
  %v4437 = vunpack.c.l.b16 %v4163
  %v4438 = vunpack.c.h.b16 %v4163
  %v4439 = vunpack.c.l.b16 %v4164
  %v4440 = vunpack.c.h.b16 %v4164
  %v4441 = vunpack.c.l.b16 %v4165
  %v4442 = vunpack.c.h.b16 %v4165
  %v4443 = vunpack.c.l.b16 %v4166
  %v4444 = vunpack.c.h.b16 %v4166
  %v4445 = vunpack.c.l.b16 %v4167
  %v4446 = vunpack.c.h.b16 %v4167
  %v4447 = vunpack.c.l.b16 %v4168
  %v4448 = vunpack.c.h.b16 %v4168
  %v4449 = vunpack.c.l.b16 %v4169
  %v4450 = vunpack.c.h.b16 %v4169
  %v4451 = vunpack.c.l.b16 %v4170
  %v4452 = vunpack.c.h.b16 %v4170
  %v4453 = vunpack.c.l.b16 %v4171
  %v4454 = vunpack.c.h.b16 %v4171
  %v4455 = vunpack.c.l.b16 %v4172
  %v4456 = vunpack.c.h.b16 %v4172
  %v4457 = vunpack.c.l.b16 %v4173
  %v4458 = vunpack.c.h.b16 %v4173
  %v4459 = vunpack.c.l.b16 %v4174
  %v4460 = vunpack.c.h.b16 %v4174
  %v4461 = vunpack.c.l.b16 %v4175
  %v4462 = vunpack.c.h.b16 %v4175
  %v4463 = vunpack.c.l.b16 %v4176
  %v4464 = vunpack.c.h.b16 %v4176
  %v4465 = vunpack.c.l.b16 %v4177
  %v4466 = vunpack.c.h.b16 %v4177
  %v4467 = vunpack.c.l.b16 %v4178
  %v4468 = vunpack.c.h.b16 %v4178
  %v4469 = vunpack.c.l.b16 %v4179
  %v4470 = vunpack.c.h.b16 %v4179
  %v4471 = vunpack.c.l.b16 %v4180
  %v4472 = vunpack.c.h.b16 %v4180
  %v4473 = vunpack.c.l.b16 %v4181
  %v4474 = vunpack.c.h.b16 %v4181
  %v4475 = vunpack.c.l.b16 %v4182
  %v4476 = vunpack.c.h.b16 %v4182
  %v4477 = vunpack.c.l.b16 %v4183
  %v4478 = vunpack.c.h.b16 %v4183
  %v4479 = vunpack.c.l.b16 %v4184
  %v4480 = vunpack.c.h.b16 %v4184
  %v4481 = vunpack.c.l.b16 %v4185
  %v4482 = vunpack.c.h.b16 %v4185
  %v4483 = vunpack.c.l.b16 %v4186
  %v4484 = vunpack.c.h.b16 %v4186
  %v4485 = vunpack.c.l.b16 %v4187
  %v4486 = vunpack.c.h.b16 %v4187
  %v4487 = vunpack.c.l.b16 %v4188
  %v4488 = vunpack.c.h.b16 %v4188
  %v4489 = vunpack.c.l.b16 %v4189
  %v4490 = vunpack.c.h.b16 %v4189
  %v4491 = vunpack.c.l.b16 %v4190
  %v4492 = vunpack.c.h.b16 %v4190
  %v4493 = vunpack.c.l.b16 %v4191
  %v4494 = vunpack.c.h.b16 %v4191
  %v4495 = vunpack.c.l.b16 %v4192
  %v4496 = vunpack.c.h.b16 %v4192
  %v4497 = vunpack.c.l.b16 %v4193
  %v4498 = vunpack.c.h.b16 %v4193
  %v4499 = vunpack.c.l.b16 %v4194
  %v4500 = vunpack.c.h.b16 %v4194
  %v4501 = vunpack.c.l.b16 %v4195
  %v4502 = vunpack.c.h.b16 %v4195
  %v4503 = vunpack.c.l.b16 %v4196
  %v4504 = vunpack.c.h.b16 %v4196
  %v4505 = vunpack.c.l.b16 %v4197
  %v4506 = vunpack.c.h.b16 %v4197
  %v4507 = vunpack.c.l.b16 %v4198
  %v4508 = vunpack.c.h.b16 %v4198
  %v4509 = vunpack.c.l.b16 %v4199
  %v4510 = vunpack.c.h.b16 %v4199
  %v4511 = vunpack.c.l.b16 %v4200
  %v4512 = vunpack.c.h.b16 %v4200
  %v4513 = vunpack.c.l.b16 %v4201
  %v4514 = vunpack.c.h.b16 %v4201
  %v4515 = vunpack.c.l.b16 %v4202
  %v4516 = vunpack.c.h.b16 %v4202
  %v4517 = vunpack.c.l.b16 %v4203
  %v4518 = vunpack.c.h.b16 %v4203
  %v4519 = vunpack.c.l.b16 %v4204
  %v4520 = vunpack.c.h.b16 %v4204
  %v4521 = vunpack.c.l.b16 %v4205
  %v4522 = vunpack.c.h.b16 %v4205
  %v4523 = vunpack.c.l.b16 %v4206
  %v4524 = vunpack.c.h.b16 %v4206
  %v4525 = vunpack.c.l.b16 %v4207
  %v4526 = vunpack.c.h.b16 %v4207
  %v4527 = vunpack.c.l.b16 %v4208
  %v4528 = vunpack.c.h.b16 %v4208
  %v4529 = vunpack.c.l.b16 %v4209
  %v4530 = vunpack.c.h.b16 %v4209
  %v4531 = vunpack.c.l.b16 %v4210
  %v4532 = vunpack.c.h.b16 %v4210
  %v4533 = vunpack.c.l.b16 %v4211
  %v4534 = vunpack.c.h.b16 %v4211
  %v4535 = vunpack.c.l.b16 %v4212
  %v4536 = vunpack.c.h.b16 %v4212
  %v4537 = vunpack.c.l.b16 %v4213
  %v4538 = vunpack.c.h.b16 %v4213
  %v4539 = vunpack.c.l.b16 %v4214
  %v4540 = vunpack.c.h.b16 %v4214
  %v4541 = vunpack.c.l.b16 %v4215
  %v4542 = vunpack.c.h.b16 %v4215
  %v4543 = vunpack.c.l.b16 %v4216
  %v4544 = vunpack.c.h.b16 %v4216
  %v4545 = vunpack.c.l.b16 %v4217
  %v4546 = vunpack.c.h.b16 %v4217
  %v4547 = vunpack.c.l.b16 %v4218
  %v4548 = vunpack.c.h.b16 %v4218
  %v4549 = vunpack.c.l.b16 %v4219
  %v4550 = vunpack.c.h.b16 %v4219
  %v4551 = vunpack.c.l.b16 %v4220
  %v4552 = vunpack.c.h.b16 %v4220
  %v4553 = vunpack.c.l.b16 %v4221
  %v4554 = vunpack.c.h.b16 %v4221
  %v4555 = vunpack.c.l.b16 %v4222
  %v4556 = vunpack.c.h.b16 %v4222
  %v4557 = vunpack.c.l.b16 %v4223
  %v4558 = vunpack.c.h.b16 %v4223
  %v4559 = vunpack.c.l.b16 %v4224
  %v4560 = vunpack.c.h.b16 %v4224
  %v4561 = vunpack.c.l.b16 %v4225
  %v4562 = vunpack.c.h.b16 %v4225
  %v4563 = vunpack.c.l.b16 %v4226
  %v4564 = vunpack.c.h.b16 %v4226
  %v4565 = vunpack.c.l.b16 %v4227
  %v4566 = vunpack.c.h.b16 %v4227
  %v4567 = vunpack.c.l.b16 %v4228
  %v4568 = vunpack.c.h.b16 %v4228
  %v4569 = vunpack.c.l.b16 %v4229
  %v4570 = vunpack.c.h.b16 %v4229
  %v4571 = vunpack.c.l.b16 %v4230
  %v4572 = vunpack.c.h.b16 %v4230
  %v4573 = vunpack.c.l.b16 %v4231
  %v4574 = vunpack.c.h.b16 %v4231
  %v4575 = vunpack.c.l.b16 %v4232
  %v4576 = vunpack.c.h.b16 %v4232
  %v4577 = vunpack.c.l.b16 %v4233
  %v4578 = vunpack.c.h.b16 %v4233
  %v4579 = vunpack.c.l.b16 %v4234
  %v4580 = vunpack.c.h.b16 %v4234
  %v4581 = vunpack.c.l.b16 %v4235
  %v4582 = vunpack.c.h.b16 %v4235
  %v4583 = vunpack.c.l.b16 %v4236
  %v4584 = vunpack.c.h.b16 %v4236
  %v4585 = vunpack.c.l.b16 %v4237
  %v4586 = vunpack.c.h.b16 %v4237
  %v4587 = vunpack.c.l.b16 %v4238
  %v4588 = vunpack.c.h.b16 %v4238
  %v4589 = vunpack.c.l.b16 %v4239
  %v4590 = vunpack.c.h.b16 %v4239
  %v4591 = vunpack.c.l.b16 %v4240
  %v4592 = vunpack.c.h.b16 %v4240
  %v4593 = vunpack.c.l.b16 %v4241
  %v4594 = vunpack.c.h.b16 %v4241
  %v4595 = vunpack.c.l.b16 %v4242
  %v4596 = vunpack.c.h.b16 %v4242
  %v4597 = vunpack.c.l.b16 %v4243
  %v4598 = vunpack.c.h.b16 %v4243
  %v4599 = vunpack.c.l.b16 %v4244
  %v4600 = vunpack.c.h.b16 %v4244
  %v4601 = vunpack.c.l.b16 %v4245
  %v4602 = vunpack.c.h.b16 %v4245
  %v4603 = vunpack.c.l.b16 %v4246
  %v4604 = vunpack.c.h.b16 %v4246
  %v4605 = vunpack.c.l.b16 %v4247
  %v4606 = vunpack.c.h.b16 %v4247
  %v4607 = vunpack.c.l.b16 %v4248
  %v4608 = vunpack.c.h.b16 %v4248
  %v4609 = vunpack.c.l.b16 %v4249
  %v4610 = vunpack.c.h.b16 %v4249
  %v4611 = vunpack.c.l.b16 %v4250
  %v4612 = vunpack.c.h.b16 %v4250
  %v4613 = vunpack.c.l.b16 %v4251
  %v4614 = vunpack.c.h.b16 %v4251
  %v4615 = vunpack.c.l.b16 %v4252
  %v4616 = vunpack.c.h.b16 %v4252
  %v4617 = vunpack.c.l.b16 %v4253
  %v4618 = vunpack.c.h.b16 %v4253
  %v4619 = vunpack.c.l.b16 %v4254
  %v4620 = vunpack.c.h.b16 %v4254
  %v4621 = vunpack.c.l.b16 %v4255
  %v4622 = vunpack.c.h.b16 %v4255
  %v4623 = vunpack.c.l.b16 %v4256
  %v4624 = vunpack.c.h.b16 %v4256
  %v4625 = vunpack.c.l.b16 %v4257
  %v4626 = vunpack.c.h.b16 %v4257
  %v4627 = vunpack.c.l.b16 %v4258
  %v4628 = vunpack.c.h.b16 %v4258
  %v4629 = vunpack.c.l.b16 %v4259
  %v4630 = vunpack.c.h.b16 %v4259
  %v4631 = vunpack.c.l.b16 %v4260
  %v4632 = vunpack.c.h.b16 %v4260
  %v4633 = vunpack.c.l.b16 %v4261
  %v4634 = vunpack.c.h.b16 %v4261
  %v4635 = vunpack.c.l.b16 %v4262
  %v4636 = vunpack.c.h.b16 %v4262
  %v4637 = vunpack.c.l.b16 %v4263
  %v4638 = vunpack.c.h.b16 %v4263
  %v4639 = vunpack.c.l.b16 %v4264
  %v4640 = vunpack.c.h.b16 %v4264
  %v4641 = vunpack.c.l.b16 %v4265
  %v4642 = vunpack.c.h.b16 %v4265
  %v4643 = vunpack.c.l.b16 %v4266
  %v4644 = vunpack.c.h.b16 %v4266
  %v4645 = vunpack.c.l.b16 %v4267
  %v4646 = vunpack.c.h.b16 %v4267
  %v4647 = vunpack.c.l.b16 %v4268
  %v4648 = vunpack.c.h.b16 %v4268
  %v4649 = vunpack.c.l.b16 %v4269
  %v4650 = vunpack.c.h.b16 %v4269
  %v4651 = vunpack.c.l.b16 %v4270
  %v4652 = vunpack.c.h.b16 %v4270
  %v4653 = vunpack.c.l.b16 %v4271
  %v4654 = vunpack.c.h.b16 %v4271
  %v4655 = vunpack.c.l.b16 %v4272
  %v4656 = vunpack.c.h.b16 %v4272
  %v4657 = vpack.c.b16 %v4405, %v4401
  %v4658 = vpack.c.b16 %v4406, %v4402
  %v4659 = vpack.c.b16 %v4407, %v4403
  %v4660 = vpack.c.b16 %v4408, %v4404
  %v4661 = vpack.c.b16 %v4413, %v4409
  %v4662 = vpack.c.b16 %v4414, %v4410
  %v4663 = vpack.c.b16 %v4415, %v4411
  %v4664 = vpack.c.b16 %v4416, %v4412
  %v4665 = vpack.c.b16 %v4421, %v4417
  %v4666 = vpack.c.b16 %v4422, %v4418
  %v4667 = vpack.c.b16 %v4423, %v4419
  %v4668 = vpack.c.b16 %v4424, %v4420
  %v4669 = vpack.c.b16 %v4429, %v4425
  %v4670 = vpack.c.b16 %v4430, %v4426
  %v4671 = vpack.c.b16 %v4431, %v4427
  %v4672 = vpack.c.b16 %v4432, %v4428
  %v4673 = vpack.c.b16 %v4437, %v4433
  %v4674 = vpack.c.b16 %v4438, %v4434
  %v4675 = vpack.c.b16 %v4439, %v4435
  %v4676 = vpack.c.b16 %v4440, %v4436
  %v4677 = vpack.c.b16 %v4445, %v4441
  %v4678 = vpack.c.b16 %v4446, %v4442
  %v4679 = vpack.c.b16 %v4447, %v4443
  %v4680 = vpack.c.b16 %v4448, %v4444
  %v4681 = vpack.c.b16 %v4453, %v4449
  %v4682 = vpack.c.b16 %v4454, %v4450
  %v4683 = vpack.c.b16 %v4455, %v4451
  %v4684 = vpack.c.b16 %v4456, %v4452
  %v4685 = vpack.c.b16 %v4461, %v4457
  %v4686 = vpack.c.b16 %v4462, %v4458
  %v4687 = vpack.c.b16 %v4463, %v4459
  %v4688 = vpack.c.b16 %v4464, %v4460
  %v4689 = vpack.c.b16 %v4469, %v4465
  %v4690 = vpack.c.b16 %v4470, %v4466
  %v4691 = vpack.c.b16 %v4471, %v4467
  %v4692 = vpack.c.b16 %v4472, %v4468
  %v4693 = vpack.c.b16 %v4477, %v4473
  %v4694 = vpack.c.b16 %v4478, %v4474
  %v4695 = vpack.c.b16 %v4479, %v4475
  %v4696 = vpack.c.b16 %v4480, %v4476
  %v4697 = vpack.c.b16 %v4485, %v4481
  %v4698 = vpack.c.b16 %v4486, %v4482
  %v4699 = vpack.c.b16 %v4487, %v4483
  %v4700 = vpack.c.b16 %v4488, %v4484
  %v4701 = vpack.c.b16 %v4493, %v4489
  %v4702 = vpack.c.b16 %v4494, %v4490
  %v4703 = vpack.c.b16 %v4495, %v4491
  %v4704 = vpack.c.b16 %v4496, %v4492
  %v4705 = vpack.c.b16 %v4501, %v4497
  %v4706 = vpack.c.b16 %v4502, %v4498
  %v4707 = vpack.c.b16 %v4503, %v4499
  %v4708 = vpack.c.b16 %v4504, %v4500
  %v4709 = vpack.c.b16 %v4509, %v4505
  %v4710 = vpack.c.b16 %v4510, %v4506
  %v4711 = vpack.c.b16 %v4511, %v4507
  %v4712 = vpack.c.b16 %v4512, %v4508
  %v4713 = vpack.c.b16 %v4517, %v4513
  %v4714 = vpack.c.b16 %v4518, %v4514
  %v4715 = vpack.c.b16 %v4519, %v4515
  %v4716 = vpack.c.b16 %v4520, %v4516
  %v4717 = vpack.c.b16 %v4525, %v4521
  %v4718 = vpack.c.b16 %v4526, %v4522
  %v4719 = vpack.c.b16 %v4527, %v4523
  %v4720 = vpack.c.b16 %v4528, %v4524
  %v4721 = vpack.c.b16 %v4533, %v4529
  %v4722 = vpack.c.b16 %v4534, %v4530
  %v4723 = vpack.c.b16 %v4535, %v4531
  %v4724 = vpack.c.b16 %v4536, %v4532
  %v4725 = vpack.c.b16 %v4541, %v4537
  %v4726 = vpack.c.b16 %v4542, %v4538
  %v4727 = vpack.c.b16 %v4543, %v4539
  %v4728 = vpack.c.b16 %v4544, %v4540
  %v4729 = vpack.c.b16 %v4549, %v4545
  %v4730 = vpack.c.b16 %v4550, %v4546
  %v4731 = vpack.c.b16 %v4551, %v4547
  %v4732 = vpack.c.b16 %v4552, %v4548
  %v4733 = vpack.c.b16 %v4557, %v4553
  %v4734 = vpack.c.b16 %v4558, %v4554
  %v4735 = vpack.c.b16 %v4559, %v4555
  %v4736 = vpack.c.b16 %v4560, %v4556
  %v4737 = vpack.c.b16 %v4565, %v4561
  %v4738 = vpack.c.b16 %v4566, %v4562
  %v4739 = vpack.c.b16 %v4567, %v4563
  %v4740 = vpack.c.b16 %v4568, %v4564
  %v4741 = vpack.c.b16 %v4573, %v4569
  %v4742 = vpack.c.b16 %v4574, %v4570
  %v4743 = vpack.c.b16 %v4575, %v4571
  %v4744 = vpack.c.b16 %v4576, %v4572
  %v4745 = vpack.c.b16 %v4581, %v4577
  %v4746 = vpack.c.b16 %v4582, %v4578
  %v4747 = vpack.c.b16 %v4583, %v4579
  %v4748 = vpack.c.b16 %v4584, %v4580
  %v4749 = vpack.c.b16 %v4589, %v4585
  %v4750 = vpack.c.b16 %v4590, %v4586
  %v4751 = vpack.c.b16 %v4591, %v4587
  %v4752 = vpack.c.b16 %v4592, %v4588
  %v4753 = vpack.c.b16 %v4597, %v4593
  %v4754 = vpack.c.b16 %v4598, %v4594
  %v4755 = vpack.c.b16 %v4599, %v4595
  %v4756 = vpack.c.b16 %v4600, %v4596
  %v4757 = vpack.c.b16 %v4605, %v4601
  %v4758 = vpack.c.b16 %v4606, %v4602
  %v4759 = vpack.c.b16 %v4607, %v4603
  %v4760 = vpack.c.b16 %v4608, %v4604
  %v4761 = vpack.c.b16 %v4613, %v4609
  %v4762 = vpack.c.b16 %v4614, %v4610
  %v4763 = vpack.c.b16 %v4615, %v4611
  %v4764 = vpack.c.b16 %v4616, %v4612
  %v4765 = vpack.c.b16 %v4621, %v4617
  %v4766 = vpack.c.b16 %v4622, %v4618
  %v4767 = vpack.c.b16 %v4623, %v4619
  %v4768 = vpack.c.b16 %v4624, %v4620
  %v4769 = vpack.c.b16 %v4629, %v4625
  %v4770 = vpack.c.b16 %v4630, %v4626
  %v4771 = vpack.c.b16 %v4631, %v4627
  %v4772 = vpack.c.b16 %v4632, %v4628
  %v4773 = vpack.c.b16 %v4637, %v4633
  %v4774 = vpack.c.b16 %v4638, %v4634
  %v4775 = vpack.c.b16 %v4639, %v4635
  %v4776 = vpack.c.b16 %v4640, %v4636
  %v4777 = vpack.c.b16 %v4645, %v4641
  %v4778 = vpack.c.b16 %v4646, %v4642
  %v4779 = vpack.c.b16 %v4647, %v4643
  %v4780 = vpack.c.b16 %v4648, %v4644
  %v4781 = vpack.c.b16 %v4653, %v4649
  %v4782 = vpack.c.b16 %v4654, %v4650
  %v4783 = vpack.c.b16 %v4655, %v4651
  %v4784 = vpack.c.b16 %v4656, %v4652
  %4913 = vmatpush.bf16.msra.mxu0 %v4685
  %4914 = vmatpush.bf16.msra.mxu0 %v4681
  %4915 = vmatpush.bf16.msra.mxu0 %v4677
  %4916 = vmatpush.bf16.msra.mxu0 %v4673
  %4917 = vmatpush.bf16.msra.mxu0 %v4669
  %4918 = vmatpush.bf16.msra.mxu0 %v4665
  %4919 = vmatpush.bf16.msra.mxu0 %v4661
  %4920 = vmatpush.bf16.msra.mxu0 %v4657
  %4921 = vmatmul.bf16.gmra.mxu0 %v4141
  %v4922 = vpop.f32.mrf.mxu0
  %v4923 = vadd.f32 0.0, %v4922
  %v4924 = vpop.f32.mrf.mxu0
  %4925 = vdwg.mxu0
  %4926 = vmatpush.bf16.msra.mxu0 %v4717
  %4927 = vmatpush.bf16.msra.mxu0 %v4713
  %4928 = vmatpush.bf16.msra.mxu0 %v4709
  %4929 = vmatpush.bf16.msra.mxu0 %v4705
  %4930 = vmatpush.bf16.msra.mxu0 %v4701
  %4931 = vmatpush.bf16.msra.mxu0 %v4697
  %4932 = vmatpush.bf16.msra.mxu0 %v4693
  %4933 = vmatpush.bf16.msra.mxu0 %v4689
  %4934 = vmatmul.bf16.gmra.mxu0 %v4142
  %v4935 = vpop.f32.mrf.mxu0
  %v4936 = vadd.f32 %v4923, %v4935
  %v4937 = vpop.f32.mrf.mxu0
  %4938 = vdwg.mxu0
  %4939 = vmatpush.bf16.msra.mxu0 %v4749
  %4940 = vmatpush.bf16.msra.mxu0 %v4745
  %4941 = vmatpush.bf16.msra.mxu0 %v4741
  %4942 = vmatpush.bf16.msra.mxu0 %v4737
  %4943 = vmatpush.bf16.msra.mxu0 %v4733
  %4944 = vmatpush.bf16.msra.mxu0 %v4729
  %4945 = vmatpush.bf16.msra.mxu0 %v4725
  %4946 = vmatpush.bf16.msra.mxu0 %v4721
  %4947 = vmatmul.bf16.gmra.mxu0 %v4143
  %v4948 = vpop.f32.mrf.mxu0
  %v4949 = vadd.f32 %v4936, %v4948
  %v4950 = vpop.f32.mrf.mxu0
  %4951 = vdwg.mxu0
  %4952 = vmatpush.bf16.msra.mxu0 %v4781
  %4953 = vmatpush.bf16.msra.mxu0 %v4777
  %4954 = vmatpush.bf16.msra.mxu0 %v4773
  %4955 = vmatpush.bf16.msra.mxu0 %v4769
  %4956 = vmatpush.bf16.msra.mxu0 %v4765
  %4957 = vmatpush.bf16.msra.mxu0 %v4761
  %4958 = vmatpush.bf16.msra.mxu0 %v4757
  %4959 = vmatpush.bf16.msra.mxu0 %v4753
  %4960 = vmatmul.bf16.gmra.mxu0 %v4144
  %v4961 = vpop.f32.mrf.mxu0
  %v4962 = vadd.f32 %v4949, %v4961
  %v4963 = vpop.f32.mrf.mxu0
  %4964 = vdwg.mxu0
  %4965 = vmatpush.bf16.msra.mxu0 %v4686
  %4966 = vmatpush.bf16.msra.mxu0 %v4682
  %4967 = vmatpush.bf16.msra.mxu0 %v4678
  %4968 = vmatpush.bf16.msra.mxu0 %v4674
  %4969 = vmatpush.bf16.msra.mxu0 %v4670
  %4970 = vmatpush.bf16.msra.mxu0 %v4666
  %4971 = vmatpush.bf16.msra.mxu0 %v4662
  %4972 = vmatpush.bf16.msra.mxu0 %v4658
  %4973 = vmatmul.bf16.gmra.mxu0 %v4141
  %v4974 = vpop.f32.mrf.mxu0
  %v4975 = vadd.f32 0.0, %v4974
  %v4976 = vpop.f32.mrf.mxu0
  %4977 = vdwg.mxu0
  %4978 = vmatpush.bf16.msra.mxu0 %v4718
  %4979 = vmatpush.bf16.msra.mxu0 %v4714
  %4980 = vmatpush.bf16.msra.mxu0 %v4710
  %4981 = vmatpush.bf16.msra.mxu0 %v4706
  %4982 = vmatpush.bf16.msra.mxu0 %v4702
  %4983 = vmatpush.bf16.msra.mxu0 %v4698
  %4984 = vmatpush.bf16.msra.mxu0 %v4694
  %4985 = vmatpush.bf16.msra.mxu0 %v4690
  %4986 = vmatmul.bf16.gmra.mxu0 %v4142
  %v4987 = vpop.f32.mrf.mxu0
  %v4988 = vadd.f32 %v4975, %v4987
  %v4989 = vpop.f32.mrf.mxu0
  %4990 = vdwg.mxu0
  %4991 = vmatpush.bf16.msra.mxu0 %v4750
  %4992 = vmatpush.bf16.msra.mxu0 %v4746
  %4993 = vmatpush.bf16.msra.mxu0 %v4742
  %4994 = vmatpush.bf16.msra.mxu0 %v4738
  %4995 = vmatpush.bf16.msra.mxu0 %v4734
  %4996 = vmatpush.bf16.msra.mxu0 %v4730
  %4997 = vmatpush.bf16.msra.mxu0 %v4726
  %4998 = vmatpush.bf16.msra.mxu0 %v4722
  %4999 = vmatmul.bf16.gmra.mxu0 %v4143
  %v5000 = vpop.f32.mrf.mxu0
  %v5001 = vadd.f32 %v4988, %v5000
  %v5002 = vpop.f32.mrf.mxu0
  %5003 = vdwg.mxu0
  %5004 = vmatpush.bf16.msra.mxu0 %v4782
  %5005 = vmatpush.bf16.msra.mxu0 %v4778
  %5006 = vmatpush.bf16.msra.mxu0 %v4774
  %5007 = vmatpush.bf16.msra.mxu0 %v4770
  %5008 = vmatpush.bf16.msra.mxu0 %v4766
  %5009 = vmatpush.bf16.msra.mxu0 %v4762
  %5010 = vmatpush.bf16.msra.mxu0 %v4758
  %5011 = vmatpush.bf16.msra.mxu0 %v4754
  %5012 = vmatmul.bf16.gmra.mxu0 %v4144
  %v5013 = vpop.f32.mrf.mxu0
  %v5014 = vadd.f32 %v5001, %v5013
  %v5015 = vpop.f32.mrf.mxu0
  %5016 = vdwg.mxu0
  %5017 = vmatpush.bf16.msra.mxu0 %v4687
  %5018 = vmatpush.bf16.msra.mxu0 %v4683
  %5019 = vmatpush.bf16.msra.mxu0 %v4679
  %5020 = vmatpush.bf16.msra.mxu0 %v4675
  %5021 = vmatpush.bf16.msra.mxu0 %v4671
  %5022 = vmatpush.bf16.msra.mxu0 %v4667
  %5023 = vmatpush.bf16.msra.mxu0 %v4663
  %5024 = vmatpush.bf16.msra.mxu0 %v4659
  %5025 = vmatmul.bf16.gmra.mxu0 %v4141
  %v5026 = vpop.f32.mrf.mxu0
  %v5027 = vadd.f32 0.0, %v5026
  %v5028 = vpop.f32.mrf.mxu0
  %5029 = vdwg.mxu0
  %5030 = vmatpush.bf16.msra.mxu0 %v4719
  %5031 = vmatpush.bf16.msra.mxu0 %v4715
  %5032 = vmatpush.bf16.msra.mxu0 %v4711
  %5033 = vmatpush.bf16.msra.mxu0 %v4707
  %5034 = vmatpush.bf16.msra.mxu0 %v4703
  %5035 = vmatpush.bf16.msra.mxu0 %v4699
  %5036 = vmatpush.bf16.msra.mxu0 %v4695
  %5037 = vmatpush.bf16.msra.mxu0 %v4691
  %5038 = vmatmul.bf16.gmra.mxu0 %v4142
  %v5039 = vpop.f32.mrf.mxu0
  %v5040 = vadd.f32 %v5027, %v5039
  %v5041 = vpop.f32.mrf.mxu0
  %5042 = vdwg.mxu0
  %5043 = vmatpush.bf16.msra.mxu0 %v4751
  %5044 = vmatpush.bf16.msra.mxu0 %v4747
  %5045 = vmatpush.bf16.msra.mxu0 %v4743
  %5046 = vmatpush.bf16.msra.mxu0 %v4739
  %5047 = vmatpush.bf16.msra.mxu0 %v4735
  %5048 = vmatpush.bf16.msra.mxu0 %v4731
  %5049 = vmatpush.bf16.msra.mxu0 %v4727
  %5050 = vmatpush.bf16.msra.mxu0 %v4723
  %5051 = vmatmul.bf16.gmra.mxu0 %v4143
  %v5052 = vpop.f32.mrf.mxu0
  %v5053 = vadd.f32 %v5040, %v5052
  %v5054 = vpop.f32.mrf.mxu0
  %5055 = vdwg.mxu0
  %5056 = vmatpush.bf16.msra.mxu0 %v4783
  %5057 = vmatpush.bf16.msra.mxu0 %v4779
  %5058 = vmatpush.bf16.msra.mxu0 %v4775
  %5059 = vmatpush.bf16.msra.mxu0 %v4771
  %5060 = vmatpush.bf16.msra.mxu0 %v4767
  %5061 = vmatpush.bf16.msra.mxu0 %v4763
  %5062 = vmatpush.bf16.msra.mxu0 %v4759
  %5063 = vmatpush.bf16.msra.mxu0 %v4755
  %5064 = vmatmul.bf16.gmra.mxu0 %v4144
  %v5065 = vpop.f32.mrf.mxu0
  %v5066 = vadd.f32 %v5053, %v5065
  %v5067 = vpop.f32.mrf.mxu0
  %5068 = vdwg.mxu0
  %5069 = vmatpush.bf16.msra.mxu0 %v4688
  %5070 = vmatpush.bf16.msra.mxu0 %v4684
  %5071 = vmatpush.bf16.msra.mxu0 %v4680
  %5072 = vmatpush.bf16.msra.mxu0 %v4676
  %5073 = vmatpush.bf16.msra.mxu0 %v4672
  %5074 = vmatpush.bf16.msra.mxu0 %v4668
  %5075 = vmatpush.bf16.msra.mxu0 %v4664
  %5076 = vmatpush.bf16.msra.mxu0 %v4660
  %5077 = vmatmul.bf16.gmra.mxu0 %v4141
  %v5078 = vpop.f32.mrf.mxu0
  %v5079 = vadd.f32 0.0, %v5078
  %v5080 = vpop.f32.mrf.mxu0
  %5081 = vdwg.mxu0
  %5082 = vmatpush.bf16.msra.mxu0 %v4720
  %5083 = vmatpush.bf16.msra.mxu0 %v4716
  %5084 = vmatpush.bf16.msra.mxu0 %v4712
  %5085 = vmatpush.bf16.msra.mxu0 %v4708
  %5086 = vmatpush.bf16.msra.mxu0 %v4704
  %5087 = vmatpush.bf16.msra.mxu0 %v4700
  %5088 = vmatpush.bf16.msra.mxu0 %v4696
  %5089 = vmatpush.bf16.msra.mxu0 %v4692
  %5090 = vmatmul.bf16.gmra.mxu0 %v4142
  %v5091 = vpop.f32.mrf.mxu0
  %v5092 = vadd.f32 %v5079, %v5091
  %v5093 = vpop.f32.mrf.mxu0
  %5094 = vdwg.mxu0
  %5095 = vmatpush.bf16.msra.mxu0 %v4752
  %5096 = vmatpush.bf16.msra.mxu0 %v4748
  %5097 = vmatpush.bf16.msra.mxu0 %v4744
  %5098 = vmatpush.bf16.msra.mxu0 %v4740
  %5099 = vmatpush.bf16.msra.mxu0 %v4736
  %5100 = vmatpush.bf16.msra.mxu0 %v4732
  %5101 = vmatpush.bf16.msra.mxu0 %v4728
  %5102 = vmatpush.bf16.msra.mxu0 %v4724
  %5103 = vmatmul.bf16.gmra.mxu0 %v4143
  %v5104 = vpop.f32.mrf.mxu0
  %v5105 = vadd.f32 %v5092, %v5104
  %v5106 = vpop.f32.mrf.mxu0
  %5107 = vdwg.mxu0
  %5108 = vmatpush.bf16.msra.mxu0 %v4784
  %5109 = vmatpush.bf16.msra.mxu0 %v4780
  %5110 = vmatpush.bf16.msra.mxu0 %v4776
  %5111 = vmatpush.bf16.msra.mxu0 %v4772
  %5112 = vmatpush.bf16.msra.mxu0 %v4768
  %5113 = vmatpush.bf16.msra.mxu0 %v4764
  %5114 = vmatpush.bf16.msra.mxu0 %v4760
  %5115 = vmatpush.bf16.msra.mxu0 %v4756
  %5116 = vmatmul.bf16.gmra.mxu0 %v4144
  %v5117 = vpop.f32.mrf.mxu0
  %v5118 = vadd.f32 %v5105, %v5117
  %v5119 = vpop.f32.mrf.mxu0
  %5120 = vdwg.mxu0
  %v5121 = vmul.f32 %v4131, 0.001953125
  %5123 = vset.pattern.permute.xlu0 0
  %5124 = vperm.xlu0 %5123, %v5121
  %v5125 = vpop.permute.xlu0 %5124
  %v5127 = vmul.f32 %v4962, %v5125
  %v5128 = vmul.f32 %v5014, %v5125
  %v5129 = vmul.f32 %v5066, %v5125
  %v5130 = vmul.f32 %v5118, %v5125
  %v5131 = vrot.slane %v5127, 4
  %v5132 = vadd.f32 %v5127, %v5131
  %v5133 = vrot.slane %v5132, 2
  %v5134 = vadd.f32 %v5132, %v5133
  %v5135 = vrot.slane %v5134, 1
  %v5136 = vadd.f32 %v5134, %v5135
  %v5137 = vrot.slane %v5128, 4
  %v5138 = vadd.f32 %v5128, %v5137
  %v5139 = vrot.slane %v5138, 2
  %v5140 = vadd.f32 %v5138, %v5139
  %v5141 = vrot.slane %v5140, 1
  %v5142 = vadd.f32 %v5140, %v5141
  %v5143 = vrot.slane %v5129, 4
  %v5144 = vadd.f32 %v5129, %v5143
  %v5145 = vrot.slane %v5144, 2
  %v5146 = vadd.f32 %v5144, %v5145
  %v5147 = vrot.slane %v5146, 1
  %v5148 = vadd.f32 %v5146, %v5147
  %v5149 = vrot.slane %v5130, 4
  %v5150 = vadd.f32 %v5130, %v5149
  %v5151 = vrot.slane %v5150, 2
  %v5152 = vadd.f32 %v5150, %v5151
  %v5153 = vrot.slane %v5152, 1
  %v5154 = vadd.f32 %v5152, %v5153
  %v5155 = vmul.f32 %v5136, 0.5
  %v5156 = vmul.f32 %v5142, 0.5
  %v5157 = vmul.f32 %v5148, 0.5
  %v5158 = vmul.f32 %v5154, 0.5
  %v5159 = vsub.f32 %v5127, %v5155
  %v5160 = vsub.f32 %v5128, %v5156
  %v5161 = vsub.f32 %v5129, %v5157
  %v5162 = vsub.f32 %v5130, %v5158
  %v5163 = vmul.f32 %v5127, %v5127
  %v5164 = vmul.f32 %v5128, %v5128
  %v5165 = vmul.f32 %v5129, %v5129
  %v5166 = vmul.f32 %v5130, %v5130
  %v5167 = vrot.slane %v5163, 4
  %v5168 = vadd.f32 %v5163, %v5167
  %v5169 = vrot.slane %v5168, 2
  %v5170 = vadd.f32 %v5168, %v5169
  %v5171 = vrot.slane %v5170, 1
  %v5172 = vadd.f32 %v5170, %v5171
  %v5173 = vrot.slane %v5164, 4
  %v5174 = vadd.f32 %v5164, %v5173
  %v5175 = vrot.slane %v5174, 2
  %v5176 = vadd.f32 %v5174, %v5175
  %v5177 = vrot.slane %v5176, 1
  %v5178 = vadd.f32 %v5176, %v5177
  %v5179 = vrot.slane %v5165, 4
  %v5180 = vadd.f32 %v5165, %v5179
  %v5181 = vrot.slane %v5180, 2
  %v5182 = vadd.f32 %v5180, %v5181
  %v5183 = vrot.slane %v5182, 1
  %v5184 = vadd.f32 %v5182, %v5183
  %v5185 = vrot.slane %v5166, 4
  %v5186 = vadd.f32 %v5166, %v5185
  %v5187 = vrot.slane %v5186, 2
  %v5188 = vadd.f32 %v5186, %v5187
  %v5189 = vrot.slane %v5188, 1
  %v5190 = vadd.f32 %v5188, %v5189
  %v5191 = vmul.f32 %v5172, 0.5
  %v5192 = vmul.f32 %v5178, 0.5
  %v5193 = vmul.f32 %v5184, 0.5
  %v5194 = vmul.f32 %v5190, 0.5
  %v5195 = vmul.f32 %v5155, %v5155
  %v5196 = vmul.f32 %v5156, %v5156
  %v5197 = vmul.f32 %v5157, %v5157
  %v5198 = vmul.f32 %v5158, %v5158
  %v5199 = vsub.f32 %v5191, %v5195
  %v5200 = vsub.f32 %v5192, %v5196
  %v5201 = vsub.f32 %v5193, %v5197
  %v5202 = vsub.f32 %v5194, %v5198
  %v5203 = vmax.f32 %v5199, 0.0
  %v5204 = vmax.f32 %v5200, 0.0
  %v5205 = vmax.f32 %v5201, 0.0
  %v5206 = vmax.f32 %v5202, 0.0
  %v5207 = vadd.f32 %v5203, 1e-05
  %v5208 = vadd.f32 %v5204, 1e-05
  %v5209 = vadd.f32 %v5205, 1e-05
  %v5210 = vadd.f32 %v5206, 1e-05
  %v5211 = vrsqrt.pop %v5207
  %v5212 = vmul.f32 %v5211, %v5207
  %v5213 = vmul.f32 %v5212, %v5211
  %v5214 = vmul.f32 0.5, %v5213
  %v5215 = vsub.f32 1.5, %v5214
  %v5216 = vmul.f32 %v5211, %v5215
  %vm5217 = vweird.f32 %v5207
  %vm5218 = vweird.f32 %v5211
  %vm5219 = vmor %vm5217, %vm5218
  %v5220 = vsel %vm5219, %v5211, %v5216
  %v5221 = vrsqrt.pop %v5208
  %v5222 = vmul.f32 %v5221, %v5208
  %v5223 = vmul.f32 %v5222, %v5221
  %v5224 = vmul.f32 0.5, %v5223
  %v5225 = vsub.f32 1.5, %v5224
  %v5226 = vmul.f32 %v5221, %v5225
  %vm5227 = vweird.f32 %v5208
  %vm5228 = vweird.f32 %v5221
  %vm5229 = vmor %vm5227, %vm5228
  %v5230 = vsel %vm5229, %v5221, %v5226
  %v5231 = vrsqrt.pop %v5209
  %v5232 = vmul.f32 %v5231, %v5209
  %v5233 = vmul.f32 %v5232, %v5231
  %v5234 = vmul.f32 0.5, %v5233
  %v5235 = vsub.f32 1.5, %v5234
  %v5236 = vmul.f32 %v5231, %v5235
  %vm5237 = vweird.f32 %v5209
  %vm5238 = vweird.f32 %v5231
  %vm5239 = vmor %vm5237, %vm5238
  %v5240 = vsel %vm5239, %v5231, %v5236
  %v5241 = vrsqrt.pop %v5210
  %v5242 = vmul.f32 %v5241, %v5210
  %v5243 = vmul.f32 %v5242, %v5241
  %v5244 = vmul.f32 0.5, %v5243
  %v5245 = vsub.f32 1.5, %v5244
  %v5246 = vmul.f32 %v5241, %v5245
  %vm5247 = vweird.f32 %v5210
  %vm5248 = vweird.f32 %v5241
  %vm5249 = vmor %vm5247, %vm5248
  %v5250 = vsel %vm5249, %v5241, %v5246
  %v5251 = vmul.f32 %v5159, %v5220
  %v5252 = vmul.f32 %v5160, %v5230
  %v5253 = vmul.f32 %v5161, %v5240
  %v5254 = vmul.f32 %v5162, %v5250
  %v5255 = vmax.f32 %v5251, 0.0
  %v5256 = vmax.f32 %v5252, 0.0
  %v5257 = vmax.f32 %v5253, 0.0
  %v5258 = vmax.f32 %v5254, 0.0
  %v5259 = vmul.f32 %v5255, %v4135
  %v5260 = vmul.f32 %v5256, %v4135
  %v5261 = vmul.f32 %v5257, %v4135
  %v5262 = vmul.f32 %v5258, %v4135
  %v5263 = vpack.c.bf16 %v5259, %v5259
  %v5264 = vpack.c.bf16 %v5260, %v5260
  %v5265 = vpack.c.bf16 %v5261, %v5261
  %v5266 = vpack.c.bf16 %v5262, %v5262
  %v5267 = vld [vmem:[%s4] sm:$0xff]
  %v5268 = vld [vmem:[%s4 + $0x8] sm:$0xff]
  %v5269 = vld [vmem:[%s4 + $0x10] sm:$0xff]
  %v5270 = vld [vmem:[%s4 + $0x18] sm:$0xff]
  %v5271 = vld [vmem:[%s4 + $0x20] sm:$0xff]
  %v5272 = vld [vmem:[%s4 + $0x28] sm:$0xff]
  %v5273 = vld [vmem:[%s4 + $0x30] sm:$0xff]
  %v5274 = vld [vmem:[%s4 + $0x38] sm:$0xff]
  %v5275 = vld [vmem:[%s4 + $0x40] sm:$0xff]
  %v5276 = vld [vmem:[%s4 + $0x48] sm:$0xff]
  %v5277 = vld [vmem:[%s4 + $0x50] sm:$0xff]
  %v5278 = vld [vmem:[%s4 + $0x58] sm:$0xff]
  %v5279 = vld [vmem:[%s4 + $0x60] sm:$0xff]
  %v5280 = vld [vmem:[%s4 + $0x68] sm:$0xff]
  %v5281 = vld [vmem:[%s4 + $0x70] sm:$0xff]
  %v5282 = vld [vmem:[%s4 + $0x78] sm:$0xff]
  %v5283 = vld [vmem:[%s4 + $0x80] sm:$0xff]
  %v5284 = vld [vmem:[%s4 + $0x88] sm:$0xff]
  %v5285 = vld [vmem:[%s4 + $0x90] sm:$0xff]
  %v5286 = vld [vmem:[%s4 + $0x98] sm:$0xff]
  %v5287 = vld [vmem:[%s4 + $0xa0] sm:$0xff]
  %v5288 = vld [vmem:[%s4 + $0xa8] sm:$0xff]
  %v5289 = vld [vmem:[%s4 + $0xb0] sm:$0xff]
  %v5290 = vld [vmem:[%s4 + $0xb8] sm:$0xff]
  %v5291 = vld [vmem:[%s4 + $0xc0] sm:$0xff]
  %v5292 = vld [vmem:[%s4 + $0xc8] sm:$0xff]
  %v5293 = vld [vmem:[%s4 + $0xd0] sm:$0xff]
  %v5294 = vld [vmem:[%s4 + $0xd8] sm:$0xff]
  %v5295 = vld [vmem:[%s4 + $0xe0] sm:$0xff]
  %v5296 = vld [vmem:[%s4 + $0xe8] sm:$0xff]
  %v5297 = vld [vmem:[%s4 + $0xf0] sm:$0xff]
  %v5298 = vld [vmem:[%s4 + $0xf8] sm:$0xff]
  %v5299 = vld [vmem:[%s4 + $0x100] sm:$0xff]
  %v5300 = vld [vmem:[%s4 + $0x108] sm:$0xff]
  %v5301 = vld [vmem:[%s4 + $0x110] sm:$0xff]
  %v5302 = vld [vmem:[%s4 + $0x118] sm:$0xff]
  %v5303 = vld [vmem:[%s4 + $0x120] sm:$0xff]
  %v5304 = vld [vmem:[%s4 + $0x128] sm:$0xff]
  %v5305 = vld [vmem:[%s4 + $0x130] sm:$0xff]
  %v5306 = vld [vmem:[%s4 + $0x138] sm:$0xff]
  %v5307 = vld [vmem:[%s4 + $0x140] sm:$0xff]
  %v5308 = vld [vmem:[%s4 + $0x148] sm:$0xff]
  %v5309 = vld [vmem:[%s4 + $0x150] sm:$0xff]
  %v5310 = vld [vmem:[%s4 + $0x158] sm:$0xff]
  %v5311 = vld [vmem:[%s4 + $0x160] sm:$0xff]
  %v5312 = vld [vmem:[%s4 + $0x168] sm:$0xff]
  %v5313 = vld [vmem:[%s4 + $0x170] sm:$0xff]
  %v5314 = vld [vmem:[%s4 + $0x178] sm:$0xff]
  %v5315 = vld [vmem:[%s4 + $0x180] sm:$0xff]
  %v5316 = vld [vmem:[%s4 + $0x188] sm:$0xff]
  %v5317 = vld [vmem:[%s4 + $0x190] sm:$0xff]
  %v5318 = vld [vmem:[%s4 + $0x198] sm:$0xff]
  %v5319 = vld [vmem:[%s4 + $0x1a0] sm:$0xff]
  %v5320 = vld [vmem:[%s4 + $0x1a8] sm:$0xff]
  %v5321 = vld [vmem:[%s4 + $0x1b0] sm:$0xff]
  %v5322 = vld [vmem:[%s4 + $0x1b8] sm:$0xff]
  %v5323 = vld [vmem:[%s4 + $0x1c0] sm:$0xff]
  %v5324 = vld [vmem:[%s4 + $0x1c8] sm:$0xff]
  %v5325 = vld [vmem:[%s4 + $0x1d0] sm:$0xff]
  %v5326 = vld [vmem:[%s4 + $0x1d8] sm:$0xff]
  %v5327 = vld [vmem:[%s4 + $0x1e0] sm:$0xff]
  %v5328 = vld [vmem:[%s4 + $0x1e8] sm:$0xff]
  %v5329 = vld [vmem:[%s4 + $0x1f0] sm:$0xff]
  %v5330 = vld [vmem:[%s4 + $0x1f8] sm:$0xff]
  %v5331 = vld [vmem:[%s4 + $0x200] sm:$0xff]
  %v5332 = vld [vmem:[%s4 + $0x208] sm:$0xff]
  %v5333 = vld [vmem:[%s4 + $0x210] sm:$0xff]
  %v5334 = vld [vmem:[%s4 + $0x218] sm:$0xff]
  %v5335 = vld [vmem:[%s4 + $0x220] sm:$0xff]
  %v5336 = vld [vmem:[%s4 + $0x228] sm:$0xff]
  %v5337 = vld [vmem:[%s4 + $0x230] sm:$0xff]
  %v5338 = vld [vmem:[%s4 + $0x238] sm:$0xff]
  %v5339 = vld [vmem:[%s4 + $0x240] sm:$0xff]
  %v5340 = vld [vmem:[%s4 + $0x248] sm:$0xff]
  %v5341 = vld [vmem:[%s4 + $0x250] sm:$0xff]
  %v5342 = vld [vmem:[%s4 + $0x258] sm:$0xff]
  %v5343 = vld [vmem:[%s4 + $0x260] sm:$0xff]
  %v5344 = vld [vmem:[%s4 + $0x268] sm:$0xff]
  %v5345 = vld [vmem:[%s4 + $0x270] sm:$0xff]
  %v5346 = vld [vmem:[%s4 + $0x278] sm:$0xff]
  %v5347 = vld [vmem:[%s4 + $0x280] sm:$0xff]
  %v5348 = vld [vmem:[%s4 + $0x288] sm:$0xff]
  %v5349 = vld [vmem:[%s4 + $0x290] sm:$0xff]
  %v5350 = vld [vmem:[%s4 + $0x298] sm:$0xff]
  %v5351 = vld [vmem:[%s4 + $0x2a0] sm:$0xff]
  %v5352 = vld [vmem:[%s4 + $0x2a8] sm:$0xff]
  %v5353 = vld [vmem:[%s4 + $0x2b0] sm:$0xff]
  %v5354 = vld [vmem:[%s4 + $0x2b8] sm:$0xff]
  %v5355 = vld [vmem:[%s4 + $0x2c0] sm:$0xff]
  %v5356 = vld [vmem:[%s4 + $0x2c8] sm:$0xff]
  %v5357 = vld [vmem:[%s4 + $0x2d0] sm:$0xff]
  %v5358 = vld [vmem:[%s4 + $0x2d8] sm:$0xff]
  %v5359 = vld [vmem:[%s4 + $0x2e0] sm:$0xff]
  %v5360 = vld [vmem:[%s4 + $0x2e8] sm:$0xff]
  %v5361 = vld [vmem:[%s4 + $0x2f0] sm:$0xff]
  %v5362 = vld [vmem:[%s4 + $0x2f8] sm:$0xff]
  %v5363 = vld [vmem:[%s4 + $0x300] sm:$0xff]
  %v5364 = vld [vmem:[%s4 + $0x308] sm:$0xff]
  %v5365 = vld [vmem:[%s4 + $0x310] sm:$0xff]
  %v5366 = vld [vmem:[%s4 + $0x318] sm:$0xff]
  %v5367 = vld [vmem:[%s4 + $0x320] sm:$0xff]
  %v5368 = vld [vmem:[%s4 + $0x328] sm:$0xff]
  %v5369 = vld [vmem:[%s4 + $0x330] sm:$0xff]
  %v5370 = vld [vmem:[%s4 + $0x338] sm:$0xff]
  %v5371 = vld [vmem:[%s4 + $0x340] sm:$0xff]
  %v5372 = vld [vmem:[%s4 + $0x348] sm:$0xff]
  %v5373 = vld [vmem:[%s4 + $0x350] sm:$0xff]
  %v5374 = vld [vmem:[%s4 + $0x358] sm:$0xff]
  %v5375 = vld [vmem:[%s4 + $0x360] sm:$0xff]
  %v5376 = vld [vmem:[%s4 + $0x368] sm:$0xff]
  %v5377 = vld [vmem:[%s4 + $0x370] sm:$0xff]
  %v5378 = vld [vmem:[%s4 + $0x378] sm:$0xff]
  %v5379 = vld [vmem:[%s4 + $0x380] sm:$0xff]
  %v5380 = vld [vmem:[%s4 + $0x388] sm:$0xff]
  %v5381 = vld [vmem:[%s4 + $0x390] sm:$0xff]
  %v5382 = vld [vmem:[%s4 + $0x398] sm:$0xff]
  %v5383 = vld [vmem:[%s4 + $0x3a0] sm:$0xff]
  %v5384 = vld [vmem:[%s4 + $0x3a8] sm:$0xff]
  %v5385 = vld [vmem:[%s4 + $0x3b0] sm:$0xff]
  %v5386 = vld [vmem:[%s4 + $0x3b8] sm:$0xff]
  %v5387 = vld [vmem:[%s4 + $0x3c0] sm:$0xff]
  %v5388 = vld [vmem:[%s4 + $0x3c8] sm:$0xff]
  %v5389 = vld [vmem:[%s4 + $0x3d0] sm:$0xff]
  %v5390 = vld [vmem:[%s4 + $0x3d8] sm:$0xff]
  %v5391 = vld [vmem:[%s4 + $0x3e0] sm:$0xff]
  %v5392 = vld [vmem:[%s4 + $0x3e8] sm:$0xff]
  %v5393 = vld [vmem:[%s4 + $0x3f0] sm:$0xff]
  %v5394 = vld [vmem:[%s4 + $0x3f8] sm:$0xff]
  %v5523 = vunpack.c.l.b16 %v5267
  %v5524 = vunpack.c.h.b16 %v5267
  %v5525 = vunpack.c.l.b16 %v5268
  %v5526 = vunpack.c.h.b16 %v5268
  %v5527 = vunpack.c.l.b16 %v5269
  %v5528 = vunpack.c.h.b16 %v5269
  %v5529 = vunpack.c.l.b16 %v5270
  %v5530 = vunpack.c.h.b16 %v5270
  %v5531 = vunpack.c.l.b16 %v5271
  %v5532 = vunpack.c.h.b16 %v5271
  %v5533 = vunpack.c.l.b16 %v5272
  %v5534 = vunpack.c.h.b16 %v5272
  %v5535 = vunpack.c.l.b16 %v5273
  %v5536 = vunpack.c.h.b16 %v5273
  %v5537 = vunpack.c.l.b16 %v5274
  %v5538 = vunpack.c.h.b16 %v5274
  %v5539 = vunpack.c.l.b16 %v5275
  %v5540 = vunpack.c.h.b16 %v5275
  %v5541 = vunpack.c.l.b16 %v5276
  %v5542 = vunpack.c.h.b16 %v5276
  %v5543 = vunpack.c.l.b16 %v5277
  %v5544 = vunpack.c.h.b16 %v5277
  %v5545 = vunpack.c.l.b16 %v5278
  %v5546 = vunpack.c.h.b16 %v5278
  %v5547 = vunpack.c.l.b16 %v5279
  %v5548 = vunpack.c.h.b16 %v5279
  %v5549 = vunpack.c.l.b16 %v5280
  %v5550 = vunpack.c.h.b16 %v5280
  %v5551 = vunpack.c.l.b16 %v5281
  %v5552 = vunpack.c.h.b16 %v5281
  %v5553 = vunpack.c.l.b16 %v5282
  %v5554 = vunpack.c.h.b16 %v5282
  %v5555 = vunpack.c.l.b16 %v5283
  %v5556 = vunpack.c.h.b16 %v5283
  %v5557 = vunpack.c.l.b16 %v5284
  %v5558 = vunpack.c.h.b16 %v5284
  %v5559 = vunpack.c.l.b16 %v5285
  %v5560 = vunpack.c.h.b16 %v5285
  %v5561 = vunpack.c.l.b16 %v5286
  %v5562 = vunpack.c.h.b16 %v5286
  %v5563 = vunpack.c.l.b16 %v5287
  %v5564 = vunpack.c.h.b16 %v5287
  %v5565 = vunpack.c.l.b16 %v5288
  %v5566 = vunpack.c.h.b16 %v5288
  %v5567 = vunpack.c.l.b16 %v5289
  %v5568 = vunpack.c.h.b16 %v5289
  %v5569 = vunpack.c.l.b16 %v5290
  %v5570 = vunpack.c.h.b16 %v5290
  %v5571 = vunpack.c.l.b16 %v5291
  %v5572 = vunpack.c.h.b16 %v5291
  %v5573 = vunpack.c.l.b16 %v5292
  %v5574 = vunpack.c.h.b16 %v5292
  %v5575 = vunpack.c.l.b16 %v5293
  %v5576 = vunpack.c.h.b16 %v5293
  %v5577 = vunpack.c.l.b16 %v5294
  %v5578 = vunpack.c.h.b16 %v5294
  %v5579 = vunpack.c.l.b16 %v5295
  %v5580 = vunpack.c.h.b16 %v5295
  %v5581 = vunpack.c.l.b16 %v5296
  %v5582 = vunpack.c.h.b16 %v5296
  %v5583 = vunpack.c.l.b16 %v5297
  %v5584 = vunpack.c.h.b16 %v5297
  %v5585 = vunpack.c.l.b16 %v5298
  %v5586 = vunpack.c.h.b16 %v5298
  %v5587 = vunpack.c.l.b16 %v5299
  %v5588 = vunpack.c.h.b16 %v5299
  %v5589 = vunpack.c.l.b16 %v5300
  %v5590 = vunpack.c.h.b16 %v5300
  %v5591 = vunpack.c.l.b16 %v5301
  %v5592 = vunpack.c.h.b16 %v5301
  %v5593 = vunpack.c.l.b16 %v5302
  %v5594 = vunpack.c.h.b16 %v5302
  %v5595 = vunpack.c.l.b16 %v5303
  %v5596 = vunpack.c.h.b16 %v5303
  %v5597 = vunpack.c.l.b16 %v5304
  %v5598 = vunpack.c.h.b16 %v5304
  %v5599 = vunpack.c.l.b16 %v5305
  %v5600 = vunpack.c.h.b16 %v5305
  %v5601 = vunpack.c.l.b16 %v5306
  %v5602 = vunpack.c.h.b16 %v5306
  %v5603 = vunpack.c.l.b16 %v5307
  %v5604 = vunpack.c.h.b16 %v5307
  %v5605 = vunpack.c.l.b16 %v5308
  %v5606 = vunpack.c.h.b16 %v5308
  %v5607 = vunpack.c.l.b16 %v5309
  %v5608 = vunpack.c.h.b16 %v5309
  %v5609 = vunpack.c.l.b16 %v5310
  %v5610 = vunpack.c.h.b16 %v5310
  %v5611 = vunpack.c.l.b16 %v5311
  %v5612 = vunpack.c.h.b16 %v5311
  %v5613 = vunpack.c.l.b16 %v5312
  %v5614 = vunpack.c.h.b16 %v5312
  %v5615 = vunpack.c.l.b16 %v5313
  %v5616 = vunpack.c.h.b16 %v5313
  %v5617 = vunpack.c.l.b16 %v5314
  %v5618 = vunpack.c.h.b16 %v5314
  %v5619 = vunpack.c.l.b16 %v5315
  %v5620 = vunpack.c.h.b16 %v5315
  %v5621 = vunpack.c.l.b16 %v5316
  %v5622 = vunpack.c.h.b16 %v5316
  %v5623 = vunpack.c.l.b16 %v5317
  %v5624 = vunpack.c.h.b16 %v5317
  %v5625 = vunpack.c.l.b16 %v5318
  %v5626 = vunpack.c.h.b16 %v5318
  %v5627 = vunpack.c.l.b16 %v5319
  %v5628 = vunpack.c.h.b16 %v5319
  %v5629 = vunpack.c.l.b16 %v5320
  %v5630 = vunpack.c.h.b16 %v5320
  %v5631 = vunpack.c.l.b16 %v5321
  %v5632 = vunpack.c.h.b16 %v5321
  %v5633 = vunpack.c.l.b16 %v5322
  %v5634 = vunpack.c.h.b16 %v5322
  %v5635 = vunpack.c.l.b16 %v5323
  %v5636 = vunpack.c.h.b16 %v5323
  %v5637 = vunpack.c.l.b16 %v5324
  %v5638 = vunpack.c.h.b16 %v5324
  %v5639 = vunpack.c.l.b16 %v5325
  %v5640 = vunpack.c.h.b16 %v5325
  %v5641 = vunpack.c.l.b16 %v5326
  %v5642 = vunpack.c.h.b16 %v5326
  %v5643 = vunpack.c.l.b16 %v5327
  %v5644 = vunpack.c.h.b16 %v5327
  %v5645 = vunpack.c.l.b16 %v5328
  %v5646 = vunpack.c.h.b16 %v5328
  %v5647 = vunpack.c.l.b16 %v5329
  %v5648 = vunpack.c.h.b16 %v5329
  %v5649 = vunpack.c.l.b16 %v5330
  %v5650 = vunpack.c.h.b16 %v5330
  %v5651 = vunpack.c.l.b16 %v5331
  %v5652 = vunpack.c.h.b16 %v5331
  %v5653 = vunpack.c.l.b16 %v5332
  %v5654 = vunpack.c.h.b16 %v5332
  %v5655 = vunpack.c.l.b16 %v5333
  %v5656 = vunpack.c.h.b16 %v5333
  %v5657 = vunpack.c.l.b16 %v5334
  %v5658 = vunpack.c.h.b16 %v5334
  %v5659 = vunpack.c.l.b16 %v5335
  %v5660 = vunpack.c.h.b16 %v5335
  %v5661 = vunpack.c.l.b16 %v5336
  %v5662 = vunpack.c.h.b16 %v5336
  %v5663 = vunpack.c.l.b16 %v5337
  %v5664 = vunpack.c.h.b16 %v5337
  %v5665 = vunpack.c.l.b16 %v5338
  %v5666 = vunpack.c.h.b16 %v5338
  %v5667 = vunpack.c.l.b16 %v5339
  %v5668 = vunpack.c.h.b16 %v5339
  %v5669 = vunpack.c.l.b16 %v5340
  %v5670 = vunpack.c.h.b16 %v5340
  %v5671 = vunpack.c.l.b16 %v5341
  %v5672 = vunpack.c.h.b16 %v5341
  %v5673 = vunpack.c.l.b16 %v5342
  %v5674 = vunpack.c.h.b16 %v5342
  %v5675 = vunpack.c.l.b16 %v5343
  %v5676 = vunpack.c.h.b16 %v5343
  %v5677 = vunpack.c.l.b16 %v5344
  %v5678 = vunpack.c.h.b16 %v5344
  %v5679 = vunpack.c.l.b16 %v5345
  %v5680 = vunpack.c.h.b16 %v5345
  %v5681 = vunpack.c.l.b16 %v5346
  %v5682 = vunpack.c.h.b16 %v5346
  %v5683 = vunpack.c.l.b16 %v5347
  %v5684 = vunpack.c.h.b16 %v5347
  %v5685 = vunpack.c.l.b16 %v5348
  %v5686 = vunpack.c.h.b16 %v5348
  %v5687 = vunpack.c.l.b16 %v5349
  %v5688 = vunpack.c.h.b16 %v5349
  %v5689 = vunpack.c.l.b16 %v5350
  %v5690 = vunpack.c.h.b16 %v5350
  %v5691 = vunpack.c.l.b16 %v5351
  %v5692 = vunpack.c.h.b16 %v5351
  %v5693 = vunpack.c.l.b16 %v5352
  %v5694 = vunpack.c.h.b16 %v5352
  %v5695 = vunpack.c.l.b16 %v5353
  %v5696 = vunpack.c.h.b16 %v5353
  %v5697 = vunpack.c.l.b16 %v5354
  %v5698 = vunpack.c.h.b16 %v5354
  %v5699 = vunpack.c.l.b16 %v5355
  %v5700 = vunpack.c.h.b16 %v5355
  %v5701 = vunpack.c.l.b16 %v5356
  %v5702 = vunpack.c.h.b16 %v5356
  %v5703 = vunpack.c.l.b16 %v5357
  %v5704 = vunpack.c.h.b16 %v5357
  %v5705 = vunpack.c.l.b16 %v5358
  %v5706 = vunpack.c.h.b16 %v5358
  %v5707 = vunpack.c.l.b16 %v5359
  %v5708 = vunpack.c.h.b16 %v5359
  %v5709 = vunpack.c.l.b16 %v5360
  %v5710 = vunpack.c.h.b16 %v5360
  %v5711 = vunpack.c.l.b16 %v5361
  %v5712 = vunpack.c.h.b16 %v5361
  %v5713 = vunpack.c.l.b16 %v5362
  %v5714 = vunpack.c.h.b16 %v5362
  %v5715 = vunpack.c.l.b16 %v5363
  %v5716 = vunpack.c.h.b16 %v5363
  %v5717 = vunpack.c.l.b16 %v5364
  %v5718 = vunpack.c.h.b16 %v5364
  %v5719 = vunpack.c.l.b16 %v5365
  %v5720 = vunpack.c.h.b16 %v5365
  %v5721 = vunpack.c.l.b16 %v5366
  %v5722 = vunpack.c.h.b16 %v5366
  %v5723 = vunpack.c.l.b16 %v5367
  %v5724 = vunpack.c.h.b16 %v5367
  %v5725 = vunpack.c.l.b16 %v5368
  %v5726 = vunpack.c.h.b16 %v5368
  %v5727 = vunpack.c.l.b16 %v5369
  %v5728 = vunpack.c.h.b16 %v5369
  %v5729 = vunpack.c.l.b16 %v5370
  %v5730 = vunpack.c.h.b16 %v5370
  %v5731 = vunpack.c.l.b16 %v5371
  %v5732 = vunpack.c.h.b16 %v5371
  %v5733 = vunpack.c.l.b16 %v5372
  %v5734 = vunpack.c.h.b16 %v5372
  %v5735 = vunpack.c.l.b16 %v5373
  %v5736 = vunpack.c.h.b16 %v5373
  %v5737 = vunpack.c.l.b16 %v5374
  %v5738 = vunpack.c.h.b16 %v5374
  %v5739 = vunpack.c.l.b16 %v5375
  %v5740 = vunpack.c.h.b16 %v5375
  %v5741 = vunpack.c.l.b16 %v5376
  %v5742 = vunpack.c.h.b16 %v5376
  %v5743 = vunpack.c.l.b16 %v5377
  %v5744 = vunpack.c.h.b16 %v5377
  %v5745 = vunpack.c.l.b16 %v5378
  %v5746 = vunpack.c.h.b16 %v5378
  %v5747 = vunpack.c.l.b16 %v5379
  %v5748 = vunpack.c.h.b16 %v5379
  %v5749 = vunpack.c.l.b16 %v5380
  %v5750 = vunpack.c.h.b16 %v5380
  %v5751 = vunpack.c.l.b16 %v5381
  %v5752 = vunpack.c.h.b16 %v5381
  %v5753 = vunpack.c.l.b16 %v5382
  %v5754 = vunpack.c.h.b16 %v5382
  %v5755 = vunpack.c.l.b16 %v5383
  %v5756 = vunpack.c.h.b16 %v5383
  %v5757 = vunpack.c.l.b16 %v5384
  %v5758 = vunpack.c.h.b16 %v5384
  %v5759 = vunpack.c.l.b16 %v5385
  %v5760 = vunpack.c.h.b16 %v5385
  %v5761 = vunpack.c.l.b16 %v5386
  %v5762 = vunpack.c.h.b16 %v5386
  %v5763 = vunpack.c.l.b16 %v5387
  %v5764 = vunpack.c.h.b16 %v5387
  %v5765 = vunpack.c.l.b16 %v5388
  %v5766 = vunpack.c.h.b16 %v5388
  %v5767 = vunpack.c.l.b16 %v5389
  %v5768 = vunpack.c.h.b16 %v5389
  %v5769 = vunpack.c.l.b16 %v5390
  %v5770 = vunpack.c.h.b16 %v5390
  %v5771 = vunpack.c.l.b16 %v5391
  %v5772 = vunpack.c.h.b16 %v5391
  %v5773 = vunpack.c.l.b16 %v5392
  %v5774 = vunpack.c.h.b16 %v5392
  %v5775 = vunpack.c.l.b16 %v5393
  %v5776 = vunpack.c.h.b16 %v5393
  %v5777 = vunpack.c.l.b16 %v5394
  %v5778 = vunpack.c.h.b16 %v5394
  %v5779 = vpack.c.b16 %v5527, %v5523
  %v5780 = vpack.c.b16 %v5528, %v5524
  %v5781 = vpack.c.b16 %v5529, %v5525
  %v5782 = vpack.c.b16 %v5530, %v5526
  %v5783 = vpack.c.b16 %v5535, %v5531
  %v5784 = vpack.c.b16 %v5536, %v5532
  %v5785 = vpack.c.b16 %v5537, %v5533
  %v5786 = vpack.c.b16 %v5538, %v5534
  %v5787 = vpack.c.b16 %v5543, %v5539
  %v5788 = vpack.c.b16 %v5544, %v5540
  %v5789 = vpack.c.b16 %v5545, %v5541
  %v5790 = vpack.c.b16 %v5546, %v5542
  %v5791 = vpack.c.b16 %v5551, %v5547
  %v5792 = vpack.c.b16 %v5552, %v5548
  %v5793 = vpack.c.b16 %v5553, %v5549
  %v5794 = vpack.c.b16 %v5554, %v5550
  %v5795 = vpack.c.b16 %v5559, %v5555
  %v5796 = vpack.c.b16 %v5560, %v5556
  %v5797 = vpack.c.b16 %v5561, %v5557
  %v5798 = vpack.c.b16 %v5562, %v5558
  %v5799 = vpack.c.b16 %v5567, %v5563
  %v5800 = vpack.c.b16 %v5568, %v5564
  %v5801 = vpack.c.b16 %v5569, %v5565
  %v5802 = vpack.c.b16 %v5570, %v5566
  %v5803 = vpack.c.b16 %v5575, %v5571
  %v5804 = vpack.c.b16 %v5576, %v5572
  %v5805 = vpack.c.b16 %v5577, %v5573
  %v5806 = vpack.c.b16 %v5578, %v5574
  %v5807 = vpack.c.b16 %v5583, %v5579
  %v5808 = vpack.c.b16 %v5584, %v5580
  %v5809 = vpack.c.b16 %v5585, %v5581
  %v5810 = vpack.c.b16 %v5586, %v5582
  %v5811 = vpack.c.b16 %v5591, %v5587
  %v5812 = vpack.c.b16 %v5592, %v5588
  %v5813 = vpack.c.b16 %v5593, %v5589
  %v5814 = vpack.c.b16 %v5594, %v5590
  %v5815 = vpack.c.b16 %v5599, %v5595
  %v5816 = vpack.c.b16 %v5600, %v5596
  %v5817 = vpack.c.b16 %v5601, %v5597
  %v5818 = vpack.c.b16 %v5602, %v5598
  %v5819 = vpack.c.b16 %v5607, %v5603
  %v5820 = vpack.c.b16 %v5608, %v5604
  %v5821 = vpack.c.b16 %v5609, %v5605
  %v5822 = vpack.c.b16 %v5610, %v5606
  %v5823 = vpack.c.b16 %v5615, %v5611
  %v5824 = vpack.c.b16 %v5616, %v5612
  %v5825 = vpack.c.b16 %v5617, %v5613
  %v5826 = vpack.c.b16 %v5618, %v5614
  %v5827 = vpack.c.b16 %v5623, %v5619
  %v5828 = vpack.c.b16 %v5624, %v5620
  %v5829 = vpack.c.b16 %v5625, %v5621
  %v5830 = vpack.c.b16 %v5626, %v5622
  %v5831 = vpack.c.b16 %v5631, %v5627
  %v5832 = vpack.c.b16 %v5632, %v5628
  %v5833 = vpack.c.b16 %v5633, %v5629
  %v5834 = vpack.c.b16 %v5634, %v5630
  %v5835 = vpack.c.b16 %v5639, %v5635
  %v5836 = vpack.c.b16 %v5640, %v5636
  %v5837 = vpack.c.b16 %v5641, %v5637
  %v5838 = vpack.c.b16 %v5642, %v5638
  %v5839 = vpack.c.b16 %v5647, %v5643
  %v5840 = vpack.c.b16 %v5648, %v5644
  %v5841 = vpack.c.b16 %v5649, %v5645
  %v5842 = vpack.c.b16 %v5650, %v5646
  %v5843 = vpack.c.b16 %v5655, %v5651
  %v5844 = vpack.c.b16 %v5656, %v5652
  %v5845 = vpack.c.b16 %v5657, %v5653
  %v5846 = vpack.c.b16 %v5658, %v5654
  %v5847 = vpack.c.b16 %v5663, %v5659
  %v5848 = vpack.c.b16 %v5664, %v5660
  %v5849 = vpack.c.b16 %v5665, %v5661
  %v5850 = vpack.c.b16 %v5666, %v5662
  %v5851 = vpack.c.b16 %v5671, %v5667
  %v5852 = vpack.c.b16 %v5672, %v5668
  %v5853 = vpack.c.b16 %v5673, %v5669
  %v5854 = vpack.c.b16 %v5674, %v5670
  %v5855 = vpack.c.b16 %v5679, %v5675
  %v5856 = vpack.c.b16 %v5680, %v5676
  %v5857 = vpack.c.b16 %v5681, %v5677
  %v5858 = vpack.c.b16 %v5682, %v5678
  %v5859 = vpack.c.b16 %v5687, %v5683
  %v5860 = vpack.c.b16 %v5688, %v5684
  %v5861 = vpack.c.b16 %v5689, %v5685
  %v5862 = vpack.c.b16 %v5690, %v5686
  %v5863 = vpack.c.b16 %v5695, %v5691
  %v5864 = vpack.c.b16 %v5696, %v5692
  %v5865 = vpack.c.b16 %v5697, %v5693
  %v5866 = vpack.c.b16 %v5698, %v5694
  %v5867 = vpack.c.b16 %v5703, %v5699
  %v5868 = vpack.c.b16 %v5704, %v5700
  %v5869 = vpack.c.b16 %v5705, %v5701
  %v5870 = vpack.c.b16 %v5706, %v5702
  %v5871 = vpack.c.b16 %v5711, %v5707
  %v5872 = vpack.c.b16 %v5712, %v5708
  %v5873 = vpack.c.b16 %v5713, %v5709
  %v5874 = vpack.c.b16 %v5714, %v5710
  %v5875 = vpack.c.b16 %v5719, %v5715
  %v5876 = vpack.c.b16 %v5720, %v5716
  %v5877 = vpack.c.b16 %v5721, %v5717
  %v5878 = vpack.c.b16 %v5722, %v5718
  %v5879 = vpack.c.b16 %v5727, %v5723
  %v5880 = vpack.c.b16 %v5728, %v5724
  %v5881 = vpack.c.b16 %v5729, %v5725
  %v5882 = vpack.c.b16 %v5730, %v5726
  %v5883 = vpack.c.b16 %v5735, %v5731
  %v5884 = vpack.c.b16 %v5736, %v5732
  %v5885 = vpack.c.b16 %v5737, %v5733
  %v5886 = vpack.c.b16 %v5738, %v5734
  %v5887 = vpack.c.b16 %v5743, %v5739
  %v5888 = vpack.c.b16 %v5744, %v5740
  %v5889 = vpack.c.b16 %v5745, %v5741
  %v5890 = vpack.c.b16 %v5746, %v5742
  %v5891 = vpack.c.b16 %v5751, %v5747
  %v5892 = vpack.c.b16 %v5752, %v5748
  %v5893 = vpack.c.b16 %v5753, %v5749
  %v5894 = vpack.c.b16 %v5754, %v5750
  %v5895 = vpack.c.b16 %v5759, %v5755
  %v5896 = vpack.c.b16 %v5760, %v5756
  %v5897 = vpack.c.b16 %v5761, %v5757
  %v5898 = vpack.c.b16 %v5762, %v5758
  %v5899 = vpack.c.b16 %v5767, %v5763
  %v5900 = vpack.c.b16 %v5768, %v5764
  %v5901 = vpack.c.b16 %v5769, %v5765
  %v5902 = vpack.c.b16 %v5770, %v5766
  %v5903 = vpack.c.b16 %v5775, %v5771
  %v5904 = vpack.c.b16 %v5776, %v5772
  %v5905 = vpack.c.b16 %v5777, %v5773
  %v5906 = vpack.c.b16 %v5778, %v5774
  %6035 = vmatpush.bf16.msra.mxu0 %v5807
  %6036 = vmatpush.bf16.msra.mxu0 %v5803
  %6037 = vmatpush.bf16.msra.mxu0 %v5799
  %6038 = vmatpush.bf16.msra.mxu0 %v5795
  %6039 = vmatpush.bf16.msra.mxu0 %v5791
  %6040 = vmatpush.bf16.msra.mxu0 %v5787
  %6041 = vmatpush.bf16.msra.mxu0 %v5783
  %6042 = vmatpush.bf16.msra.mxu0 %v5779
  %6043 = vmatmul.bf16.gmra.mxu0 %v5263
  %v6044 = vpop.f32.mrf.mxu0
  %v6045 = vadd.f32 0.0, %v6044
  %v6046 = vpop.f32.mrf.mxu0
  %6047 = vdwg.mxu0
  %6048 = vmatpush.bf16.msra.mxu0 %v5839
  %6049 = vmatpush.bf16.msra.mxu0 %v5835
  %6050 = vmatpush.bf16.msra.mxu0 %v5831
  %6051 = vmatpush.bf16.msra.mxu0 %v5827
  %6052 = vmatpush.bf16.msra.mxu0 %v5823
  %6053 = vmatpush.bf16.msra.mxu0 %v5819
  %6054 = vmatpush.bf16.msra.mxu0 %v5815
  %6055 = vmatpush.bf16.msra.mxu0 %v5811
  %6056 = vmatmul.bf16.gmra.mxu0 %v5264
  %v6057 = vpop.f32.mrf.mxu0
  %v6058 = vadd.f32 %v6045, %v6057
  %v6059 = vpop.f32.mrf.mxu0
  %6060 = vdwg.mxu0
  %6061 = vmatpush.bf16.msra.mxu0 %v5871
  %6062 = vmatpush.bf16.msra.mxu0 %v5867
  %6063 = vmatpush.bf16.msra.mxu0 %v5863
  %6064 = vmatpush.bf16.msra.mxu0 %v5859
  %6065 = vmatpush.bf16.msra.mxu0 %v5855
  %6066 = vmatpush.bf16.msra.mxu0 %v5851
  %6067 = vmatpush.bf16.msra.mxu0 %v5847
  %6068 = vmatpush.bf16.msra.mxu0 %v5843
  %6069 = vmatmul.bf16.gmra.mxu0 %v5265
  %v6070 = vpop.f32.mrf.mxu0
  %v6071 = vadd.f32 %v6058, %v6070
  %v6072 = vpop.f32.mrf.mxu0
  %6073 = vdwg.mxu0
  %6074 = vmatpush.bf16.msra.mxu0 %v5903
  %6075 = vmatpush.bf16.msra.mxu0 %v5899
  %6076 = vmatpush.bf16.msra.mxu0 %v5895
  %6077 = vmatpush.bf16.msra.mxu0 %v5891
  %6078 = vmatpush.bf16.msra.mxu0 %v5887
  %6079 = vmatpush.bf16.msra.mxu0 %v5883
  %6080 = vmatpush.bf16.msra.mxu0 %v5879
  %6081 = vmatpush.bf16.msra.mxu0 %v5875
  %6082 = vmatmul.bf16.gmra.mxu0 %v5266
  %v6083 = vpop.f32.mrf.mxu0
  %v6084 = vadd.f32 %v6071, %v6083
  %v6085 = vpop.f32.mrf.mxu0
  %6086 = vdwg.mxu0
  %6087 = vmatpush.bf16.msra.mxu0 %v5808
  %6088 = vmatpush.bf16.msra.mxu0 %v5804
  %6089 = vmatpush.bf16.msra.mxu0 %v5800
  %6090 = vmatpush.bf16.msra.mxu0 %v5796
  %6091 = vmatpush.bf16.msra.mxu0 %v5792
  %6092 = vmatpush.bf16.msra.mxu0 %v5788
  %6093 = vmatpush.bf16.msra.mxu0 %v5784
  %6094 = vmatpush.bf16.msra.mxu0 %v5780
  %6095 = vmatmul.bf16.gmra.mxu0 %v5263
  %v6096 = vpop.f32.mrf.mxu0
  %v6097 = vadd.f32 0.0, %v6096
  %v6098 = vpop.f32.mrf.mxu0
  %6099 = vdwg.mxu0
  %6100 = vmatpush.bf16.msra.mxu0 %v5840
  %6101 = vmatpush.bf16.msra.mxu0 %v5836
  %6102 = vmatpush.bf16.msra.mxu0 %v5832
  %6103 = vmatpush.bf16.msra.mxu0 %v5828
  %6104 = vmatpush.bf16.msra.mxu0 %v5824
  %6105 = vmatpush.bf16.msra.mxu0 %v5820
  %6106 = vmatpush.bf16.msra.mxu0 %v5816
  %6107 = vmatpush.bf16.msra.mxu0 %v5812
  %6108 = vmatmul.bf16.gmra.mxu0 %v5264
  %v6109 = vpop.f32.mrf.mxu0
  %v6110 = vadd.f32 %v6097, %v6109
  %v6111 = vpop.f32.mrf.mxu0
  %6112 = vdwg.mxu0
  %6113 = vmatpush.bf16.msra.mxu0 %v5872
  %6114 = vmatpush.bf16.msra.mxu0 %v5868
  %6115 = vmatpush.bf16.msra.mxu0 %v5864
  %6116 = vmatpush.bf16.msra.mxu0 %v5860
  %6117 = vmatpush.bf16.msra.mxu0 %v5856
  %6118 = vmatpush.bf16.msra.mxu0 %v5852
  %6119 = vmatpush.bf16.msra.mxu0 %v5848
  %6120 = vmatpush.bf16.msra.mxu0 %v5844
  %6121 = vmatmul.bf16.gmra.mxu0 %v5265
  %v6122 = vpop.f32.mrf.mxu0
  %v6123 = vadd.f32 %v6110, %v6122
  %v6124 = vpop.f32.mrf.mxu0
  %6125 = vdwg.mxu0
  %6126 = vmatpush.bf16.msra.mxu0 %v5904
  %6127 = vmatpush.bf16.msra.mxu0 %v5900
  %6128 = vmatpush.bf16.msra.mxu0 %v5896
  %6129 = vmatpush.bf16.msra.mxu0 %v5892
  %6130 = vmatpush.bf16.msra.mxu0 %v5888
  %6131 = vmatpush.bf16.msra.mxu0 %v5884
  %6132 = vmatpush.bf16.msra.mxu0 %v5880
  %6133 = vmatpush.bf16.msra.mxu0 %v5876
  %6134 = vmatmul.bf16.gmra.mxu0 %v5266
  %v6135 = vpop.f32.mrf.mxu0
  %v6136 = vadd.f32 %v6123, %v6135
  %v6137 = vpop.f32.mrf.mxu0
  %6138 = vdwg.mxu0
  %6139 = vmatpush.bf16.msra.mxu0 %v5809
  %6140 = vmatpush.bf16.msra.mxu0 %v5805
  %6141 = vmatpush.bf16.msra.mxu0 %v5801
  %6142 = vmatpush.bf16.msra.mxu0 %v5797
  %6143 = vmatpush.bf16.msra.mxu0 %v5793
  %6144 = vmatpush.bf16.msra.mxu0 %v5789
  %6145 = vmatpush.bf16.msra.mxu0 %v5785
  %6146 = vmatpush.bf16.msra.mxu0 %v5781
  %6147 = vmatmul.bf16.gmra.mxu0 %v5263
  %v6148 = vpop.f32.mrf.mxu0
  %v6149 = vadd.f32 0.0, %v6148
  %v6150 = vpop.f32.mrf.mxu0
  %6151 = vdwg.mxu0
  %6152 = vmatpush.bf16.msra.mxu0 %v5841
  %6153 = vmatpush.bf16.msra.mxu0 %v5837
  %6154 = vmatpush.bf16.msra.mxu0 %v5833
  %6155 = vmatpush.bf16.msra.mxu0 %v5829
  %6156 = vmatpush.bf16.msra.mxu0 %v5825
  %6157 = vmatpush.bf16.msra.mxu0 %v5821
  %6158 = vmatpush.bf16.msra.mxu0 %v5817
  %6159 = vmatpush.bf16.msra.mxu0 %v5813
  %6160 = vmatmul.bf16.gmra.mxu0 %v5264
  %v6161 = vpop.f32.mrf.mxu0
  %v6162 = vadd.f32 %v6149, %v6161
  %v6163 = vpop.f32.mrf.mxu0
  %6164 = vdwg.mxu0
  %6165 = vmatpush.bf16.msra.mxu0 %v5873
  %6166 = vmatpush.bf16.msra.mxu0 %v5869
  %6167 = vmatpush.bf16.msra.mxu0 %v5865
  %6168 = vmatpush.bf16.msra.mxu0 %v5861
  %6169 = vmatpush.bf16.msra.mxu0 %v5857
  %6170 = vmatpush.bf16.msra.mxu0 %v5853
  %6171 = vmatpush.bf16.msra.mxu0 %v5849
  %6172 = vmatpush.bf16.msra.mxu0 %v5845
  %6173 = vmatmul.bf16.gmra.mxu0 %v5265
  %v6174 = vpop.f32.mrf.mxu0
  %v6175 = vadd.f32 %v6162, %v6174
  %v6176 = vpop.f32.mrf.mxu0
  %6177 = vdwg.mxu0
  %6178 = vmatpush.bf16.msra.mxu0 %v5905
  %6179 = vmatpush.bf16.msra.mxu0 %v5901
  %6180 = vmatpush.bf16.msra.mxu0 %v5897
  %6181 = vmatpush.bf16.msra.mxu0 %v5893
  %6182 = vmatpush.bf16.msra.mxu0 %v5889
  %6183 = vmatpush.bf16.msra.mxu0 %v5885
  %6184 = vmatpush.bf16.msra.mxu0 %v5881
  %6185 = vmatpush.bf16.msra.mxu0 %v5877
  %6186 = vmatmul.bf16.gmra.mxu0 %v5266
  %v6187 = vpop.f32.mrf.mxu0
  %v6188 = vadd.f32 %v6175, %v6187
  %v6189 = vpop.f32.mrf.mxu0
  %6190 = vdwg.mxu0
  %6191 = vmatpush.bf16.msra.mxu0 %v5810
  %6192 = vmatpush.bf16.msra.mxu0 %v5806
  %6193 = vmatpush.bf16.msra.mxu0 %v5802
  %6194 = vmatpush.bf16.msra.mxu0 %v5798
  %6195 = vmatpush.bf16.msra.mxu0 %v5794
  %6196 = vmatpush.bf16.msra.mxu0 %v5790
  %6197 = vmatpush.bf16.msra.mxu0 %v5786
  %6198 = vmatpush.bf16.msra.mxu0 %v5782
  %6199 = vmatmul.bf16.gmra.mxu0 %v5263
  %v6200 = vpop.f32.mrf.mxu0
  %v6201 = vadd.f32 0.0, %v6200
  %v6202 = vpop.f32.mrf.mxu0
  %6203 = vdwg.mxu0
  %6204 = vmatpush.bf16.msra.mxu0 %v5842
  %6205 = vmatpush.bf16.msra.mxu0 %v5838
  %6206 = vmatpush.bf16.msra.mxu0 %v5834
  %6207 = vmatpush.bf16.msra.mxu0 %v5830
  %6208 = vmatpush.bf16.msra.mxu0 %v5826
  %6209 = vmatpush.bf16.msra.mxu0 %v5822
  %6210 = vmatpush.bf16.msra.mxu0 %v5818
  %6211 = vmatpush.bf16.msra.mxu0 %v5814
  %6212 = vmatmul.bf16.gmra.mxu0 %v5264
  %v6213 = vpop.f32.mrf.mxu0
  %v6214 = vadd.f32 %v6201, %v6213
  %v6215 = vpop.f32.mrf.mxu0
  %6216 = vdwg.mxu0
  %6217 = vmatpush.bf16.msra.mxu0 %v5874
  %6218 = vmatpush.bf16.msra.mxu0 %v5870
  %6219 = vmatpush.bf16.msra.mxu0 %v5866
  %6220 = vmatpush.bf16.msra.mxu0 %v5862
  %6221 = vmatpush.bf16.msra.mxu0 %v5858
  %6222 = vmatpush.bf16.msra.mxu0 %v5854
  %6223 = vmatpush.bf16.msra.mxu0 %v5850
  %6224 = vmatpush.bf16.msra.mxu0 %v5846
  %6225 = vmatmul.bf16.gmra.mxu0 %v5265
  %v6226 = vpop.f32.mrf.mxu0
  %v6227 = vadd.f32 %v6214, %v6226
  %v6228 = vpop.f32.mrf.mxu0
  %6229 = vdwg.mxu0
  %6230 = vmatpush.bf16.msra.mxu0 %v5906
  %6231 = vmatpush.bf16.msra.mxu0 %v5902
  %6232 = vmatpush.bf16.msra.mxu0 %v5898
  %6233 = vmatpush.bf16.msra.mxu0 %v5894
  %6234 = vmatpush.bf16.msra.mxu0 %v5890
  %6235 = vmatpush.bf16.msra.mxu0 %v5886
  %6236 = vmatpush.bf16.msra.mxu0 %v5882
  %6237 = vmatpush.bf16.msra.mxu0 %v5878
  %6238 = vmatmul.bf16.gmra.mxu0 %v5266
  %v6239 = vpop.f32.mrf.mxu0
  %v6240 = vadd.f32 %v6227, %v6239
  %v6241 = vpop.f32.mrf.mxu0
  %6242 = vdwg.mxu0
  %v6243 = vmul.f32 %v6084, %v5125
  %v6244 = vmul.f32 %v6136, %v5125
  %v6245 = vmul.f32 %v6188, %v5125
  %v6246 = vmul.f32 %v6240, %v5125
  %v6247 = vrot.slane %v6243, 4
  %v6248 = vadd.f32 %v6243, %v6247
  %v6249 = vrot.slane %v6248, 2
  %v6250 = vadd.f32 %v6248, %v6249
  %v6251 = vrot.slane %v6250, 1
  %v6252 = vadd.f32 %v6250, %v6251
  %v6253 = vrot.slane %v6244, 4
  %v6254 = vadd.f32 %v6244, %v6253
  %v6255 = vrot.slane %v6254, 2
  %v6256 = vadd.f32 %v6254, %v6255
  %v6257 = vrot.slane %v6256, 1
  %v6258 = vadd.f32 %v6256, %v6257
  %v6259 = vrot.slane %v6245, 4
  %v6260 = vadd.f32 %v6245, %v6259
  %v6261 = vrot.slane %v6260, 2
  %v6262 = vadd.f32 %v6260, %v6261
  %v6263 = vrot.slane %v6262, 1
  %v6264 = vadd.f32 %v6262, %v6263
  %v6265 = vrot.slane %v6246, 4
  %v6266 = vadd.f32 %v6246, %v6265
  %v6267 = vrot.slane %v6266, 2
  %v6268 = vadd.f32 %v6266, %v6267
  %v6269 = vrot.slane %v6268, 1
  %v6270 = vadd.f32 %v6268, %v6269
  %v6271 = vmul.f32 %v6252, 0.5
  %v6272 = vmul.f32 %v6258, 0.5
  %v6273 = vmul.f32 %v6264, 0.5
  %v6274 = vmul.f32 %v6270, 0.5
  %v6275 = vsub.f32 %v6243, %v6271
  %v6276 = vsub.f32 %v6244, %v6272
  %v6277 = vsub.f32 %v6245, %v6273
  %v6278 = vsub.f32 %v6246, %v6274
  %v6279 = vmul.f32 %v6243, %v6243
  %v6280 = vmul.f32 %v6244, %v6244
  %v6281 = vmul.f32 %v6245, %v6245
  %v6282 = vmul.f32 %v6246, %v6246
  %v6283 = vrot.slane %v6279, 4
  %v6284 = vadd.f32 %v6279, %v6283
  %v6285 = vrot.slane %v6284, 2
  %v6286 = vadd.f32 %v6284, %v6285
  %v6287 = vrot.slane %v6286, 1
  %v6288 = vadd.f32 %v6286, %v6287
  %v6289 = vrot.slane %v6280, 4
  %v6290 = vadd.f32 %v6280, %v6289
  %v6291 = vrot.slane %v6290, 2
  %v6292 = vadd.f32 %v6290, %v6291
  %v6293 = vrot.slane %v6292, 1
  %v6294 = vadd.f32 %v6292, %v6293
  %v6295 = vrot.slane %v6281, 4
  %v6296 = vadd.f32 %v6281, %v6295
  %v6297 = vrot.slane %v6296, 2
  %v6298 = vadd.f32 %v6296, %v6297
  %v6299 = vrot.slane %v6298, 1
  %v6300 = vadd.f32 %v6298, %v6299
  %v6301 = vrot.slane %v6282, 4
  %v6302 = vadd.f32 %v6282, %v6301
  %v6303 = vrot.slane %v6302, 2
  %v6304 = vadd.f32 %v6302, %v6303
  %v6305 = vrot.slane %v6304, 1
  %v6306 = vadd.f32 %v6304, %v6305
  %v6307 = vmul.f32 %v6288, 0.5
  %v6308 = vmul.f32 %v6294, 0.5
  %v6309 = vmul.f32 %v6300, 0.5
  %v6310 = vmul.f32 %v6306, 0.5
  %v6311 = vmul.f32 %v6271, %v6271
  %v6312 = vmul.f32 %v6272, %v6272
  %v6313 = vmul.f32 %v6273, %v6273
  %v6314 = vmul.f32 %v6274, %v6274
  %v6315 = vsub.f32 %v6307, %v6311
  %v6316 = vsub.f32 %v6308, %v6312
  %v6317 = vsub.f32 %v6309, %v6313
  %v6318 = vsub.f32 %v6310, %v6314
  %v6319 = vmax.f32 %v6315, 0.0
  %v6320 = vmax.f32 %v6316, 0.0
  %v6321 = vmax.f32 %v6317, 0.0
  %v6322 = vmax.f32 %v6318, 0.0
  %v6323 = vadd.f32 %v6319, 1e-05
  %v6324 = vadd.f32 %v6320, 1e-05
  %v6325 = vadd.f32 %v6321, 1e-05
  %v6326 = vadd.f32 %v6322, 1e-05
  %v6327 = vrsqrt.pop %v6323
  %v6328 = vmul.f32 %v6327, %v6323
  %v6329 = vmul.f32 %v6328, %v6327
  %v6330 = vmul.f32 0.5, %v6329
  %v6331 = vsub.f32 1.5, %v6330
  %v6332 = vmul.f32 %v6327, %v6331
  %vm6333 = vweird.f32 %v6323
  %vm6334 = vweird.f32 %v6327
  %vm6335 = vmor %vm6333, %vm6334
  %v6336 = vsel %vm6335, %v6327, %v6332
  %v6337 = vrsqrt.pop %v6324
  %v6338 = vmul.f32 %v6337, %v6324
  %v6339 = vmul.f32 %v6338, %v6337
  %v6340 = vmul.f32 0.5, %v6339
  %v6341 = vsub.f32 1.5, %v6340
  %v6342 = vmul.f32 %v6337, %v6341
  %vm6343 = vweird.f32 %v6324
  %vm6344 = vweird.f32 %v6337
  %vm6345 = vmor %vm6343, %vm6344
  %v6346 = vsel %vm6345, %v6337, %v6342
  %v6347 = vrsqrt.pop %v6325
  %v6348 = vmul.f32 %v6347, %v6325
  %v6349 = vmul.f32 %v6348, %v6347
  %v6350 = vmul.f32 0.5, %v6349
  %v6351 = vsub.f32 1.5, %v6350
  %v6352 = vmul.f32 %v6347, %v6351
  %vm6353 = vweird.f32 %v6325
  %vm6354 = vweird.f32 %v6347
  %vm6355 = vmor %vm6353, %vm6354
  %v6356 = vsel %vm6355, %v6347, %v6352
  %v6357 = vrsqrt.pop %v6326
  %v6358 = vmul.f32 %v6357, %v6326
  %v6359 = vmul.f32 %v6358, %v6357
  %v6360 = vmul.f32 0.5, %v6359
  %v6361 = vsub.f32 1.5, %v6360
  %v6362 = vmul.f32 %v6357, %v6361
  %vm6363 = vweird.f32 %v6326
  %vm6364 = vweird.f32 %v6357
  %vm6365 = vmor %vm6363, %vm6364
  %v6366 = vsel %vm6365, %v6357, %v6362
  %v6367 = vmul.f32 %v6275, %v6336
  %v6368 = vmul.f32 %v6276, %v6346
  %v6369 = vmul.f32 %v6277, %v6356
  %v6370 = vmul.f32 %v6278, %v6366
  %v6371 = vmax.f32 %v6367, 0.0
  %v6372 = vmax.f32 %v6368, 0.0
  %v6373 = vmax.f32 %v6369, 0.0
  %v6374 = vmax.f32 %v6370, 0.0
  %v6375 = vpack.c.bf16 %v6371, %v6371
  %v6376 = vpack.c.bf16 %v6372, %v6372
  %v6377 = vpack.c.bf16 %v6373, %v6373
  %v6378 = vpack.c.bf16 %v6374, %v6374
  %v6379 = vld [vmem:[%s5] sm:$0xf]
  %v6380 = vld [vmem:[%s5 + $0x4] sm:$0xf]
  %v6381 = vld [vmem:[%s5 + $0x8] sm:$0xf]
  %v6382 = vld [vmem:[%s5 + $0xc] sm:$0xf]
  %v6383 = vld [vmem:[%s5 + $0x10] sm:$0xf]
  %v6384 = vld [vmem:[%s5 + $0x14] sm:$0xf]
  %v6385 = vld [vmem:[%s5 + $0x18] sm:$0xf]
  %v6386 = vld [vmem:[%s5 + $0x1c] sm:$0xf]
  %v6387 = vld [vmem:[%s5 + $0x20] sm:$0xf]
  %v6388 = vld [vmem:[%s5 + $0x24] sm:$0xf]
  %v6389 = vld [vmem:[%s5 + $0x28] sm:$0xf]
  %v6390 = vld [vmem:[%s5 + $0x2c] sm:$0xf]
  %v6391 = vld [vmem:[%s5 + $0x30] sm:$0xf]
  %v6392 = vld [vmem:[%s5 + $0x34] sm:$0xf]
  %v6393 = vld [vmem:[%s5 + $0x38] sm:$0xf]
  %v6394 = vld [vmem:[%s5 + $0x3c] sm:$0xf]
  %v6395 = vld [vmem:[%s5 + $0x40] sm:$0xf]
  %v6396 = vld [vmem:[%s5 + $0x44] sm:$0xf]
  %v6397 = vld [vmem:[%s5 + $0x48] sm:$0xf]
  %v6398 = vld [vmem:[%s5 + $0x4c] sm:$0xf]
  %v6399 = vld [vmem:[%s5 + $0x50] sm:$0xf]
  %v6400 = vld [vmem:[%s5 + $0x54] sm:$0xf]
  %v6401 = vld [vmem:[%s5 + $0x58] sm:$0xf]
  %v6402 = vld [vmem:[%s5 + $0x5c] sm:$0xf]
  %v6403 = vld [vmem:[%s5 + $0x60] sm:$0xf]
  %v6404 = vld [vmem:[%s5 + $0x64] sm:$0xf]
  %v6405 = vld [vmem:[%s5 + $0x68] sm:$0xf]
  %v6406 = vld [vmem:[%s5 + $0x6c] sm:$0xf]
  %v6407 = vld [vmem:[%s5 + $0x70] sm:$0xf]
  %v6408 = vld [vmem:[%s5 + $0x74] sm:$0xf]
  %v6409 = vld [vmem:[%s5 + $0x78] sm:$0xf]
  %v6410 = vld [vmem:[%s5 + $0x7c] sm:$0xf]
  %v6411 = vld [vmem:[%s5 + $0x80] sm:$0xf]
  %v6412 = vld [vmem:[%s5 + $0x84] sm:$0xf]
  %v6413 = vld [vmem:[%s5 + $0x88] sm:$0xf]
  %v6414 = vld [vmem:[%s5 + $0x8c] sm:$0xf]
  %v6415 = vld [vmem:[%s5 + $0x90] sm:$0xf]
  %v6416 = vld [vmem:[%s5 + $0x94] sm:$0xf]
  %v6417 = vld [vmem:[%s5 + $0x98] sm:$0xf]
  %v6418 = vld [vmem:[%s5 + $0x9c] sm:$0xf]
  %v6419 = vld [vmem:[%s5 + $0xa0] sm:$0xf]
  %v6420 = vld [vmem:[%s5 + $0xa4] sm:$0xf]
  %v6421 = vld [vmem:[%s5 + $0xa8] sm:$0xf]
  %v6422 = vld [vmem:[%s5 + $0xac] sm:$0xf]
  %v6423 = vld [vmem:[%s5 + $0xb0] sm:$0xf]
  %v6424 = vld [vmem:[%s5 + $0xb4] sm:$0xf]
  %v6425 = vld [vmem:[%s5 + $0xb8] sm:$0xf]
  %v6426 = vld [vmem:[%s5 + $0xbc] sm:$0xf]
  %v6427 = vld [vmem:[%s5 + $0xc0] sm:$0xf]
  %v6428 = vld [vmem:[%s5 + $0xc4] sm:$0xf]
  %v6429 = vld [vmem:[%s5 + $0xc8] sm:$0xf]
  %v6430 = vld [vmem:[%s5 + $0xcc] sm:$0xf]
  %v6431 = vld [vmem:[%s5 + $0xd0] sm:$0xf]
  %v6432 = vld [vmem:[%s5 + $0xd4] sm:$0xf]
  %v6433 = vld [vmem:[%s5 + $0xd8] sm:$0xf]
  %v6434 = vld [vmem:[%s5 + $0xdc] sm:$0xf]
  %v6435 = vld [vmem:[%s5 + $0xe0] sm:$0xf]
  %v6436 = vld [vmem:[%s5 + $0xe4] sm:$0xf]
  %v6437 = vld [vmem:[%s5 + $0xe8] sm:$0xf]
  %v6438 = vld [vmem:[%s5 + $0xec] sm:$0xf]
  %v6439 = vld [vmem:[%s5 + $0xf0] sm:$0xf]
  %v6440 = vld [vmem:[%s5 + $0xf4] sm:$0xf]
  %v6441 = vld [vmem:[%s5 + $0xf8] sm:$0xf]
  %v6442 = vld [vmem:[%s5 + $0xfc] sm:$0xf]
  %v6507 = vunpack.c.l.b16 %v6379
  %v6508 = vunpack.c.l.b16 %v6380
  %v6509 = vunpack.c.l.b16 %v6381
  %v6510 = vunpack.c.l.b16 %v6382
  %v6511 = vunpack.c.l.b16 %v6383
  %v6512 = vunpack.c.l.b16 %v6384
  %v6513 = vunpack.c.l.b16 %v6385
  %v6514 = vunpack.c.l.b16 %v6386
  %v6515 = vunpack.c.l.b16 %v6387
  %v6516 = vunpack.c.l.b16 %v6388
  %v6517 = vunpack.c.l.b16 %v6389
  %v6518 = vunpack.c.l.b16 %v6390
  %v6519 = vunpack.c.l.b16 %v6391
  %v6520 = vunpack.c.l.b16 %v6392
  %v6521 = vunpack.c.l.b16 %v6393
  %v6522 = vunpack.c.l.b16 %v6394
  %v6523 = vunpack.c.l.b16 %v6395
  %v6524 = vunpack.c.l.b16 %v6396
  %v6525 = vunpack.c.l.b16 %v6397
  %v6526 = vunpack.c.l.b16 %v6398
  %v6527 = vunpack.c.l.b16 %v6399
  %v6528 = vunpack.c.l.b16 %v6400
  %v6529 = vunpack.c.l.b16 %v6401
  %v6530 = vunpack.c.l.b16 %v6402
  %v6531 = vunpack.c.l.b16 %v6403
  %v6532 = vunpack.c.l.b16 %v6404
  %v6533 = vunpack.c.l.b16 %v6405
  %v6534 = vunpack.c.l.b16 %v6406
  %v6535 = vunpack.c.l.b16 %v6407
  %v6536 = vunpack.c.l.b16 %v6408
  %v6537 = vunpack.c.l.b16 %v6409
  %v6538 = vunpack.c.l.b16 %v6410
  %v6539 = vunpack.c.l.b16 %v6411
  %v6540 = vunpack.c.l.b16 %v6412
  %v6541 = vunpack.c.l.b16 %v6413
  %v6542 = vunpack.c.l.b16 %v6414
  %v6543 = vunpack.c.l.b16 %v6415
  %v6544 = vunpack.c.l.b16 %v6416
  %v6545 = vunpack.c.l.b16 %v6417
  %v6546 = vunpack.c.l.b16 %v6418
  %v6547 = vunpack.c.l.b16 %v6419
  %v6548 = vunpack.c.l.b16 %v6420
  %v6549 = vunpack.c.l.b16 %v6421
  %v6550 = vunpack.c.l.b16 %v6422
  %v6551 = vunpack.c.l.b16 %v6423
  %v6552 = vunpack.c.l.b16 %v6424
  %v6553 = vunpack.c.l.b16 %v6425
  %v6554 = vunpack.c.l.b16 %v6426
  %v6555 = vunpack.c.l.b16 %v6427
  %v6556 = vunpack.c.l.b16 %v6428
  %v6557 = vunpack.c.l.b16 %v6429
  %v6558 = vunpack.c.l.b16 %v6430
  %v6559 = vunpack.c.l.b16 %v6431
  %v6560 = vunpack.c.l.b16 %v6432
  %v6561 = vunpack.c.l.b16 %v6433
  %v6562 = vunpack.c.l.b16 %v6434
  %v6563 = vunpack.c.l.b16 %v6435
  %v6564 = vunpack.c.l.b16 %v6436
  %v6565 = vunpack.c.l.b16 %v6437
  %v6566 = vunpack.c.l.b16 %v6438
  %v6567 = vunpack.c.l.b16 %v6439
  %v6568 = vunpack.c.l.b16 %v6440
  %v6569 = vunpack.c.l.b16 %v6441
  %v6570 = vunpack.c.l.b16 %v6442
  %v6571 = vpack.c.b16 %v6508, %v6507
  %v6572 = vpack.c.b16 %v6510, %v6509
  %v6573 = vpack.c.b16 %v6512, %v6511
  %v6574 = vpack.c.b16 %v6514, %v6513
  %v6575 = vpack.c.b16 %v6516, %v6515
  %v6576 = vpack.c.b16 %v6518, %v6517
  %v6577 = vpack.c.b16 %v6520, %v6519
  %v6578 = vpack.c.b16 %v6522, %v6521
  %v6579 = vpack.c.b16 %v6524, %v6523
  %v6580 = vpack.c.b16 %v6526, %v6525
  %v6581 = vpack.c.b16 %v6528, %v6527
  %v6582 = vpack.c.b16 %v6530, %v6529
  %v6583 = vpack.c.b16 %v6532, %v6531
  %v6584 = vpack.c.b16 %v6534, %v6533
  %v6585 = vpack.c.b16 %v6536, %v6535
  %v6586 = vpack.c.b16 %v6538, %v6537
  %v6587 = vpack.c.b16 %v6540, %v6539
  %v6588 = vpack.c.b16 %v6542, %v6541
  %v6589 = vpack.c.b16 %v6544, %v6543
  %v6590 = vpack.c.b16 %v6546, %v6545
  %v6591 = vpack.c.b16 %v6548, %v6547
  %v6592 = vpack.c.b16 %v6550, %v6549
  %v6593 = vpack.c.b16 %v6552, %v6551
  %v6594 = vpack.c.b16 %v6554, %v6553
  %v6595 = vpack.c.b16 %v6556, %v6555
  %v6596 = vpack.c.b16 %v6558, %v6557
  %v6597 = vpack.c.b16 %v6560, %v6559
  %v6598 = vpack.c.b16 %v6562, %v6561
  %v6599 = vpack.c.b16 %v6564, %v6563
  %v6600 = vpack.c.b16 %v6566, %v6565
  %v6601 = vpack.c.b16 %v6568, %v6567
  %v6602 = vpack.c.b16 %v6570, %v6569
  %6635 = vmatpush.bf16.msra.mxu0 %v6578
  %6636 = vmatpush.bf16.msra.mxu0 %v6577
  %6637 = vmatpush.bf16.msra.mxu0 %v6576
  %6638 = vmatpush.bf16.msra.mxu0 %v6575
  %6639 = vmatpush.bf16.msra.mxu0 %v6574
  %6640 = vmatpush.bf16.msra.mxu0 %v6573
  %6641 = vmatpush.bf16.msra.mxu0 %v6572
  %6642 = vmatpush.bf16.msra.mxu0 %v6571
  %6643 = vmatmul.bf16.gmra.mxu0 %v6375
  %v6644 = vpop.f32.mrf.mxu0
  %v6645 = vadd.f32 0.0, %v6644
  %v6646 = vpop.f32.mrf.mxu0
  %6647 = vdwg.mxu0
  %6648 = vmatpush.bf16.msra.mxu0 %v6586
  %6649 = vmatpush.bf16.msra.mxu0 %v6585
  %6650 = vmatpush.bf16.msra.mxu0 %v6584
  %6651 = vmatpush.bf16.msra.mxu0 %v6583
  %6652 = vmatpush.bf16.msra.mxu0 %v6582
  %6653 = vmatpush.bf16.msra.mxu0 %v6581
  %6654 = vmatpush.bf16.msra.mxu0 %v6580
  %6655 = vmatpush.bf16.msra.mxu0 %v6579
  %6656 = vmatmul.bf16.gmra.mxu0 %v6376
  %v6657 = vpop.f32.mrf.mxu0
  %v6658 = vadd.f32 %v6645, %v6657
  %v6659 = vpop.f32.mrf.mxu0
  %6660 = vdwg.mxu0
  %6661 = vmatpush.bf16.msra.mxu0 %v6594
  %6662 = vmatpush.bf16.msra.mxu0 %v6593
  %6663 = vmatpush.bf16.msra.mxu0 %v6592
  %6664 = vmatpush.bf16.msra.mxu0 %v6591
  %6665 = vmatpush.bf16.msra.mxu0 %v6590
  %6666 = vmatpush.bf16.msra.mxu0 %v6589
  %6667 = vmatpush.bf16.msra.mxu0 %v6588
  %6668 = vmatpush.bf16.msra.mxu0 %v6587
  %6669 = vmatmul.bf16.gmra.mxu0 %v6377
  %v6670 = vpop.f32.mrf.mxu0
  %v6671 = vadd.f32 %v6658, %v6670
  %v6672 = vpop.f32.mrf.mxu0
  %6673 = vdwg.mxu0
  %6674 = vmatpush.bf16.msra.mxu0 %v6602
  %6675 = vmatpush.bf16.msra.mxu0 %v6601
  %6676 = vmatpush.bf16.msra.mxu0 %v6600
  %6677 = vmatpush.bf16.msra.mxu0 %v6599
  %6678 = vmatpush.bf16.msra.mxu0 %v6598
  %6679 = vmatpush.bf16.msra.mxu0 %v6597
  %6680 = vmatpush.bf16.msra.mxu0 %v6596
  %6681 = vmatpush.bf16.msra.mxu0 %v6595
  %6682 = vmatmul.bf16.gmra.mxu0 %v6378
  %v6683 = vpop.f32.mrf.mxu0
  %v6684 = vadd.f32 %v6671, %v6683
  %v6685 = vpop.f32.mrf.mxu0
  %6686 = vdwg.mxu0
  %6687 = vst [vmem:[%s6] sm:$0xff] %v6684
  // Predicated region
  $region26: #{discriminator_forward.7} parent=0 // pred_check
    _
  $region27: #{discriminator_forward.7} parent=0 // pred_check_branch
    %6689 = sbr.rel (0) target = $region29
  $region28: #{discriminator_forward.7} parent=0 // pred_region
    _
  $region29: #{discriminator_forward.7} parent=0 // pred_fallthru
    _
  // Predicated region
  $region30: #{discriminator_forward.7} parent=0 // pred_check
    _
  $region31: #{discriminator_forward.7} parent=0 // pred_check_branch
    %6691 = sbr.rel (0) target = $region33
  $region32: #{discriminator_forward.7} parent=0 // pred_region
    _
  $region33: #{discriminator_forward.7} parent=0 // pred_fallthru
    _

</llo_original>
